<compile_context>
chip_gen: v7x
topology: tpu7x:2x2x1
jax: 0.10.0
libtpu: 0.0.40
codegen_flags: <defaults>
</compile_context>

<pallas_src>
import jax
import jax.numpy as jnp
import numpy as np
from jax.experimental import pallas as pl
from jax.experimental.pallas import tpu as pltpu


def _cnhalf2_kernel(ii_ref, jj_ref, adj_ref, adj2_ref, x_ref,
                    xwc_ref, bc1_ref, wc2_ref, bc2_ref, wc3l_ref,
                    xwd_ref, bd1_ref, wd2_ref, bd2_ref, wd3l_ref,
                    w1_ref, b1_ref, w2l_ref,
                    bfuse_ref, wo_ref, bo_ref,
                    out_ref):
    te = ii_ref.shape[0]
    n = adj_ref.shape[0]
    cd = adj_ref.dtype            # compute dtype for MXU operands (bf16 or f32)
    f32 = jnp.float32
    one = jnp.ones((), cd)
    zero = jnp.zeros((), cd)

    # --- stacked [i; j] one-hot gather: each RHS pushed through the MXU once ---
    idx = jnp.concatenate([ii_ref[...], jj_ref[...]], axis=0)       # (2te, 1)
    lane = jax.lax.broadcasted_iota(jnp.int32, (2 * te, n), 1)
    oh = jnp.where(lane == idx, one, zero)                          # (2te, N)

    ga = jnp.dot(oh, adj_ref[...], preferred_element_type=f32)      # rows of 1-hop adj
    gb = jnp.dot(oh, adj2_ref[...], preferred_element_type=f32)     # rows of 2-hop pattern
    gx = jnp.dot(oh, x_ref[...], preferred_element_type=f32)        # node features

    ai, aj = ga[:te], ga[te:]
    bi, bj = gb[:te], gb[te:]
    xi, xj = gx[:te], gx[te:]

    # --- common-neighbor weights (exact {0,1,...} counts) ---
    cn0 = (ai * aj).astype(cd)                # 1-hop ∩ 1-hop
    cn1 = (ai * bj + bi * aj).astype(cd)      # 1∩2 + 2∩1

    # --- xcnlin with L1 folded into the aggregation: relu(cn0 @ (x@Wc1) + bc1) ---
    h = jnp.dot(cn0, xwc_ref[...], preferred_element_type=f32)
    h = jnp.maximum(h + bc1_ref[...], 0.0)
    h = jnp.dot(h.astype(cd), wc2_ref[...], preferred_element_type=f32)
    r0 = jnp.maximum(h + bc2_ref[...], 0.0)

    # --- xcn12lin, same structure ---
    h = jnp.dot(cn1, xwd_ref[...], preferred_element_type=f32)
    h = jnp.maximum(h + bd1_ref[...], 0.0)
    h = jnp.dot(h.astype(cd), wd2_ref[...], preferred_element_type=f32)
    r1 = jnp.maximum(h + bd2_ref[...], 0.0)

    # --- xijlin first layer (its tail Linear folded into lin[0]) ---
    h = jnp.dot((xi * xj).astype(cd), w1_ref[...], preferred_element_type=f32)
    r2 = jnp.maximum(h + b1_ref[...], 0.0)

    # --- fused lin[0]:  z @ Wl + bl == r0@wc3l + r1@wd3l + r2@w2l + bfuse ---
    z = jnp.dot(r0.astype(cd), wc3l_ref[...], preferred_element_type=f32)
    z = z + jnp.dot(r1.astype(cd), wd3l_ref[...], preferred_element_type=f32)
    z = z + jnp.dot(r2.astype(cd), w2l_ref[...], preferred_element_type=f32)
    h2 = jnp.maximum(z + bfuse_ref[...], 0.0)

    # --- lane-dense output (O padded to 128 in the wrapper) ---
    out = jnp.dot(h2.astype(cd), wo_ref[...], preferred_element_type=f32)
    out_ref[...] = (out + bo_ref[...]).astype(out_ref.dtype)


def cnhalf2_link_predictor(x, adj, tar_ei, params, *, edge_tile=512,
                           compute_dtype=jnp.bfloat16):
    """Forward pass of CNhalf2LinkPredictor (eval mode)."""
    N, C = x.shape
    H = params["xij_w1"].shape[1]
    O = params["wo"].shape[1]
    E = tar_ei.shape[1]
    cd = compute_dtype
    f32 = jnp.float32
    hp = jax.lax.Precision.HIGHEST

    # Graph-level preprocessing (matches `adj2 = adj @ adj`; downstream only the
    # sparsity pattern is used, so keep the binary indicator).
    adj1 = (adj != 0).astype(cd)
    adj2 = (jnp.dot(adj, adj, precision=hp) != 0).astype(cd)

    # Fold the first Linear of xcnlin / xcn12lin into the CN aggregation matmul:
    # relu((cn @ x) @ W1 + b1) == relu(cn @ (x @ W1) + b1).
    xw_c = jnp.dot(x, params["xcn_w1"], precision=hp)          # (N, H)
    xw_d = jnp.dot(x, params["xcn12_w1"], precision=hp)        # (N, H)

    # Fold the three tail Linears (no activation follows them) together with lin[0].
    beta = jnp.asarray(params["beta"], f32)
    wc3l = (beta * jnp.dot(params["xcn_w3"], params["lin_w1"], precision=hp)).astype(cd)
    wd3l = jnp.dot(params["xcn12_w3"], params["lin_w1"], precision=hp).astype(cd)
    w2l = jnp.dot(params["xij_w2"], params["lin_w1"], precision=hp).astype(cd)
    bfuse = (jnp.dot(beta * params["xcn_b3"] + params["xcn12_b3"] + params["xij_b2"],
                     params["lin_w1"], precision=hp) + params["lin_b1"]).astype(f32)

    # Lane-dense output: pad out_channels up to a multiple of 128.
    O_pad = -(-O // 128) * 128
    wo_pad = jnp.zeros((H, O_pad), f32).at[:, :O].set(params["wo"]).astype(cd)
    bo_pad = jnp.zeros((1, O_pad), f32).at[:, :O].set(params["bo"])

    # Pad the edge list to a whole number of tiles (no ragged-E assert).
    E_pad = -(-E // edge_tile) * edge_tile
    ii = jnp.zeros((E_pad, 1), jnp.int32).at[:E, 0].set(tar_ei[0])
    jj = jnp.zeros((E_pad, 1), jnp.int32).at[:E, 0].set(tar_ei[1])

    inputs = (
        ii, jj, adj1, adj2, x.astype(cd),
        xw_c.astype(cd), params["xcn_b1"].astype(f32),
        params["xcn_w2"].astype(cd), params["xcn_b2"].astype(f32), wc3l,
        xw_d.astype(cd), params["xcn12_b1"].astype(f32),
        params["xcn12_w2"].astype(cd), params["xcn12_b2"].astype(f32), wd3l,
        params["xij_w1"].astype(cd), params["xij_b1"].astype(f32), w2l,
        bfuse, wo_pad, bo_pad,
    )

    def edge_spec(d):
        return pl.BlockSpec((edge_tile, d), lambda t: (t, 0))

    def full_spec(a):
        nd = len(a.shape)
        return pl.BlockSpec(a.shape, lambda t: (0,) * nd)

    in_specs = [edge_spec(1), edge_spec(1)] + [full_spec(a) for a in inputs[2:]]

    # NOTE: on v7x (64 MiB VMEM) re-derive edge_tile if N grows; defaults are ample here.
    out = pl.pallas_call(
        _cnhalf2_kernel,
        out_shape=jax.ShapeDtypeStruct((E_pad, O_pad), f32),
        grid=(E_pad // edge_tile,),
        in_specs=in_specs,
        out_specs=edge_spec(O_pad),
        compiler_params=pltpu.CompilerParams(
            dimension_semantics=("parallel",)),
    )(*inputs)

    return out[:E, :O]


def cnhalf2_reference(x, adj, tar_ei, params):
    """Pure-JAX f32 reference matching the PyTorch forward (eval mode)."""
    hp = jax.lax.Precision.HIGHEST
    a = (adj != 0).astype(jnp.float32)
    b = (jnp.dot(adj, adj, precision=hp) != 0).astype(jnp.float32)
    ai, aj = a[tar_ei[0]], a[tar_ei[1]]
    bi, bj = b[tar_ei[0]], b[tar_ei[1]]
    xi, xj = x[tar_ei[0]], x[tar_ei[1]]

    xcn0 = jnp.dot(ai * aj, x, precision=hp)
    xcn1 = jnp.dot(ai * bj, x, precision=hp) + jnp.dot(bi * aj, x, precision=hp)

    def mlp3(v, w1, b1, w2, b2, w3, b3):
        h = jax.nn.relu(jnp.dot(v, w1, precision=hp) + b1)
        h = jax.nn.relu(jnp.dot(h, w2, precision=hp) + b2)
        return jnp.dot(h, w3, precision=hp) + b3

    u0 = mlp3(xcn0, params["xcn_w1"], params["xcn_b1"], params["xcn_w2"],
              params["xcn_b2"], params["xcn_w3"], params["xcn_b3"])
    u1 = mlp3(xcn1, params["xcn12_w1"], params["xcn12_b1"], params["xcn12_w2"],
              params["xcn12_b2"], params["xcn12_w3"], params["xcn12_b3"])
    h = jax.nn.relu(jnp.dot(xi * xj, params["xij_w1"], precision=hp) + params["xij_b1"])
    xij = jnp.dot(h, params["xij_w2"], precision=hp) + params["xij_b2"]

    z = params["beta"] * u0 + u1 + xij
    h2 = jax.nn.relu(jnp.dot(z, params["lin_w1"], precision=hp) + params["lin_b1"])
    return jnp.dot(h2, params["wo"], precision=hp) + params["bo"]


def make_params(key, in_channels, hidden, out_channels, *, beta=0.75):
    ks = jax.random.split(key, 20)
    s = 0.1

    def w(k, shape):
        return s * jax.random.normal(k, shape, jnp.float32)

    return {
        "beta": jnp.asarray(beta, jnp.float32),
        # xijlin: Linear(C,H) -> ReLU -> Linear(H,H)
        "xij_w1": w(ks[0], (in_channels, hidden)), "xij_b1": w(ks[1], (1, hidden)),
        "xij_w2": w(ks[2], (hidden, hidden)), "xij_b2": w(ks[3], (1, hidden)),
        # xcnlin: Linear(C,H) -> ReLU -> Linear(H,H) -> ReLU -> Linear(H,H)
        "xcn_w1": w(ks[4], (in_channels, hidden)), "xcn_b1": w(ks[5], (1, hidden)),
        "xcn_w2": w(ks[6], (hidden, hidden)), "xcn_b2": w(ks[7], (1, hidden)),
        "xcn_w3": w(ks[8], (hidden, hidden)), "xcn_b3": w(ks[9], (1, hidden)),
        # xcn12lin: same structure
        "xcn12_w1": w(ks[10], (in_channels, hidden)), "xcn12_b1": w(ks[11], (1, hidden)),
        "xcn12_w2": w(ks[12], (hidden, hidden)), "xcn12_b2": w(ks[13], (1, hidden)),
        "xcn12_w3": w(ks[14], (hidden, hidden)), "xcn12_b3": w(ks[15], (1, hidden)),
        # lin: Linear(H,H) -> ReLU -> Linear(H,O)
        "lin_w1": w(ks[16], (hidden, hidden)), "lin_b1": w(ks[17], (1, hidden)),
        "wo": w(ks[18], (hidden, out_channels)), "bo": w(ks[19], (1, out_channels)),
    }


if __name__ == "__main__":
    key = jax.random.PRNGKey(0)
    k_x, k_adj, k_ei, k_p = jax.random.split(key, 4)

    N = 128      # number of nodes
    C = 32       # in_channels
    H = 32       # hidden_channels
    O = 8        # out_channels
    E = 1000     # number of target edges (ragged: padded to 2 tiles of 512)
    EDGE_TILE = 512

    x = jax.random.normal(k_x, (N, C), jnp.float32)
    adj = jax.random.bernoulli(k_adj, 0.1, (N, N)).astype(jnp.float32)  # dense {0,1} adjacency
    tar_ei = jax.random.randint(k_ei, (2, E), 0, N, jnp.int32)
    params = make_params(k_p, C, H, O)

    ref = cnhalf2_reference(x, adj, tar_ei, params)

    # Exact-semantics check: f32 compute path, tight tolerance.
    out_f32 = jax.block_until_ready(
        cnhalf2_link_predictor(x, adj, tar_ei, params,
                               edge_tile=EDGE_TILE, compute_dtype=jnp.float32))
    np.testing.assert_allclose(np.asarray(out_f32), np.asarray(ref), rtol=5e-4, atol=5e-4)

    # Fast path: bf16 MXU operands, f32 accumulation.
    out_bf16 = jax.block_until_ready(
        cnhalf2_link_predictor(x, adj, tar_ei, params,
                               edge_tile=EDGE_TILE, compute_dtype=jnp.bfloat16))
    np.testing.assert_allclose(np.asarray(out_bf16), np.asarray(ref), rtol=1e-1, atol=1e-1)

    print("KERNEL_OK")
</pallas_src>

<mosaic_0001>
module attributes {stable_mosaic.version = 11 : i64} {
  func.func @_cnhalf2_kernel(%arg0: i32, %arg1: memref<512x1xi32, #tpu.memory_space<vmem>>, %arg2: memref<512x1xi32, #tpu.memory_space<vmem>>, %arg3: memref<128x128xf32, #tpu.memory_space<vmem>>, %arg4: memref<128x128xf32, #tpu.memory_space<vmem>>, %arg5: memref<128x32xf32, #tpu.memory_space<vmem>>, %arg6: memref<128x32xf32, #tpu.memory_space<vmem>>, %arg7: memref<1x32xf32, #tpu.memory_space<vmem>>, %arg8: memref<32x32xf32, #tpu.memory_space<vmem>>, %arg9: memref<1x32xf32, #tpu.memory_space<vmem>>, %arg10: memref<32x32xf32, #tpu.memory_space<vmem>>, %arg11: memref<128x32xf32, #tpu.memory_space<vmem>>, %arg12: memref<1x32xf32, #tpu.memory_space<vmem>>, %arg13: memref<32x32xf32, #tpu.memory_space<vmem>>, %arg14: memref<1x32xf32, #tpu.memory_space<vmem>>, %arg15: memref<32x32xf32, #tpu.memory_space<vmem>>, %arg16: memref<32x32xf32, #tpu.memory_space<vmem>>, %arg17: memref<1x32xf32, #tpu.memory_space<vmem>>, %arg18: memref<32x32xf32, #tpu.memory_space<vmem>>, %arg19: memref<1x32xf32, #tpu.memory_space<vmem>>, %arg20: memref<32x128xf32, #tpu.memory_space<vmem>>, %arg21: memref<1x128xf32, #tpu.memory_space<vmem>>, %arg22: memref<512x128xf32, #tpu.memory_space<vmem>>) attributes {dimension_semantics = [#tpu.dimension_semantics<parallel>], iteration_bounds = array<i64: 2>, scalar_prefetch = 0 : i64, scratch_operands = 0 : i64, tpu.core_type = #tpu.core_type<tc>, window_params = [{transform_indices = @transform_0, window_bounds = array<i64: 512, 1>}, {transform_indices = @transform_1, window_bounds = array<i64: 512, 1>}, {pipeline_mode = #tpu.pipeline_mode<synchronous>, transform_indices = @transform_2, window_bounds = array<i64: 128, 128>}, {pipeline_mode = #tpu.pipeline_mode<synchronous>, transform_indices = @transform_3, window_bounds = array<i64: 128, 128>}, {pipeline_mode = #tpu.pipeline_mode<synchronous>, transform_indices = @transform_4, window_bounds = array<i64: 128, 32>}, {pipeline_mode = #tpu.pipeline_mode<synchronous>, transform_indices = @transform_5, window_bounds = array<i64: 128, 32>}, {pipeline_mode = #tpu.pipeline_mode<synchronous>, transform_indices = @transform_6, window_bounds = array<i64: 1, 32>}, {pipeline_mode = #tpu.pipeline_mode<synchronous>, transform_indices = @transform_7, window_bounds = array<i64: 32, 32>}, {pipeline_mode = #tpu.pipeline_mode<synchronous>, transform_indices = @transform_8, window_bounds = array<i64: 1, 32>}, {pipeline_mode = #tpu.pipeline_mode<synchronous>, transform_indices = @transform_9, window_bounds = array<i64: 32, 32>}, {pipeline_mode = #tpu.pipeline_mode<synchronous>, transform_indices = @transform_10, window_bounds = array<i64: 128, 32>}, {pipeline_mode = #tpu.pipeline_mode<synchronous>, transform_indices = @transform_11, window_bounds = array<i64: 1, 32>}, {pipeline_mode = #tpu.pipeline_mode<synchronous>, transform_indices = @transform_12, window_bounds = array<i64: 32, 32>}, {pipeline_mode = #tpu.pipeline_mode<synchronous>, transform_indices = @transform_13, window_bounds = array<i64: 1, 32>}, {pipeline_mode = #tpu.pipeline_mode<synchronous>, transform_indices = @transform_14, window_bounds = array<i64: 32, 32>}, {pipeline_mode = #tpu.pipeline_mode<synchronous>, transform_indices = @transform_15, window_bounds = array<i64: 32, 32>}, {pipeline_mode = #tpu.pipeline_mode<synchronous>, transform_indices = @transform_16, window_bounds = array<i64: 1, 32>}, {pipeline_mode = #tpu.pipeline_mode<synchronous>, transform_indices = @transform_17, window_bounds = array<i64: 32, 32>}, {pipeline_mode = #tpu.pipeline_mode<synchronous>, transform_indices = @transform_18, window_bounds = array<i64: 1, 32>}, {pipeline_mode = #tpu.pipeline_mode<synchronous>, transform_indices = @transform_19, window_bounds = array<i64: 32, 128>}, {pipeline_mode = #tpu.pipeline_mode<synchronous>, transform_indices = @transform_20, window_bounds = array<i64: 1, 128>}, {transform_indices = @transform_21, window_bounds = array<i64: 512, 128>}]} {
    %c0 = arith.constant 0 : index
    %c0_0 = arith.constant 0 : index
    %0 = vector.load %arg1[%c0, %c0_0] : memref<512x1xi32, #tpu.memory_space<vmem>>, vector<512x1xi32>
    %c0_1 = arith.constant 0 : index
    %c0_2 = arith.constant 0 : index
    %1 = vector.load %arg2[%c0_1, %c0_2] : memref<512x1xi32, #tpu.memory_space<vmem>>, vector<512x1xi32>
    %2 = tpu.concatenate %0, %1 in 0 : vector<512x1xi32>, vector<512x1xi32> -> vector<1024x1xi32>
    %3 = tpu.iota {dimensions = array<i32: 1>} : vector<1024x128xi32>
    %4 = vector.broadcast %2 : vector<1024x1xi32> to vector<1024x128xi32>
    %5 = arith.cmpi eq, %3, %4 : vector<1024x128xi32>
    %cst = arith.constant 1.000000e+00 : f32
    %cst_3 = arith.constant 0.000000e+00 : f32
    %6 = vector.broadcast %cst : f32 to vector<1024x128xf32>
    %7 = vector.broadcast %cst_3 : f32 to vector<1024x128xf32>
    %8 = arith.select %5, %6, %7 : vector<1024x128xi1>, vector<1024x128xf32>
    %c0_4 = arith.constant 0 : index
    %c0_5 = arith.constant 0 : index
    %9 = vector.load %arg3[%c0_4, %c0_5] : memref<128x128xf32, #tpu.memory_space<vmem>>, vector<128x128xf32>
    %cst_6 = arith.constant dense<0.000000e+00> : vector<1024x128xf32>
    %10 = tpu.matmul %8, %9, %cst_6 {dimension_numbers = #tpu.dot_dimension_numbers<[1], [0], [0], [1], [0, 0, 1, 1], [], []>} : vector<1024x128xf32>, vector<128x128xf32>, vector<1024x128xf32> -> vector<1024x128xf32>
    %c0_7 = arith.constant 0 : index
    %c0_8 = arith.constant 0 : index
    %11 = vector.load %arg4[%c0_7, %c0_8] : memref<128x128xf32, #tpu.memory_space<vmem>>, vector<128x128xf32>
    %cst_9 = arith.constant dense<0.000000e+00> : vector<1024x128xf32>
    %12 = tpu.matmul %8, %11, %cst_9 {dimension_numbers = #tpu.dot_dimension_numbers<[1], [0], [0], [1], [0, 0, 1, 1], [], []>} : vector<1024x128xf32>, vector<128x128xf32>, vector<1024x128xf32> -> vector<1024x128xf32>
    %c0_10 = arith.constant 0 : index
    %c0_11 = arith.constant 0 : index
    %13 = vector.load %arg5[%c0_10, %c0_11] : memref<128x32xf32, #tpu.memory_space<vmem>>, vector<128x32xf32>
    %cst_12 = arith.constant dense<0.000000e+00> : vector<1024x32xf32>
    %14 = tpu.matmul %8, %13, %cst_12 {dimension_numbers = #tpu.dot_dimension_numbers<[1], [0], [0], [1], [0, 0, 1, 1], [], []>} : vector<1024x128xf32>, vector<128x32xf32>, vector<1024x32xf32> -> vector<1024x32xf32>
    %15 = vector.extract_strided_slice %10 {offsets = [0, 0], sizes = [512, 128], strides = [1, 1]} : vector<1024x128xf32> to vector<512x128xf32>
    %16 = vector.extract_strided_slice %10 {offsets = [512, 0], sizes = [512, 128], strides = [1, 1]} : vector<1024x128xf32> to vector<512x128xf32>
    %17 = vector.extract_strided_slice %12 {offsets = [0, 0], sizes = [512, 128], strides = [1, 1]} : vector<1024x128xf32> to vector<512x128xf32>
    %18 = vector.extract_strided_slice %12 {offsets = [512, 0], sizes = [512, 128], strides = [1, 1]} : vector<1024x128xf32> to vector<512x128xf32>
    %19 = vector.extract_strided_slice %14 {offsets = [0, 0], sizes = [512, 32], strides = [1, 1]} : vector<1024x32xf32> to vector<512x32xf32>
    %20 = vector.extract_strided_slice %14 {offsets = [512, 0], sizes = [512, 32], strides = [1, 1]} : vector<1024x32xf32> to vector<512x32xf32>
    %21 = arith.mulf %15, %16 : vector<512x128xf32>
    %22 = arith.mulf %15, %18 : vector<512x128xf32>
    %23 = arith.mulf %17, %16 : vector<512x128xf32>
    %24 = arith.addf %22, %23 : vector<512x128xf32>
    %c0_13 = arith.constant 0 : index
    %c0_14 = arith.constant 0 : index
    %25 = vector.load %arg6[%c0_13, %c0_14] : memref<128x32xf32, #tpu.memory_space<vmem>>, vector<128x32xf32>
    %cst_15 = arith.constant dense<0.000000e+00> : vector<512x32xf32>
    %26 = tpu.matmul %21, %25, %cst_15 {dimension_numbers = #tpu.dot_dimension_numbers<[1], [0], [0], [1], [0, 0, 1, 1], [], []>} : vector<512x128xf32>, vector<128x32xf32>, vector<512x32xf32> -> vector<512x32xf32>
    %c0_16 = arith.constant 0 : index
    %c0_17 = arith.constant 0 : index
    %27 = vector.load %arg7[%c0_16, %c0_17] : memref<1x32xf32, #tpu.memory_space<vmem>>, vector<1x32xf32>
    %28 = vector.broadcast %27 : vector<1x32xf32> to vector<512x32xf32>
    %29 = arith.addf %26, %28 : vector<512x32xf32>
    %cst_18 = arith.constant 0.000000e+00 : f32
    %30 = vector.broadcast %cst_18 : f32 to vector<512x32xf32>
    %31 = arith.maximumf %29, %30 : vector<512x32xf32>
    %c0_19 = arith.constant 0 : index
    %c0_20 = arith.constant 0 : index
    %32 = vector.load %arg8[%c0_19, %c0_20] : memref<32x32xf32, #tpu.memory_space<vmem>>, vector<32x32xf32>
    %cst_21 = arith.constant dense<0.000000e+00> : vector<512x32xf32>
    %33 = tpu.matmul %31, %32, %cst_21 {dimension_numbers = #tpu.dot_dimension_numbers<[1], [0], [0], [1], [0, 0, 1, 1], [], []>} : vector<512x32xf32>, vector<32x32xf32>, vector<512x32xf32> -> vector<512x32xf32>
    %c0_22 = arith.constant 0 : index
    %c0_23 = arith.constant 0 : index
    %34 = vector.load %arg9[%c0_22, %c0_23] : memref<1x32xf32, #tpu.memory_space<vmem>>, vector<1x32xf32>
    %35 = vector.broadcast %34 : vector<1x32xf32> to vector<512x32xf32>
    %36 = arith.addf %33, %35 : vector<512x32xf32>
    %cst_24 = arith.constant 0.000000e+00 : f32
    %37 = vector.broadcast %cst_24 : f32 to vector<512x32xf32>
    %38 = arith.maximumf %36, %37 : vector<512x32xf32>
    %c0_25 = arith.constant 0 : index
    %c0_26 = arith.constant 0 : index
    %39 = vector.load %arg11[%c0_25, %c0_26] : memref<128x32xf32, #tpu.memory_space<vmem>>, vector<128x32xf32>
    %cst_27 = arith.constant dense<0.000000e+00> : vector<512x32xf32>
    %40 = tpu.matmul %24, %39, %cst_27 {dimension_numbers = #tpu.dot_dimension_numbers<[1], [0], [0], [1], [0, 0, 1, 1], [], []>} : vector<512x128xf32>, vector<128x32xf32>, vector<512x32xf32> -> vector<512x32xf32>
    %c0_28 = arith.constant 0 : index
    %c0_29 = arith.constant 0 : index
    %41 = vector.load %arg12[%c0_28, %c0_29] : memref<1x32xf32, #tpu.memory_space<vmem>>, vector<1x32xf32>
    %42 = vector.broadcast %41 : vector<1x32xf32> to vector<512x32xf32>
    %43 = arith.addf %40, %42 : vector<512x32xf32>
    %cst_30 = arith.constant 0.000000e+00 : f32
    %44 = vector.broadcast %cst_30 : f32 to vector<512x32xf32>
    %45 = arith.maximumf %43, %44 : vector<512x32xf32>
    %c0_31 = arith.constant 0 : index
    %c0_32 = arith.constant 0 : index
    %46 = vector.load %arg13[%c0_31, %c0_32] : memref<32x32xf32, #tpu.memory_space<vmem>>, vector<32x32xf32>
    %cst_33 = arith.constant dense<0.000000e+00> : vector<512x32xf32>
    %47 = tpu.matmul %45, %46, %cst_33 {dimension_numbers = #tpu.dot_dimension_numbers<[1], [0], [0], [1], [0, 0, 1, 1], [], []>} : vector<512x32xf32>, vector<32x32xf32>, vector<512x32xf32> -> vector<512x32xf32>
    %c0_34 = arith.constant 0 : index
    %c0_35 = arith.constant 0 : index
    %48 = vector.load %arg14[%c0_34, %c0_35] : memref<1x32xf32, #tpu.memory_space<vmem>>, vector<1x32xf32>
    %49 = vector.broadcast %48 : vector<1x32xf32> to vector<512x32xf32>
    %50 = arith.addf %47, %49 : vector<512x32xf32>
    %cst_36 = arith.constant 0.000000e+00 : f32
    %51 = vector.broadcast %cst_36 : f32 to vector<512x32xf32>
    %52 = arith.maximumf %50, %51 : vector<512x32xf32>
    %53 = arith.mulf %19, %20 : vector<512x32xf32>
    %c0_37 = arith.constant 0 : index
    %c0_38 = arith.constant 0 : index
    %54 = vector.load %arg16[%c0_37, %c0_38] : memref<32x32xf32, #tpu.memory_space<vmem>>, vector<32x32xf32>
    %cst_39 = arith.constant dense<0.000000e+00> : vector<512x32xf32>
    %55 = tpu.matmul %53, %54, %cst_39 {dimension_numbers = #tpu.dot_dimension_numbers<[1], [0], [0], [1], [0, 0, 1, 1], [], []>} : vector<512x32xf32>, vector<32x32xf32>, vector<512x32xf32> -> vector<512x32xf32>
    %c0_40 = arith.constant 0 : index
    %c0_41 = arith.constant 0 : index
    %56 = vector.load %arg17[%c0_40, %c0_41] : memref<1x32xf32, #tpu.memory_space<vmem>>, vector<1x32xf32>
    %57 = vector.broadcast %56 : vector<1x32xf32> to vector<512x32xf32>
    %58 = arith.addf %55, %57 : vector<512x32xf32>
    %cst_42 = arith.constant 0.000000e+00 : f32
    %59 = vector.broadcast %cst_42 : f32 to vector<512x32xf32>
    %60 = arith.maximumf %58, %59 : vector<512x32xf32>
    %c0_43 = arith.constant 0 : index
    %c0_44 = arith.constant 0 : index
    %61 = vector.load %arg10[%c0_43, %c0_44] : memref<32x32xf32, #tpu.memory_space<vmem>>, vector<32x32xf32>
    %cst_45 = arith.constant dense<0.000000e+00> : vector<512x32xf32>
    %62 = tpu.matmul %38, %61, %cst_45 {dimension_numbers = #tpu.dot_dimension_numbers<[1], [0], [0], [1], [0, 0, 1, 1], [], []>} : vector<512x32xf32>, vector<32x32xf32>, vector<512x32xf32> -> vector<512x32xf32>
    %c0_46 = arith.constant 0 : index
    %c0_47 = arith.constant 0 : index
    %63 = vector.load %arg15[%c0_46, %c0_47] : memref<32x32xf32, #tpu.memory_space<vmem>>, vector<32x32xf32>
    %cst_48 = arith.constant dense<0.000000e+00> : vector<512x32xf32>
    %64 = tpu.matmul %52, %63, %cst_48 {dimension_numbers = #tpu.dot_dimension_numbers<[1], [0], [0], [1], [0, 0, 1, 1], [], []>} : vector<512x32xf32>, vector<32x32xf32>, vector<512x32xf32> -> vector<512x32xf32>
    %65 = arith.addf %62, %64 : vector<512x32xf32>
    %c0_49 = arith.constant 0 : index
    %c0_50 = arith.constant 0 : index
    %66 = vector.load %arg18[%c0_49, %c0_50] : memref<32x32xf32, #tpu.memory_space<vmem>>, vector<32x32xf32>
    %cst_51 = arith.constant dense<0.000000e+00> : vector<512x32xf32>
    %67 = tpu.matmul %60, %66, %cst_51 {dimension_numbers = #tpu.dot_dimension_numbers<[1], [0], [0], [1], [0, 0, 1, 1], [], []>} : vector<512x32xf32>, vector<32x32xf32>, vector<512x32xf32> -> vector<512x32xf32>
    %68 = arith.addf %65, %67 : vector<512x32xf32>
    %c0_52 = arith.constant 0 : index
    %c0_53 = arith.constant 0 : index
    %69 = vector.load %arg19[%c0_52, %c0_53] : memref<1x32xf32, #tpu.memory_space<vmem>>, vector<1x32xf32>
    %70 = vector.broadcast %69 : vector<1x32xf32> to vector<512x32xf32>
    %71 = arith.addf %68, %70 : vector<512x32xf32>
    %cst_54 = arith.constant 0.000000e+00 : f32
    %72 = vector.broadcast %cst_54 : f32 to vector<512x32xf32>
    %73 = arith.maximumf %71, %72 : vector<512x32xf32>
    %c0_55 = arith.constant 0 : index
    %c0_56 = arith.constant 0 : index
    %74 = vector.load %arg20[%c0_55, %c0_56] : memref<32x128xf32, #tpu.memory_space<vmem>>, vector<32x128xf32>
    %cst_57 = arith.constant dense<0.000000e+00> : vector<512x128xf32>
    %75 = tpu.matmul %73, %74, %cst_57 {dimension_numbers = #tpu.dot_dimension_numbers<[1], [0], [0], [1], [0, 0, 1, 1], [], []>} : vector<512x32xf32>, vector<32x128xf32>, vector<512x128xf32> -> vector<512x128xf32>
    %c0_58 = arith.constant 0 : index
    %c0_59 = arith.constant 0 : index
    %76 = vector.load %arg21[%c0_58, %c0_59] : memref<1x128xf32, #tpu.memory_space<vmem>>, vector<1x128xf32>
    %77 = vector.broadcast %76 : vector<1x128xf32> to vector<512x128xf32>
    %78 = arith.addf %75, %77 : vector<512x128xf32>
    %c0_60 = arith.constant 0 : index
    %c0_61 = arith.constant 0 : index
    %79 = vector.load %arg22[%c0_60, %c0_61] : memref<512x128xf32, #tpu.memory_space<vmem>>, vector<512x128xf32>
    tpu.vector_store %arg22[%c0_60, %c0_61], %78 {strides = array<i32>} : memref<512x128xf32, #tpu.memory_space<vmem>>, vector<512x128xf32>,
    return
  }
  func.func @transform_0(%arg0: i32) -> (i32, i32) {
    %c0_i32 = arith.constant 0 : i32
    %c0_i32_0 = arith.constant 0 : i32
    return %arg0, %c0_i32 : i32, i32
  }
  func.func @transform_1(%arg0: i32) -> (i32, i32) {
    %c0_i32 = arith.constant 0 : i32
    %c0_i32_0 = arith.constant 0 : i32
    return %arg0, %c0_i32 : i32, i32
  }
  func.func @transform_2(%arg0: i32) -> (i32, i32) {
    %c0_i32 = arith.constant 0 : i32
    %c0_i32_0 = arith.constant 0 : i32
    %c0_i32_1 = arith.constant 0 : i32
    return %c0_i32, %c0_i32_0 : i32, i32
  }
  func.func @transform_3(%arg0: i32) -> (i32, i32) {
    %c0_i32 = arith.constant 0 : i32
    %c0_i32_0 = arith.constant 0 : i32
    %c0_i32_1 = arith.constant 0 : i32
    return %c0_i32, %c0_i32_0 : i32, i32
  }
  func.func @transform_4(%arg0: i32) -> (i32, i32) {
    %c0_i32 = arith.constant 0 : i32
    %c0_i32_0 = arith.constant 0 : i32
    %c0_i32_1 = arith.constant 0 : i32
    return %c0_i32, %c0_i32_0 : i32, i32
  }
  func.func @transform_5(%arg0: i32) -> (i32, i32) {
    %c0_i32 = arith.constant 0 : i32
    %c0_i32_0 = arith.constant 0 : i32
    %c0_i32_1 = arith.constant 0 : i32
    return %c0_i32, %c0_i32_0 : i32, i32
  }
  func.func @transform_6(%arg0: i32) -> (i32, i32) {
    %c0_i32 = arith.constant 0 : i32
    %c0_i32_0 = arith.constant 0 : i32
    %c0_i32_1 = arith.constant 0 : i32
    return %c0_i32, %c0_i32_0 : i32, i32
  }
  func.func @transform_7(%arg0: i32) -> (i32, i32) {
    %c0_i32 = arith.constant 0 : i32
    %c0_i32_0 = arith.constant 0 : i32
    %c0_i32_1 = arith.constant 0 : i32
    return %c0_i32, %c0_i32_0 : i32, i32
  }
  func.func @transform_8(%arg0: i32) -> (i32, i32) {
    %c0_i32 = arith.constant 0 : i32
    %c0_i32_0 = arith.constant 0 : i32
    %c0_i32_1 = arith.constant 0 : i32
    return %c0_i32, %c0_i32_0 : i32, i32
  }
  func.func @transform_9(%arg0: i32) -> (i32, i32) {
    %c0_i32 = arith.constant 0 : i32
    %c0_i32_0 = arith.constant 0 : i32
    %c0_i32_1 = arith.constant 0 : i32
    return %c0_i32, %c0_i32_0 : i32, i32
  }
  func.func @transform_10(%arg0: i32) -> (i32, i32) {
    %c0_i32 = arith.constant 0 : i32
    %c0_i32_0 = arith.constant 0 : i32
    %c0_i32_1 = arith.constant 0 : i32
    return %c0_i32, %c0_i32_0 : i32, i32
  }
  func.func @transform_11(%arg0: i32) -> (i32, i32) {
    %c0_i32 = arith.constant 0 : i32
    %c0_i32_0 = arith.constant 0 : i32
    %c0_i32_1 = arith.constant 0 : i32
    return %c0_i32, %c0_i32_0 : i32, i32
  }
  func.func @transform_12(%arg0: i32) -> (i32, i32) {
    %c0_i32 = arith.constant 0 : i32
    %c0_i32_0 = arith.constant 0 : i32
    %c0_i32_1 = arith.constant 0 : i32
    return %c0_i32, %c0_i32_0 : i32, i32
  }
  func.func @transform_13(%arg0: i32) -> (i32, i32) {
    %c0_i32 = arith.constant 0 : i32
    %c0_i32_0 = arith.constant 0 : i32
    %c0_i32_1 = arith.constant 0 : i32
    return %c0_i32, %c0_i32_0 : i32, i32
  }
  func.func @transform_14(%arg0: i32) -> (i32, i32) {
    %c0_i32 = arith.constant 0 : i32
    %c0_i32_0 = arith.constant 0 : i32
    %c0_i32_1 = arith.constant 0 : i32
    return %c0_i32, %c0_i32_0 : i32, i32
  }
  func.func @transform_15(%arg0: i32) -> (i32, i32) {
    %c0_i32 = arith.constant 0 : i32
    %c0_i32_0 = arith.constant 0 : i32
    %c0_i32_1 = arith.constant 0 : i32
    return %c0_i32, %c0_i32_0 : i32, i32
  }
  func.func @transform_16(%arg0: i32) -> (i32, i32) {
    %c0_i32 = arith.constant 0 : i32
    %c0_i32_0 = arith.constant 0 : i32
    %c0_i32_1 = arith.constant 0 : i32
    return %c0_i32, %c0_i32_0 : i32, i32
  }
  func.func @transform_17(%arg0: i32) -> (i32, i32) {
    %c0_i32 = arith.constant 0 : i32
    %c0_i32_0 = arith.constant 0 : i32
    %c0_i32_1 = arith.constant 0 : i32
    return %c0_i32, %c0_i32_0 : i32, i32
  }
  func.func @transform_18(%arg0: i32) -> (i32, i32) {
    %c0_i32 = arith.constant 0 : i32
    %c0_i32_0 = arith.constant 0 : i32
    %c0_i32_1 = arith.constant 0 : i32
    return %c0_i32, %c0_i32_0 : i32, i32
  }
  func.func @transform_19(%arg0: i32) -> (i32, i32) {
    %c0_i32 = arith.constant 0 : i32
    %c0_i32_0 = arith.constant 0 : i32
    %c0_i32_1 = arith.constant 0 : i32
    return %c0_i32, %c0_i32_0 : i32, i32
  }
  func.func @transform_20(%arg0: i32) -> (i32, i32) {
    %c0_i32 = arith.constant 0 : i32
    %c0_i32_0 = arith.constant 0 : i32
    %c0_i32_1 = arith.constant 0 : i32
    return %c0_i32, %c0_i32_0 : i32, i32
  }
  func.func @transform_21(%arg0: i32) -> (i32, i32) {
    %c0_i32 = arith.constant 0 : i32
    %c0_i32_0 = arith.constant 0 : i32
    return %arg0, %c0_i32 : i32, i32
  }
}

</mosaic_0001>

<llo_original>
// kernel: tpu_custom_call.1
$region0: #{tpu_custom_call.1}
  #allocation0 [shape = 'u32[]', space=smem, size = 0x4, offset = 0x4, fixed_abs, tag = 'smem constant byte address 0x4 - core index']
  #allocation1 [shape = 'u32[144,128]{1,0:T(1,128)}', space=vmem, size = 0x12000, scoped, tag = 'internal scratch']
  %s0 = inlined_call_operand.vmem [shape: s32[1024,1], index: 0, kind: input, shape index: {}]
  %s1 = inlined_call_operand.vmem [shape: s32[1024,1], index: 1, kind: input, shape index: {}]
  %s2 = inlined_call_operand.vmem [shape: f32[128,128], index: 2, kind: input, shape index: {}]
  %s3 = inlined_call_operand.vmem [shape: f32[128,128], index: 3, kind: input, shape index: {}]
  %s4 = inlined_call_operand.vmem [shape: f32[128,32], index: 4, kind: input, shape index: {}]
  %s5 = inlined_call_operand.vmem [shape: f32[128,32], index: 5, kind: input, shape index: {}]
  %s6 = inlined_call_operand.vmem [shape: f32[1,32], index: 6, kind: input, shape index: {}]
  %s7 = inlined_call_operand.vmem [shape: f32[32,32], index: 7, kind: input, shape index: {}]
  %s8 = inlined_call_operand.vmem [shape: f32[1,32], index: 8, kind: input, shape index: {}]
  %s9 = inlined_call_operand.vmem [shape: f32[32,32], index: 9, kind: input, shape index: {}]
  %s10 = inlined_call_operand.vmem [shape: f32[128,32], index: 10, kind: input, shape index: {}]
  %s11 = inlined_call_operand.vmem [shape: f32[1,32], index: 11, kind: input, shape index: {}]
  %s12 = inlined_call_operand.vmem [shape: f32[32,32], index: 12, kind: input, shape index: {}]
  %s13 = inlined_call_operand.vmem [shape: f32[1,32], index: 13, kind: input, shape index: {}]
  %s14 = inlined_call_operand.vmem [shape: f32[32,32], index: 14, kind: input, shape index: {}]
  %s15 = inlined_call_operand.vmem [shape: f32[32,32], index: 15, kind: input, shape index: {}]
  %s16 = inlined_call_operand.vmem [shape: f32[1,32], index: 16, kind: input, shape index: {}]
  %s17 = inlined_call_operand.vmem [shape: f32[32,32], index: 17, kind: input, shape index: {}]
  %s18 = inlined_call_operand.vmem [shape: f32[1,32], index: 18, kind: input, shape index: {}]
  %s19 = inlined_call_operand.vmem [shape: f32[32,128], index: 19, kind: input, shape index: {}]
  %s20 = inlined_call_operand.vmem [shape: f32[1,128], index: 20, kind: input, shape index: {}]
  %s21 = inlined_call_operand.hbm [shape: f32[1024,128], index: 21, kind: output, shape index: {}]
  %s22 = sld [smem:[#allocation0]]
  $region117: #{tpu_custom_call.1} parent=0
    _
  %s24 = ssub.s32 1, %s22
  %s25 = scalar_select 0, %s24, %s22
  $region1: #{tpu_custom_call.1} parent=0
    #allocation2 [shape = 'u8[524288]{0}', space=vmem, size = 0x80000, scoped, tag = 'output window, operand 0']
    #allocation3 [shape = 's32[2]{0}', space=sflag, size = 0x8, scoped, tag = 'scoped memory for tpu_custom_call.1']
    %26 = vsyncpa [#allocation3], 0
    %s27 = scalar_lea.sflag [#allocation3], 1
    %28 = vsyncpa %s27, 0
    loop: start=0, step=1, limit=4
    $region2: #{tpu_custom_call.1} parent=1 // loop_pre_header
      _
    $region3: #{tpu_custom_call.1} parent=1 // loop_header
      %s30 = sphi 0, %s34
      %p31 = scmp.ge.s32.totalorder %s30, 4
      %s40 = sphi 0, %s42
      %s43 = sphi 0, %s40
      %s44 = sphi 0, %s43
      %s60 = sphi 0, %s44
      %s66 = sphi 0, %s68
      %s69 = sphi 0, %s66
      %s70 = sphi 0, %s69
      %s86 = sphi 0, %s70
      %s90 = sphi 0, %s90
      %s92 = sphi 0, %s90
      %s93 = sphi 0, %s92
      %s107 = sphi 0, %s93
      %s111 = sphi 0, %s111
      %s113 = sphi 0, %s111
      %s114 = sphi 0, %s113
      %s128 = sphi 0, %s114
      %s132 = sphi 0, %s132
      %s134 = sphi 0, %s132
      %s135 = sphi 0, %s134
      %s149 = sphi 0, %s135
      %s153 = sphi 0, %s153
      %s155 = sphi 0, %s153
      %s156 = sphi 0, %s155
      %s170 = sphi 0, %s156
      %s174 = sphi 0, %s174
      %s176 = sphi 0, %s174
      %s177 = sphi 0, %s176
      %s191 = sphi 0, %s177
      %s195 = sphi 0, %s195
      %s197 = sphi 0, %s195
      %s198 = sphi 0, %s197
      %s212 = sphi 0, %s198
      %s216 = sphi 0, %s216
      %s218 = sphi 0, %s216
      %s219 = sphi 0, %s218
      %s233 = sphi 0, %s219
      %s237 = sphi 0, %s237
      %s239 = sphi 0, %s237
      %s240 = sphi 0, %s239
      %s254 = sphi 0, %s240
      %s258 = sphi 0, %s258
      %s260 = sphi 0, %s258
      %s261 = sphi 0, %s260
      %s275 = sphi 0, %s261
      %s279 = sphi 0, %s279
      %s281 = sphi 0, %s279
      %s282 = sphi 0, %s281
      %s296 = sphi 0, %s282
      %s300 = sphi 0, %s300
      %s302 = sphi 0, %s300
      %s303 = sphi 0, %s302
      %s317 = sphi 0, %s303
      %s321 = sphi 0, %s321
      %s323 = sphi 0, %s321
      %s324 = sphi 0, %s323
      %s338 = sphi 0, %s324
      %s342 = sphi 0, %s342
      %s344 = sphi 0, %s342
      %s345 = sphi 0, %s344
      %s359 = sphi 0, %s345
      %s363 = sphi 0, %s363
      %s365 = sphi 0, %s363
      %s366 = sphi 0, %s365
      %s380 = sphi 0, %s366
      %s384 = sphi 0, %s384
      %s386 = sphi 0, %s384
      %s387 = sphi 0, %s386
      %s401 = sphi 0, %s387
      %s405 = sphi 0, %s405
      %s407 = sphi 0, %s405
      %s408 = sphi 0, %s407
      %s422 = sphi 0, %s408
      %s426 = sphi 0, %s426
      %s428 = sphi 0, %s426
      %s429 = sphi 0, %s428
      %s443 = sphi 0, %s429
      %s447 = sphi 0, %s447
      %s449 = sphi 0, %s447
      %s450 = sphi 0, %s449
      %s464 = sphi 0, %s450
      %s468 = sphi 0, %s468
      %s470 = sphi 0, %s468
      %s471 = sphi 0, %s470
      %s485 = sphi 0, %s471
      %s491 = sphi 0, %s493
      %s494 = sphi 0, %s491
      %s495 = sphi 0, %s494
      %s511 = sphi 0, %s495
    $region4: #{tpu_custom_call.1} parent=1 // loop_header_branch
      %33 = sbr.rel (%p31) target = $region8
    $region5: #{tpu_custom_call.1} parent=1 // loop_body
      %s35 = ssub.s32 %s30, 1
      %s36 = ssub.s32 %s30, 2
      %s37 = sadd.s32 %s30, 1
      %s38 = ssub.s32 %s30, %s37
      %p39 = scmp.eq.s32.totalorder %s38, 0
      %s41 = sadd.s32 %s40, 1
      %s42 = scalar_select %p39, %s40, %s41
      %p45 = pneg %p39
      %p46 = scmp.eq.s32.totalorder %s30, 1
      %p47 = por %p45, %p46
      %p48 = scmp.ne.s32.totalorder %s40, %s43
      %p49 = scmp.eq.s32.totalorder %s30, 0
      %p50 = por %p48, %p49
      %p51 = scmp.ne.s32.totalorder %s40, %s43
      %p52 = scmp.eq.s32.totalorder %s35, 1
      %p53 = por %p51, %p52
      %p54 = scmp.ne.s32.totalorder %s43, %s44
      %p55 = scmp.eq.s32.totalorder %s35, 0
      %p56 = por %p54, %p55
      %p57 = scmp.ne.s32.totalorder %s43, %s44
      %p58 = scmp.eq.s32.totalorder %s36, 1
      %p59 = por %p57, %p58
      %p61 = scmp.ne.s32.totalorder %s44, %s60
      %p62 = scmp.eq.s32.totalorder %s36, 0
      %p63 = por %p61, %p62
      %s64 = ssub.s32 %s30, %s37
      %p65 = scmp.eq.s32.totalorder %s64, 0
      %s67 = sadd.s32 %s66, 1
      %s68 = scalar_select %p65, %s66, %s67
      %p71 = pneg %p65
      %p72 = scmp.eq.s32.totalorder %s30, 1
      %p73 = por %p71, %p72
      %p74 = scmp.ne.s32.totalorder %s66, %s69
      %p75 = scmp.eq.s32.totalorder %s30, 0
      %p76 = por %p74, %p75
      %p77 = scmp.ne.s32.totalorder %s66, %s69
      %p78 = scmp.eq.s32.totalorder %s35, 1
      %p79 = por %p77, %p78
      %p80 = scmp.ne.s32.totalorder %s69, %s70
      %p81 = scmp.eq.s32.totalorder %s35, 0
      %p82 = por %p80, %p81
      %p83 = scmp.ne.s32.totalorder %s69, %s70
      %p84 = scmp.eq.s32.totalorder %s36, 1
      %p85 = por %p83, %p84
      %p87 = scmp.ne.s32.totalorder %s70, %s86
      %p88 = scmp.eq.s32.totalorder %s36, 0
      %p89 = por %p87, %p88
      %s91 = sadd.s32 %s90, 1
      %p94 = scmp.eq.s32.totalorder %s30, 1
      %p95 = scmp.ne.s32.totalorder %s90, %s92
      %p96 = scmp.eq.s32.totalorder %s30, 0
      %p97 = por %p95, %p96
      %p98 = scmp.ne.s32.totalorder %s90, %s92
      %p99 = scmp.eq.s32.totalorder %s35, 1
      %p100 = por %p98, %p99
      %p101 = scmp.ne.s32.totalorder %s92, %s93
      %p102 = scmp.eq.s32.totalorder %s35, 0
      %p103 = por %p101, %p102
      %p104 = scmp.ne.s32.totalorder %s92, %s93
      %p105 = scmp.eq.s32.totalorder %s36, 1
      %p106 = por %p104, %p105
      %p108 = scmp.ne.s32.totalorder %s93, %s107
      %p109 = scmp.eq.s32.totalorder %s36, 0
      %p110 = por %p108, %p109
      %s112 = sadd.s32 %s111, 1
      %p115 = scmp.eq.s32.totalorder %s30, 1
      %p116 = scmp.ne.s32.totalorder %s111, %s113
      %p117 = scmp.eq.s32.totalorder %s30, 0
      %p118 = por %p116, %p117
      %p119 = scmp.ne.s32.totalorder %s111, %s113
      %p120 = scmp.eq.s32.totalorder %s35, 1
      %p121 = por %p119, %p120
      %p122 = scmp.ne.s32.totalorder %s113, %s114
      %p123 = scmp.eq.s32.totalorder %s35, 0
      %p124 = por %p122, %p123
      %p125 = scmp.ne.s32.totalorder %s113, %s114
      %p126 = scmp.eq.s32.totalorder %s36, 1
      %p127 = por %p125, %p126
      %p129 = scmp.ne.s32.totalorder %s114, %s128
      %p130 = scmp.eq.s32.totalorder %s36, 0
      %p131 = por %p129, %p130
      %s133 = sadd.s32 %s132, 1
      %p136 = scmp.eq.s32.totalorder %s30, 1
      %p137 = scmp.ne.s32.totalorder %s132, %s134
      %p138 = scmp.eq.s32.totalorder %s30, 0
      %p139 = por %p137, %p138
      %p140 = scmp.ne.s32.totalorder %s132, %s134
      %p141 = scmp.eq.s32.totalorder %s35, 1
      %p142 = por %p140, %p141
      %p143 = scmp.ne.s32.totalorder %s134, %s135
      %p144 = scmp.eq.s32.totalorder %s35, 0
      %p145 = por %p143, %p144
      %p146 = scmp.ne.s32.totalorder %s134, %s135
      %p147 = scmp.eq.s32.totalorder %s36, 1
      %p148 = por %p146, %p147
      %p150 = scmp.ne.s32.totalorder %s135, %s149
      %p151 = scmp.eq.s32.totalorder %s36, 0
      %p152 = por %p150, %p151
      %s154 = sadd.s32 %s153, 1
      %p157 = scmp.eq.s32.totalorder %s30, 1
      %p158 = scmp.ne.s32.totalorder %s153, %s155
      %p159 = scmp.eq.s32.totalorder %s30, 0
      %p160 = por %p158, %p159
      %p161 = scmp.ne.s32.totalorder %s153, %s155
      %p162 = scmp.eq.s32.totalorder %s35, 1
      %p163 = por %p161, %p162
      %p164 = scmp.ne.s32.totalorder %s155, %s156
      %p165 = scmp.eq.s32.totalorder %s35, 0
      %p166 = por %p164, %p165
      %p167 = scmp.ne.s32.totalorder %s155, %s156
      %p168 = scmp.eq.s32.totalorder %s36, 1
      %p169 = por %p167, %p168
      %p171 = scmp.ne.s32.totalorder %s156, %s170
      %p172 = scmp.eq.s32.totalorder %s36, 0
      %p173 = por %p171, %p172
      %s175 = sadd.s32 %s174, 1
      %p178 = scmp.eq.s32.totalorder %s30, 1
      %p179 = scmp.ne.s32.totalorder %s174, %s176
      %p180 = scmp.eq.s32.totalorder %s30, 0
      %p181 = por %p179, %p180
      %p182 = scmp.ne.s32.totalorder %s174, %s176
      %p183 = scmp.eq.s32.totalorder %s35, 1
      %p184 = por %p182, %p183
      %p185 = scmp.ne.s32.totalorder %s176, %s177
      %p186 = scmp.eq.s32.totalorder %s35, 0
      %p187 = por %p185, %p186
      %p188 = scmp.ne.s32.totalorder %s176, %s177
      %p189 = scmp.eq.s32.totalorder %s36, 1
      %p190 = por %p188, %p189
      %p192 = scmp.ne.s32.totalorder %s177, %s191
      %p193 = scmp.eq.s32.totalorder %s36, 0
      %p194 = por %p192, %p193
      %s196 = sadd.s32 %s195, 1
      %p199 = scmp.eq.s32.totalorder %s30, 1
      %p200 = scmp.ne.s32.totalorder %s195, %s197
      %p201 = scmp.eq.s32.totalorder %s30, 0
      %p202 = por %p200, %p201
      %p203 = scmp.ne.s32.totalorder %s195, %s197
      %p204 = scmp.eq.s32.totalorder %s35, 1
      %p205 = por %p203, %p204
      %p206 = scmp.ne.s32.totalorder %s197, %s198
      %p207 = scmp.eq.s32.totalorder %s35, 0
      %p208 = por %p206, %p207
      %p209 = scmp.ne.s32.totalorder %s197, %s198
      %p210 = scmp.eq.s32.totalorder %s36, 1
      %p211 = por %p209, %p210
      %p213 = scmp.ne.s32.totalorder %s198, %s212
      %p214 = scmp.eq.s32.totalorder %s36, 0
      %p215 = por %p213, %p214
      %s217 = sadd.s32 %s216, 1
      %p220 = scmp.eq.s32.totalorder %s30, 1
      %p221 = scmp.ne.s32.totalorder %s216, %s218
      %p222 = scmp.eq.s32.totalorder %s30, 0
      %p223 = por %p221, %p222
      %p224 = scmp.ne.s32.totalorder %s216, %s218
      %p225 = scmp.eq.s32.totalorder %s35, 1
      %p226 = por %p224, %p225
      %p227 = scmp.ne.s32.totalorder %s218, %s219
      %p228 = scmp.eq.s32.totalorder %s35, 0
      %p229 = por %p227, %p228
      %p230 = scmp.ne.s32.totalorder %s218, %s219
      %p231 = scmp.eq.s32.totalorder %s36, 1
      %p232 = por %p230, %p231
      %p234 = scmp.ne.s32.totalorder %s219, %s233
      %p235 = scmp.eq.s32.totalorder %s36, 0
      %p236 = por %p234, %p235
      %s238 = sadd.s32 %s237, 1
      %p241 = scmp.eq.s32.totalorder %s30, 1
      %p242 = scmp.ne.s32.totalorder %s237, %s239
      %p243 = scmp.eq.s32.totalorder %s30, 0
      %p244 = por %p242, %p243
      %p245 = scmp.ne.s32.totalorder %s237, %s239
      %p246 = scmp.eq.s32.totalorder %s35, 1
      %p247 = por %p245, %p246
      %p248 = scmp.ne.s32.totalorder %s239, %s240
      %p249 = scmp.eq.s32.totalorder %s35, 0
      %p250 = por %p248, %p249
      %p251 = scmp.ne.s32.totalorder %s239, %s240
      %p252 = scmp.eq.s32.totalorder %s36, 1
      %p253 = por %p251, %p252
      %p255 = scmp.ne.s32.totalorder %s240, %s254
      %p256 = scmp.eq.s32.totalorder %s36, 0
      %p257 = por %p255, %p256
      %s259 = sadd.s32 %s258, 1
      %p262 = scmp.eq.s32.totalorder %s30, 1
      %p263 = scmp.ne.s32.totalorder %s258, %s260
      %p264 = scmp.eq.s32.totalorder %s30, 0
      %p265 = por %p263, %p264
      %p266 = scmp.ne.s32.totalorder %s258, %s260
      %p267 = scmp.eq.s32.totalorder %s35, 1
      %p268 = por %p266, %p267
      %p269 = scmp.ne.s32.totalorder %s260, %s261
      %p270 = scmp.eq.s32.totalorder %s35, 0
      %p271 = por %p269, %p270
      %p272 = scmp.ne.s32.totalorder %s260, %s261
      %p273 = scmp.eq.s32.totalorder %s36, 1
      %p274 = por %p272, %p273
      %p276 = scmp.ne.s32.totalorder %s261, %s275
      %p277 = scmp.eq.s32.totalorder %s36, 0
      %p278 = por %p276, %p277
      %s280 = sadd.s32 %s279, 1
      %p283 = scmp.eq.s32.totalorder %s30, 1
      %p284 = scmp.ne.s32.totalorder %s279, %s281
      %p285 = scmp.eq.s32.totalorder %s30, 0
      %p286 = por %p284, %p285
      %p287 = scmp.ne.s32.totalorder %s279, %s281
      %p288 = scmp.eq.s32.totalorder %s35, 1
      %p289 = por %p287, %p288
      %p290 = scmp.ne.s32.totalorder %s281, %s282
      %p291 = scmp.eq.s32.totalorder %s35, 0
      %p292 = por %p290, %p291
      %p293 = scmp.ne.s32.totalorder %s281, %s282
      %p294 = scmp.eq.s32.totalorder %s36, 1
      %p295 = por %p293, %p294
      %p297 = scmp.ne.s32.totalorder %s282, %s296
      %p298 = scmp.eq.s32.totalorder %s36, 0
      %p299 = por %p297, %p298
      %s301 = sadd.s32 %s300, 1
      %p304 = scmp.eq.s32.totalorder %s30, 1
      %p305 = scmp.ne.s32.totalorder %s300, %s302
      %p306 = scmp.eq.s32.totalorder %s30, 0
      %p307 = por %p305, %p306
      %p308 = scmp.ne.s32.totalorder %s300, %s302
      %p309 = scmp.eq.s32.totalorder %s35, 1
      %p310 = por %p308, %p309
      %p311 = scmp.ne.s32.totalorder %s302, %s303
      %p312 = scmp.eq.s32.totalorder %s35, 0
      %p313 = por %p311, %p312
      %p314 = scmp.ne.s32.totalorder %s302, %s303
      %p315 = scmp.eq.s32.totalorder %s36, 1
      %p316 = por %p314, %p315
      %p318 = scmp.ne.s32.totalorder %s303, %s317
      %p319 = scmp.eq.s32.totalorder %s36, 0
      %p320 = por %p318, %p319
      %s322 = sadd.s32 %s321, 1
      %p325 = scmp.eq.s32.totalorder %s30, 1
      %p326 = scmp.ne.s32.totalorder %s321, %s323
      %p327 = scmp.eq.s32.totalorder %s30, 0
      %p328 = por %p326, %p327
      %p329 = scmp.ne.s32.totalorder %s321, %s323
      %p330 = scmp.eq.s32.totalorder %s35, 1
      %p331 = por %p329, %p330
      %p332 = scmp.ne.s32.totalorder %s323, %s324
      %p333 = scmp.eq.s32.totalorder %s35, 0
      %p334 = por %p332, %p333
      %p335 = scmp.ne.s32.totalorder %s323, %s324
      %p336 = scmp.eq.s32.totalorder %s36, 1
      %p337 = por %p335, %p336
      %p339 = scmp.ne.s32.totalorder %s324, %s338
      %p340 = scmp.eq.s32.totalorder %s36, 0
      %p341 = por %p339, %p340
      %s343 = sadd.s32 %s342, 1
      %p346 = scmp.eq.s32.totalorder %s30, 1
      %p347 = scmp.ne.s32.totalorder %s342, %s344
      %p348 = scmp.eq.s32.totalorder %s30, 0
      %p349 = por %p347, %p348
      %p350 = scmp.ne.s32.totalorder %s342, %s344
      %p351 = scmp.eq.s32.totalorder %s35, 1
      %p352 = por %p350, %p351
      %p353 = scmp.ne.s32.totalorder %s344, %s345
      %p354 = scmp.eq.s32.totalorder %s35, 0
      %p355 = por %p353, %p354
      %p356 = scmp.ne.s32.totalorder %s344, %s345
      %p357 = scmp.eq.s32.totalorder %s36, 1
      %p358 = por %p356, %p357
      %p360 = scmp.ne.s32.totalorder %s345, %s359
      %p361 = scmp.eq.s32.totalorder %s36, 0
      %p362 = por %p360, %p361
      %s364 = sadd.s32 %s363, 1
      %p367 = scmp.eq.s32.totalorder %s30, 1
      %p368 = scmp.ne.s32.totalorder %s363, %s365
      %p369 = scmp.eq.s32.totalorder %s30, 0
      %p370 = por %p368, %p369
      %p371 = scmp.ne.s32.totalorder %s363, %s365
      %p372 = scmp.eq.s32.totalorder %s35, 1
      %p373 = por %p371, %p372
      %p374 = scmp.ne.s32.totalorder %s365, %s366
      %p375 = scmp.eq.s32.totalorder %s35, 0
      %p376 = por %p374, %p375
      %p377 = scmp.ne.s32.totalorder %s365, %s366
      %p378 = scmp.eq.s32.totalorder %s36, 1
      %p379 = por %p377, %p378
      %p381 = scmp.ne.s32.totalorder %s366, %s380
      %p382 = scmp.eq.s32.totalorder %s36, 0
      %p383 = por %p381, %p382
      %s385 = sadd.s32 %s384, 1
      %p388 = scmp.eq.s32.totalorder %s30, 1
      %p389 = scmp.ne.s32.totalorder %s384, %s386
      %p390 = scmp.eq.s32.totalorder %s30, 0
      %p391 = por %p389, %p390
      %p392 = scmp.ne.s32.totalorder %s384, %s386
      %p393 = scmp.eq.s32.totalorder %s35, 1
      %p394 = por %p392, %p393
      %p395 = scmp.ne.s32.totalorder %s386, %s387
      %p396 = scmp.eq.s32.totalorder %s35, 0
      %p397 = por %p395, %p396
      %p398 = scmp.ne.s32.totalorder %s386, %s387
      %p399 = scmp.eq.s32.totalorder %s36, 1
      %p400 = por %p398, %p399
      %p402 = scmp.ne.s32.totalorder %s387, %s401
      %p403 = scmp.eq.s32.totalorder %s36, 0
      %p404 = por %p402, %p403
      %s406 = sadd.s32 %s405, 1
      %p409 = scmp.eq.s32.totalorder %s30, 1
      %p410 = scmp.ne.s32.totalorder %s405, %s407
      %p411 = scmp.eq.s32.totalorder %s30, 0
      %p412 = por %p410, %p411
      %p413 = scmp.ne.s32.totalorder %s405, %s407
      %p414 = scmp.eq.s32.totalorder %s35, 1
      %p415 = por %p413, %p414
      %p416 = scmp.ne.s32.totalorder %s407, %s408
      %p417 = scmp.eq.s32.totalorder %s35, 0
      %p418 = por %p416, %p417
      %p419 = scmp.ne.s32.totalorder %s407, %s408
      %p420 = scmp.eq.s32.totalorder %s36, 1
      %p421 = por %p419, %p420
      %p423 = scmp.ne.s32.totalorder %s408, %s422
      %p424 = scmp.eq.s32.totalorder %s36, 0
      %p425 = por %p423, %p424
      %s427 = sadd.s32 %s426, 1
      %p430 = scmp.eq.s32.totalorder %s30, 1
      %p431 = scmp.ne.s32.totalorder %s426, %s428
      %p432 = scmp.eq.s32.totalorder %s30, 0
      %p433 = por %p431, %p432
      %p434 = scmp.ne.s32.totalorder %s426, %s428
      %p435 = scmp.eq.s32.totalorder %s35, 1
      %p436 = por %p434, %p435
      %p437 = scmp.ne.s32.totalorder %s428, %s429
      %p438 = scmp.eq.s32.totalorder %s35, 0
      %p439 = por %p437, %p438
      %p440 = scmp.ne.s32.totalorder %s428, %s429
      %p441 = scmp.eq.s32.totalorder %s36, 1
      %p442 = por %p440, %p441
      %p444 = scmp.ne.s32.totalorder %s429, %s443
      %p445 = scmp.eq.s32.totalorder %s36, 0
      %p446 = por %p444, %p445
      %s448 = sadd.s32 %s447, 1
      %p451 = scmp.eq.s32.totalorder %s30, 1
      %p452 = scmp.ne.s32.totalorder %s447, %s449
      %p453 = scmp.eq.s32.totalorder %s30, 0
      %p454 = por %p452, %p453
      %p455 = scmp.ne.s32.totalorder %s447, %s449
      %p456 = scmp.eq.s32.totalorder %s35, 1
      %p457 = por %p455, %p456
      %p458 = scmp.ne.s32.totalorder %s449, %s450
      %p459 = scmp.eq.s32.totalorder %s35, 0
      %p460 = por %p458, %p459
      %p461 = scmp.ne.s32.totalorder %s449, %s450
      %p462 = scmp.eq.s32.totalorder %s36, 1
      %p463 = por %p461, %p462
      %p465 = scmp.ne.s32.totalorder %s450, %s464
      %p466 = scmp.eq.s32.totalorder %s36, 0
      %p467 = por %p465, %p466
      %s469 = sadd.s32 %s468, 1
      %p472 = scmp.eq.s32.totalorder %s30, 1
      %p473 = scmp.ne.s32.totalorder %s468, %s470
      %p474 = scmp.eq.s32.totalorder %s30, 0
      %p475 = por %p473, %p474
      %p476 = scmp.ne.s32.totalorder %s468, %s470
      %p477 = scmp.eq.s32.totalorder %s35, 1
      %p478 = por %p476, %p477
      %p479 = scmp.ne.s32.totalorder %s470, %s471
      %p480 = scmp.eq.s32.totalorder %s35, 0
      %p481 = por %p479, %p480
      %p482 = scmp.ne.s32.totalorder %s470, %s471
      %p483 = scmp.eq.s32.totalorder %s36, 1
      %p484 = por %p482, %p483
      %p486 = scmp.ne.s32.totalorder %s471, %s485
      %p487 = scmp.eq.s32.totalorder %s36, 0
      %p488 = por %p486, %p487
      %s489 = ssub.s32 %s30, %s37
      %p490 = scmp.eq.s32.totalorder %s489, 0
      %s492 = sadd.s32 %s491, 1
      %s493 = scalar_select %p490, %s491, %s492
      %p496 = pneg %p490
      %p497 = scmp.eq.s32.totalorder %s30, 1
      %p498 = por %p496, %p497
      %p499 = scmp.ne.s32.totalorder %s491, %s494
      %p500 = scmp.eq.s32.totalorder %s30, 0
      %p501 = por %p499, %p500
      %p502 = scmp.ne.s32.totalorder %s491, %s494
      %p503 = scmp.eq.s32.totalorder %s35, 1
      %p504 = por %p502, %p503
      %p505 = scmp.ne.s32.totalorder %s494, %s495
      %p506 = scmp.eq.s32.totalorder %s35, 0
      %p507 = por %p505, %p506
      %p508 = scmp.ne.s32.totalorder %s494, %s495
      %p509 = scmp.eq.s32.totalorder %s36, 1
      %p510 = por %p508, %p509
      %p512 = scmp.ne.s32.totalorder %s495, %s511
      %p513 = scmp.eq.s32.totalorder %s36, 0
      %p514 = por %p512, %p513
      %p515 = scmp.le.s32.totalorder 1, %s30
      %p516 = scmp.lt.s32.totalorder %s30, 3
      %p517 = pnand %p515, %p516
      %p518 = pneg %p517
      // Predicated region
      $region9: #{tpu_custom_call.1} parent=5 // pred_check
        _
      $region10: #{tpu_custom_call.1} parent=5 // pred_check_branch
        %520 = sbr.rel (%p517) target = $region12
      $region11: #{tpu_custom_call.1} parent=5 // pred_region
        %s521 = ssub.s32 %s30, 1
        // Predicated region
        $region13: #{tpu_custom_call.1} parent=11 // pred_check
          %p522 = pneg %p103
        $region14: #{tpu_custom_call.1} parent=11 // pred_check_branch
          %524 = sbr.rel (%p522) target = $region16
        $region15: #{tpu_custom_call.1} parent=11 // pred_region
          _
        $region16: #{tpu_custom_call.1} parent=11 // pred_fallthru
          _
        // Predicated region
        $region17: #{tpu_custom_call.1} parent=11 // pred_check
          %p525 = pneg %p124
        $region18: #{tpu_custom_call.1} parent=11 // pred_check_branch
          %527 = sbr.rel (%p525) target = $region20
        $region19: #{tpu_custom_call.1} parent=11 // pred_region
          _
        $region20: #{tpu_custom_call.1} parent=11 // pred_fallthru
          _
        // Predicated region
        $region21: #{tpu_custom_call.1} parent=11 // pred_check
          %p528 = pneg %p145
        $region22: #{tpu_custom_call.1} parent=11 // pred_check_branch
          %530 = sbr.rel (%p528) target = $region24
        $region23: #{tpu_custom_call.1} parent=11 // pred_region
          _
        $region24: #{tpu_custom_call.1} parent=11 // pred_fallthru
          _
        // Predicated region
        $region25: #{tpu_custom_call.1} parent=11 // pred_check
          %p531 = pneg %p166
        $region26: #{tpu_custom_call.1} parent=11 // pred_check_branch
          %533 = sbr.rel (%p531) target = $region28
        $region27: #{tpu_custom_call.1} parent=11 // pred_region
          _
        $region28: #{tpu_custom_call.1} parent=11 // pred_fallthru
          _
        // Predicated region
        $region29: #{tpu_custom_call.1} parent=11 // pred_check
          %p534 = pneg %p187
        $region30: #{tpu_custom_call.1} parent=11 // pred_check_branch
          %536 = sbr.rel (%p534) target = $region32
        $region31: #{tpu_custom_call.1} parent=11 // pred_region
          _
        $region32: #{tpu_custom_call.1} parent=11 // pred_fallthru
          _
        // Predicated region
        $region33: #{tpu_custom_call.1} parent=11 // pred_check
          %p537 = pneg %p208
        $region34: #{tpu_custom_call.1} parent=11 // pred_check_branch
          %539 = sbr.rel (%p537) target = $region36
        $region35: #{tpu_custom_call.1} parent=11 // pred_region
          _
        $region36: #{tpu_custom_call.1} parent=11 // pred_fallthru
          _
        // Predicated region
        $region37: #{tpu_custom_call.1} parent=11 // pred_check
          %p540 = pneg %p229
        $region38: #{tpu_custom_call.1} parent=11 // pred_check_branch
          %542 = sbr.rel (%p540) target = $region40
        $region39: #{tpu_custom_call.1} parent=11 // pred_region
          _
        $region40: #{tpu_custom_call.1} parent=11 // pred_fallthru
          _
        // Predicated region
        $region41: #{tpu_custom_call.1} parent=11 // pred_check
          %p543 = pneg %p250
        $region42: #{tpu_custom_call.1} parent=11 // pred_check_branch
          %545 = sbr.rel (%p543) target = $region44
        $region43: #{tpu_custom_call.1} parent=11 // pred_region
          _
        $region44: #{tpu_custom_call.1} parent=11 // pred_fallthru
          _
        // Predicated region
        $region45: #{tpu_custom_call.1} parent=11 // pred_check
          %p546 = pneg %p271
        $region46: #{tpu_custom_call.1} parent=11 // pred_check_branch
          %548 = sbr.rel (%p546) target = $region48
        $region47: #{tpu_custom_call.1} parent=11 // pred_region
          _
        $region48: #{tpu_custom_call.1} parent=11 // pred_fallthru
          _
        // Predicated region
        $region49: #{tpu_custom_call.1} parent=11 // pred_check
          %p549 = pneg %p292
        $region50: #{tpu_custom_call.1} parent=11 // pred_check_branch
          %551 = sbr.rel (%p549) target = $region52
        $region51: #{tpu_custom_call.1} parent=11 // pred_region
          _
        $region52: #{tpu_custom_call.1} parent=11 // pred_fallthru
          _
        // Predicated region
        $region53: #{tpu_custom_call.1} parent=11 // pred_check
          %p552 = pneg %p313
        $region54: #{tpu_custom_call.1} parent=11 // pred_check_branch
          %554 = sbr.rel (%p552) target = $region56
        $region55: #{tpu_custom_call.1} parent=11 // pred_region
          _
        $region56: #{tpu_custom_call.1} parent=11 // pred_fallthru
          _
        // Predicated region
        $region57: #{tpu_custom_call.1} parent=11 // pred_check
          %p555 = pneg %p334
        $region58: #{tpu_custom_call.1} parent=11 // pred_check_branch
          %557 = sbr.rel (%p555) target = $region60
        $region59: #{tpu_custom_call.1} parent=11 // pred_region
          _
        $region60: #{tpu_custom_call.1} parent=11 // pred_fallthru
          _
        // Predicated region
        $region61: #{tpu_custom_call.1} parent=11 // pred_check
          %p558 = pneg %p355
        $region62: #{tpu_custom_call.1} parent=11 // pred_check_branch
          %560 = sbr.rel (%p558) target = $region64
        $region63: #{tpu_custom_call.1} parent=11 // pred_region
          _
        $region64: #{tpu_custom_call.1} parent=11 // pred_fallthru
          _
        // Predicated region
        $region65: #{tpu_custom_call.1} parent=11 // pred_check
          %p561 = pneg %p376
        $region66: #{tpu_custom_call.1} parent=11 // pred_check_branch
          %563 = sbr.rel (%p561) target = $region68
        $region67: #{tpu_custom_call.1} parent=11 // pred_region
          _
        $region68: #{tpu_custom_call.1} parent=11 // pred_fallthru
          _
        // Predicated region
        $region69: #{tpu_custom_call.1} parent=11 // pred_check
          %p564 = pneg %p397
        $region70: #{tpu_custom_call.1} parent=11 // pred_check_branch
          %566 = sbr.rel (%p564) target = $region72
        $region71: #{tpu_custom_call.1} parent=11 // pred_region
          _
        $region72: #{tpu_custom_call.1} parent=11 // pred_fallthru
          _
        // Predicated region
        $region73: #{tpu_custom_call.1} parent=11 // pred_check
          %p567 = pneg %p418
        $region74: #{tpu_custom_call.1} parent=11 // pred_check_branch
          %569 = sbr.rel (%p567) target = $region76
        $region75: #{tpu_custom_call.1} parent=11 // pred_region
          _
        $region76: #{tpu_custom_call.1} parent=11 // pred_fallthru
          _
        // Predicated region
        $region77: #{tpu_custom_call.1} parent=11 // pred_check
          %p570 = pneg %p439
        $region78: #{tpu_custom_call.1} parent=11 // pred_check_branch
          %572 = sbr.rel (%p570) target = $region80
        $region79: #{tpu_custom_call.1} parent=11 // pred_region
          _
        $region80: #{tpu_custom_call.1} parent=11 // pred_fallthru
          _
        // Predicated region
        $region81: #{tpu_custom_call.1} parent=11 // pred_check
          %p573 = pneg %p460
        $region82: #{tpu_custom_call.1} parent=11 // pred_check_branch
          %575 = sbr.rel (%p573) target = $region84
        $region83: #{tpu_custom_call.1} parent=11 // pred_region
          _
        $region84: #{tpu_custom_call.1} parent=11 // pred_fallthru
          _
        // Predicated region
        $region85: #{tpu_custom_call.1} parent=11 // pred_check
          %p576 = pneg %p481
        $region86: #{tpu_custom_call.1} parent=11 // pred_check_branch
          %578 = sbr.rel (%p576) target = $region88
        $region87: #{tpu_custom_call.1} parent=11 // pred_region
          _
        $region88: #{tpu_custom_call.1} parent=11 // pred_fallthru
          _
      $region12: #{tpu_custom_call.1} parent=5 // pred_fallthru
        _
      %p579 = scmp.lt.s32.totalorder %s30, 2
      // Predicated region
      $region89: #{tpu_custom_call.1} parent=5 // pred_check
        %p580 = pneg %p579
      $region90: #{tpu_custom_call.1} parent=5 // pred_check_branch
        %582 = sbr.rel (%p580) target = $region92
      $region91: #{tpu_custom_call.1} parent=5 // pred_region
        // Predicated region
        $region93: #{tpu_custom_call.1} parent=91 // pred_check
          %p583 = pneg %p50
        $region94: #{tpu_custom_call.1} parent=91 // pred_check_branch
          %585 = sbr.rel (%p583) target = $region96
        $region95: #{tpu_custom_call.1} parent=91 // pred_region
          %s586 = smul.u32 64, %s30
          %p587 = scmp.lt.s32.totalorder %s586, 127
          %s588 = scalar_select %p587, %s586, 127
          %s589 = smul.addr %s588, 8
          %s590 = scalar_lea.vmem %s0, %s589
          %s591 = smul.u32 64, %s30
        $region96: #{tpu_custom_call.1} parent=91 // pred_fallthru
          _
        // Predicated region
        $region97: #{tpu_custom_call.1} parent=91 // pred_check
          %p592 = pneg %p76
        $region98: #{tpu_custom_call.1} parent=91 // pred_check_branch
          %594 = sbr.rel (%p592) target = $region100
        $region99: #{tpu_custom_call.1} parent=91 // pred_region
          %s595 = smul.u32 64, %s30
          %p596 = scmp.lt.s32.totalorder %s595, 127
          %s597 = scalar_select %p596, %s595, 127
          %s598 = smul.addr %s597, 8
          %s599 = scalar_lea.vmem %s1, %s598
          %s600 = smul.u32 64, %s30
        $region100: #{tpu_custom_call.1} parent=91 // pred_fallthru
          _
      $region92: #{tpu_custom_call.1} parent=5 // pred_fallthru
        _
      %p601 = scmp.le.s32.totalorder 1, %s30
      %p602 = scmp.lt.s32.totalorder %s30, 3
      %p603 = pnand %p601, %p602
      %p604 = pneg %p603
      // Predicated region
      $region101: #{tpu_custom_call.1} parent=5 // pred_check
        _
      $region102: #{tpu_custom_call.1} parent=5 // pred_check_branch
        %606 = sbr.rel (%p603) target = $region104
      $region103: #{tpu_custom_call.1} parent=5 // pred_region
        %s607 = ssub.s32 %s30, 1
        %s608 = smul.u32 64, %s35
        %p609 = scmp.lt.s32.totalorder %s608, 127
        %s610 = scalar_select %p609, %s608, 127
        %s611 = smul.addr %s610, 8
        %s612 = scalar_lea.vmem %s0, %s611
        %p613 = pneg %p56
        %p614 = pneg %p53
        %s615 = smul.u32 64, %s35
        %p616 = scmp.lt.s32.totalorder %s615, 127
        %s617 = scalar_select %p616, %s615, 127
        %s618 = smul.addr %s617, 8
        %s619 = scalar_lea.vmem %s1, %s618
        %p620 = pneg %p82
        %p621 = pneg %p79
        %p622 = pneg %p103
        %p623 = pneg %p100
        %p624 = pneg %p124
        %p625 = pneg %p121
        %p626 = pneg %p145
        %p627 = pneg %p142
        %p628 = pneg %p166
        %p629 = pneg %p163
        %p630 = pneg %p187
        %p631 = pneg %p184
        %p632 = pneg %p208
        %p633 = pneg %p205
        %p634 = pneg %p229
        %p635 = pneg %p226
        %p636 = pneg %p250
        %p637 = pneg %p247
        %p638 = pneg %p271
        %p639 = pneg %p268
        %p640 = pneg %p292
        %p641 = pneg %p289
        %p642 = pneg %p313
        %p643 = pneg %p310
        %p644 = pneg %p334
        %p645 = pneg %p331
        %p646 = pneg %p355
        %p647 = pneg %p352
        %p648 = pneg %p376
        %p649 = pneg %p373
        %p650 = pneg %p397
        %p651 = pneg %p394
        %p652 = pneg %p418
        %p653 = pneg %p415
        %p654 = pneg %p439
        %p655 = pneg %p436
        %p656 = pneg %p460
        %p657 = pneg %p457
        %p658 = pneg %p481
        %p659 = pneg %p478
        %p660 = pneg %p507
        %p661 = pneg %p504
        %s662 = sand.u32 %s494, 1
        %s663 = scalar_lea.sflag [#allocation3], %s662
        %s664 = sand.u32 %s494, 1
        %s665 = smul.addr %s664, 512
        %s666 = scalar_lea.vmem [#allocation2], %s665
        %s667 = smul.u32 64, %s35
        %p668 = scmp.lt.s32.totalorder %s667, 127
        %s669 = scalar_select %p668, %s667, 127
        %s670 = smul.addr %s669, 8
        %s671 = scalar_lea.vmem %s0, %s670
        %s672 = smul.u32 64, %s35
        %s673 = smul.u32 64, %s35
        %p674 = scmp.lt.s32.totalorder %s673, 127
        %s675 = scalar_select %p674, %s673, 127
        %s676 = smul.addr %s675, 8
        %s677 = scalar_lea.vmem %s1, %s676
        %s678 = smul.u32 64, %s35
        %s679 = smul.u32 64, %s35
        %v680 = vld [vmem:[%s671] sm:$0xff]
        %v681 = vld [vmem:[%s671 + $0x8] sm:$0xff]
        %v682 = vld [vmem:[%s671 + $0x10] sm:$0xff]
        %v683 = vld [vmem:[%s671 + $0x18] sm:$0xff]
        %v684 = vld [vmem:[%s671 + $0x20] sm:$0xff]
        %v685 = vld [vmem:[%s671 + $0x28] sm:$0xff]
        %v686 = vld [vmem:[%s671 + $0x30] sm:$0xff]
        %v687 = vld [vmem:[%s671 + $0x38] sm:$0xff]
        %v688 = vld [vmem:[%s671 + $0x40] sm:$0xff]
        %v689 = vld [vmem:[%s671 + $0x48] sm:$0xff]
        %v690 = vld [vmem:[%s671 + $0x50] sm:$0xff]
        %v691 = vld [vmem:[%s671 + $0x58] sm:$0xff]
        %v692 = vld [vmem:[%s671 + $0x60] sm:$0xff]
        %v693 = vld [vmem:[%s671 + $0x68] sm:$0xff]
        %v694 = vld [vmem:[%s671 + $0x70] sm:$0xff]
        %v695 = vld [vmem:[%s671 + $0x78] sm:$0xff]
        %v696 = vld [vmem:[%s671 + $0x80] sm:$0xff]
        %v697 = vld [vmem:[%s671 + $0x88] sm:$0xff]
        %v698 = vld [vmem:[%s671 + $0x90] sm:$0xff]
        %v699 = vld [vmem:[%s671 + $0x98] sm:$0xff]
        %v700 = vld [vmem:[%s671 + $0xa0] sm:$0xff]
        %v701 = vld [vmem:[%s671 + $0xa8] sm:$0xff]
        %v702 = vld [vmem:[%s671 + $0xb0] sm:$0xff]
        %v703 = vld [vmem:[%s671 + $0xb8] sm:$0xff]
        %v704 = vld [vmem:[%s671 + $0xc0] sm:$0xff]
        %v705 = vld [vmem:[%s671 + $0xc8] sm:$0xff]
        %v706 = vld [vmem:[%s671 + $0xd0] sm:$0xff]
        %v707 = vld [vmem:[%s671 + $0xd8] sm:$0xff]
        %v708 = vld [vmem:[%s671 + $0xe0] sm:$0xff]
        %v709 = vld [vmem:[%s671 + $0xe8] sm:$0xff]
        %v710 = vld [vmem:[%s671 + $0xf0] sm:$0xff]
        %v711 = vld [vmem:[%s671 + $0xf8] sm:$0xff]
        %v712 = vld [vmem:[%s671 + $0x100] sm:$0xff]
        %v713 = vld [vmem:[%s671 + $0x108] sm:$0xff]
        %v714 = vld [vmem:[%s671 + $0x110] sm:$0xff]
        %v715 = vld [vmem:[%s671 + $0x118] sm:$0xff]
        %v716 = vld [vmem:[%s671 + $0x120] sm:$0xff]
        %v717 = vld [vmem:[%s671 + $0x128] sm:$0xff]
        %v718 = vld [vmem:[%s671 + $0x130] sm:$0xff]
        %v719 = vld [vmem:[%s671 + $0x138] sm:$0xff]
        %v720 = vld [vmem:[%s671 + $0x140] sm:$0xff]
        %v721 = vld [vmem:[%s671 + $0x148] sm:$0xff]
        %v722 = vld [vmem:[%s671 + $0x150] sm:$0xff]
        %v723 = vld [vmem:[%s671 + $0x158] sm:$0xff]
        %v724 = vld [vmem:[%s671 + $0x160] sm:$0xff]
        %v725 = vld [vmem:[%s671 + $0x168] sm:$0xff]
        %v726 = vld [vmem:[%s671 + $0x170] sm:$0xff]
        %v727 = vld [vmem:[%s671 + $0x178] sm:$0xff]
        %v728 = vld [vmem:[%s671 + $0x180] sm:$0xff]
        %v729 = vld [vmem:[%s671 + $0x188] sm:$0xff]
        %v730 = vld [vmem:[%s671 + $0x190] sm:$0xff]
        %v731 = vld [vmem:[%s671 + $0x198] sm:$0xff]
        %v732 = vld [vmem:[%s671 + $0x1a0] sm:$0xff]
        %v733 = vld [vmem:[%s671 + $0x1a8] sm:$0xff]
        %v734 = vld [vmem:[%s671 + $0x1b0] sm:$0xff]
        %v735 = vld [vmem:[%s671 + $0x1b8] sm:$0xff]
        %v736 = vld [vmem:[%s671 + $0x1c0] sm:$0xff]
        %v737 = vld [vmem:[%s671 + $0x1c8] sm:$0xff]
        %v738 = vld [vmem:[%s671 + $0x1d0] sm:$0xff]
        %v739 = vld [vmem:[%s671 + $0x1d8] sm:$0xff]
        %v740 = vld [vmem:[%s671 + $0x1e0] sm:$0xff]
        %v741 = vld [vmem:[%s671 + $0x1e8] sm:$0xff]
        %v742 = vld [vmem:[%s671 + $0x1f0] sm:$0xff]
        %v743 = vld [vmem:[%s671 + $0x1f8] sm:$0xff]
        %v744 = vld [vmem:[%s677] sm:$0xff]
        %v745 = vld [vmem:[%s677 + $0x8] sm:$0xff]
        %v746 = vld [vmem:[%s677 + $0x10] sm:$0xff]
        %v747 = vld [vmem:[%s677 + $0x18] sm:$0xff]
        %v748 = vld [vmem:[%s677 + $0x20] sm:$0xff]
        %v749 = vld [vmem:[%s677 + $0x28] sm:$0xff]
        %v750 = vld [vmem:[%s677 + $0x30] sm:$0xff]
        %v751 = vld [vmem:[%s677 + $0x38] sm:$0xff]
        %v752 = vld [vmem:[%s677 + $0x40] sm:$0xff]
        %v753 = vld [vmem:[%s677 + $0x48] sm:$0xff]
        %v754 = vld [vmem:[%s677 + $0x50] sm:$0xff]
        %v755 = vld [vmem:[%s677 + $0x58] sm:$0xff]
        %v756 = vld [vmem:[%s677 + $0x60] sm:$0xff]
        %v757 = vld [vmem:[%s677 + $0x68] sm:$0xff]
        %v758 = vld [vmem:[%s677 + $0x70] sm:$0xff]
        %v759 = vld [vmem:[%s677 + $0x78] sm:$0xff]
        %v760 = vld [vmem:[%s677 + $0x80] sm:$0xff]
        %v761 = vld [vmem:[%s677 + $0x88] sm:$0xff]
        %v762 = vld [vmem:[%s677 + $0x90] sm:$0xff]
        %v763 = vld [vmem:[%s677 + $0x98] sm:$0xff]
        %v764 = vld [vmem:[%s677 + $0xa0] sm:$0xff]
        %v765 = vld [vmem:[%s677 + $0xa8] sm:$0xff]
        %v766 = vld [vmem:[%s677 + $0xb0] sm:$0xff]
        %v767 = vld [vmem:[%s677 + $0xb8] sm:$0xff]
        %v768 = vld [vmem:[%s677 + $0xc0] sm:$0xff]
        %v769 = vld [vmem:[%s677 + $0xc8] sm:$0xff]
        %v770 = vld [vmem:[%s677 + $0xd0] sm:$0xff]
        %v771 = vld [vmem:[%s677 + $0xd8] sm:$0xff]
        %v772 = vld [vmem:[%s677 + $0xe0] sm:$0xff]
        %v773 = vld [vmem:[%s677 + $0xe8] sm:$0xff]
        %v774 = vld [vmem:[%s677 + $0xf0] sm:$0xff]
        %v775 = vld [vmem:[%s677 + $0xf8] sm:$0xff]
        %v776 = vld [vmem:[%s677 + $0x100] sm:$0xff]
        %v777 = vld [vmem:[%s677 + $0x108] sm:$0xff]
        %v778 = vld [vmem:[%s677 + $0x110] sm:$0xff]
        %v779 = vld [vmem:[%s677 + $0x118] sm:$0xff]
        %v780 = vld [vmem:[%s677 + $0x120] sm:$0xff]
        %v781 = vld [vmem:[%s677 + $0x128] sm:$0xff]
        %v782 = vld [vmem:[%s677 + $0x130] sm:$0xff]
        %v783 = vld [vmem:[%s677 + $0x138] sm:$0xff]
        %v784 = vld [vmem:[%s677 + $0x140] sm:$0xff]
        %v785 = vld [vmem:[%s677 + $0x148] sm:$0xff]
        %v786 = vld [vmem:[%s677 + $0x150] sm:$0xff]
        %v787 = vld [vmem:[%s677 + $0x158] sm:$0xff]
        %v788 = vld [vmem:[%s677 + $0x160] sm:$0xff]
        %v789 = vld [vmem:[%s677 + $0x168] sm:$0xff]
        %v790 = vld [vmem:[%s677 + $0x170] sm:$0xff]
        %v791 = vld [vmem:[%s677 + $0x178] sm:$0xff]
        %v792 = vld [vmem:[%s677 + $0x180] sm:$0xff]
        %v793 = vld [vmem:[%s677 + $0x188] sm:$0xff]
        %v794 = vld [vmem:[%s677 + $0x190] sm:$0xff]
        %v795 = vld [vmem:[%s677 + $0x198] sm:$0xff]
        %v796 = vld [vmem:[%s677 + $0x1a0] sm:$0xff]
        %v797 = vld [vmem:[%s677 + $0x1a8] sm:$0xff]
        %v798 = vld [vmem:[%s677 + $0x1b0] sm:$0xff]
        %v799 = vld [vmem:[%s677 + $0x1b8] sm:$0xff]
        %v800 = vld [vmem:[%s677 + $0x1c0] sm:$0xff]
        %v801 = vld [vmem:[%s677 + $0x1c8] sm:$0xff]
        %v802 = vld [vmem:[%s677 + $0x1d0] sm:$0xff]
        %v803 = vld [vmem:[%s677 + $0x1d8] sm:$0xff]
        %v804 = vld [vmem:[%s677 + $0x1e0] sm:$0xff]
        %v805 = vld [vmem:[%s677 + $0x1e8] sm:$0xff]
        %v806 = vld [vmem:[%s677 + $0x1f0] sm:$0xff]
        %v807 = vld [vmem:[%s677 + $0x1f8] sm:$0xff]
        %v808 = vlaneseq
        %v809 = vand.u32 %v808, 127
        %810 = vset.pattern.permute.xlu0 0
        %811 = vperm.xlu0 %810, %v680
        %v812 = vpop.permute.xlu0 %811
        %813 = vset.pattern.permute.xlu0 0
        %814 = vperm.xlu0 %813, %v681
        %v815 = vpop.permute.xlu0 %814
        %816 = vset.pattern.permute.xlu0 0
        %817 = vperm.xlu0 %816, %v682
        %v818 = vpop.permute.xlu0 %817
        %819 = vset.pattern.permute.xlu0 0
        %820 = vperm.xlu0 %819, %v683
        %v821 = vpop.permute.xlu0 %820
        %822 = vset.pattern.permute.xlu0 0
        %823 = vperm.xlu0 %822, %v684
        %v824 = vpop.permute.xlu0 %823
        %825 = vset.pattern.permute.xlu0 0
        %826 = vperm.xlu0 %825, %v685
        %v827 = vpop.permute.xlu0 %826
        %828 = vset.pattern.permute.xlu0 0
        %829 = vperm.xlu0 %828, %v686
        %v830 = vpop.permute.xlu0 %829
        %831 = vset.pattern.permute.xlu0 0
        %832 = vperm.xlu0 %831, %v687
        %v833 = vpop.permute.xlu0 %832
        %834 = vset.pattern.permute.xlu0 0
        %835 = vperm.xlu0 %834, %v688
        %v836 = vpop.permute.xlu0 %835
        %837 = vset.pattern.permute.xlu0 0
        %838 = vperm.xlu0 %837, %v689
        %v839 = vpop.permute.xlu0 %838
        %840 = vset.pattern.permute.xlu0 0
        %841 = vperm.xlu0 %840, %v690
        %v842 = vpop.permute.xlu0 %841
        %843 = vset.pattern.permute.xlu0 0
        %844 = vperm.xlu0 %843, %v691
        %v845 = vpop.permute.xlu0 %844
        %846 = vset.pattern.permute.xlu0 0
        %847 = vperm.xlu0 %846, %v692
        %v848 = vpop.permute.xlu0 %847
        %849 = vset.pattern.permute.xlu0 0
        %850 = vperm.xlu0 %849, %v693
        %v851 = vpop.permute.xlu0 %850
        %852 = vset.pattern.permute.xlu0 0
        %853 = vperm.xlu0 %852, %v694
        %v854 = vpop.permute.xlu0 %853
        %855 = vset.pattern.permute.xlu0 0
        %856 = vperm.xlu0 %855, %v695
        %v857 = vpop.permute.xlu0 %856
        %858 = vset.pattern.permute.xlu0 0
        %859 = vperm.xlu0 %858, %v696
        %v860 = vpop.permute.xlu0 %859
        %861 = vset.pattern.permute.xlu0 0
        %862 = vperm.xlu0 %861, %v697
        %v863 = vpop.permute.xlu0 %862
        %864 = vset.pattern.permute.xlu0 0
        %865 = vperm.xlu0 %864, %v698
        %v866 = vpop.permute.xlu0 %865
        %867 = vset.pattern.permute.xlu0 0
        %868 = vperm.xlu0 %867, %v699
        %v869 = vpop.permute.xlu0 %868
        %870 = vset.pattern.permute.xlu0 0
        %871 = vperm.xlu0 %870, %v700
        %v872 = vpop.permute.xlu0 %871
        %873 = vset.pattern.permute.xlu0 0
        %874 = vperm.xlu0 %873, %v701
        %v875 = vpop.permute.xlu0 %874
        %876 = vset.pattern.permute.xlu0 0
        %877 = vperm.xlu0 %876, %v702
        %v878 = vpop.permute.xlu0 %877
        %879 = vset.pattern.permute.xlu0 0
        %880 = vperm.xlu0 %879, %v703
        %v881 = vpop.permute.xlu0 %880
        %882 = vset.pattern.permute.xlu0 0
        %883 = vperm.xlu0 %882, %v704
        %v884 = vpop.permute.xlu0 %883
        %885 = vset.pattern.permute.xlu0 0
        %886 = vperm.xlu0 %885, %v705
        %v887 = vpop.permute.xlu0 %886
        %888 = vset.pattern.permute.xlu0 0
        %889 = vperm.xlu0 %888, %v706
        %v890 = vpop.permute.xlu0 %889
        %891 = vset.pattern.permute.xlu0 0
        %892 = vperm.xlu0 %891, %v707
        %v893 = vpop.permute.xlu0 %892
        %894 = vset.pattern.permute.xlu0 0
        %895 = vperm.xlu0 %894, %v708
        %v896 = vpop.permute.xlu0 %895
        %897 = vset.pattern.permute.xlu0 0
        %898 = vperm.xlu0 %897, %v709
        %v899 = vpop.permute.xlu0 %898
        %900 = vset.pattern.permute.xlu0 0
        %901 = vperm.xlu0 %900, %v710
        %v902 = vpop.permute.xlu0 %901
        %903 = vset.pattern.permute.xlu0 0
        %904 = vperm.xlu0 %903, %v711
        %v905 = vpop.permute.xlu0 %904
        %906 = vset.pattern.permute.xlu0 0
        %907 = vperm.xlu0 %906, %v712
        %v908 = vpop.permute.xlu0 %907
        %909 = vset.pattern.permute.xlu0 0
        %910 = vperm.xlu0 %909, %v713
        %v911 = vpop.permute.xlu0 %910
        %912 = vset.pattern.permute.xlu0 0
        %913 = vperm.xlu0 %912, %v714
        %v914 = vpop.permute.xlu0 %913
        %915 = vset.pattern.permute.xlu0 0
        %916 = vperm.xlu0 %915, %v715
        %v917 = vpop.permute.xlu0 %916
        %918 = vset.pattern.permute.xlu0 0
        %919 = vperm.xlu0 %918, %v716
        %v920 = vpop.permute.xlu0 %919
        %921 = vset.pattern.permute.xlu0 0
        %922 = vperm.xlu0 %921, %v717
        %v923 = vpop.permute.xlu0 %922
        %924 = vset.pattern.permute.xlu0 0
        %925 = vperm.xlu0 %924, %v718
        %v926 = vpop.permute.xlu0 %925
        %927 = vset.pattern.permute.xlu0 0
        %928 = vperm.xlu0 %927, %v719
        %v929 = vpop.permute.xlu0 %928
        %930 = vset.pattern.permute.xlu0 0
        %931 = vperm.xlu0 %930, %v720
        %v932 = vpop.permute.xlu0 %931
        %933 = vset.pattern.permute.xlu0 0
        %934 = vperm.xlu0 %933, %v721
        %v935 = vpop.permute.xlu0 %934
        %936 = vset.pattern.permute.xlu0 0
        %937 = vperm.xlu0 %936, %v722
        %v938 = vpop.permute.xlu0 %937
        %939 = vset.pattern.permute.xlu0 0
        %940 = vperm.xlu0 %939, %v723
        %v941 = vpop.permute.xlu0 %940
        %942 = vset.pattern.permute.xlu0 0
        %943 = vperm.xlu0 %942, %v724
        %v944 = vpop.permute.xlu0 %943
        %945 = vset.pattern.permute.xlu0 0
        %946 = vperm.xlu0 %945, %v725
        %v947 = vpop.permute.xlu0 %946
        %948 = vset.pattern.permute.xlu0 0
        %949 = vperm.xlu0 %948, %v726
        %v950 = vpop.permute.xlu0 %949
        %951 = vset.pattern.permute.xlu0 0
        %952 = vperm.xlu0 %951, %v727
        %v953 = vpop.permute.xlu0 %952
        %954 = vset.pattern.permute.xlu0 0
        %955 = vperm.xlu0 %954, %v728
        %v956 = vpop.permute.xlu0 %955
        %957 = vset.pattern.permute.xlu0 0
        %958 = vperm.xlu0 %957, %v729
        %v959 = vpop.permute.xlu0 %958
        %960 = vset.pattern.permute.xlu0 0
        %961 = vperm.xlu0 %960, %v730
        %v962 = vpop.permute.xlu0 %961
        %963 = vset.pattern.permute.xlu0 0
        %964 = vperm.xlu0 %963, %v731
        %v965 = vpop.permute.xlu0 %964
        %966 = vset.pattern.permute.xlu0 0
        %967 = vperm.xlu0 %966, %v732
        %v968 = vpop.permute.xlu0 %967
        %969 = vset.pattern.permute.xlu0 0
        %970 = vperm.xlu0 %969, %v733
        %v971 = vpop.permute.xlu0 %970
        %972 = vset.pattern.permute.xlu0 0
        %973 = vperm.xlu0 %972, %v734
        %v974 = vpop.permute.xlu0 %973
        %975 = vset.pattern.permute.xlu0 0
        %976 = vperm.xlu0 %975, %v735
        %v977 = vpop.permute.xlu0 %976
        %978 = vset.pattern.permute.xlu0 0
        %979 = vperm.xlu0 %978, %v736
        %v980 = vpop.permute.xlu0 %979
        %981 = vset.pattern.permute.xlu0 0
        %982 = vperm.xlu0 %981, %v737
        %v983 = vpop.permute.xlu0 %982
        %984 = vset.pattern.permute.xlu0 0
        %985 = vperm.xlu0 %984, %v738
        %v986 = vpop.permute.xlu0 %985
        %987 = vset.pattern.permute.xlu0 0
        %988 = vperm.xlu0 %987, %v739
        %v989 = vpop.permute.xlu0 %988
        %990 = vset.pattern.permute.xlu0 0
        %991 = vperm.xlu0 %990, %v740
        %v992 = vpop.permute.xlu0 %991
        %993 = vset.pattern.permute.xlu0 0
        %994 = vperm.xlu0 %993, %v741
        %v995 = vpop.permute.xlu0 %994
        %996 = vset.pattern.permute.xlu0 0
        %997 = vperm.xlu0 %996, %v742
        %v998 = vpop.permute.xlu0 %997
        %999 = vset.pattern.permute.xlu0 0
        %1000 = vperm.xlu0 %999, %v743
        %v1001 = vpop.permute.xlu0 %1000
        %1002 = vset.pattern.permute.xlu0 0
        %1003 = vperm.xlu0 %1002, %v744
        %v1004 = vpop.permute.xlu0 %1003
        %1005 = vset.pattern.permute.xlu0 0
        %1006 = vperm.xlu0 %1005, %v745
        %v1007 = vpop.permute.xlu0 %1006
        %1008 = vset.pattern.permute.xlu0 0
        %1009 = vperm.xlu0 %1008, %v746
        %v1010 = vpop.permute.xlu0 %1009
        %1011 = vset.pattern.permute.xlu0 0
        %1012 = vperm.xlu0 %1011, %v747
        %v1013 = vpop.permute.xlu0 %1012
        %1014 = vset.pattern.permute.xlu0 0
        %1015 = vperm.xlu0 %1014, %v748
        %v1016 = vpop.permute.xlu0 %1015
        %1017 = vset.pattern.permute.xlu0 0
        %1018 = vperm.xlu0 %1017, %v749
        %v1019 = vpop.permute.xlu0 %1018
        %1020 = vset.pattern.permute.xlu0 0
        %1021 = vperm.xlu0 %1020, %v750
        %v1022 = vpop.permute.xlu0 %1021
        %1023 = vset.pattern.permute.xlu0 0
        %1024 = vperm.xlu0 %1023, %v751
        %v1025 = vpop.permute.xlu0 %1024
        %1026 = vset.pattern.permute.xlu0 0
        %1027 = vperm.xlu0 %1026, %v752
        %v1028 = vpop.permute.xlu0 %1027
        %1029 = vset.pattern.permute.xlu0 0
        %1030 = vperm.xlu0 %1029, %v753
        %v1031 = vpop.permute.xlu0 %1030
        %1032 = vset.pattern.permute.xlu0 0
        %1033 = vperm.xlu0 %1032, %v754
        %v1034 = vpop.permute.xlu0 %1033
        %1035 = vset.pattern.permute.xlu0 0
        %1036 = vperm.xlu0 %1035, %v755
        %v1037 = vpop.permute.xlu0 %1036
        %1038 = vset.pattern.permute.xlu0 0
        %1039 = vperm.xlu0 %1038, %v756
        %v1040 = vpop.permute.xlu0 %1039
        %1041 = vset.pattern.permute.xlu0 0
        %1042 = vperm.xlu0 %1041, %v757
        %v1043 = vpop.permute.xlu0 %1042
        %1044 = vset.pattern.permute.xlu0 0
        %1045 = vperm.xlu0 %1044, %v758
        %v1046 = vpop.permute.xlu0 %1045
        %1047 = vset.pattern.permute.xlu0 0
        %1048 = vperm.xlu0 %1047, %v759
        %v1049 = vpop.permute.xlu0 %1048
        %1050 = vset.pattern.permute.xlu0 0
        %1051 = vperm.xlu0 %1050, %v760
        %v1052 = vpop.permute.xlu0 %1051
        %1053 = vset.pattern.permute.xlu0 0
        %1054 = vperm.xlu0 %1053, %v761
        %v1055 = vpop.permute.xlu0 %1054
        %1056 = vset.pattern.permute.xlu0 0
        %1057 = vperm.xlu0 %1056, %v762
        %v1058 = vpop.permute.xlu0 %1057
        %1059 = vset.pattern.permute.xlu0 0
        %1060 = vperm.xlu0 %1059, %v763
        %v1061 = vpop.permute.xlu0 %1060
        %1062 = vset.pattern.permute.xlu0 0
        %1063 = vperm.xlu0 %1062, %v764
        %v1064 = vpop.permute.xlu0 %1063
        %1065 = vset.pattern.permute.xlu0 0
        %1066 = vperm.xlu0 %1065, %v765
        %v1067 = vpop.permute.xlu0 %1066
        %1068 = vset.pattern.permute.xlu0 0
        %1069 = vperm.xlu0 %1068, %v766
        %v1070 = vpop.permute.xlu0 %1069
        %1071 = vset.pattern.permute.xlu0 0
        %1072 = vperm.xlu0 %1071, %v767
        %v1073 = vpop.permute.xlu0 %1072
        %1074 = vset.pattern.permute.xlu0 0
        %1075 = vperm.xlu0 %1074, %v768
        %v1076 = vpop.permute.xlu0 %1075
        %1077 = vset.pattern.permute.xlu0 0
        %1078 = vperm.xlu0 %1077, %v769
        %v1079 = vpop.permute.xlu0 %1078
        %1080 = vset.pattern.permute.xlu0 0
        %1081 = vperm.xlu0 %1080, %v770
        %v1082 = vpop.permute.xlu0 %1081
        %1083 = vset.pattern.permute.xlu0 0
        %1084 = vperm.xlu0 %1083, %v771
        %v1085 = vpop.permute.xlu0 %1084
        %1086 = vset.pattern.permute.xlu0 0
        %1087 = vperm.xlu0 %1086, %v772
        %v1088 = vpop.permute.xlu0 %1087
        %1089 = vset.pattern.permute.xlu0 0
        %1090 = vperm.xlu0 %1089, %v773
        %v1091 = vpop.permute.xlu0 %1090
        %1092 = vset.pattern.permute.xlu0 0
        %1093 = vperm.xlu0 %1092, %v774
        %v1094 = vpop.permute.xlu0 %1093
        %1095 = vset.pattern.permute.xlu0 0
        %1096 = vperm.xlu0 %1095, %v775
        %v1097 = vpop.permute.xlu0 %1096
        %1098 = vset.pattern.permute.xlu0 0
        %1099 = vperm.xlu0 %1098, %v776
        %v1100 = vpop.permute.xlu0 %1099
        %1101 = vset.pattern.permute.xlu0 0
        %1102 = vperm.xlu0 %1101, %v777
        %v1103 = vpop.permute.xlu0 %1102
        %1104 = vset.pattern.permute.xlu0 0
        %1105 = vperm.xlu0 %1104, %v778
        %v1106 = vpop.permute.xlu0 %1105
        %1107 = vset.pattern.permute.xlu0 0
        %1108 = vperm.xlu0 %1107, %v779
        %v1109 = vpop.permute.xlu0 %1108
        %1110 = vset.pattern.permute.xlu0 0
        %1111 = vperm.xlu0 %1110, %v780
        %v1112 = vpop.permute.xlu0 %1111
        %1113 = vset.pattern.permute.xlu0 0
        %1114 = vperm.xlu0 %1113, %v781
        %v1115 = vpop.permute.xlu0 %1114
        %1116 = vset.pattern.permute.xlu0 0
        %1117 = vperm.xlu0 %1116, %v782
        %v1118 = vpop.permute.xlu0 %1117
        %1119 = vset.pattern.permute.xlu0 0
        %1120 = vperm.xlu0 %1119, %v783
        %v1121 = vpop.permute.xlu0 %1120
        %1122 = vset.pattern.permute.xlu0 0
        %1123 = vperm.xlu0 %1122, %v784
        %v1124 = vpop.permute.xlu0 %1123
        %1125 = vset.pattern.permute.xlu0 0
        %1126 = vperm.xlu0 %1125, %v785
        %v1127 = vpop.permute.xlu0 %1126
        %1128 = vset.pattern.permute.xlu0 0
        %1129 = vperm.xlu0 %1128, %v786
        %v1130 = vpop.permute.xlu0 %1129
        %1131 = vset.pattern.permute.xlu0 0
        %1132 = vperm.xlu0 %1131, %v787
        %v1133 = vpop.permute.xlu0 %1132
        %1134 = vset.pattern.permute.xlu0 0
        %1135 = vperm.xlu0 %1134, %v788
        %v1136 = vpop.permute.xlu0 %1135
        %1137 = vset.pattern.permute.xlu0 0
        %1138 = vperm.xlu0 %1137, %v789
        %v1139 = vpop.permute.xlu0 %1138
        %1140 = vset.pattern.permute.xlu0 0
        %1141 = vperm.xlu0 %1140, %v790
        %v1142 = vpop.permute.xlu0 %1141
        %1143 = vset.pattern.permute.xlu0 0
        %1144 = vperm.xlu0 %1143, %v791
        %v1145 = vpop.permute.xlu0 %1144
        %1146 = vset.pattern.permute.xlu0 0
        %1147 = vperm.xlu0 %1146, %v792
        %v1148 = vpop.permute.xlu0 %1147
        %1149 = vset.pattern.permute.xlu0 0
        %1150 = vperm.xlu0 %1149, %v793
        %v1151 = vpop.permute.xlu0 %1150
        %1152 = vset.pattern.permute.xlu0 0
        %1153 = vperm.xlu0 %1152, %v794
        %v1154 = vpop.permute.xlu0 %1153
        %1155 = vset.pattern.permute.xlu0 0
        %1156 = vperm.xlu0 %1155, %v795
        %v1157 = vpop.permute.xlu0 %1156
        %1158 = vset.pattern.permute.xlu0 0
        %1159 = vperm.xlu0 %1158, %v796
        %v1160 = vpop.permute.xlu0 %1159
        %1161 = vset.pattern.permute.xlu0 0
        %1162 = vperm.xlu0 %1161, %v797
        %v1163 = vpop.permute.xlu0 %1162
        %1164 = vset.pattern.permute.xlu0 0
        %1165 = vperm.xlu0 %1164, %v798
        %v1166 = vpop.permute.xlu0 %1165
        %1167 = vset.pattern.permute.xlu0 0
        %1168 = vperm.xlu0 %1167, %v799
        %v1169 = vpop.permute.xlu0 %1168
        %1170 = vset.pattern.permute.xlu0 0
        %1171 = vperm.xlu0 %1170, %v800
        %v1172 = vpop.permute.xlu0 %1171
        %1173 = vset.pattern.permute.xlu0 0
        %1174 = vperm.xlu0 %1173, %v801
        %v1175 = vpop.permute.xlu0 %1174
        %1176 = vset.pattern.permute.xlu0 0
        %1177 = vperm.xlu0 %1176, %v802
        %v1178 = vpop.permute.xlu0 %1177
        %1179 = vset.pattern.permute.xlu0 0
        %1180 = vperm.xlu0 %1179, %v803
        %v1181 = vpop.permute.xlu0 %1180
        %1182 = vset.pattern.permute.xlu0 0
        %1183 = vperm.xlu0 %1182, %v804
        %v1184 = vpop.permute.xlu0 %1183
        %1185 = vset.pattern.permute.xlu0 0
        %1186 = vperm.xlu0 %1185, %v805
        %v1187 = vpop.permute.xlu0 %1186
        %1188 = vset.pattern.permute.xlu0 0
        %1189 = vperm.xlu0 %1188, %v806
        %v1190 = vpop.permute.xlu0 %1189
        %1191 = vset.pattern.permute.xlu0 0
        %1192 = vperm.xlu0 %1191, %v807
        %v1193 = vpop.permute.xlu0 %1192
        %vm1194 = vcmp.eq.s32.totalorder %v809, %v812
        %vm1195 = vcmp.eq.s32.totalorder %v809, %v815
        %vm1196 = vcmp.eq.s32.totalorder %v809, %v818
        %vm1197 = vcmp.eq.s32.totalorder %v809, %v821
        %vm1198 = vcmp.eq.s32.totalorder %v809, %v824
        %vm1199 = vcmp.eq.s32.totalorder %v809, %v827
        %vm1200 = vcmp.eq.s32.totalorder %v809, %v830
        %vm1201 = vcmp.eq.s32.totalorder %v809, %v833
        %vm1202 = vcmp.eq.s32.totalorder %v809, %v836
        %vm1203 = vcmp.eq.s32.totalorder %v809, %v839
        %vm1204 = vcmp.eq.s32.totalorder %v809, %v842
        %vm1205 = vcmp.eq.s32.totalorder %v809, %v845
        %vm1206 = vcmp.eq.s32.totalorder %v809, %v848
        %vm1207 = vcmp.eq.s32.totalorder %v809, %v851
        %vm1208 = vcmp.eq.s32.totalorder %v809, %v854
        %vm1209 = vcmp.eq.s32.totalorder %v809, %v857
        %vm1210 = vcmp.eq.s32.totalorder %v809, %v860
        %vm1211 = vcmp.eq.s32.totalorder %v809, %v863
        %vm1212 = vcmp.eq.s32.totalorder %v809, %v866
        %vm1213 = vcmp.eq.s32.totalorder %v809, %v869
        %vm1214 = vcmp.eq.s32.totalorder %v809, %v872
        %vm1215 = vcmp.eq.s32.totalorder %v809, %v875
        %vm1216 = vcmp.eq.s32.totalorder %v809, %v878
        %vm1217 = vcmp.eq.s32.totalorder %v809, %v881
        %vm1218 = vcmp.eq.s32.totalorder %v809, %v884
        %vm1219 = vcmp.eq.s32.totalorder %v809, %v887
        %vm1220 = vcmp.eq.s32.totalorder %v809, %v890
        %vm1221 = vcmp.eq.s32.totalorder %v809, %v893
        %vm1222 = vcmp.eq.s32.totalorder %v809, %v896
        %vm1223 = vcmp.eq.s32.totalorder %v809, %v899
        %vm1224 = vcmp.eq.s32.totalorder %v809, %v902
        %vm1225 = vcmp.eq.s32.totalorder %v809, %v905
        %vm1226 = vcmp.eq.s32.totalorder %v809, %v908
        %vm1227 = vcmp.eq.s32.totalorder %v809, %v911
        %vm1228 = vcmp.eq.s32.totalorder %v809, %v914
        %vm1229 = vcmp.eq.s32.totalorder %v809, %v917
        %vm1230 = vcmp.eq.s32.totalorder %v809, %v920
        %vm1231 = vcmp.eq.s32.totalorder %v809, %v923
        %vm1232 = vcmp.eq.s32.totalorder %v809, %v926
        %vm1233 = vcmp.eq.s32.totalorder %v809, %v929
        %vm1234 = vcmp.eq.s32.totalorder %v809, %v932
        %vm1235 = vcmp.eq.s32.totalorder %v809, %v935
        %vm1236 = vcmp.eq.s32.totalorder %v809, %v938
        %vm1237 = vcmp.eq.s32.totalorder %v809, %v941
        %vm1238 = vcmp.eq.s32.totalorder %v809, %v944
        %vm1239 = vcmp.eq.s32.totalorder %v809, %v947
        %vm1240 = vcmp.eq.s32.totalorder %v809, %v950
        %vm1241 = vcmp.eq.s32.totalorder %v809, %v953
        %vm1242 = vcmp.eq.s32.totalorder %v809, %v956
        %vm1243 = vcmp.eq.s32.totalorder %v809, %v959
        %vm1244 = vcmp.eq.s32.totalorder %v809, %v962
        %vm1245 = vcmp.eq.s32.totalorder %v809, %v965
        %vm1246 = vcmp.eq.s32.totalorder %v809, %v968
        %vm1247 = vcmp.eq.s32.totalorder %v809, %v971
        %vm1248 = vcmp.eq.s32.totalorder %v809, %v974
        %vm1249 = vcmp.eq.s32.totalorder %v809, %v977
        %vm1250 = vcmp.eq.s32.totalorder %v809, %v980
        %vm1251 = vcmp.eq.s32.totalorder %v809, %v983
        %vm1252 = vcmp.eq.s32.totalorder %v809, %v986
        %vm1253 = vcmp.eq.s32.totalorder %v809, %v989
        %vm1254 = vcmp.eq.s32.totalorder %v809, %v992
        %vm1255 = vcmp.eq.s32.totalorder %v809, %v995
        %vm1256 = vcmp.eq.s32.totalorder %v809, %v998
        %vm1257 = vcmp.eq.s32.totalorder %v809, %v1001
        %vm1258 = vcmp.eq.s32.totalorder %v809, %v1004
        %vm1259 = vcmp.eq.s32.totalorder %v809, %v1007
        %vm1260 = vcmp.eq.s32.totalorder %v809, %v1010
        %vm1261 = vcmp.eq.s32.totalorder %v809, %v1013
        %vm1262 = vcmp.eq.s32.totalorder %v809, %v1016
        %vm1263 = vcmp.eq.s32.totalorder %v809, %v1019
        %vm1264 = vcmp.eq.s32.totalorder %v809, %v1022
        %vm1265 = vcmp.eq.s32.totalorder %v809, %v1025
        %vm1266 = vcmp.eq.s32.totalorder %v809, %v1028
        %vm1267 = vcmp.eq.s32.totalorder %v809, %v1031
        %vm1268 = vcmp.eq.s32.totalorder %v809, %v1034
        %vm1269 = vcmp.eq.s32.totalorder %v809, %v1037
        %vm1270 = vcmp.eq.s32.totalorder %v809, %v1040
        %vm1271 = vcmp.eq.s32.totalorder %v809, %v1043
        %vm1272 = vcmp.eq.s32.totalorder %v809, %v1046
        %vm1273 = vcmp.eq.s32.totalorder %v809, %v1049
        %vm1274 = vcmp.eq.s32.totalorder %v809, %v1052
        %vm1275 = vcmp.eq.s32.totalorder %v809, %v1055
        %vm1276 = vcmp.eq.s32.totalorder %v809, %v1058
        %vm1277 = vcmp.eq.s32.totalorder %v809, %v1061
        %vm1278 = vcmp.eq.s32.totalorder %v809, %v1064
        %vm1279 = vcmp.eq.s32.totalorder %v809, %v1067
        %vm1280 = vcmp.eq.s32.totalorder %v809, %v1070
        %vm1281 = vcmp.eq.s32.totalorder %v809, %v1073
        %vm1282 = vcmp.eq.s32.totalorder %v809, %v1076
        %vm1283 = vcmp.eq.s32.totalorder %v809, %v1079
        %vm1284 = vcmp.eq.s32.totalorder %v809, %v1082
        %vm1285 = vcmp.eq.s32.totalorder %v809, %v1085
        %vm1286 = vcmp.eq.s32.totalorder %v809, %v1088
        %vm1287 = vcmp.eq.s32.totalorder %v809, %v1091
        %vm1288 = vcmp.eq.s32.totalorder %v809, %v1094
        %vm1289 = vcmp.eq.s32.totalorder %v809, %v1097
        %vm1290 = vcmp.eq.s32.totalorder %v809, %v1100
        %vm1291 = vcmp.eq.s32.totalorder %v809, %v1103
        %vm1292 = vcmp.eq.s32.totalorder %v809, %v1106
        %vm1293 = vcmp.eq.s32.totalorder %v809, %v1109
        %vm1294 = vcmp.eq.s32.totalorder %v809, %v1112
        %vm1295 = vcmp.eq.s32.totalorder %v809, %v1115
        %vm1296 = vcmp.eq.s32.totalorder %v809, %v1118
        %vm1297 = vcmp.eq.s32.totalorder %v809, %v1121
        %vm1298 = vcmp.eq.s32.totalorder %v809, %v1124
        %vm1299 = vcmp.eq.s32.totalorder %v809, %v1127
        %vm1300 = vcmp.eq.s32.totalorder %v809, %v1130
        %vm1301 = vcmp.eq.s32.totalorder %v809, %v1133
        %vm1302 = vcmp.eq.s32.totalorder %v809, %v1136
        %vm1303 = vcmp.eq.s32.totalorder %v809, %v1139
        %vm1304 = vcmp.eq.s32.totalorder %v809, %v1142
        %vm1305 = vcmp.eq.s32.totalorder %v809, %v1145
        %vm1306 = vcmp.eq.s32.totalorder %v809, %v1148
        %vm1307 = vcmp.eq.s32.totalorder %v809, %v1151
        %vm1308 = vcmp.eq.s32.totalorder %v809, %v1154
        %vm1309 = vcmp.eq.s32.totalorder %v809, %v1157
        %vm1310 = vcmp.eq.s32.totalorder %v809, %v1160
        %vm1311 = vcmp.eq.s32.totalorder %v809, %v1163
        %vm1312 = vcmp.eq.s32.totalorder %v809, %v1166
        %vm1313 = vcmp.eq.s32.totalorder %v809, %v1169
        %vm1314 = vcmp.eq.s32.totalorder %v809, %v1172
        %vm1315 = vcmp.eq.s32.totalorder %v809, %v1175
        %vm1316 = vcmp.eq.s32.totalorder %v809, %v1178
        %vm1317 = vcmp.eq.s32.totalorder %v809, %v1181
        %vm1318 = vcmp.eq.s32.totalorder %v809, %v1184
        %vm1319 = vcmp.eq.s32.totalorder %v809, %v1187
        %vm1320 = vcmp.eq.s32.totalorder %v809, %v1190
        %vm1321 = vcmp.eq.s32.totalorder %v809, %v1193
        %v1322 = vsel %vm1194, 1.0, 0.0
        %v1323 = vsel %vm1195, 1.0, 0.0
        %v1324 = vsel %vm1196, 1.0, 0.0
        %v1325 = vsel %vm1197, 1.0, 0.0
        %v1326 = vsel %vm1198, 1.0, 0.0
        %v1327 = vsel %vm1199, 1.0, 0.0
        %v1328 = vsel %vm1200, 1.0, 0.0
        %v1329 = vsel %vm1201, 1.0, 0.0
        %v1330 = vsel %vm1202, 1.0, 0.0
        %v1331 = vsel %vm1203, 1.0, 0.0
        %v1332 = vsel %vm1204, 1.0, 0.0
        %v1333 = vsel %vm1205, 1.0, 0.0
        %v1334 = vsel %vm1206, 1.0, 0.0
        %v1335 = vsel %vm1207, 1.0, 0.0
        %v1336 = vsel %vm1208, 1.0, 0.0
        %v1337 = vsel %vm1209, 1.0, 0.0
        %v1338 = vsel %vm1210, 1.0, 0.0
        %v1339 = vsel %vm1211, 1.0, 0.0
        %v1340 = vsel %vm1212, 1.0, 0.0
        %v1341 = vsel %vm1213, 1.0, 0.0
        %v1342 = vsel %vm1214, 1.0, 0.0
        %v1343 = vsel %vm1215, 1.0, 0.0
        %v1344 = vsel %vm1216, 1.0, 0.0
        %v1345 = vsel %vm1217, 1.0, 0.0
        %v1346 = vsel %vm1218, 1.0, 0.0
        %v1347 = vsel %vm1219, 1.0, 0.0
        %v1348 = vsel %vm1220, 1.0, 0.0
        %v1349 = vsel %vm1221, 1.0, 0.0
        %v1350 = vsel %vm1222, 1.0, 0.0
        %v1351 = vsel %vm1223, 1.0, 0.0
        %v1352 = vsel %vm1224, 1.0, 0.0
        %v1353 = vsel %vm1225, 1.0, 0.0
        %v1354 = vsel %vm1226, 1.0, 0.0
        %v1355 = vsel %vm1227, 1.0, 0.0
        %v1356 = vsel %vm1228, 1.0, 0.0
        %v1357 = vsel %vm1229, 1.0, 0.0
        %v1358 = vsel %vm1230, 1.0, 0.0
        %v1359 = vsel %vm1231, 1.0, 0.0
        %v1360 = vsel %vm1232, 1.0, 0.0
        %v1361 = vsel %vm1233, 1.0, 0.0
        %v1362 = vsel %vm1234, 1.0, 0.0
        %v1363 = vsel %vm1235, 1.0, 0.0
        %v1364 = vsel %vm1236, 1.0, 0.0
        %v1365 = vsel %vm1237, 1.0, 0.0
        %v1366 = vsel %vm1238, 1.0, 0.0
        %v1367 = vsel %vm1239, 1.0, 0.0
        %v1368 = vsel %vm1240, 1.0, 0.0
        %v1369 = vsel %vm1241, 1.0, 0.0
        %v1370 = vsel %vm1242, 1.0, 0.0
        %v1371 = vsel %vm1243, 1.0, 0.0
        %v1372 = vsel %vm1244, 1.0, 0.0
        %v1373 = vsel %vm1245, 1.0, 0.0
        %v1374 = vsel %vm1246, 1.0, 0.0
        %v1375 = vsel %vm1247, 1.0, 0.0
        %v1376 = vsel %vm1248, 1.0, 0.0
        %v1377 = vsel %vm1249, 1.0, 0.0
        %v1378 = vsel %vm1250, 1.0, 0.0
        %v1379 = vsel %vm1251, 1.0, 0.0
        %v1380 = vsel %vm1252, 1.0, 0.0
        %v1381 = vsel %vm1253, 1.0, 0.0
        %v1382 = vsel %vm1254, 1.0, 0.0
        %v1383 = vsel %vm1255, 1.0, 0.0
        %v1384 = vsel %vm1256, 1.0, 0.0
        %v1385 = vsel %vm1257, 1.0, 0.0
        %v1386 = vsel %vm1258, 1.0, 0.0
        %v1387 = vsel %vm1259, 1.0, 0.0
        %v1388 = vsel %vm1260, 1.0, 0.0
        %v1389 = vsel %vm1261, 1.0, 0.0
        %v1390 = vsel %vm1262, 1.0, 0.0
        %v1391 = vsel %vm1263, 1.0, 0.0
        %v1392 = vsel %vm1264, 1.0, 0.0
        %v1393 = vsel %vm1265, 1.0, 0.0
        %v1394 = vsel %vm1266, 1.0, 0.0
        %v1395 = vsel %vm1267, 1.0, 0.0
        %v1396 = vsel %vm1268, 1.0, 0.0
        %v1397 = vsel %vm1269, 1.0, 0.0
        %v1398 = vsel %vm1270, 1.0, 0.0
        %v1399 = vsel %vm1271, 1.0, 0.0
        %v1400 = vsel %vm1272, 1.0, 0.0
        %v1401 = vsel %vm1273, 1.0, 0.0
        %v1402 = vsel %vm1274, 1.0, 0.0
        %v1403 = vsel %vm1275, 1.0, 0.0
        %v1404 = vsel %vm1276, 1.0, 0.0
        %v1405 = vsel %vm1277, 1.0, 0.0
        %v1406 = vsel %vm1278, 1.0, 0.0
        %v1407 = vsel %vm1279, 1.0, 0.0
        %v1408 = vsel %vm1280, 1.0, 0.0
        %v1409 = vsel %vm1281, 1.0, 0.0
        %v1410 = vsel %vm1282, 1.0, 0.0
        %v1411 = vsel %vm1283, 1.0, 0.0
        %v1412 = vsel %vm1284, 1.0, 0.0
        %v1413 = vsel %vm1285, 1.0, 0.0
        %v1414 = vsel %vm1286, 1.0, 0.0
        %v1415 = vsel %vm1287, 1.0, 0.0
        %v1416 = vsel %vm1288, 1.0, 0.0
        %v1417 = vsel %vm1289, 1.0, 0.0
        %v1418 = vsel %vm1290, 1.0, 0.0
        %v1419 = vsel %vm1291, 1.0, 0.0
        %v1420 = vsel %vm1292, 1.0, 0.0
        %v1421 = vsel %vm1293, 1.0, 0.0
        %v1422 = vsel %vm1294, 1.0, 0.0
        %v1423 = vsel %vm1295, 1.0, 0.0
        %v1424 = vsel %vm1296, 1.0, 0.0
        %v1425 = vsel %vm1297, 1.0, 0.0
        %v1426 = vsel %vm1298, 1.0, 0.0
        %v1427 = vsel %vm1299, 1.0, 0.0
        %v1428 = vsel %vm1300, 1.0, 0.0
        %v1429 = vsel %vm1301, 1.0, 0.0
        %v1430 = vsel %vm1302, 1.0, 0.0
        %v1431 = vsel %vm1303, 1.0, 0.0
        %v1432 = vsel %vm1304, 1.0, 0.0
        %v1433 = vsel %vm1305, 1.0, 0.0
        %v1434 = vsel %vm1306, 1.0, 0.0
        %v1435 = vsel %vm1307, 1.0, 0.0
        %v1436 = vsel %vm1308, 1.0, 0.0
        %v1437 = vsel %vm1309, 1.0, 0.0
        %v1438 = vsel %vm1310, 1.0, 0.0
        %v1439 = vsel %vm1311, 1.0, 0.0
        %v1440 = vsel %vm1312, 1.0, 0.0
        %v1441 = vsel %vm1313, 1.0, 0.0
        %v1442 = vsel %vm1314, 1.0, 0.0
        %v1443 = vsel %vm1315, 1.0, 0.0
        %v1444 = vsel %vm1316, 1.0, 0.0
        %v1445 = vsel %vm1317, 1.0, 0.0
        %v1446 = vsel %vm1318, 1.0, 0.0
        %v1447 = vsel %vm1319, 1.0, 0.0
        %v1448 = vsel %vm1320, 1.0, 0.0
        %v1449 = vsel %vm1321, 1.0, 0.0
        %v1450 = vld [vmem:[%s2] sm:$0xff]
        %v1451 = vld [vmem:[%s2 + $0x8] sm:$0xff]
        %v1452 = vld [vmem:[%s2 + $0x10] sm:$0xff]
        %v1453 = vld [vmem:[%s2 + $0x18] sm:$0xff]
        %v1454 = vld [vmem:[%s2 + $0x20] sm:$0xff]
        %v1455 = vld [vmem:[%s2 + $0x28] sm:$0xff]
        %v1456 = vld [vmem:[%s2 + $0x30] sm:$0xff]
        %v1457 = vld [vmem:[%s2 + $0x38] sm:$0xff]
        %v1458 = vld [vmem:[%s2 + $0x40] sm:$0xff]
        %v1459 = vld [vmem:[%s2 + $0x48] sm:$0xff]
        %v1460 = vld [vmem:[%s2 + $0x50] sm:$0xff]
        %v1461 = vld [vmem:[%s2 + $0x58] sm:$0xff]
        %v1462 = vld [vmem:[%s2 + $0x60] sm:$0xff]
        %v1463 = vld [vmem:[%s2 + $0x68] sm:$0xff]
        %v1464 = vld [vmem:[%s2 + $0x70] sm:$0xff]
        %v1465 = vld [vmem:[%s2 + $0x78] sm:$0xff]
        %1466 = vmatprep.subr.mxu0 0.0
        %1467 = vmatpush1.msra.mxu0 %v1450
        %1468 = vmatprep.subr.mxu0 0.0
        %1469 = vmatpush1.msra.mxu0 %v1451
        %1470 = vmatprep.subr.mxu0 0.0
        %1471 = vmatpush1.msra.mxu0 %v1452
        %1472 = vmatprep.subr.mxu0 0.0
        %1473 = vmatpush1.msra.mxu0 %v1453
        %1474 = vmatprep.subr.mxu0 0.0
        %1475 = vmatpush1.msra.mxu0 %v1454
        %1476 = vmatprep.subr.mxu0 0.0
        %1477 = vmatpush1.msra.mxu0 %v1455
        %1478 = vmatprep.subr.mxu0 0.0
        %1479 = vmatpush1.msra.mxu0 %v1456
        %1480 = vmatprep.subr.mxu0 0.0
        %1481 = vmatpush1.msra.mxu0 %v1457
        %1482 = vmatprep.subr.mxu0 0.0
        %1483 = vmatpush1.msra.mxu0 %v1458
        %1484 = vmatprep.subr.mxu0 0.0
        %1485 = vmatpush1.msra.mxu0 %v1459
        %1486 = vmatprep.subr.mxu0 0.0
        %1487 = vmatpush1.msra.mxu0 %v1460
        %1488 = vmatprep.subr.mxu0 0.0
        %1489 = vmatpush1.msra.mxu0 %v1461
        %1490 = vmatprep.subr.mxu0 0.0
        %1491 = vmatpush1.msra.mxu0 %v1462
        %1492 = vmatprep.subr.mxu0 0.0
        %1493 = vmatpush1.msra.mxu0 %v1463
        %1494 = vmatprep.subr.mxu0 0.0
        %1495 = vmatpush1.msra.mxu0 %v1464
        %1496 = vmatprep.subr.mxu0 0.0
        %1497 = vmatpush1.msra.mxu0 %v1465
        %1498 = vmatprep.subr.mxu0 0.0
        %1499 = vmatpush1.msra.mxu0 0.0
        %1500 = vmatprep.subr.mxu0 0.0
        %1501 = vmatpush1.msra.mxu0 0.0
        %1502 = vmatprep.subr.mxu0 0.0
        %1503 = vmatpush1.msra.mxu0 0.0
        %1504 = vmatprep.subr.mxu0 0.0
        %1505 = vmatpush1.msra.mxu0 0.0
        %1506 = vmatprep.subr.mxu0 0.0
        %1507 = vmatpush1.msra.mxu0 0.0
        %1508 = vmatprep.subr.mxu0 0.0
        %1509 = vmatpush1.msra.mxu0 0.0
        %1510 = vmatprep.subr.mxu0 0.0
        %1511 = vmatpush1.msra.mxu0 0.0
        %1512 = vmatprep.subr.mxu0 0.0
        %1513 = vmatpush1.msra.mxu0 0.0
        %1514 = vmatprep.subr.mxu0 0.0
        %1515 = vmatpush1.msra.mxu0 0.0
        %1516 = vmatprep.subr.mxu0 0.0
        %1517 = vmatpush1.msra.mxu0 0.0
        %1518 = vmatprep.subr.mxu0 0.0
        %1519 = vmatpush1.msra.mxu0 0.0
        %1520 = vmatprep.subr.mxu0 0.0
        %1521 = vmatpush1.msra.mxu0 0.0
        %1522 = vmatprep.subr.mxu0 0.0
        %1523 = vmatpush1.msra.mxu0 0.0
        %1524 = vmatprep.subr.mxu0 0.0
        %1525 = vmatpush1.msra.mxu0 0.0
        %1526 = vmatprep.subr.mxu0 0.0
        %1527 = vmatpush1.msra.mxu0 0.0
        %1528 = vmatprep.subr.mxu0 0.0
        %1529 = vmatpush1.msra.mxu0 0.0
        %1530 = vmatprep.mubr.f32.mxu0 0.0
        %1531 = vmatmul.mubr.f32.gmra.mrb[0].mxu0 %v1322
        %v1532 = vpop.f32.mrb[0].mxu0
        %v1533 = vadd.f32 0.0, %v1532
        %v1534 = vpop.f32.mrb[0].mxu0
        %1535 = vmatprep.mubr.f32.mxu0 0.0
        %1536 = vmatmul.mubr.f32.gmra.mrb[0].mxu0 %v1323
        %v1537 = vpop.f32.mrb[0].mxu0
        %v1538 = vadd.f32 0.0, %v1537
        %v1539 = vpop.f32.mrb[0].mxu0
        %1540 = vmatprep.mubr.f32.mxu0 0.0
        %1541 = vmatmul.mubr.f32.gmra.mrb[0].mxu0 %v1324
        %v1542 = vpop.f32.mrb[0].mxu0
        %v1543 = vadd.f32 0.0, %v1542
        %v1544 = vpop.f32.mrb[0].mxu0
        %1545 = vmatprep.mubr.f32.mxu0 0.0
        %1546 = vmatmul.mubr.f32.gmra.mrb[0].mxu0 %v1325
        %v1547 = vpop.f32.mrb[0].mxu0
        %v1548 = vadd.f32 0.0, %v1547
        %v1549 = vpop.f32.mrb[0].mxu0
        %1550 = vmatprep.mubr.f32.mxu0 0.0
        %1551 = vmatmul.mubr.f32.gmra.mrb[0].mxu0 %v1326
        %v1552 = vpop.f32.mrb[0].mxu0
        %v1553 = vadd.f32 0.0, %v1552
        %v1554 = vpop.f32.mrb[0].mxu0
        %1555 = vmatprep.mubr.f32.mxu0 0.0
        %1556 = vmatmul.mubr.f32.gmra.mrb[0].mxu0 %v1327
        %v1557 = vpop.f32.mrb[0].mxu0
        %v1558 = vadd.f32 0.0, %v1557
        %v1559 = vpop.f32.mrb[0].mxu0
        %1560 = vmatprep.mubr.f32.mxu0 0.0
        %1561 = vmatmul.mubr.f32.gmra.mrb[0].mxu0 %v1328
        %v1562 = vpop.f32.mrb[0].mxu0
        %v1563 = vadd.f32 0.0, %v1562
        %v1564 = vpop.f32.mrb[0].mxu0
        %1565 = vmatprep.mubr.f32.mxu0 0.0
        %1566 = vmatmul.mubr.f32.gmra.mrb[0].mxu0 %v1329
        %v1567 = vpop.f32.mrb[0].mxu0
        %v1568 = vadd.f32 0.0, %v1567
        %v1569 = vpop.f32.mrb[0].mxu0
        %1570 = vmatprep.mubr.f32.mxu0 0.0
        %1571 = vmatmul.mubr.f32.gmra.mrb[0].mxu0 %v1330
        %v1572 = vpop.f32.mrb[0].mxu0
        %v1573 = vadd.f32 0.0, %v1572
        %v1574 = vpop.f32.mrb[0].mxu0
        %1575 = vmatprep.mubr.f32.mxu0 0.0
        %1576 = vmatmul.mubr.f32.gmra.mrb[0].mxu0 %v1331
        %v1577 = vpop.f32.mrb[0].mxu0
        %v1578 = vadd.f32 0.0, %v1577
        %v1579 = vpop.f32.mrb[0].mxu0
        %1580 = vmatprep.mubr.f32.mxu0 0.0
        %1581 = vmatmul.mubr.f32.gmra.mrb[0].mxu0 %v1332
        %v1582 = vpop.f32.mrb[0].mxu0
        %v1583 = vadd.f32 0.0, %v1582
        %v1584 = vpop.f32.mrb[0].mxu0
        %1585 = vmatprep.mubr.f32.mxu0 0.0
        %1586 = vmatmul.mubr.f32.gmra.mrb[0].mxu0 %v1333
        %v1587 = vpop.f32.mrb[0].mxu0
        %v1588 = vadd.f32 0.0, %v1587
        %v1589 = vpop.f32.mrb[0].mxu0
        %1590 = vmatprep.mubr.f32.mxu0 0.0
        %1591 = vmatmul.mubr.f32.gmra.mrb[0].mxu0 %v1334
        %v1592 = vpop.f32.mrb[0].mxu0
        %v1593 = vadd.f32 0.0, %v1592
        %v1594 = vpop.f32.mrb[0].mxu0
        %1595 = vmatprep.mubr.f32.mxu0 0.0
        %1596 = vmatmul.mubr.f32.gmra.mrb[0].mxu0 %v1335
        %v1597 = vpop.f32.mrb[0].mxu0
        %v1598 = vadd.f32 0.0, %v1597
        %v1599 = vpop.f32.mrb[0].mxu0
        %1600 = vmatprep.mubr.f32.mxu0 0.0
        %1601 = vmatmul.mubr.f32.gmra.mrb[0].mxu0 %v1336
        %v1602 = vpop.f32.mrb[0].mxu0
        %v1603 = vadd.f32 0.0, %v1602
        %v1604 = vpop.f32.mrb[0].mxu0
        %1605 = vmatprep.mubr.f32.mxu0 0.0
        %1606 = vmatmul.mubr.f32.gmra.mrb[0].mxu0 %v1337
        %v1607 = vpop.f32.mrb[0].mxu0
        %v1608 = vadd.f32 0.0, %v1607
        %v1609 = vpop.f32.mrb[0].mxu0
        %1610 = vmatprep.mubr.f32.mxu0 0.0
        %1611 = vmatmul.mubr.f32.gmra.mrb[0].mxu0 %v1338
        %v1612 = vpop.f32.mrb[0].mxu0
        %v1613 = vadd.f32 0.0, %v1612
        %v1614 = vpop.f32.mrb[0].mxu0
        %1615 = vmatprep.mubr.f32.mxu0 0.0
        %1616 = vmatmul.mubr.f32.gmra.mrb[0].mxu0 %v1339
        %v1617 = vpop.f32.mrb[0].mxu0
        %v1618 = vadd.f32 0.0, %v1617
        %v1619 = vpop.f32.mrb[0].mxu0
        %1620 = vmatprep.mubr.f32.mxu0 0.0
        %1621 = vmatmul.mubr.f32.gmra.mrb[0].mxu0 %v1340
        %v1622 = vpop.f32.mrb[0].mxu0
        %v1623 = vadd.f32 0.0, %v1622
        %v1624 = vpop.f32.mrb[0].mxu0
        %1625 = vmatprep.mubr.f32.mxu0 0.0
        %1626 = vmatmul.mubr.f32.gmra.mrb[0].mxu0 %v1341
        %v1627 = vpop.f32.mrb[0].mxu0
        %v1628 = vadd.f32 0.0, %v1627
        %v1629 = vpop.f32.mrb[0].mxu0
        %1630 = vmatprep.mubr.f32.mxu0 0.0
        %1631 = vmatmul.mubr.f32.gmra.mrb[0].mxu0 %v1342
        %v1632 = vpop.f32.mrb[0].mxu0
        %v1633 = vadd.f32 0.0, %v1632
        %v1634 = vpop.f32.mrb[0].mxu0
        %1635 = vmatprep.mubr.f32.mxu0 0.0
        %1636 = vmatmul.mubr.f32.gmra.mrb[0].mxu0 %v1343
        %v1637 = vpop.f32.mrb[0].mxu0
        %v1638 = vadd.f32 0.0, %v1637
        %v1639 = vpop.f32.mrb[0].mxu0
        %1640 = vmatprep.mubr.f32.mxu0 0.0
        %1641 = vmatmul.mubr.f32.gmra.mrb[0].mxu0 %v1344
        %v1642 = vpop.f32.mrb[0].mxu0
        %v1643 = vadd.f32 0.0, %v1642
        %v1644 = vpop.f32.mrb[0].mxu0
        %1645 = vmatprep.mubr.f32.mxu0 0.0
        %1646 = vmatmul.mubr.f32.gmra.mrb[0].mxu0 %v1345
        %v1647 = vpop.f32.mrb[0].mxu0
        %v1648 = vadd.f32 0.0, %v1647
        %v1649 = vpop.f32.mrb[0].mxu0
        %1650 = vmatprep.mubr.f32.mxu0 0.0
        %1651 = vmatmul.mubr.f32.gmra.mrb[0].mxu0 %v1346
        %v1652 = vpop.f32.mrb[0].mxu0
        %v1653 = vadd.f32 0.0, %v1652
        %v1654 = vpop.f32.mrb[0].mxu0
        %1655 = vmatprep.mubr.f32.mxu0 0.0
        %1656 = vmatmul.mubr.f32.gmra.mrb[0].mxu0 %v1347
        %v1657 = vpop.f32.mrb[0].mxu0
        %v1658 = vadd.f32 0.0, %v1657
        %v1659 = vpop.f32.mrb[0].mxu0
        %1660 = vmatprep.mubr.f32.mxu0 0.0
        %1661 = vmatmul.mubr.f32.gmra.mrb[0].mxu0 %v1348
        %v1662 = vpop.f32.mrb[0].mxu0
        %v1663 = vadd.f32 0.0, %v1662
        %v1664 = vpop.f32.mrb[0].mxu0
        %1665 = vmatprep.mubr.f32.mxu0 0.0
        %1666 = vmatmul.mubr.f32.gmra.mrb[0].mxu0 %v1349
        %v1667 = vpop.f32.mrb[0].mxu0
        %v1668 = vadd.f32 0.0, %v1667
        %v1669 = vpop.f32.mrb[0].mxu0
        %1670 = vmatprep.mubr.f32.mxu0 0.0
        %1671 = vmatmul.mubr.f32.gmra.mrb[0].mxu0 %v1350
        %v1672 = vpop.f32.mrb[0].mxu0
        %v1673 = vadd.f32 0.0, %v1672
        %v1674 = vpop.f32.mrb[0].mxu0
        %1675 = vmatprep.mubr.f32.mxu0 0.0
        %1676 = vmatmul.mubr.f32.gmra.mrb[0].mxu0 %v1351
        %v1677 = vpop.f32.mrb[0].mxu0
        %v1678 = vadd.f32 0.0, %v1677
        %v1679 = vpop.f32.mrb[0].mxu0
        %1680 = vmatprep.mubr.f32.mxu0 0.0
        %1681 = vmatmul.mubr.f32.gmra.mrb[0].mxu0 %v1352
        %v1682 = vpop.f32.mrb[0].mxu0
        %v1683 = vadd.f32 0.0, %v1682
        %v1684 = vpop.f32.mrb[0].mxu0
        %1685 = vmatprep.mubr.f32.mxu0 0.0
        %1686 = vmatmul.mubr.f32.gmra.mrb[0].mxu0 %v1353
        %v1687 = vpop.f32.mrb[0].mxu0
        %v1688 = vadd.f32 0.0, %v1687
        %v1689 = vpop.f32.mrb[0].mxu0
        %1690 = vmatprep.mubr.f32.mxu0 0.0
        %1691 = vmatmul.mubr.f32.gmra.mrb[0].mxu0 %v1354
        %v1692 = vpop.f32.mrb[0].mxu0
        %v1693 = vadd.f32 0.0, %v1692
        %v1694 = vpop.f32.mrb[0].mxu0
        %1695 = vmatprep.mubr.f32.mxu0 0.0
        %1696 = vmatmul.mubr.f32.gmra.mrb[0].mxu0 %v1355
        %v1697 = vpop.f32.mrb[0].mxu0
        %v1698 = vadd.f32 0.0, %v1697
        %v1699 = vpop.f32.mrb[0].mxu0
        %1700 = vmatprep.mubr.f32.mxu0 0.0
        %1701 = vmatmul.mubr.f32.gmra.mrb[0].mxu0 %v1356
        %v1702 = vpop.f32.mrb[0].mxu0
        %v1703 = vadd.f32 0.0, %v1702
        %v1704 = vpop.f32.mrb[0].mxu0
        %1705 = vmatprep.mubr.f32.mxu0 0.0
        %1706 = vmatmul.mubr.f32.gmra.mrb[0].mxu0 %v1357
        %v1707 = vpop.f32.mrb[0].mxu0
        %v1708 = vadd.f32 0.0, %v1707
        %v1709 = vpop.f32.mrb[0].mxu0
        %1710 = vmatprep.mubr.f32.mxu0 0.0
        %1711 = vmatmul.mubr.f32.gmra.mrb[0].mxu0 %v1358
        %v1712 = vpop.f32.mrb[0].mxu0
        %v1713 = vadd.f32 0.0, %v1712
        %v1714 = vpop.f32.mrb[0].mxu0
        %1715 = vmatprep.mubr.f32.mxu0 0.0
        %1716 = vmatmul.mubr.f32.gmra.mrb[0].mxu0 %v1359
        %v1717 = vpop.f32.mrb[0].mxu0
        %v1718 = vadd.f32 0.0, %v1717
        %v1719 = vpop.f32.mrb[0].mxu0
        %1720 = vmatprep.mubr.f32.mxu0 0.0
        %1721 = vmatmul.mubr.f32.gmra.mrb[0].mxu0 %v1360
        %v1722 = vpop.f32.mrb[0].mxu0
        %v1723 = vadd.f32 0.0, %v1722
        %v1724 = vpop.f32.mrb[0].mxu0
        %1725 = vmatprep.mubr.f32.mxu0 0.0
        %1726 = vmatmul.mubr.f32.gmra.mrb[0].mxu0 %v1361
        %v1727 = vpop.f32.mrb[0].mxu0
        %v1728 = vadd.f32 0.0, %v1727
        %v1729 = vpop.f32.mrb[0].mxu0
        %1730 = vmatprep.mubr.f32.mxu0 0.0
        %1731 = vmatmul.mubr.f32.gmra.mrb[0].mxu0 %v1362
        %v1732 = vpop.f32.mrb[0].mxu0
        %v1733 = vadd.f32 0.0, %v1732
        %v1734 = vpop.f32.mrb[0].mxu0
        %1735 = vmatprep.mubr.f32.mxu0 0.0
        %1736 = vmatmul.mubr.f32.gmra.mrb[0].mxu0 %v1363
        %v1737 = vpop.f32.mrb[0].mxu0
        %v1738 = vadd.f32 0.0, %v1737
        %v1739 = vpop.f32.mrb[0].mxu0
        %1740 = vmatprep.mubr.f32.mxu0 0.0
        %1741 = vmatmul.mubr.f32.gmra.mrb[0].mxu0 %v1364
        %v1742 = vpop.f32.mrb[0].mxu0
        %v1743 = vadd.f32 0.0, %v1742
        %v1744 = vpop.f32.mrb[0].mxu0
        %1745 = vmatprep.mubr.f32.mxu0 0.0
        %1746 = vmatmul.mubr.f32.gmra.mrb[0].mxu0 %v1365
        %v1747 = vpop.f32.mrb[0].mxu0
        %v1748 = vadd.f32 0.0, %v1747
        %v1749 = vpop.f32.mrb[0].mxu0
        %1750 = vmatprep.mubr.f32.mxu0 0.0
        %1751 = vmatmul.mubr.f32.gmra.mrb[0].mxu0 %v1366
        %v1752 = vpop.f32.mrb[0].mxu0
        %v1753 = vadd.f32 0.0, %v1752
        %v1754 = vpop.f32.mrb[0].mxu0
        %1755 = vmatprep.mubr.f32.mxu0 0.0
        %1756 = vmatmul.mubr.f32.gmra.mrb[0].mxu0 %v1367
        %v1757 = vpop.f32.mrb[0].mxu0
        %v1758 = vadd.f32 0.0, %v1757
        %v1759 = vpop.f32.mrb[0].mxu0
        %1760 = vmatprep.mubr.f32.mxu0 0.0
        %1761 = vmatmul.mubr.f32.gmra.mrb[0].mxu0 %v1368
        %v1762 = vpop.f32.mrb[0].mxu0
        %v1763 = vadd.f32 0.0, %v1762
        %v1764 = vpop.f32.mrb[0].mxu0
        %1765 = vmatprep.mubr.f32.mxu0 0.0
        %1766 = vmatmul.mubr.f32.gmra.mrb[0].mxu0 %v1369
        %v1767 = vpop.f32.mrb[0].mxu0
        %v1768 = vadd.f32 0.0, %v1767
        %v1769 = vpop.f32.mrb[0].mxu0
        %1770 = vmatprep.mubr.f32.mxu0 0.0
        %1771 = vmatmul.mubr.f32.gmra.mrb[0].mxu0 %v1370
        %v1772 = vpop.f32.mrb[0].mxu0
        %v1773 = vadd.f32 0.0, %v1772
        %v1774 = vpop.f32.mrb[0].mxu0
        %1775 = vmatprep.mubr.f32.mxu0 0.0
        %1776 = vmatmul.mubr.f32.gmra.mrb[0].mxu0 %v1371
        %v1777 = vpop.f32.mrb[0].mxu0
        %v1778 = vadd.f32 0.0, %v1777
        %v1779 = vpop.f32.mrb[0].mxu0
        %1780 = vmatprep.mubr.f32.mxu0 0.0
        %1781 = vmatmul.mubr.f32.gmra.mrb[0].mxu0 %v1372
        %v1782 = vpop.f32.mrb[0].mxu0
        %v1783 = vadd.f32 0.0, %v1782
        %v1784 = vpop.f32.mrb[0].mxu0
        %1785 = vmatprep.mubr.f32.mxu0 0.0
        %1786 = vmatmul.mubr.f32.gmra.mrb[0].mxu0 %v1373
        %v1787 = vpop.f32.mrb[0].mxu0
        %v1788 = vadd.f32 0.0, %v1787
        %v1789 = vpop.f32.mrb[0].mxu0
        %1790 = vmatprep.mubr.f32.mxu0 0.0
        %1791 = vmatmul.mubr.f32.gmra.mrb[0].mxu0 %v1374
        %v1792 = vpop.f32.mrb[0].mxu0
        %v1793 = vadd.f32 0.0, %v1792
        %v1794 = vpop.f32.mrb[0].mxu0
        %1795 = vmatprep.mubr.f32.mxu0 0.0
        %1796 = vmatmul.mubr.f32.gmra.mrb[0].mxu0 %v1375
        %v1797 = vpop.f32.mrb[0].mxu0
        %v1798 = vadd.f32 0.0, %v1797
        %v1799 = vpop.f32.mrb[0].mxu0
        %1800 = vmatprep.mubr.f32.mxu0 0.0
        %1801 = vmatmul.mubr.f32.gmra.mrb[0].mxu0 %v1376
        %v1802 = vpop.f32.mrb[0].mxu0
        %v1803 = vadd.f32 0.0, %v1802
        %v1804 = vpop.f32.mrb[0].mxu0
        %1805 = vmatprep.mubr.f32.mxu0 0.0
        %1806 = vmatmul.mubr.f32.gmra.mrb[0].mxu0 %v1377
        %v1807 = vpop.f32.mrb[0].mxu0
        %v1808 = vadd.f32 0.0, %v1807
        %v1809 = vpop.f32.mrb[0].mxu0
        %1810 = vmatprep.mubr.f32.mxu0 0.0
        %1811 = vmatmul.mubr.f32.gmra.mrb[0].mxu0 %v1378
        %v1812 = vpop.f32.mrb[0].mxu0
        %v1813 = vadd.f32 0.0, %v1812
        %v1814 = vpop.f32.mrb[0].mxu0
        %1815 = vmatprep.mubr.f32.mxu0 0.0
        %1816 = vmatmul.mubr.f32.gmra.mrb[0].mxu0 %v1379
        %v1817 = vpop.f32.mrb[0].mxu0
        %v1818 = vadd.f32 0.0, %v1817
        %v1819 = vpop.f32.mrb[0].mxu0
        %1820 = vmatprep.mubr.f32.mxu0 0.0
        %1821 = vmatmul.mubr.f32.gmra.mrb[0].mxu0 %v1380
        %v1822 = vpop.f32.mrb[0].mxu0
        %v1823 = vadd.f32 0.0, %v1822
        %v1824 = vpop.f32.mrb[0].mxu0
        %1825 = vmatprep.mubr.f32.mxu0 0.0
        %1826 = vmatmul.mubr.f32.gmra.mrb[0].mxu0 %v1381
        %v1827 = vpop.f32.mrb[0].mxu0
        %v1828 = vadd.f32 0.0, %v1827
        %v1829 = vpop.f32.mrb[0].mxu0
        %1830 = vmatprep.mubr.f32.mxu0 0.0
        %1831 = vmatmul.mubr.f32.gmra.mrb[0].mxu0 %v1382
        %v1832 = vpop.f32.mrb[0].mxu0
        %v1833 = vadd.f32 0.0, %v1832
        %v1834 = vpop.f32.mrb[0].mxu0
        %1835 = vmatprep.mubr.f32.mxu0 0.0
        %1836 = vmatmul.mubr.f32.gmra.mrb[0].mxu0 %v1383
        %v1837 = vpop.f32.mrb[0].mxu0
        %v1838 = vadd.f32 0.0, %v1837
        %v1839 = vpop.f32.mrb[0].mxu0
        %1840 = vmatprep.mubr.f32.mxu0 0.0
        %1841 = vmatmul.mubr.f32.gmra.mrb[0].mxu0 %v1384
        %v1842 = vpop.f32.mrb[0].mxu0
        %v1843 = vadd.f32 0.0, %v1842
        %v1844 = vpop.f32.mrb[0].mxu0
        %1845 = vmatprep.mubr.f32.mxu0 0.0
        %1846 = vmatmul.mubr.f32.gmra.mrb[0].mxu0 %v1385
        %v1847 = vpop.f32.mrb[0].mxu0
        %v1848 = vadd.f32 0.0, %v1847
        %v1849 = vpop.f32.mrb[0].mxu0
        %1850 = vmatprep.mubr.f32.mxu0 0.0
        %1851 = vmatmul.mubr.f32.gmra.mrb[0].mxu0 %v1386
        %v1852 = vpop.f32.mrb[0].mxu0
        %v1853 = vadd.f32 0.0, %v1852
        %v1854 = vpop.f32.mrb[0].mxu0
        %1855 = vmatprep.mubr.f32.mxu0 0.0
        %1856 = vmatmul.mubr.f32.gmra.mrb[0].mxu0 %v1387
        %v1857 = vpop.f32.mrb[0].mxu0
        %v1858 = vadd.f32 0.0, %v1857
        %v1859 = vpop.f32.mrb[0].mxu0
        %1860 = vmatprep.mubr.f32.mxu0 0.0
        %1861 = vmatmul.mubr.f32.gmra.mrb[0].mxu0 %v1388
        %v1862 = vpop.f32.mrb[0].mxu0
        %v1863 = vadd.f32 0.0, %v1862
        %v1864 = vpop.f32.mrb[0].mxu0
        %1865 = vmatprep.mubr.f32.mxu0 0.0
        %1866 = vmatmul.mubr.f32.gmra.mrb[0].mxu0 %v1389
        %v1867 = vpop.f32.mrb[0].mxu0
        %v1868 = vadd.f32 0.0, %v1867
        %v1869 = vpop.f32.mrb[0].mxu0
        %1870 = vmatprep.mubr.f32.mxu0 0.0
        %1871 = vmatmul.mubr.f32.gmra.mrb[0].mxu0 %v1390
        %v1872 = vpop.f32.mrb[0].mxu0
        %v1873 = vadd.f32 0.0, %v1872
        %v1874 = vpop.f32.mrb[0].mxu0
        %1875 = vmatprep.mubr.f32.mxu0 0.0
        %1876 = vmatmul.mubr.f32.gmra.mrb[0].mxu0 %v1391
        %v1877 = vpop.f32.mrb[0].mxu0
        %v1878 = vadd.f32 0.0, %v1877
        %v1879 = vpop.f32.mrb[0].mxu0
        %1880 = vmatprep.mubr.f32.mxu0 0.0
        %1881 = vmatmul.mubr.f32.gmra.mrb[0].mxu0 %v1392
        %v1882 = vpop.f32.mrb[0].mxu0
        %v1883 = vadd.f32 0.0, %v1882
        %v1884 = vpop.f32.mrb[0].mxu0
        %1885 = vmatprep.mubr.f32.mxu0 0.0
        %1886 = vmatmul.mubr.f32.gmra.mrb[0].mxu0 %v1393
        %v1887 = vpop.f32.mrb[0].mxu0
        %v1888 = vadd.f32 0.0, %v1887
        %v1889 = vpop.f32.mrb[0].mxu0
        %1890 = vmatprep.mubr.f32.mxu0 0.0
        %1891 = vmatmul.mubr.f32.gmra.mrb[0].mxu0 %v1394
        %v1892 = vpop.f32.mrb[0].mxu0
        %v1893 = vadd.f32 0.0, %v1892
        %v1894 = vpop.f32.mrb[0].mxu0
        %1895 = vmatprep.mubr.f32.mxu0 0.0
        %1896 = vmatmul.mubr.f32.gmra.mrb[0].mxu0 %v1395
        %v1897 = vpop.f32.mrb[0].mxu0
        %v1898 = vadd.f32 0.0, %v1897
        %v1899 = vpop.f32.mrb[0].mxu0
        %1900 = vmatprep.mubr.f32.mxu0 0.0
        %1901 = vmatmul.mubr.f32.gmra.mrb[0].mxu0 %v1396
        %v1902 = vpop.f32.mrb[0].mxu0
        %v1903 = vadd.f32 0.0, %v1902
        %v1904 = vpop.f32.mrb[0].mxu0
        %1905 = vmatprep.mubr.f32.mxu0 0.0
        %1906 = vmatmul.mubr.f32.gmra.mrb[0].mxu0 %v1397
        %v1907 = vpop.f32.mrb[0].mxu0
        %v1908 = vadd.f32 0.0, %v1907
        %v1909 = vpop.f32.mrb[0].mxu0
        %1910 = vmatprep.mubr.f32.mxu0 0.0
        %1911 = vmatmul.mubr.f32.gmra.mrb[0].mxu0 %v1398
        %v1912 = vpop.f32.mrb[0].mxu0
        %v1913 = vadd.f32 0.0, %v1912
        %v1914 = vpop.f32.mrb[0].mxu0
        %1915 = vmatprep.mubr.f32.mxu0 0.0
        %1916 = vmatmul.mubr.f32.gmra.mrb[0].mxu0 %v1399
        %v1917 = vpop.f32.mrb[0].mxu0
        %v1918 = vadd.f32 0.0, %v1917
        %v1919 = vpop.f32.mrb[0].mxu0
        %1920 = vmatprep.mubr.f32.mxu0 0.0
        %1921 = vmatmul.mubr.f32.gmra.mrb[0].mxu0 %v1400
        %v1922 = vpop.f32.mrb[0].mxu0
        %v1923 = vadd.f32 0.0, %v1922
        %v1924 = vpop.f32.mrb[0].mxu0
        %1925 = vmatprep.mubr.f32.mxu0 0.0
        %1926 = vmatmul.mubr.f32.gmra.mrb[0].mxu0 %v1401
        %v1927 = vpop.f32.mrb[0].mxu0
        %v1928 = vadd.f32 0.0, %v1927
        %v1929 = vpop.f32.mrb[0].mxu0
        %1930 = vmatprep.mubr.f32.mxu0 0.0
        %1931 = vmatmul.mubr.f32.gmra.mrb[0].mxu0 %v1402
        %v1932 = vpop.f32.mrb[0].mxu0
        %v1933 = vadd.f32 0.0, %v1932
        %v1934 = vpop.f32.mrb[0].mxu0
        %1935 = vmatprep.mubr.f32.mxu0 0.0
        %1936 = vmatmul.mubr.f32.gmra.mrb[0].mxu0 %v1403
        %v1937 = vpop.f32.mrb[0].mxu0
        %v1938 = vadd.f32 0.0, %v1937
        %v1939 = vpop.f32.mrb[0].mxu0
        %1940 = vmatprep.mubr.f32.mxu0 0.0
        %1941 = vmatmul.mubr.f32.gmra.mrb[0].mxu0 %v1404
        %v1942 = vpop.f32.mrb[0].mxu0
        %v1943 = vadd.f32 0.0, %v1942
        %v1944 = vpop.f32.mrb[0].mxu0
        %1945 = vmatprep.mubr.f32.mxu0 0.0
        %1946 = vmatmul.mubr.f32.gmra.mrb[0].mxu0 %v1405
        %v1947 = vpop.f32.mrb[0].mxu0
        %v1948 = vadd.f32 0.0, %v1947
        %v1949 = vpop.f32.mrb[0].mxu0
        %1950 = vmatprep.mubr.f32.mxu0 0.0
        %1951 = vmatmul.mubr.f32.gmra.mrb[0].mxu0 %v1406
        %v1952 = vpop.f32.mrb[0].mxu0
        %v1953 = vadd.f32 0.0, %v1952
        %v1954 = vpop.f32.mrb[0].mxu0
        %1955 = vmatprep.mubr.f32.mxu0 0.0
        %1956 = vmatmul.mubr.f32.gmra.mrb[0].mxu0 %v1407
        %v1957 = vpop.f32.mrb[0].mxu0
        %v1958 = vadd.f32 0.0, %v1957
        %v1959 = vpop.f32.mrb[0].mxu0
        %1960 = vmatprep.mubr.f32.mxu0 0.0
        %1961 = vmatmul.mubr.f32.gmra.mrb[0].mxu0 %v1408
        %v1962 = vpop.f32.mrb[0].mxu0
        %v1963 = vadd.f32 0.0, %v1962
        %v1964 = vpop.f32.mrb[0].mxu0
        %1965 = vmatprep.mubr.f32.mxu0 0.0
        %1966 = vmatmul.mubr.f32.gmra.mrb[0].mxu0 %v1409
        %v1967 = vpop.f32.mrb[0].mxu0
        %v1968 = vadd.f32 0.0, %v1967
        %v1969 = vpop.f32.mrb[0].mxu0
        %1970 = vmatprep.mubr.f32.mxu0 0.0
        %1971 = vmatmul.mubr.f32.gmra.mrb[0].mxu0 %v1410
        %v1972 = vpop.f32.mrb[0].mxu0
        %v1973 = vadd.f32 0.0, %v1972
        %v1974 = vpop.f32.mrb[0].mxu0
        %1975 = vmatprep.mubr.f32.mxu0 0.0
        %1976 = vmatmul.mubr.f32.gmra.mrb[0].mxu0 %v1411
        %v1977 = vpop.f32.mrb[0].mxu0
        %v1978 = vadd.f32 0.0, %v1977
        %v1979 = vpop.f32.mrb[0].mxu0
        %1980 = vmatprep.mubr.f32.mxu0 0.0
        %1981 = vmatmul.mubr.f32.gmra.mrb[0].mxu0 %v1412
        %v1982 = vpop.f32.mrb[0].mxu0
        %v1983 = vadd.f32 0.0, %v1982
        %v1984 = vpop.f32.mrb[0].mxu0
        %1985 = vmatprep.mubr.f32.mxu0 0.0
        %1986 = vmatmul.mubr.f32.gmra.mrb[0].mxu0 %v1413
        %v1987 = vpop.f32.mrb[0].mxu0
        %v1988 = vadd.f32 0.0, %v1987
        %v1989 = vpop.f32.mrb[0].mxu0
        %1990 = vmatprep.mubr.f32.mxu0 0.0
        %1991 = vmatmul.mubr.f32.gmra.mrb[0].mxu0 %v1414
        %v1992 = vpop.f32.mrb[0].mxu0
        %v1993 = vadd.f32 0.0, %v1992
        %v1994 = vpop.f32.mrb[0].mxu0
        %1995 = vmatprep.mubr.f32.mxu0 0.0
        %1996 = vmatmul.mubr.f32.gmra.mrb[0].mxu0 %v1415
        %v1997 = vpop.f32.mrb[0].mxu0
        %v1998 = vadd.f32 0.0, %v1997
        %v1999 = vpop.f32.mrb[0].mxu0
        %2000 = vmatprep.mubr.f32.mxu0 0.0
        %2001 = vmatmul.mubr.f32.gmra.mrb[0].mxu0 %v1416
        %v2002 = vpop.f32.mrb[0].mxu0
        %v2003 = vadd.f32 0.0, %v2002
        %v2004 = vpop.f32.mrb[0].mxu0
        %2005 = vmatprep.mubr.f32.mxu0 0.0
        %2006 = vmatmul.mubr.f32.gmra.mrb[0].mxu0 %v1417
        %v2007 = vpop.f32.mrb[0].mxu0
        %v2008 = vadd.f32 0.0, %v2007
        %v2009 = vpop.f32.mrb[0].mxu0
        %2010 = vmatprep.mubr.f32.mxu0 0.0
        %2011 = vmatmul.mubr.f32.gmra.mrb[0].mxu0 %v1418
        %v2012 = vpop.f32.mrb[0].mxu0
        %v2013 = vadd.f32 0.0, %v2012
        %v2014 = vpop.f32.mrb[0].mxu0
        %2015 = vmatprep.mubr.f32.mxu0 0.0
        %2016 = vmatmul.mubr.f32.gmra.mrb[0].mxu0 %v1419
        %v2017 = vpop.f32.mrb[0].mxu0
        %v2018 = vadd.f32 0.0, %v2017
        %v2019 = vpop.f32.mrb[0].mxu0
        %2020 = vmatprep.mubr.f32.mxu0 0.0
        %2021 = vmatmul.mubr.f32.gmra.mrb[0].mxu0 %v1420
        %v2022 = vpop.f32.mrb[0].mxu0
        %v2023 = vadd.f32 0.0, %v2022
        %v2024 = vpop.f32.mrb[0].mxu0
        %2025 = vmatprep.mubr.f32.mxu0 0.0
        %2026 = vmatmul.mubr.f32.gmra.mrb[0].mxu0 %v1421
        %v2027 = vpop.f32.mrb[0].mxu0
        %v2028 = vadd.f32 0.0, %v2027
        %v2029 = vpop.f32.mrb[0].mxu0
        %2030 = vmatprep.mubr.f32.mxu0 0.0
        %2031 = vmatmul.mubr.f32.gmra.mrb[0].mxu0 %v1422
        %v2032 = vpop.f32.mrb[0].mxu0
        %v2033 = vadd.f32 0.0, %v2032
        %v2034 = vpop.f32.mrb[0].mxu0
        %2035 = vmatprep.mubr.f32.mxu0 0.0
        %2036 = vmatmul.mubr.f32.gmra.mrb[0].mxu0 %v1423
        %v2037 = vpop.f32.mrb[0].mxu0
        %v2038 = vadd.f32 0.0, %v2037
        %v2039 = vpop.f32.mrb[0].mxu0
        %2040 = vmatprep.mubr.f32.mxu0 0.0
        %2041 = vmatmul.mubr.f32.gmra.mrb[0].mxu0 %v1424
        %v2042 = vpop.f32.mrb[0].mxu0
        %v2043 = vadd.f32 0.0, %v2042
        %v2044 = vpop.f32.mrb[0].mxu0
        %2045 = vmatprep.mubr.f32.mxu0 0.0
        %2046 = vmatmul.mubr.f32.gmra.mrb[0].mxu0 %v1425
        %v2047 = vpop.f32.mrb[0].mxu0
        %v2048 = vadd.f32 0.0, %v2047
        %v2049 = vpop.f32.mrb[0].mxu0
        %2050 = vmatprep.mubr.f32.mxu0 0.0
        %2051 = vmatmul.mubr.f32.gmra.mrb[0].mxu0 %v1426
        %v2052 = vpop.f32.mrb[0].mxu0
        %v2053 = vadd.f32 0.0, %v2052
        %v2054 = vpop.f32.mrb[0].mxu0
        %2055 = vmatprep.mubr.f32.mxu0 0.0
        %2056 = vmatmul.mubr.f32.gmra.mrb[0].mxu0 %v1427
        %v2057 = vpop.f32.mrb[0].mxu0
        %v2058 = vadd.f32 0.0, %v2057
        %v2059 = vpop.f32.mrb[0].mxu0
        %2060 = vmatprep.mubr.f32.mxu0 0.0
        %2061 = vmatmul.mubr.f32.gmra.mrb[0].mxu0 %v1428
        %v2062 = vpop.f32.mrb[0].mxu0
        %v2063 = vadd.f32 0.0, %v2062
        %v2064 = vpop.f32.mrb[0].mxu0
        %2065 = vmatprep.mubr.f32.mxu0 0.0
        %2066 = vmatmul.mubr.f32.gmra.mrb[0].mxu0 %v1429
        %v2067 = vpop.f32.mrb[0].mxu0
        %v2068 = vadd.f32 0.0, %v2067
        %v2069 = vpop.f32.mrb[0].mxu0
        %2070 = vmatprep.mubr.f32.mxu0 0.0
        %2071 = vmatmul.mubr.f32.gmra.mrb[0].mxu0 %v1430
        %v2072 = vpop.f32.mrb[0].mxu0
        %v2073 = vadd.f32 0.0, %v2072
        %v2074 = vpop.f32.mrb[0].mxu0
        %2075 = vmatprep.mubr.f32.mxu0 0.0
        %2076 = vmatmul.mubr.f32.gmra.mrb[0].mxu0 %v1431
        %v2077 = vpop.f32.mrb[0].mxu0
        %v2078 = vadd.f32 0.0, %v2077
        %v2079 = vpop.f32.mrb[0].mxu0
        %2080 = vmatprep.mubr.f32.mxu0 0.0
        %2081 = vmatmul.mubr.f32.gmra.mrb[0].mxu0 %v1432
        %v2082 = vpop.f32.mrb[0].mxu0
        %v2083 = vadd.f32 0.0, %v2082
        %v2084 = vpop.f32.mrb[0].mxu0
        %2085 = vmatprep.mubr.f32.mxu0 0.0
        %2086 = vmatmul.mubr.f32.gmra.mrb[0].mxu0 %v1433
        %v2087 = vpop.f32.mrb[0].mxu0
        %v2088 = vadd.f32 0.0, %v2087
        %v2089 = vpop.f32.mrb[0].mxu0
        %2090 = vmatprep.mubr.f32.mxu0 0.0
        %2091 = vmatmul.mubr.f32.gmra.mrb[0].mxu0 %v1434
        %v2092 = vpop.f32.mrb[0].mxu0
        %v2093 = vadd.f32 0.0, %v2092
        %v2094 = vpop.f32.mrb[0].mxu0
        %2095 = vmatprep.mubr.f32.mxu0 0.0
        %2096 = vmatmul.mubr.f32.gmra.mrb[0].mxu0 %v1435
        %v2097 = vpop.f32.mrb[0].mxu0
        %v2098 = vadd.f32 0.0, %v2097
        %v2099 = vpop.f32.mrb[0].mxu0
        %2100 = vmatprep.mubr.f32.mxu0 0.0
        %2101 = vmatmul.mubr.f32.gmra.mrb[0].mxu0 %v1436
        %v2102 = vpop.f32.mrb[0].mxu0
        %v2103 = vadd.f32 0.0, %v2102
        %v2104 = vpop.f32.mrb[0].mxu0
        %2105 = vmatprep.mubr.f32.mxu0 0.0
        %2106 = vmatmul.mubr.f32.gmra.mrb[0].mxu0 %v1437
        %v2107 = vpop.f32.mrb[0].mxu0
        %v2108 = vadd.f32 0.0, %v2107
        %v2109 = vpop.f32.mrb[0].mxu0
        %2110 = vmatprep.mubr.f32.mxu0 0.0
        %2111 = vmatmul.mubr.f32.gmra.mrb[0].mxu0 %v1438
        %v2112 = vpop.f32.mrb[0].mxu0
        %v2113 = vadd.f32 0.0, %v2112
        %v2114 = vpop.f32.mrb[0].mxu0
        %2115 = vmatprep.mubr.f32.mxu0 0.0
        %2116 = vmatmul.mubr.f32.gmra.mrb[0].mxu0 %v1439
        %v2117 = vpop.f32.mrb[0].mxu0
        %v2118 = vadd.f32 0.0, %v2117
        %v2119 = vpop.f32.mrb[0].mxu0
        %2120 = vmatprep.mubr.f32.mxu0 0.0
        %2121 = vmatmul.mubr.f32.gmra.mrb[0].mxu0 %v1440
        %v2122 = vpop.f32.mrb[0].mxu0
        %v2123 = vadd.f32 0.0, %v2122
        %v2124 = vpop.f32.mrb[0].mxu0
        %2125 = vmatprep.mubr.f32.mxu0 0.0
        %2126 = vmatmul.mubr.f32.gmra.mrb[0].mxu0 %v1441
        %v2127 = vpop.f32.mrb[0].mxu0
        %v2128 = vadd.f32 0.0, %v2127
        %v2129 = vpop.f32.mrb[0].mxu0
        %2130 = vmatprep.mubr.f32.mxu0 0.0
        %2131 = vmatmul.mubr.f32.gmra.mrb[0].mxu0 %v1442
        %v2132 = vpop.f32.mrb[0].mxu0
        %v2133 = vadd.f32 0.0, %v2132
        %v2134 = vpop.f32.mrb[0].mxu0
        %2135 = vmatprep.mubr.f32.mxu0 0.0
        %2136 = vmatmul.mubr.f32.gmra.mrb[0].mxu0 %v1443
        %v2137 = vpop.f32.mrb[0].mxu0
        %v2138 = vadd.f32 0.0, %v2137
        %v2139 = vpop.f32.mrb[0].mxu0
        %2140 = vmatprep.mubr.f32.mxu0 0.0
        %2141 = vmatmul.mubr.f32.gmra.mrb[0].mxu0 %v1444
        %v2142 = vpop.f32.mrb[0].mxu0
        %v2143 = vadd.f32 0.0, %v2142
        %v2144 = vpop.f32.mrb[0].mxu0
        %2145 = vmatprep.mubr.f32.mxu0 0.0
        %2146 = vmatmul.mubr.f32.gmra.mrb[0].mxu0 %v1445
        %v2147 = vpop.f32.mrb[0].mxu0
        %v2148 = vadd.f32 0.0, %v2147
        %v2149 = vpop.f32.mrb[0].mxu0
        %2150 = vmatprep.mubr.f32.mxu0 0.0
        %2151 = vmatmul.mubr.f32.gmra.mrb[0].mxu0 %v1446
        %v2152 = vpop.f32.mrb[0].mxu0
        %v2153 = vadd.f32 0.0, %v2152
        %v2154 = vpop.f32.mrb[0].mxu0
        %2155 = vmatprep.mubr.f32.mxu0 0.0
        %2156 = vmatmul.mubr.f32.gmra.mrb[0].mxu0 %v1447
        %v2157 = vpop.f32.mrb[0].mxu0
        %v2158 = vadd.f32 0.0, %v2157
        %v2159 = vpop.f32.mrb[0].mxu0
        %2160 = vmatprep.mubr.f32.mxu0 0.0
        %2161 = vmatmul.mubr.f32.gmra.mrb[0].mxu0 %v1448
        %v2162 = vpop.f32.mrb[0].mxu0
        %v2163 = vadd.f32 0.0, %v2162
        %v2164 = vpop.f32.mrb[0].mxu0
        %2165 = vmatprep.mubr.f32.mxu0 0.0
        %2166 = vmatmul.mubr.f32.gmra.mrb[0].mxu0 %v1449
        %v2167 = vpop.f32.mrb[0].mxu0
        %v2168 = vadd.f32 0.0, %v2167
        %v2169 = vpop.f32.mrb[0].mxu0
        %2170 = vdwg.mxu0
        %v2171 = vld [vmem:[%s3] sm:$0xff]
        %v2172 = vld [vmem:[%s3 + $0x8] sm:$0xff]
        %v2173 = vld [vmem:[%s3 + $0x10] sm:$0xff]
        %v2174 = vld [vmem:[%s3 + $0x18] sm:$0xff]
        %v2175 = vld [vmem:[%s3 + $0x20] sm:$0xff]
        %v2176 = vld [vmem:[%s3 + $0x28] sm:$0xff]
        %v2177 = vld [vmem:[%s3 + $0x30] sm:$0xff]
        %v2178 = vld [vmem:[%s3 + $0x38] sm:$0xff]
        %v2179 = vld [vmem:[%s3 + $0x40] sm:$0xff]
        %v2180 = vld [vmem:[%s3 + $0x48] sm:$0xff]
        %v2181 = vld [vmem:[%s3 + $0x50] sm:$0xff]
        %v2182 = vld [vmem:[%s3 + $0x58] sm:$0xff]
        %v2183 = vld [vmem:[%s3 + $0x60] sm:$0xff]
        %v2184 = vld [vmem:[%s3 + $0x68] sm:$0xff]
        %v2185 = vld [vmem:[%s3 + $0x70] sm:$0xff]
        %v2186 = vld [vmem:[%s3 + $0x78] sm:$0xff]
        %2187 = vmatprep.subr.mxu0 0.0
        %2188 = vmatpush1.msra.mxu0 %v2171
        %2189 = vmatprep.subr.mxu0 0.0
        %2190 = vmatpush1.msra.mxu0 %v2172
        %2191 = vmatprep.subr.mxu0 0.0
        %2192 = vmatpush1.msra.mxu0 %v2173
        %2193 = vmatprep.subr.mxu0 0.0
        %2194 = vmatpush1.msra.mxu0 %v2174
        %2195 = vmatprep.subr.mxu0 0.0
        %2196 = vmatpush1.msra.mxu0 %v2175
        %2197 = vmatprep.subr.mxu0 0.0
        %2198 = vmatpush1.msra.mxu0 %v2176
        %2199 = vmatprep.subr.mxu0 0.0
        %2200 = vmatpush1.msra.mxu0 %v2177
        %2201 = vmatprep.subr.mxu0 0.0
        %2202 = vmatpush1.msra.mxu0 %v2178
        %2203 = vmatprep.subr.mxu0 0.0
        %2204 = vmatpush1.msra.mxu0 %v2179
        %2205 = vmatprep.subr.mxu0 0.0
        %2206 = vmatpush1.msra.mxu0 %v2180
        %2207 = vmatprep.subr.mxu0 0.0
        %2208 = vmatpush1.msra.mxu0 %v2181
        %2209 = vmatprep.subr.mxu0 0.0
        %2210 = vmatpush1.msra.mxu0 %v2182
        %2211 = vmatprep.subr.mxu0 0.0
        %2212 = vmatpush1.msra.mxu0 %v2183
        %2213 = vmatprep.subr.mxu0 0.0
        %2214 = vmatpush1.msra.mxu0 %v2184
        %2215 = vmatprep.subr.mxu0 0.0
        %2216 = vmatpush1.msra.mxu0 %v2185
        %2217 = vmatprep.subr.mxu0 0.0
        %2218 = vmatpush1.msra.mxu0 %v2186
        %2219 = vmatprep.subr.mxu0 0.0
        %2220 = vmatpush1.msra.mxu0 0.0
        %2221 = vmatprep.subr.mxu0 0.0
        %2222 = vmatpush1.msra.mxu0 0.0
        %2223 = vmatprep.subr.mxu0 0.0
        %2224 = vmatpush1.msra.mxu0 0.0
        %2225 = vmatprep.subr.mxu0 0.0
        %2226 = vmatpush1.msra.mxu0 0.0
        %2227 = vmatprep.subr.mxu0 0.0
        %2228 = vmatpush1.msra.mxu0 0.0
        %2229 = vmatprep.subr.mxu0 0.0
        %2230 = vmatpush1.msra.mxu0 0.0
        %2231 = vmatprep.subr.mxu0 0.0
        %2232 = vmatpush1.msra.mxu0 0.0
        %2233 = vmatprep.subr.mxu0 0.0
        %2234 = vmatpush1.msra.mxu0 0.0
        %2235 = vmatprep.subr.mxu0 0.0
        %2236 = vmatpush1.msra.mxu0 0.0
        %2237 = vmatprep.subr.mxu0 0.0
        %2238 = vmatpush1.msra.mxu0 0.0
        %2239 = vmatprep.subr.mxu0 0.0
        %2240 = vmatpush1.msra.mxu0 0.0
        %2241 = vmatprep.subr.mxu0 0.0
        %2242 = vmatpush1.msra.mxu0 0.0
        %2243 = vmatprep.subr.mxu0 0.0
        %2244 = vmatpush1.msra.mxu0 0.0
        %2245 = vmatprep.subr.mxu0 0.0
        %2246 = vmatpush1.msra.mxu0 0.0
        %2247 = vmatprep.subr.mxu0 0.0
        %2248 = vmatpush1.msra.mxu0 0.0
        %2249 = vmatprep.subr.mxu0 0.0
        %2250 = vmatpush1.msra.mxu0 0.0
        %2251 = vmatprep.mubr.f32.mxu0 0.0
        %2252 = vmatmul.mubr.f32.gmra.mrb[0].mxu0 %v1322
        %v2253 = vpop.f32.mrb[0].mxu0
        %v2254 = vadd.f32 0.0, %v2253
        %v2255 = vpop.f32.mrb[0].mxu0
        %2256 = vmatprep.mubr.f32.mxu0 0.0
        %2257 = vmatmul.mubr.f32.gmra.mrb[0].mxu0 %v1323
        %v2258 = vpop.f32.mrb[0].mxu0
        %v2259 = vadd.f32 0.0, %v2258
        %v2260 = vpop.f32.mrb[0].mxu0
        %2261 = vmatprep.mubr.f32.mxu0 0.0
        %2262 = vmatmul.mubr.f32.gmra.mrb[0].mxu0 %v1324
        %v2263 = vpop.f32.mrb[0].mxu0
        %v2264 = vadd.f32 0.0, %v2263
        %v2265 = vpop.f32.mrb[0].mxu0
        %2266 = vmatprep.mubr.f32.mxu0 0.0
        %2267 = vmatmul.mubr.f32.gmra.mrb[0].mxu0 %v1325
        %v2268 = vpop.f32.mrb[0].mxu0
        %v2269 = vadd.f32 0.0, %v2268
        %v2270 = vpop.f32.mrb[0].mxu0
        %2271 = vmatprep.mubr.f32.mxu0 0.0
        %2272 = vmatmul.mubr.f32.gmra.mrb[0].mxu0 %v1326
        %v2273 = vpop.f32.mrb[0].mxu0
        %v2274 = vadd.f32 0.0, %v2273
        %v2275 = vpop.f32.mrb[0].mxu0
        %2276 = vmatprep.mubr.f32.mxu0 0.0
        %2277 = vmatmul.mubr.f32.gmra.mrb[0].mxu0 %v1327
        %v2278 = vpop.f32.mrb[0].mxu0
        %v2279 = vadd.f32 0.0, %v2278
        %v2280 = vpop.f32.mrb[0].mxu0
        %2281 = vmatprep.mubr.f32.mxu0 0.0
        %2282 = vmatmul.mubr.f32.gmra.mrb[0].mxu0 %v1328
        %v2283 = vpop.f32.mrb[0].mxu0
        %v2284 = vadd.f32 0.0, %v2283
        %v2285 = vpop.f32.mrb[0].mxu0
        %2286 = vmatprep.mubr.f32.mxu0 0.0
        %2287 = vmatmul.mubr.f32.gmra.mrb[0].mxu0 %v1329
        %v2288 = vpop.f32.mrb[0].mxu0
        %v2289 = vadd.f32 0.0, %v2288
        %v2290 = vpop.f32.mrb[0].mxu0
        %2291 = vmatprep.mubr.f32.mxu0 0.0
        %2292 = vmatmul.mubr.f32.gmra.mrb[0].mxu0 %v1330
        %v2293 = vpop.f32.mrb[0].mxu0
        %v2294 = vadd.f32 0.0, %v2293
        %v2295 = vpop.f32.mrb[0].mxu0
        %2296 = vmatprep.mubr.f32.mxu0 0.0
        %2297 = vmatmul.mubr.f32.gmra.mrb[0].mxu0 %v1331
        %v2298 = vpop.f32.mrb[0].mxu0
        %v2299 = vadd.f32 0.0, %v2298
        %v2300 = vpop.f32.mrb[0].mxu0
        %2301 = vmatprep.mubr.f32.mxu0 0.0
        %2302 = vmatmul.mubr.f32.gmra.mrb[0].mxu0 %v1332
        %v2303 = vpop.f32.mrb[0].mxu0
        %v2304 = vadd.f32 0.0, %v2303
        %v2305 = vpop.f32.mrb[0].mxu0
        %2306 = vmatprep.mubr.f32.mxu0 0.0
        %2307 = vmatmul.mubr.f32.gmra.mrb[0].mxu0 %v1333
        %v2308 = vpop.f32.mrb[0].mxu0
        %v2309 = vadd.f32 0.0, %v2308
        %v2310 = vpop.f32.mrb[0].mxu0
        %2311 = vmatprep.mubr.f32.mxu0 0.0
        %2312 = vmatmul.mubr.f32.gmra.mrb[0].mxu0 %v1334
        %v2313 = vpop.f32.mrb[0].mxu0
        %v2314 = vadd.f32 0.0, %v2313
        %v2315 = vpop.f32.mrb[0].mxu0
        %2316 = vmatprep.mubr.f32.mxu0 0.0
        %2317 = vmatmul.mubr.f32.gmra.mrb[0].mxu0 %v1335
        %v2318 = vpop.f32.mrb[0].mxu0
        %v2319 = vadd.f32 0.0, %v2318
        %v2320 = vpop.f32.mrb[0].mxu0
        %2321 = vmatprep.mubr.f32.mxu0 0.0
        %2322 = vmatmul.mubr.f32.gmra.mrb[0].mxu0 %v1336
        %v2323 = vpop.f32.mrb[0].mxu0
        %v2324 = vadd.f32 0.0, %v2323
        %v2325 = vpop.f32.mrb[0].mxu0
        %2326 = vmatprep.mubr.f32.mxu0 0.0
        %2327 = vmatmul.mubr.f32.gmra.mrb[0].mxu0 %v1337
        %v2328 = vpop.f32.mrb[0].mxu0
        %v2329 = vadd.f32 0.0, %v2328
        %v2330 = vpop.f32.mrb[0].mxu0
        %2331 = vmatprep.mubr.f32.mxu0 0.0
        %2332 = vmatmul.mubr.f32.gmra.mrb[0].mxu0 %v1338
        %v2333 = vpop.f32.mrb[0].mxu0
        %v2334 = vadd.f32 0.0, %v2333
        %v2335 = vpop.f32.mrb[0].mxu0
        %2336 = vmatprep.mubr.f32.mxu0 0.0
        %2337 = vmatmul.mubr.f32.gmra.mrb[0].mxu0 %v1339
        %v2338 = vpop.f32.mrb[0].mxu0
        %v2339 = vadd.f32 0.0, %v2338
        %v2340 = vpop.f32.mrb[0].mxu0
        %2341 = vmatprep.mubr.f32.mxu0 0.0
        %2342 = vmatmul.mubr.f32.gmra.mrb[0].mxu0 %v1340
        %v2343 = vpop.f32.mrb[0].mxu0
        %v2344 = vadd.f32 0.0, %v2343
        %v2345 = vpop.f32.mrb[0].mxu0
        %2346 = vmatprep.mubr.f32.mxu0 0.0
        %2347 = vmatmul.mubr.f32.gmra.mrb[0].mxu0 %v1341
        %v2348 = vpop.f32.mrb[0].mxu0
        %v2349 = vadd.f32 0.0, %v2348
        %v2350 = vpop.f32.mrb[0].mxu0
        %2351 = vmatprep.mubr.f32.mxu0 0.0
        %2352 = vmatmul.mubr.f32.gmra.mrb[0].mxu0 %v1342
        %v2353 = vpop.f32.mrb[0].mxu0
        %v2354 = vadd.f32 0.0, %v2353
        %v2355 = vpop.f32.mrb[0].mxu0
        %2356 = vmatprep.mubr.f32.mxu0 0.0
        %2357 = vmatmul.mubr.f32.gmra.mrb[0].mxu0 %v1343
        %v2358 = vpop.f32.mrb[0].mxu0
        %v2359 = vadd.f32 0.0, %v2358
        %v2360 = vpop.f32.mrb[0].mxu0
        %2361 = vmatprep.mubr.f32.mxu0 0.0
        %2362 = vmatmul.mubr.f32.gmra.mrb[0].mxu0 %v1344
        %v2363 = vpop.f32.mrb[0].mxu0
        %v2364 = vadd.f32 0.0, %v2363
        %v2365 = vpop.f32.mrb[0].mxu0
        %2366 = vmatprep.mubr.f32.mxu0 0.0
        %2367 = vmatmul.mubr.f32.gmra.mrb[0].mxu0 %v1345
        %v2368 = vpop.f32.mrb[0].mxu0
        %v2369 = vadd.f32 0.0, %v2368
        %v2370 = vpop.f32.mrb[0].mxu0
        %2371 = vmatprep.mubr.f32.mxu0 0.0
        %2372 = vmatmul.mubr.f32.gmra.mrb[0].mxu0 %v1346
        %v2373 = vpop.f32.mrb[0].mxu0
        %v2374 = vadd.f32 0.0, %v2373
        %v2375 = vpop.f32.mrb[0].mxu0
        %2376 = vmatprep.mubr.f32.mxu0 0.0
        %2377 = vmatmul.mubr.f32.gmra.mrb[0].mxu0 %v1347
        %v2378 = vpop.f32.mrb[0].mxu0
        %v2379 = vadd.f32 0.0, %v2378
        %v2380 = vpop.f32.mrb[0].mxu0
        %2381 = vmatprep.mubr.f32.mxu0 0.0
        %2382 = vmatmul.mubr.f32.gmra.mrb[0].mxu0 %v1348
        %v2383 = vpop.f32.mrb[0].mxu0
        %v2384 = vadd.f32 0.0, %v2383
        %v2385 = vpop.f32.mrb[0].mxu0
        %2386 = vmatprep.mubr.f32.mxu0 0.0
        %2387 = vmatmul.mubr.f32.gmra.mrb[0].mxu0 %v1349
        %v2388 = vpop.f32.mrb[0].mxu0
        %v2389 = vadd.f32 0.0, %v2388
        %v2390 = vpop.f32.mrb[0].mxu0
        %2391 = vmatprep.mubr.f32.mxu0 0.0
        %2392 = vmatmul.mubr.f32.gmra.mrb[0].mxu0 %v1350
        %v2393 = vpop.f32.mrb[0].mxu0
        %v2394 = vadd.f32 0.0, %v2393
        %v2395 = vpop.f32.mrb[0].mxu0
        %2396 = vmatprep.mubr.f32.mxu0 0.0
        %2397 = vmatmul.mubr.f32.gmra.mrb[0].mxu0 %v1351
        %v2398 = vpop.f32.mrb[0].mxu0
        %v2399 = vadd.f32 0.0, %v2398
        %v2400 = vpop.f32.mrb[0].mxu0
        %2401 = vmatprep.mubr.f32.mxu0 0.0
        %2402 = vmatmul.mubr.f32.gmra.mrb[0].mxu0 %v1352
        %v2403 = vpop.f32.mrb[0].mxu0
        %v2404 = vadd.f32 0.0, %v2403
        %v2405 = vpop.f32.mrb[0].mxu0
        %2406 = vmatprep.mubr.f32.mxu0 0.0
        %2407 = vmatmul.mubr.f32.gmra.mrb[0].mxu0 %v1353
        %v2408 = vpop.f32.mrb[0].mxu0
        %v2409 = vadd.f32 0.0, %v2408
        %v2410 = vpop.f32.mrb[0].mxu0
        %2411 = vmatprep.mubr.f32.mxu0 0.0
        %2412 = vmatmul.mubr.f32.gmra.mrb[0].mxu0 %v1354
        %v2413 = vpop.f32.mrb[0].mxu0
        %v2414 = vadd.f32 0.0, %v2413
        %v2415 = vpop.f32.mrb[0].mxu0
        %2416 = vmatprep.mubr.f32.mxu0 0.0
        %2417 = vmatmul.mubr.f32.gmra.mrb[0].mxu0 %v1355
        %v2418 = vpop.f32.mrb[0].mxu0
        %v2419 = vadd.f32 0.0, %v2418
        %v2420 = vpop.f32.mrb[0].mxu0
        %2421 = vmatprep.mubr.f32.mxu0 0.0
        %2422 = vmatmul.mubr.f32.gmra.mrb[0].mxu0 %v1356
        %v2423 = vpop.f32.mrb[0].mxu0
        %v2424 = vadd.f32 0.0, %v2423
        %v2425 = vpop.f32.mrb[0].mxu0
        %2426 = vmatprep.mubr.f32.mxu0 0.0
        %2427 = vmatmul.mubr.f32.gmra.mrb[0].mxu0 %v1357
        %v2428 = vpop.f32.mrb[0].mxu0
        %v2429 = vadd.f32 0.0, %v2428
        %v2430 = vpop.f32.mrb[0].mxu0
        %2431 = vmatprep.mubr.f32.mxu0 0.0
        %2432 = vmatmul.mubr.f32.gmra.mrb[0].mxu0 %v1358
        %v2433 = vpop.f32.mrb[0].mxu0
        %v2434 = vadd.f32 0.0, %v2433
        %v2435 = vpop.f32.mrb[0].mxu0
        %2436 = vmatprep.mubr.f32.mxu0 0.0
        %2437 = vmatmul.mubr.f32.gmra.mrb[0].mxu0 %v1359
        %v2438 = vpop.f32.mrb[0].mxu0
        %v2439 = vadd.f32 0.0, %v2438
        %v2440 = vpop.f32.mrb[0].mxu0
        %2441 = vmatprep.mubr.f32.mxu0 0.0
        %2442 = vmatmul.mubr.f32.gmra.mrb[0].mxu0 %v1360
        %v2443 = vpop.f32.mrb[0].mxu0
        %v2444 = vadd.f32 0.0, %v2443
        %v2445 = vpop.f32.mrb[0].mxu0
        %2446 = vmatprep.mubr.f32.mxu0 0.0
        %2447 = vmatmul.mubr.f32.gmra.mrb[0].mxu0 %v1361
        %v2448 = vpop.f32.mrb[0].mxu0
        %v2449 = vadd.f32 0.0, %v2448
        %v2450 = vpop.f32.mrb[0].mxu0
        %2451 = vmatprep.mubr.f32.mxu0 0.0
        %2452 = vmatmul.mubr.f32.gmra.mrb[0].mxu0 %v1362
        %v2453 = vpop.f32.mrb[0].mxu0
        %v2454 = vadd.f32 0.0, %v2453
        %v2455 = vpop.f32.mrb[0].mxu0
        %2456 = vmatprep.mubr.f32.mxu0 0.0
        %2457 = vmatmul.mubr.f32.gmra.mrb[0].mxu0 %v1363
        %v2458 = vpop.f32.mrb[0].mxu0
        %v2459 = vadd.f32 0.0, %v2458
        %v2460 = vpop.f32.mrb[0].mxu0
        %2461 = vmatprep.mubr.f32.mxu0 0.0
        %2462 = vmatmul.mubr.f32.gmra.mrb[0].mxu0 %v1364
        %v2463 = vpop.f32.mrb[0].mxu0
        %v2464 = vadd.f32 0.0, %v2463
        %v2465 = vpop.f32.mrb[0].mxu0
        %2466 = vmatprep.mubr.f32.mxu0 0.0
        %2467 = vmatmul.mubr.f32.gmra.mrb[0].mxu0 %v1365
        %v2468 = vpop.f32.mrb[0].mxu0
        %v2469 = vadd.f32 0.0, %v2468
        %v2470 = vpop.f32.mrb[0].mxu0
        %2471 = vmatprep.mubr.f32.mxu0 0.0
        %2472 = vmatmul.mubr.f32.gmra.mrb[0].mxu0 %v1366
        %v2473 = vpop.f32.mrb[0].mxu0
        %v2474 = vadd.f32 0.0, %v2473
        %v2475 = vpop.f32.mrb[0].mxu0
        %2476 = vmatprep.mubr.f32.mxu0 0.0
        %2477 = vmatmul.mubr.f32.gmra.mrb[0].mxu0 %v1367
        %v2478 = vpop.f32.mrb[0].mxu0
        %v2479 = vadd.f32 0.0, %v2478
        %v2480 = vpop.f32.mrb[0].mxu0
        %2481 = vmatprep.mubr.f32.mxu0 0.0
        %2482 = vmatmul.mubr.f32.gmra.mrb[0].mxu0 %v1368
        %v2483 = vpop.f32.mrb[0].mxu0
        %v2484 = vadd.f32 0.0, %v2483
        %v2485 = vpop.f32.mrb[0].mxu0
        %2486 = vmatprep.mubr.f32.mxu0 0.0
        %2487 = vmatmul.mubr.f32.gmra.mrb[0].mxu0 %v1369
        %v2488 = vpop.f32.mrb[0].mxu0
        %v2489 = vadd.f32 0.0, %v2488
        %v2490 = vpop.f32.mrb[0].mxu0
        %2491 = vmatprep.mubr.f32.mxu0 0.0
        %2492 = vmatmul.mubr.f32.gmra.mrb[0].mxu0 %v1370
        %v2493 = vpop.f32.mrb[0].mxu0
        %v2494 = vadd.f32 0.0, %v2493
        %v2495 = vpop.f32.mrb[0].mxu0
        %2496 = vmatprep.mubr.f32.mxu0 0.0
        %2497 = vmatmul.mubr.f32.gmra.mrb[0].mxu0 %v1371
        %v2498 = vpop.f32.mrb[0].mxu0
        %v2499 = vadd.f32 0.0, %v2498
        %v2500 = vpop.f32.mrb[0].mxu0
        %2501 = vmatprep.mubr.f32.mxu0 0.0
        %2502 = vmatmul.mubr.f32.gmra.mrb[0].mxu0 %v1372
        %v2503 = vpop.f32.mrb[0].mxu0
        %v2504 = vadd.f32 0.0, %v2503
        %v2505 = vpop.f32.mrb[0].mxu0
        %2506 = vmatprep.mubr.f32.mxu0 0.0
        %2507 = vmatmul.mubr.f32.gmra.mrb[0].mxu0 %v1373
        %v2508 = vpop.f32.mrb[0].mxu0
        %v2509 = vadd.f32 0.0, %v2508
        %v2510 = vpop.f32.mrb[0].mxu0
        %2511 = vmatprep.mubr.f32.mxu0 0.0
        %2512 = vmatmul.mubr.f32.gmra.mrb[0].mxu0 %v1374
        %v2513 = vpop.f32.mrb[0].mxu0
        %v2514 = vadd.f32 0.0, %v2513
        %v2515 = vpop.f32.mrb[0].mxu0
        %2516 = vmatprep.mubr.f32.mxu0 0.0
        %2517 = vmatmul.mubr.f32.gmra.mrb[0].mxu0 %v1375
        %v2518 = vpop.f32.mrb[0].mxu0
        %v2519 = vadd.f32 0.0, %v2518
        %v2520 = vpop.f32.mrb[0].mxu0
        %2521 = vmatprep.mubr.f32.mxu0 0.0
        %2522 = vmatmul.mubr.f32.gmra.mrb[0].mxu0 %v1376
        %v2523 = vpop.f32.mrb[0].mxu0
        %v2524 = vadd.f32 0.0, %v2523
        %v2525 = vpop.f32.mrb[0].mxu0
        %2526 = vmatprep.mubr.f32.mxu0 0.0
        %2527 = vmatmul.mubr.f32.gmra.mrb[0].mxu0 %v1377
        %v2528 = vpop.f32.mrb[0].mxu0
        %v2529 = vadd.f32 0.0, %v2528
        %v2530 = vpop.f32.mrb[0].mxu0
        %2531 = vmatprep.mubr.f32.mxu0 0.0
        %2532 = vmatmul.mubr.f32.gmra.mrb[0].mxu0 %v1378
        %v2533 = vpop.f32.mrb[0].mxu0
        %v2534 = vadd.f32 0.0, %v2533
        %v2535 = vpop.f32.mrb[0].mxu0
        %2536 = vmatprep.mubr.f32.mxu0 0.0
        %2537 = vmatmul.mubr.f32.gmra.mrb[0].mxu0 %v1379
        %v2538 = vpop.f32.mrb[0].mxu0
        %v2539 = vadd.f32 0.0, %v2538
        %v2540 = vpop.f32.mrb[0].mxu0
        %2541 = vmatprep.mubr.f32.mxu0 0.0
        %2542 = vmatmul.mubr.f32.gmra.mrb[0].mxu0 %v1380
        %v2543 = vpop.f32.mrb[0].mxu0
        %v2544 = vadd.f32 0.0, %v2543
        %v2545 = vpop.f32.mrb[0].mxu0
        %2546 = vmatprep.mubr.f32.mxu0 0.0
        %2547 = vmatmul.mubr.f32.gmra.mrb[0].mxu0 %v1381
        %v2548 = vpop.f32.mrb[0].mxu0
        %v2549 = vadd.f32 0.0, %v2548
        %v2550 = vpop.f32.mrb[0].mxu0
        %2551 = vmatprep.mubr.f32.mxu0 0.0
        %2552 = vmatmul.mubr.f32.gmra.mrb[0].mxu0 %v1382
        %v2553 = vpop.f32.mrb[0].mxu0
        %v2554 = vadd.f32 0.0, %v2553
        %v2555 = vpop.f32.mrb[0].mxu0
        %2556 = vmatprep.mubr.f32.mxu0 0.0
        %2557 = vmatmul.mubr.f32.gmra.mrb[0].mxu0 %v1383
        %v2558 = vpop.f32.mrb[0].mxu0
        %v2559 = vadd.f32 0.0, %v2558
        %v2560 = vpop.f32.mrb[0].mxu0
        %2561 = vmatprep.mubr.f32.mxu0 0.0
        %2562 = vmatmul.mubr.f32.gmra.mrb[0].mxu0 %v1384
        %v2563 = vpop.f32.mrb[0].mxu0
        %v2564 = vadd.f32 0.0, %v2563
        %v2565 = vpop.f32.mrb[0].mxu0
        %2566 = vmatprep.mubr.f32.mxu0 0.0
        %2567 = vmatmul.mubr.f32.gmra.mrb[0].mxu0 %v1385
        %v2568 = vpop.f32.mrb[0].mxu0
        %v2569 = vadd.f32 0.0, %v2568
        %v2570 = vpop.f32.mrb[0].mxu0
        %2571 = vmatprep.mubr.f32.mxu0 0.0
        %2572 = vmatmul.mubr.f32.gmra.mrb[0].mxu0 %v1386
        %v2573 = vpop.f32.mrb[0].mxu0
        %v2574 = vadd.f32 0.0, %v2573
        %v2575 = vpop.f32.mrb[0].mxu0
        %2576 = vmatprep.mubr.f32.mxu0 0.0
        %2577 = vmatmul.mubr.f32.gmra.mrb[0].mxu0 %v1387
        %v2578 = vpop.f32.mrb[0].mxu0
        %v2579 = vadd.f32 0.0, %v2578
        %v2580 = vpop.f32.mrb[0].mxu0
        %2581 = vmatprep.mubr.f32.mxu0 0.0
        %2582 = vmatmul.mubr.f32.gmra.mrb[0].mxu0 %v1388
        %v2583 = vpop.f32.mrb[0].mxu0
        %v2584 = vadd.f32 0.0, %v2583
        %v2585 = vpop.f32.mrb[0].mxu0
        %2586 = vmatprep.mubr.f32.mxu0 0.0
        %2587 = vmatmul.mubr.f32.gmra.mrb[0].mxu0 %v1389
        %v2588 = vpop.f32.mrb[0].mxu0
        %v2589 = vadd.f32 0.0, %v2588
        %v2590 = vpop.f32.mrb[0].mxu0
        %2591 = vmatprep.mubr.f32.mxu0 0.0
        %2592 = vmatmul.mubr.f32.gmra.mrb[0].mxu0 %v1390
        %v2593 = vpop.f32.mrb[0].mxu0
        %v2594 = vadd.f32 0.0, %v2593
        %v2595 = vpop.f32.mrb[0].mxu0
        %2596 = vmatprep.mubr.f32.mxu0 0.0
        %2597 = vmatmul.mubr.f32.gmra.mrb[0].mxu0 %v1391
        %v2598 = vpop.f32.mrb[0].mxu0
        %v2599 = vadd.f32 0.0, %v2598
        %v2600 = vpop.f32.mrb[0].mxu0
        %2601 = vmatprep.mubr.f32.mxu0 0.0
        %2602 = vmatmul.mubr.f32.gmra.mrb[0].mxu0 %v1392
        %v2603 = vpop.f32.mrb[0].mxu0
        %v2604 = vadd.f32 0.0, %v2603
        %v2605 = vpop.f32.mrb[0].mxu0
        %2606 = vmatprep.mubr.f32.mxu0 0.0
        %2607 = vmatmul.mubr.f32.gmra.mrb[0].mxu0 %v1393
        %v2608 = vpop.f32.mrb[0].mxu0
        %v2609 = vadd.f32 0.0, %v2608
        %v2610 = vpop.f32.mrb[0].mxu0
        %2611 = vmatprep.mubr.f32.mxu0 0.0
        %2612 = vmatmul.mubr.f32.gmra.mrb[0].mxu0 %v1394
        %v2613 = vpop.f32.mrb[0].mxu0
        %v2614 = vadd.f32 0.0, %v2613
        %v2615 = vpop.f32.mrb[0].mxu0
        %2616 = vmatprep.mubr.f32.mxu0 0.0
        %2617 = vmatmul.mubr.f32.gmra.mrb[0].mxu0 %v1395
        %v2618 = vpop.f32.mrb[0].mxu0
        %v2619 = vadd.f32 0.0, %v2618
        %v2620 = vpop.f32.mrb[0].mxu0
        %2621 = vmatprep.mubr.f32.mxu0 0.0
        %2622 = vmatmul.mubr.f32.gmra.mrb[0].mxu0 %v1396
        %v2623 = vpop.f32.mrb[0].mxu0
        %v2624 = vadd.f32 0.0, %v2623
        %v2625 = vpop.f32.mrb[0].mxu0
        %2626 = vmatprep.mubr.f32.mxu0 0.0
        %2627 = vmatmul.mubr.f32.gmra.mrb[0].mxu0 %v1397
        %v2628 = vpop.f32.mrb[0].mxu0
        %v2629 = vadd.f32 0.0, %v2628
        %v2630 = vpop.f32.mrb[0].mxu0
        %2631 = vmatprep.mubr.f32.mxu0 0.0
        %2632 = vmatmul.mubr.f32.gmra.mrb[0].mxu0 %v1398
        %v2633 = vpop.f32.mrb[0].mxu0
        %v2634 = vadd.f32 0.0, %v2633
        %v2635 = vpop.f32.mrb[0].mxu0
        %2636 = vmatprep.mubr.f32.mxu0 0.0
        %2637 = vmatmul.mubr.f32.gmra.mrb[0].mxu0 %v1399
        %v2638 = vpop.f32.mrb[0].mxu0
        %v2639 = vadd.f32 0.0, %v2638
        %v2640 = vpop.f32.mrb[0].mxu0
        %2641 = vmatprep.mubr.f32.mxu0 0.0
        %2642 = vmatmul.mubr.f32.gmra.mrb[0].mxu0 %v1400
        %v2643 = vpop.f32.mrb[0].mxu0
        %v2644 = vadd.f32 0.0, %v2643
        %v2645 = vpop.f32.mrb[0].mxu0
        %2646 = vmatprep.mubr.f32.mxu0 0.0
        %2647 = vmatmul.mubr.f32.gmra.mrb[0].mxu0 %v1401
        %v2648 = vpop.f32.mrb[0].mxu0
        %v2649 = vadd.f32 0.0, %v2648
        %v2650 = vpop.f32.mrb[0].mxu0
        %2651 = vmatprep.mubr.f32.mxu0 0.0
        %2652 = vmatmul.mubr.f32.gmra.mrb[0].mxu0 %v1402
        %v2653 = vpop.f32.mrb[0].mxu0
        %v2654 = vadd.f32 0.0, %v2653
        %v2655 = vpop.f32.mrb[0].mxu0
        %2656 = vmatprep.mubr.f32.mxu0 0.0
        %2657 = vmatmul.mubr.f32.gmra.mrb[0].mxu0 %v1403
        %v2658 = vpop.f32.mrb[0].mxu0
        %v2659 = vadd.f32 0.0, %v2658
        %v2660 = vpop.f32.mrb[0].mxu0
        %2661 = vmatprep.mubr.f32.mxu0 0.0
        %2662 = vmatmul.mubr.f32.gmra.mrb[0].mxu0 %v1404
        %v2663 = vpop.f32.mrb[0].mxu0
        %v2664 = vadd.f32 0.0, %v2663
        %v2665 = vpop.f32.mrb[0].mxu0
        %2666 = vmatprep.mubr.f32.mxu0 0.0
        %2667 = vmatmul.mubr.f32.gmra.mrb[0].mxu0 %v1405
        %v2668 = vpop.f32.mrb[0].mxu0
        %v2669 = vadd.f32 0.0, %v2668
        %v2670 = vpop.f32.mrb[0].mxu0
        %2671 = vmatprep.mubr.f32.mxu0 0.0
        %2672 = vmatmul.mubr.f32.gmra.mrb[0].mxu0 %v1406
        %v2673 = vpop.f32.mrb[0].mxu0
        %v2674 = vadd.f32 0.0, %v2673
        %v2675 = vpop.f32.mrb[0].mxu0
        %2676 = vmatprep.mubr.f32.mxu0 0.0
        %2677 = vmatmul.mubr.f32.gmra.mrb[0].mxu0 %v1407
        %v2678 = vpop.f32.mrb[0].mxu0
        %v2679 = vadd.f32 0.0, %v2678
        %v2680 = vpop.f32.mrb[0].mxu0
        %2681 = vmatprep.mubr.f32.mxu0 0.0
        %2682 = vmatmul.mubr.f32.gmra.mrb[0].mxu0 %v1408
        %v2683 = vpop.f32.mrb[0].mxu0
        %v2684 = vadd.f32 0.0, %v2683
        %v2685 = vpop.f32.mrb[0].mxu0
        %2686 = vmatprep.mubr.f32.mxu0 0.0
        %2687 = vmatmul.mubr.f32.gmra.mrb[0].mxu0 %v1409
        %v2688 = vpop.f32.mrb[0].mxu0
        %v2689 = vadd.f32 0.0, %v2688
        %v2690 = vpop.f32.mrb[0].mxu0
        %2691 = vmatprep.mubr.f32.mxu0 0.0
        %2692 = vmatmul.mubr.f32.gmra.mrb[0].mxu0 %v1410
        %v2693 = vpop.f32.mrb[0].mxu0
        %v2694 = vadd.f32 0.0, %v2693
        %v2695 = vpop.f32.mrb[0].mxu0
        %2696 = vmatprep.mubr.f32.mxu0 0.0
        %2697 = vmatmul.mubr.f32.gmra.mrb[0].mxu0 %v1411
        %v2698 = vpop.f32.mrb[0].mxu0
        %v2699 = vadd.f32 0.0, %v2698
        %v2700 = vpop.f32.mrb[0].mxu0
        %2701 = vmatprep.mubr.f32.mxu0 0.0
        %2702 = vmatmul.mubr.f32.gmra.mrb[0].mxu0 %v1412
        %v2703 = vpop.f32.mrb[0].mxu0
        %v2704 = vadd.f32 0.0, %v2703
        %v2705 = vpop.f32.mrb[0].mxu0
        %2706 = vmatprep.mubr.f32.mxu0 0.0
        %2707 = vmatmul.mubr.f32.gmra.mrb[0].mxu0 %v1413
        %v2708 = vpop.f32.mrb[0].mxu0
        %v2709 = vadd.f32 0.0, %v2708
        %v2710 = vpop.f32.mrb[0].mxu0
        %2711 = vmatprep.mubr.f32.mxu0 0.0
        %2712 = vmatmul.mubr.f32.gmra.mrb[0].mxu0 %v1414
        %v2713 = vpop.f32.mrb[0].mxu0
        %v2714 = vadd.f32 0.0, %v2713
        %v2715 = vpop.f32.mrb[0].mxu0
        %2716 = vmatprep.mubr.f32.mxu0 0.0
        %2717 = vmatmul.mubr.f32.gmra.mrb[0].mxu0 %v1415
        %v2718 = vpop.f32.mrb[0].mxu0
        %v2719 = vadd.f32 0.0, %v2718
        %v2720 = vpop.f32.mrb[0].mxu0
        %2721 = vmatprep.mubr.f32.mxu0 0.0
        %2722 = vmatmul.mubr.f32.gmra.mrb[0].mxu0 %v1416
        %v2723 = vpop.f32.mrb[0].mxu0
        %v2724 = vadd.f32 0.0, %v2723
        %v2725 = vpop.f32.mrb[0].mxu0
        %2726 = vmatprep.mubr.f32.mxu0 0.0
        %2727 = vmatmul.mubr.f32.gmra.mrb[0].mxu0 %v1417
        %v2728 = vpop.f32.mrb[0].mxu0
        %v2729 = vadd.f32 0.0, %v2728
        %v2730 = vpop.f32.mrb[0].mxu0
        %2731 = vmatprep.mubr.f32.mxu0 0.0
        %2732 = vmatmul.mubr.f32.gmra.mrb[0].mxu0 %v1418
        %v2733 = vpop.f32.mrb[0].mxu0
        %v2734 = vadd.f32 0.0, %v2733
        %v2735 = vpop.f32.mrb[0].mxu0
        %2736 = vmatprep.mubr.f32.mxu0 0.0
        %2737 = vmatmul.mubr.f32.gmra.mrb[0].mxu0 %v1419
        %v2738 = vpop.f32.mrb[0].mxu0
        %v2739 = vadd.f32 0.0, %v2738
        %v2740 = vpop.f32.mrb[0].mxu0
        %2741 = vmatprep.mubr.f32.mxu0 0.0
        %2742 = vmatmul.mubr.f32.gmra.mrb[0].mxu0 %v1420
        %v2743 = vpop.f32.mrb[0].mxu0
        %v2744 = vadd.f32 0.0, %v2743
        %v2745 = vpop.f32.mrb[0].mxu0
        %2746 = vmatprep.mubr.f32.mxu0 0.0
        %2747 = vmatmul.mubr.f32.gmra.mrb[0].mxu0 %v1421
        %v2748 = vpop.f32.mrb[0].mxu0
        %v2749 = vadd.f32 0.0, %v2748
        %v2750 = vpop.f32.mrb[0].mxu0
        %2751 = vmatprep.mubr.f32.mxu0 0.0
        %2752 = vmatmul.mubr.f32.gmra.mrb[0].mxu0 %v1422
        %v2753 = vpop.f32.mrb[0].mxu0
        %v2754 = vadd.f32 0.0, %v2753
        %v2755 = vpop.f32.mrb[0].mxu0
        %2756 = vmatprep.mubr.f32.mxu0 0.0
        %2757 = vmatmul.mubr.f32.gmra.mrb[0].mxu0 %v1423
        %v2758 = vpop.f32.mrb[0].mxu0
        %v2759 = vadd.f32 0.0, %v2758
        %v2760 = vpop.f32.mrb[0].mxu0
        %2761 = vmatprep.mubr.f32.mxu0 0.0
        %2762 = vmatmul.mubr.f32.gmra.mrb[0].mxu0 %v1424
        %v2763 = vpop.f32.mrb[0].mxu0
        %v2764 = vadd.f32 0.0, %v2763
        %v2765 = vpop.f32.mrb[0].mxu0
        %2766 = vmatprep.mubr.f32.mxu0 0.0
        %2767 = vmatmul.mubr.f32.gmra.mrb[0].mxu0 %v1425
        %v2768 = vpop.f32.mrb[0].mxu0
        %v2769 = vadd.f32 0.0, %v2768
        %v2770 = vpop.f32.mrb[0].mxu0
        %2771 = vmatprep.mubr.f32.mxu0 0.0
        %2772 = vmatmul.mubr.f32.gmra.mrb[0].mxu0 %v1426
        %v2773 = vpop.f32.mrb[0].mxu0
        %v2774 = vadd.f32 0.0, %v2773
        %v2775 = vpop.f32.mrb[0].mxu0
        %2776 = vmatprep.mubr.f32.mxu0 0.0
        %2777 = vmatmul.mubr.f32.gmra.mrb[0].mxu0 %v1427
        %v2778 = vpop.f32.mrb[0].mxu0
        %v2779 = vadd.f32 0.0, %v2778
        %v2780 = vpop.f32.mrb[0].mxu0
        %2781 = vmatprep.mubr.f32.mxu0 0.0
        %2782 = vmatmul.mubr.f32.gmra.mrb[0].mxu0 %v1428
        %v2783 = vpop.f32.mrb[0].mxu0
        %v2784 = vadd.f32 0.0, %v2783
        %v2785 = vpop.f32.mrb[0].mxu0
        %2786 = vmatprep.mubr.f32.mxu0 0.0
        %2787 = vmatmul.mubr.f32.gmra.mrb[0].mxu0 %v1429
        %v2788 = vpop.f32.mrb[0].mxu0
        %v2789 = vadd.f32 0.0, %v2788
        %v2790 = vpop.f32.mrb[0].mxu0
        %2791 = vmatprep.mubr.f32.mxu0 0.0
        %2792 = vmatmul.mubr.f32.gmra.mrb[0].mxu0 %v1430
        %v2793 = vpop.f32.mrb[0].mxu0
        %v2794 = vadd.f32 0.0, %v2793
        %v2795 = vpop.f32.mrb[0].mxu0
        %2796 = vmatprep.mubr.f32.mxu0 0.0
        %2797 = vmatmul.mubr.f32.gmra.mrb[0].mxu0 %v1431
        %v2798 = vpop.f32.mrb[0].mxu0
        %v2799 = vadd.f32 0.0, %v2798
        %v2800 = vpop.f32.mrb[0].mxu0
        %2801 = vmatprep.mubr.f32.mxu0 0.0
        %2802 = vmatmul.mubr.f32.gmra.mrb[0].mxu0 %v1432
        %v2803 = vpop.f32.mrb[0].mxu0
        %v2804 = vadd.f32 0.0, %v2803
        %v2805 = vpop.f32.mrb[0].mxu0
        %2806 = vmatprep.mubr.f32.mxu0 0.0
        %2807 = vmatmul.mubr.f32.gmra.mrb[0].mxu0 %v1433
        %v2808 = vpop.f32.mrb[0].mxu0
        %v2809 = vadd.f32 0.0, %v2808
        %v2810 = vpop.f32.mrb[0].mxu0
        %2811 = vmatprep.mubr.f32.mxu0 0.0
        %2812 = vmatmul.mubr.f32.gmra.mrb[0].mxu0 %v1434
        %v2813 = vpop.f32.mrb[0].mxu0
        %v2814 = vadd.f32 0.0, %v2813
        %v2815 = vpop.f32.mrb[0].mxu0
        %2816 = vmatprep.mubr.f32.mxu0 0.0
        %2817 = vmatmul.mubr.f32.gmra.mrb[0].mxu0 %v1435
        %v2818 = vpop.f32.mrb[0].mxu0
        %v2819 = vadd.f32 0.0, %v2818
        %v2820 = vpop.f32.mrb[0].mxu0
        %2821 = vmatprep.mubr.f32.mxu0 0.0
        %2822 = vmatmul.mubr.f32.gmra.mrb[0].mxu0 %v1436
        %v2823 = vpop.f32.mrb[0].mxu0
        %v2824 = vadd.f32 0.0, %v2823
        %v2825 = vpop.f32.mrb[0].mxu0
        %2826 = vmatprep.mubr.f32.mxu0 0.0
        %2827 = vmatmul.mubr.f32.gmra.mrb[0].mxu0 %v1437
        %v2828 = vpop.f32.mrb[0].mxu0
        %v2829 = vadd.f32 0.0, %v2828
        %v2830 = vpop.f32.mrb[0].mxu0
        %2831 = vmatprep.mubr.f32.mxu0 0.0
        %2832 = vmatmul.mubr.f32.gmra.mrb[0].mxu0 %v1438
        %v2833 = vpop.f32.mrb[0].mxu0
        %v2834 = vadd.f32 0.0, %v2833
        %v2835 = vpop.f32.mrb[0].mxu0
        %2836 = vmatprep.mubr.f32.mxu0 0.0
        %2837 = vmatmul.mubr.f32.gmra.mrb[0].mxu0 %v1439
        %v2838 = vpop.f32.mrb[0].mxu0
        %v2839 = vadd.f32 0.0, %v2838
        %v2840 = vpop.f32.mrb[0].mxu0
        %2841 = vmatprep.mubr.f32.mxu0 0.0
        %2842 = vmatmul.mubr.f32.gmra.mrb[0].mxu0 %v1440
        %v2843 = vpop.f32.mrb[0].mxu0
        %v2844 = vadd.f32 0.0, %v2843
        %v2845 = vpop.f32.mrb[0].mxu0
        %2846 = vmatprep.mubr.f32.mxu0 0.0
        %2847 = vmatmul.mubr.f32.gmra.mrb[0].mxu0 %v1441
        %v2848 = vpop.f32.mrb[0].mxu0
        %v2849 = vadd.f32 0.0, %v2848
        %v2850 = vpop.f32.mrb[0].mxu0
        %2851 = vmatprep.mubr.f32.mxu0 0.0
        %2852 = vmatmul.mubr.f32.gmra.mrb[0].mxu0 %v1442
        %v2853 = vpop.f32.mrb[0].mxu0
        %v2854 = vadd.f32 0.0, %v2853
        %v2855 = vpop.f32.mrb[0].mxu0
        %2856 = vmatprep.mubr.f32.mxu0 0.0
        %2857 = vmatmul.mubr.f32.gmra.mrb[0].mxu0 %v1443
        %v2858 = vpop.f32.mrb[0].mxu0
        %v2859 = vadd.f32 0.0, %v2858
        %v2860 = vpop.f32.mrb[0].mxu0
        %2861 = vmatprep.mubr.f32.mxu0 0.0
        %2862 = vmatmul.mubr.f32.gmra.mrb[0].mxu0 %v1444
        %v2863 = vpop.f32.mrb[0].mxu0
        %v2864 = vadd.f32 0.0, %v2863
        %v2865 = vpop.f32.mrb[0].mxu0
        %2866 = vmatprep.mubr.f32.mxu0 0.0
        %2867 = vmatmul.mubr.f32.gmra.mrb[0].mxu0 %v1445
        %v2868 = vpop.f32.mrb[0].mxu0
        %v2869 = vadd.f32 0.0, %v2868
        %v2870 = vpop.f32.mrb[0].mxu0
        %2871 = vmatprep.mubr.f32.mxu0 0.0
        %2872 = vmatmul.mubr.f32.gmra.mrb[0].mxu0 %v1446
        %v2873 = vpop.f32.mrb[0].mxu0
        %v2874 = vadd.f32 0.0, %v2873
        %v2875 = vpop.f32.mrb[0].mxu0
        %2876 = vmatprep.mubr.f32.mxu0 0.0
        %2877 = vmatmul.mubr.f32.gmra.mrb[0].mxu0 %v1447
        %v2878 = vpop.f32.mrb[0].mxu0
        %v2879 = vadd.f32 0.0, %v2878
        %v2880 = vpop.f32.mrb[0].mxu0
        %2881 = vmatprep.mubr.f32.mxu0 0.0
        %2882 = vmatmul.mubr.f32.gmra.mrb[0].mxu0 %v1448
        %v2883 = vpop.f32.mrb[0].mxu0
        %v2884 = vadd.f32 0.0, %v2883
        %v2885 = vpop.f32.mrb[0].mxu0
        %2886 = vmatprep.mubr.f32.mxu0 0.0
        %2887 = vmatmul.mubr.f32.gmra.mrb[0].mxu0 %v1449
        %v2888 = vpop.f32.mrb[0].mxu0
        %v2889 = vadd.f32 0.0, %v2888
        %v2890 = vpop.f32.mrb[0].mxu0
        %2891 = vdwg.mxu0
        %v2892 = vld [vmem:[%s4] sm:$0xff]
        %v2893 = vld [vmem:[%s4 + $0x8] sm:$0xff]
        %v2894 = vld [vmem:[%s4 + $0x10] sm:$0xff]
        %v2895 = vld [vmem:[%s4 + $0x18] sm:$0xff]
        %v2896 = vld [vmem:[%s4 + $0x20] sm:$0xff]
        %v2897 = vld [vmem:[%s4 + $0x28] sm:$0xff]
        %v2898 = vld [vmem:[%s4 + $0x30] sm:$0xff]
        %v2899 = vld [vmem:[%s4 + $0x38] sm:$0xff]
        %v2900 = vld [vmem:[%s4 + $0x40] sm:$0xff]
        %v2901 = vld [vmem:[%s4 + $0x48] sm:$0xff]
        %v2902 = vld [vmem:[%s4 + $0x50] sm:$0xff]
        %v2903 = vld [vmem:[%s4 + $0x58] sm:$0xff]
        %v2904 = vld [vmem:[%s4 + $0x60] sm:$0xff]
        %v2905 = vld [vmem:[%s4 + $0x68] sm:$0xff]
        %v2906 = vld [vmem:[%s4 + $0x70] sm:$0xff]
        %v2907 = vld [vmem:[%s4 + $0x78] sm:$0xff]
        %2908 = vmatprep.subr.mxu0 0.0
        %2909 = vmatpush1.msra.mxu0 %v2892
        %2910 = vmatprep.subr.mxu0 0.0
        %2911 = vmatpush1.msra.mxu0 %v2893
        %2912 = vmatprep.subr.mxu0 0.0
        %2913 = vmatpush1.msra.mxu0 %v2894
        %2914 = vmatprep.subr.mxu0 0.0
        %2915 = vmatpush1.msra.mxu0 %v2895
        %2916 = vmatprep.subr.mxu0 0.0
        %2917 = vmatpush1.msra.mxu0 %v2896
        %2918 = vmatprep.subr.mxu0 0.0
        %2919 = vmatpush1.msra.mxu0 %v2897
        %2920 = vmatprep.subr.mxu0 0.0
        %2921 = vmatpush1.msra.mxu0 %v2898
        %2922 = vmatprep.subr.mxu0 0.0
        %2923 = vmatpush1.msra.mxu0 %v2899
        %2924 = vmatprep.subr.mxu0 0.0
        %2925 = vmatpush1.msra.mxu0 %v2900
        %2926 = vmatprep.subr.mxu0 0.0
        %2927 = vmatpush1.msra.mxu0 %v2901
        %2928 = vmatprep.subr.mxu0 0.0
        %2929 = vmatpush1.msra.mxu0 %v2902
        %2930 = vmatprep.subr.mxu0 0.0
        %2931 = vmatpush1.msra.mxu0 %v2903
        %2932 = vmatprep.subr.mxu0 0.0
        %2933 = vmatpush1.msra.mxu0 %v2904
        %2934 = vmatprep.subr.mxu0 0.0
        %2935 = vmatpush1.msra.mxu0 %v2905
        %2936 = vmatprep.subr.mxu0 0.0
        %2937 = vmatpush1.msra.mxu0 %v2906
        %2938 = vmatprep.subr.mxu0 0.0
        %2939 = vmatpush1.msra.mxu0 %v2907
        %2940 = vmatprep.subr.mxu0 0.0
        %2941 = vmatpush1.msra.mxu0 0.0
        %2942 = vmatprep.subr.mxu0 0.0
        %2943 = vmatpush1.msra.mxu0 0.0
        %2944 = vmatprep.subr.mxu0 0.0
        %2945 = vmatpush1.msra.mxu0 0.0
        %2946 = vmatprep.subr.mxu0 0.0
        %2947 = vmatpush1.msra.mxu0 0.0
        %2948 = vmatprep.subr.mxu0 0.0
        %2949 = vmatpush1.msra.mxu0 0.0
        %2950 = vmatprep.subr.mxu0 0.0
        %2951 = vmatpush1.msra.mxu0 0.0
        %2952 = vmatprep.subr.mxu0 0.0
        %2953 = vmatpush1.msra.mxu0 0.0
        %2954 = vmatprep.subr.mxu0 0.0
        %2955 = vmatpush1.msra.mxu0 0.0
        %2956 = vmatprep.subr.mxu0 0.0
        %2957 = vmatpush1.msra.mxu0 0.0
        %2958 = vmatprep.subr.mxu0 0.0
        %2959 = vmatpush1.msra.mxu0 0.0
        %2960 = vmatprep.subr.mxu0 0.0
        %2961 = vmatpush1.msra.mxu0 0.0
        %2962 = vmatprep.subr.mxu0 0.0
        %2963 = vmatpush1.msra.mxu0 0.0
        %2964 = vmatprep.subr.mxu0 0.0
        %2965 = vmatpush1.msra.mxu0 0.0
        %2966 = vmatprep.subr.mxu0 0.0
        %2967 = vmatpush1.msra.mxu0 0.0
        %2968 = vmatprep.subr.mxu0 0.0
        %2969 = vmatpush1.msra.mxu0 0.0
        %2970 = vmatprep.subr.mxu0 0.0
        %2971 = vmatpush1.msra.mxu0 0.0
        %2972 = vmatprep.mubr.f32.mxu0 0.0
        %2973 = vmatmul.mubr.f32.gmra.mrb[0].mxu0 %v1322
        %v2974 = vpop.f32.mrb[0].mxu0
        %v2975 = vadd.f32 0.0, %v2974
        %v2976 = vpop.f32.mrb[0].mxu0
        %2977 = vmatprep.mubr.f32.mxu0 0.0
        %2978 = vmatmul.mubr.f32.gmra.mrb[0].mxu0 %v1323
        %v2979 = vpop.f32.mrb[0].mxu0
        %v2980 = vadd.f32 0.0, %v2979
        %v2981 = vpop.f32.mrb[0].mxu0
        %2982 = vmatprep.mubr.f32.mxu0 0.0
        %2983 = vmatmul.mubr.f32.gmra.mrb[0].mxu0 %v1324
        %v2984 = vpop.f32.mrb[0].mxu0
        %v2985 = vadd.f32 0.0, %v2984
        %v2986 = vpop.f32.mrb[0].mxu0
        %2987 = vmatprep.mubr.f32.mxu0 0.0
        %2988 = vmatmul.mubr.f32.gmra.mrb[0].mxu0 %v1325
        %v2989 = vpop.f32.mrb[0].mxu0
        %v2990 = vadd.f32 0.0, %v2989
        %v2991 = vpop.f32.mrb[0].mxu0
        %2992 = vmatprep.mubr.f32.mxu0 0.0
        %2993 = vmatmul.mubr.f32.gmra.mrb[0].mxu0 %v1326
        %v2994 = vpop.f32.mrb[0].mxu0
        %v2995 = vadd.f32 0.0, %v2994
        %v2996 = vpop.f32.mrb[0].mxu0
        %2997 = vmatprep.mubr.f32.mxu0 0.0
        %2998 = vmatmul.mubr.f32.gmra.mrb[0].mxu0 %v1327
        %v2999 = vpop.f32.mrb[0].mxu0
        %v3000 = vadd.f32 0.0, %v2999
        %v3001 = vpop.f32.mrb[0].mxu0
        %3002 = vmatprep.mubr.f32.mxu0 0.0
        %3003 = vmatmul.mubr.f32.gmra.mrb[0].mxu0 %v1328
        %v3004 = vpop.f32.mrb[0].mxu0
        %v3005 = vadd.f32 0.0, %v3004
        %v3006 = vpop.f32.mrb[0].mxu0
        %3007 = vmatprep.mubr.f32.mxu0 0.0
        %3008 = vmatmul.mubr.f32.gmra.mrb[0].mxu0 %v1329
        %v3009 = vpop.f32.mrb[0].mxu0
        %v3010 = vadd.f32 0.0, %v3009
        %v3011 = vpop.f32.mrb[0].mxu0
        %3012 = vmatprep.mubr.f32.mxu0 0.0
        %3013 = vmatmul.mubr.f32.gmra.mrb[0].mxu0 %v1330
        %v3014 = vpop.f32.mrb[0].mxu0
        %v3015 = vadd.f32 0.0, %v3014
        %v3016 = vpop.f32.mrb[0].mxu0
        %3017 = vmatprep.mubr.f32.mxu0 0.0
        %3018 = vmatmul.mubr.f32.gmra.mrb[0].mxu0 %v1331
        %v3019 = vpop.f32.mrb[0].mxu0
        %v3020 = vadd.f32 0.0, %v3019
        %v3021 = vpop.f32.mrb[0].mxu0
        %3022 = vmatprep.mubr.f32.mxu0 0.0
        %3023 = vmatmul.mubr.f32.gmra.mrb[0].mxu0 %v1332
        %v3024 = vpop.f32.mrb[0].mxu0
        %v3025 = vadd.f32 0.0, %v3024
        %v3026 = vpop.f32.mrb[0].mxu0
        %3027 = vmatprep.mubr.f32.mxu0 0.0
        %3028 = vmatmul.mubr.f32.gmra.mrb[0].mxu0 %v1333
        %v3029 = vpop.f32.mrb[0].mxu0
        %v3030 = vadd.f32 0.0, %v3029
        %v3031 = vpop.f32.mrb[0].mxu0
        %3032 = vmatprep.mubr.f32.mxu0 0.0
        %3033 = vmatmul.mubr.f32.gmra.mrb[0].mxu0 %v1334
        %v3034 = vpop.f32.mrb[0].mxu0
        %v3035 = vadd.f32 0.0, %v3034
        %v3036 = vpop.f32.mrb[0].mxu0
        %3037 = vmatprep.mubr.f32.mxu0 0.0
        %3038 = vmatmul.mubr.f32.gmra.mrb[0].mxu0 %v1335
        %v3039 = vpop.f32.mrb[0].mxu0
        %v3040 = vadd.f32 0.0, %v3039
        %v3041 = vpop.f32.mrb[0].mxu0
        %3042 = vmatprep.mubr.f32.mxu0 0.0
        %3043 = vmatmul.mubr.f32.gmra.mrb[0].mxu0 %v1336
        %v3044 = vpop.f32.mrb[0].mxu0
        %v3045 = vadd.f32 0.0, %v3044
        %v3046 = vpop.f32.mrb[0].mxu0
        %3047 = vmatprep.mubr.f32.mxu0 0.0
        %3048 = vmatmul.mubr.f32.gmra.mrb[0].mxu0 %v1337
        %v3049 = vpop.f32.mrb[0].mxu0
        %v3050 = vadd.f32 0.0, %v3049
        %v3051 = vpop.f32.mrb[0].mxu0
        %3052 = vmatprep.mubr.f32.mxu0 0.0
        %3053 = vmatmul.mubr.f32.gmra.mrb[0].mxu0 %v1338
        %v3054 = vpop.f32.mrb[0].mxu0
        %v3055 = vadd.f32 0.0, %v3054
        %v3056 = vpop.f32.mrb[0].mxu0
        %3057 = vmatprep.mubr.f32.mxu0 0.0
        %3058 = vmatmul.mubr.f32.gmra.mrb[0].mxu0 %v1339
        %v3059 = vpop.f32.mrb[0].mxu0
        %v3060 = vadd.f32 0.0, %v3059
        %v3061 = vpop.f32.mrb[0].mxu0
        %3062 = vmatprep.mubr.f32.mxu0 0.0
        %3063 = vmatmul.mubr.f32.gmra.mrb[0].mxu0 %v1340
        %v3064 = vpop.f32.mrb[0].mxu0
        %v3065 = vadd.f32 0.0, %v3064
        %v3066 = vpop.f32.mrb[0].mxu0
        %3067 = vmatprep.mubr.f32.mxu0 0.0
        %3068 = vmatmul.mubr.f32.gmra.mrb[0].mxu0 %v1341
        %v3069 = vpop.f32.mrb[0].mxu0
        %v3070 = vadd.f32 0.0, %v3069
        %v3071 = vpop.f32.mrb[0].mxu0
        %3072 = vmatprep.mubr.f32.mxu0 0.0
        %3073 = vmatmul.mubr.f32.gmra.mrb[0].mxu0 %v1342
        %v3074 = vpop.f32.mrb[0].mxu0
        %v3075 = vadd.f32 0.0, %v3074
        %v3076 = vpop.f32.mrb[0].mxu0
        %3077 = vmatprep.mubr.f32.mxu0 0.0
        %3078 = vmatmul.mubr.f32.gmra.mrb[0].mxu0 %v1343
        %v3079 = vpop.f32.mrb[0].mxu0
        %v3080 = vadd.f32 0.0, %v3079
        %v3081 = vpop.f32.mrb[0].mxu0
        %3082 = vmatprep.mubr.f32.mxu0 0.0
        %3083 = vmatmul.mubr.f32.gmra.mrb[0].mxu0 %v1344
        %v3084 = vpop.f32.mrb[0].mxu0
        %v3085 = vadd.f32 0.0, %v3084
        %v3086 = vpop.f32.mrb[0].mxu0
        %3087 = vmatprep.mubr.f32.mxu0 0.0
        %3088 = vmatmul.mubr.f32.gmra.mrb[0].mxu0 %v1345
        %v3089 = vpop.f32.mrb[0].mxu0
        %v3090 = vadd.f32 0.0, %v3089
        %v3091 = vpop.f32.mrb[0].mxu0
        %3092 = vmatprep.mubr.f32.mxu0 0.0
        %3093 = vmatmul.mubr.f32.gmra.mrb[0].mxu0 %v1346
        %v3094 = vpop.f32.mrb[0].mxu0
        %v3095 = vadd.f32 0.0, %v3094
        %v3096 = vpop.f32.mrb[0].mxu0
        %3097 = vmatprep.mubr.f32.mxu0 0.0
        %3098 = vmatmul.mubr.f32.gmra.mrb[0].mxu0 %v1347
        %v3099 = vpop.f32.mrb[0].mxu0
        %v3100 = vadd.f32 0.0, %v3099
        %v3101 = vpop.f32.mrb[0].mxu0
        %3102 = vmatprep.mubr.f32.mxu0 0.0
        %3103 = vmatmul.mubr.f32.gmra.mrb[0].mxu0 %v1348
        %v3104 = vpop.f32.mrb[0].mxu0
        %v3105 = vadd.f32 0.0, %v3104
        %v3106 = vpop.f32.mrb[0].mxu0
        %3107 = vmatprep.mubr.f32.mxu0 0.0
        %3108 = vmatmul.mubr.f32.gmra.mrb[0].mxu0 %v1349
        %v3109 = vpop.f32.mrb[0].mxu0
        %v3110 = vadd.f32 0.0, %v3109
        %v3111 = vpop.f32.mrb[0].mxu0
        %3112 = vmatprep.mubr.f32.mxu0 0.0
        %3113 = vmatmul.mubr.f32.gmra.mrb[0].mxu0 %v1350
        %v3114 = vpop.f32.mrb[0].mxu0
        %v3115 = vadd.f32 0.0, %v3114
        %v3116 = vpop.f32.mrb[0].mxu0
        %3117 = vmatprep.mubr.f32.mxu0 0.0
        %3118 = vmatmul.mubr.f32.gmra.mrb[0].mxu0 %v1351
        %v3119 = vpop.f32.mrb[0].mxu0
        %v3120 = vadd.f32 0.0, %v3119
        %v3121 = vpop.f32.mrb[0].mxu0
        %3122 = vmatprep.mubr.f32.mxu0 0.0
        %3123 = vmatmul.mubr.f32.gmra.mrb[0].mxu0 %v1352
        %v3124 = vpop.f32.mrb[0].mxu0
        %v3125 = vadd.f32 0.0, %v3124
        %v3126 = vpop.f32.mrb[0].mxu0
        %3127 = vmatprep.mubr.f32.mxu0 0.0
        %3128 = vmatmul.mubr.f32.gmra.mrb[0].mxu0 %v1353
        %v3129 = vpop.f32.mrb[0].mxu0
        %v3130 = vadd.f32 0.0, %v3129
        %v3131 = vpop.f32.mrb[0].mxu0
        %3132 = vmatprep.mubr.f32.mxu0 0.0
        %3133 = vmatmul.mubr.f32.gmra.mrb[0].mxu0 %v1354
        %v3134 = vpop.f32.mrb[0].mxu0
        %v3135 = vadd.f32 0.0, %v3134
        %v3136 = vpop.f32.mrb[0].mxu0
        %3137 = vmatprep.mubr.f32.mxu0 0.0
        %3138 = vmatmul.mubr.f32.gmra.mrb[0].mxu0 %v1355
        %v3139 = vpop.f32.mrb[0].mxu0
        %v3140 = vadd.f32 0.0, %v3139
        %v3141 = vpop.f32.mrb[0].mxu0
        %3142 = vmatprep.mubr.f32.mxu0 0.0
        %3143 = vmatmul.mubr.f32.gmra.mrb[0].mxu0 %v1356
        %v3144 = vpop.f32.mrb[0].mxu0
        %v3145 = vadd.f32 0.0, %v3144
        %v3146 = vpop.f32.mrb[0].mxu0
        %3147 = vmatprep.mubr.f32.mxu0 0.0
        %3148 = vmatmul.mubr.f32.gmra.mrb[0].mxu0 %v1357
        %v3149 = vpop.f32.mrb[0].mxu0
        %v3150 = vadd.f32 0.0, %v3149
        %v3151 = vpop.f32.mrb[0].mxu0
        %3152 = vmatprep.mubr.f32.mxu0 0.0
        %3153 = vmatmul.mubr.f32.gmra.mrb[0].mxu0 %v1358
        %v3154 = vpop.f32.mrb[0].mxu0
        %v3155 = vadd.f32 0.0, %v3154
        %v3156 = vpop.f32.mrb[0].mxu0
        %3157 = vmatprep.mubr.f32.mxu0 0.0
        %3158 = vmatmul.mubr.f32.gmra.mrb[0].mxu0 %v1359
        %v3159 = vpop.f32.mrb[0].mxu0
        %v3160 = vadd.f32 0.0, %v3159
        %v3161 = vpop.f32.mrb[0].mxu0
        %3162 = vmatprep.mubr.f32.mxu0 0.0
        %3163 = vmatmul.mubr.f32.gmra.mrb[0].mxu0 %v1360
        %v3164 = vpop.f32.mrb[0].mxu0
        %v3165 = vadd.f32 0.0, %v3164
        %v3166 = vpop.f32.mrb[0].mxu0
        %3167 = vmatprep.mubr.f32.mxu0 0.0
        %3168 = vmatmul.mubr.f32.gmra.mrb[0].mxu0 %v1361
        %v3169 = vpop.f32.mrb[0].mxu0
        %v3170 = vadd.f32 0.0, %v3169
        %v3171 = vpop.f32.mrb[0].mxu0
        %3172 = vmatprep.mubr.f32.mxu0 0.0
        %3173 = vmatmul.mubr.f32.gmra.mrb[0].mxu0 %v1362
        %v3174 = vpop.f32.mrb[0].mxu0
        %v3175 = vadd.f32 0.0, %v3174
        %v3176 = vpop.f32.mrb[0].mxu0
        %3177 = vmatprep.mubr.f32.mxu0 0.0
        %3178 = vmatmul.mubr.f32.gmra.mrb[0].mxu0 %v1363
        %v3179 = vpop.f32.mrb[0].mxu0
        %v3180 = vadd.f32 0.0, %v3179
        %v3181 = vpop.f32.mrb[0].mxu0
        %3182 = vmatprep.mubr.f32.mxu0 0.0
        %3183 = vmatmul.mubr.f32.gmra.mrb[0].mxu0 %v1364
        %v3184 = vpop.f32.mrb[0].mxu0
        %v3185 = vadd.f32 0.0, %v3184
        %v3186 = vpop.f32.mrb[0].mxu0
        %3187 = vmatprep.mubr.f32.mxu0 0.0
        %3188 = vmatmul.mubr.f32.gmra.mrb[0].mxu0 %v1365
        %v3189 = vpop.f32.mrb[0].mxu0
        %v3190 = vadd.f32 0.0, %v3189
        %v3191 = vpop.f32.mrb[0].mxu0
        %3192 = vmatprep.mubr.f32.mxu0 0.0
        %3193 = vmatmul.mubr.f32.gmra.mrb[0].mxu0 %v1366
        %v3194 = vpop.f32.mrb[0].mxu0
        %v3195 = vadd.f32 0.0, %v3194
        %v3196 = vpop.f32.mrb[0].mxu0
        %3197 = vmatprep.mubr.f32.mxu0 0.0
        %3198 = vmatmul.mubr.f32.gmra.mrb[0].mxu0 %v1367
        %v3199 = vpop.f32.mrb[0].mxu0
        %v3200 = vadd.f32 0.0, %v3199
        %v3201 = vpop.f32.mrb[0].mxu0
        %3202 = vmatprep.mubr.f32.mxu0 0.0
        %3203 = vmatmul.mubr.f32.gmra.mrb[0].mxu0 %v1368
        %v3204 = vpop.f32.mrb[0].mxu0
        %v3205 = vadd.f32 0.0, %v3204
        %v3206 = vpop.f32.mrb[0].mxu0
        %3207 = vmatprep.mubr.f32.mxu0 0.0
        %3208 = vmatmul.mubr.f32.gmra.mrb[0].mxu0 %v1369
        %v3209 = vpop.f32.mrb[0].mxu0
        %v3210 = vadd.f32 0.0, %v3209
        %v3211 = vpop.f32.mrb[0].mxu0
        %3212 = vmatprep.mubr.f32.mxu0 0.0
        %3213 = vmatmul.mubr.f32.gmra.mrb[0].mxu0 %v1370
        %v3214 = vpop.f32.mrb[0].mxu0
        %v3215 = vadd.f32 0.0, %v3214
        %v3216 = vpop.f32.mrb[0].mxu0
        %3217 = vmatprep.mubr.f32.mxu0 0.0
        %3218 = vmatmul.mubr.f32.gmra.mrb[0].mxu0 %v1371
        %v3219 = vpop.f32.mrb[0].mxu0
        %v3220 = vadd.f32 0.0, %v3219
        %v3221 = vpop.f32.mrb[0].mxu0
        %3222 = vmatprep.mubr.f32.mxu0 0.0
        %3223 = vmatmul.mubr.f32.gmra.mrb[0].mxu0 %v1372
        %v3224 = vpop.f32.mrb[0].mxu0
        %v3225 = vadd.f32 0.0, %v3224
        %v3226 = vpop.f32.mrb[0].mxu0
        %3227 = vmatprep.mubr.f32.mxu0 0.0
        %3228 = vmatmul.mubr.f32.gmra.mrb[0].mxu0 %v1373
        %v3229 = vpop.f32.mrb[0].mxu0
        %v3230 = vadd.f32 0.0, %v3229
        %v3231 = vpop.f32.mrb[0].mxu0
        %3232 = vmatprep.mubr.f32.mxu0 0.0
        %3233 = vmatmul.mubr.f32.gmra.mrb[0].mxu0 %v1374
        %v3234 = vpop.f32.mrb[0].mxu0
        %v3235 = vadd.f32 0.0, %v3234
        %v3236 = vpop.f32.mrb[0].mxu0
        %3237 = vmatprep.mubr.f32.mxu0 0.0
        %3238 = vmatmul.mubr.f32.gmra.mrb[0].mxu0 %v1375
        %v3239 = vpop.f32.mrb[0].mxu0
        %v3240 = vadd.f32 0.0, %v3239
        %v3241 = vpop.f32.mrb[0].mxu0
        %3242 = vmatprep.mubr.f32.mxu0 0.0
        %3243 = vmatmul.mubr.f32.gmra.mrb[0].mxu0 %v1376
        %v3244 = vpop.f32.mrb[0].mxu0
        %v3245 = vadd.f32 0.0, %v3244
        %v3246 = vpop.f32.mrb[0].mxu0
        %3247 = vmatprep.mubr.f32.mxu0 0.0
        %3248 = vmatmul.mubr.f32.gmra.mrb[0].mxu0 %v1377
        %v3249 = vpop.f32.mrb[0].mxu0
        %v3250 = vadd.f32 0.0, %v3249
        %v3251 = vpop.f32.mrb[0].mxu0
        %3252 = vmatprep.mubr.f32.mxu0 0.0
        %3253 = vmatmul.mubr.f32.gmra.mrb[0].mxu0 %v1378
        %v3254 = vpop.f32.mrb[0].mxu0
        %v3255 = vadd.f32 0.0, %v3254
        %v3256 = vpop.f32.mrb[0].mxu0
        %3257 = vmatprep.mubr.f32.mxu0 0.0
        %3258 = vmatmul.mubr.f32.gmra.mrb[0].mxu0 %v1379
        %v3259 = vpop.f32.mrb[0].mxu0
        %v3260 = vadd.f32 0.0, %v3259
        %v3261 = vpop.f32.mrb[0].mxu0
        %3262 = vmatprep.mubr.f32.mxu0 0.0
        %3263 = vmatmul.mubr.f32.gmra.mrb[0].mxu0 %v1380
        %v3264 = vpop.f32.mrb[0].mxu0
        %v3265 = vadd.f32 0.0, %v3264
        %v3266 = vpop.f32.mrb[0].mxu0
        %3267 = vmatprep.mubr.f32.mxu0 0.0
        %3268 = vmatmul.mubr.f32.gmra.mrb[0].mxu0 %v1381
        %v3269 = vpop.f32.mrb[0].mxu0
        %v3270 = vadd.f32 0.0, %v3269
        %v3271 = vpop.f32.mrb[0].mxu0
        %3272 = vmatprep.mubr.f32.mxu0 0.0
        %3273 = vmatmul.mubr.f32.gmra.mrb[0].mxu0 %v1382
        %v3274 = vpop.f32.mrb[0].mxu0
        %v3275 = vadd.f32 0.0, %v3274
        %v3276 = vpop.f32.mrb[0].mxu0
        %3277 = vmatprep.mubr.f32.mxu0 0.0
        %3278 = vmatmul.mubr.f32.gmra.mrb[0].mxu0 %v1383
        %v3279 = vpop.f32.mrb[0].mxu0
        %v3280 = vadd.f32 0.0, %v3279
        %v3281 = vpop.f32.mrb[0].mxu0
        %3282 = vmatprep.mubr.f32.mxu0 0.0
        %3283 = vmatmul.mubr.f32.gmra.mrb[0].mxu0 %v1384
        %v3284 = vpop.f32.mrb[0].mxu0
        %v3285 = vadd.f32 0.0, %v3284
        %v3286 = vpop.f32.mrb[0].mxu0
        %3287 = vmatprep.mubr.f32.mxu0 0.0
        %3288 = vmatmul.mubr.f32.gmra.mrb[0].mxu0 %v1385
        %v3289 = vpop.f32.mrb[0].mxu0
        %v3290 = vadd.f32 0.0, %v3289
        %v3291 = vpop.f32.mrb[0].mxu0
        %3292 = vmatprep.mubr.f32.mxu0 0.0
        %3293 = vmatmul.mubr.f32.gmra.mrb[0].mxu0 %v1386
        %v3294 = vpop.f32.mrb[0].mxu0
        %v3295 = vadd.f32 0.0, %v3294
        %v3296 = vpop.f32.mrb[0].mxu0
        %3297 = vmatprep.mubr.f32.mxu0 0.0
        %3298 = vmatmul.mubr.f32.gmra.mrb[0].mxu0 %v1387
        %v3299 = vpop.f32.mrb[0].mxu0
        %v3300 = vadd.f32 0.0, %v3299
        %v3301 = vpop.f32.mrb[0].mxu0
        %3302 = vmatprep.mubr.f32.mxu0 0.0
        %3303 = vmatmul.mubr.f32.gmra.mrb[0].mxu0 %v1388
        %v3304 = vpop.f32.mrb[0].mxu0
        %v3305 = vadd.f32 0.0, %v3304
        %v3306 = vpop.f32.mrb[0].mxu0
        %3307 = vmatprep.mubr.f32.mxu0 0.0
        %3308 = vmatmul.mubr.f32.gmra.mrb[0].mxu0 %v1389
        %v3309 = vpop.f32.mrb[0].mxu0
        %v3310 = vadd.f32 0.0, %v3309
        %v3311 = vpop.f32.mrb[0].mxu0
        %3312 = vmatprep.mubr.f32.mxu0 0.0
        %3313 = vmatmul.mubr.f32.gmra.mrb[0].mxu0 %v1390
        %v3314 = vpop.f32.mrb[0].mxu0
        %v3315 = vadd.f32 0.0, %v3314
        %v3316 = vpop.f32.mrb[0].mxu0
        %3317 = vmatprep.mubr.f32.mxu0 0.0
        %3318 = vmatmul.mubr.f32.gmra.mrb[0].mxu0 %v1391
        %v3319 = vpop.f32.mrb[0].mxu0
        %v3320 = vadd.f32 0.0, %v3319
        %v3321 = vpop.f32.mrb[0].mxu0
        %3322 = vmatprep.mubr.f32.mxu0 0.0
        %3323 = vmatmul.mubr.f32.gmra.mrb[0].mxu0 %v1392
        %v3324 = vpop.f32.mrb[0].mxu0
        %v3325 = vadd.f32 0.0, %v3324
        %v3326 = vpop.f32.mrb[0].mxu0
        %3327 = vmatprep.mubr.f32.mxu0 0.0
        %3328 = vmatmul.mubr.f32.gmra.mrb[0].mxu0 %v1393
        %v3329 = vpop.f32.mrb[0].mxu0
        %v3330 = vadd.f32 0.0, %v3329
        %v3331 = vpop.f32.mrb[0].mxu0
        %3332 = vmatprep.mubr.f32.mxu0 0.0
        %3333 = vmatmul.mubr.f32.gmra.mrb[0].mxu0 %v1394
        %v3334 = vpop.f32.mrb[0].mxu0
        %v3335 = vadd.f32 0.0, %v3334
        %v3336 = vpop.f32.mrb[0].mxu0
        %3337 = vmatprep.mubr.f32.mxu0 0.0
        %3338 = vmatmul.mubr.f32.gmra.mrb[0].mxu0 %v1395
        %v3339 = vpop.f32.mrb[0].mxu0
        %v3340 = vadd.f32 0.0, %v3339
        %v3341 = vpop.f32.mrb[0].mxu0
        %3342 = vmatprep.mubr.f32.mxu0 0.0
        %3343 = vmatmul.mubr.f32.gmra.mrb[0].mxu0 %v1396
        %v3344 = vpop.f32.mrb[0].mxu0
        %v3345 = vadd.f32 0.0, %v3344
        %v3346 = vpop.f32.mrb[0].mxu0
        %3347 = vmatprep.mubr.f32.mxu0 0.0
        %3348 = vmatmul.mubr.f32.gmra.mrb[0].mxu0 %v1397
        %v3349 = vpop.f32.mrb[0].mxu0
        %v3350 = vadd.f32 0.0, %v3349
        %v3351 = vpop.f32.mrb[0].mxu0
        %3352 = vmatprep.mubr.f32.mxu0 0.0
        %3353 = vmatmul.mubr.f32.gmra.mrb[0].mxu0 %v1398
        %v3354 = vpop.f32.mrb[0].mxu0
        %v3355 = vadd.f32 0.0, %v3354
        %v3356 = vpop.f32.mrb[0].mxu0
        %3357 = vmatprep.mubr.f32.mxu0 0.0
        %3358 = vmatmul.mubr.f32.gmra.mrb[0].mxu0 %v1399
        %v3359 = vpop.f32.mrb[0].mxu0
        %v3360 = vadd.f32 0.0, %v3359
        %v3361 = vpop.f32.mrb[0].mxu0
        %3362 = vmatprep.mubr.f32.mxu0 0.0
        %3363 = vmatmul.mubr.f32.gmra.mrb[0].mxu0 %v1400
        %v3364 = vpop.f32.mrb[0].mxu0
        %v3365 = vadd.f32 0.0, %v3364
        %v3366 = vpop.f32.mrb[0].mxu0
        %3367 = vmatprep.mubr.f32.mxu0 0.0
        %3368 = vmatmul.mubr.f32.gmra.mrb[0].mxu0 %v1401
        %v3369 = vpop.f32.mrb[0].mxu0
        %v3370 = vadd.f32 0.0, %v3369
        %v3371 = vpop.f32.mrb[0].mxu0
        %3372 = vmatprep.mubr.f32.mxu0 0.0
        %3373 = vmatmul.mubr.f32.gmra.mrb[0].mxu0 %v1402
        %v3374 = vpop.f32.mrb[0].mxu0
        %v3375 = vadd.f32 0.0, %v3374
        %v3376 = vpop.f32.mrb[0].mxu0
        %3377 = vmatprep.mubr.f32.mxu0 0.0
        %3378 = vmatmul.mubr.f32.gmra.mrb[0].mxu0 %v1403
        %v3379 = vpop.f32.mrb[0].mxu0
        %v3380 = vadd.f32 0.0, %v3379
        %v3381 = vpop.f32.mrb[0].mxu0
        %3382 = vmatprep.mubr.f32.mxu0 0.0
        %3383 = vmatmul.mubr.f32.gmra.mrb[0].mxu0 %v1404
        %v3384 = vpop.f32.mrb[0].mxu0
        %v3385 = vadd.f32 0.0, %v3384
        %v3386 = vpop.f32.mrb[0].mxu0
        %3387 = vmatprep.mubr.f32.mxu0 0.0
        %3388 = vmatmul.mubr.f32.gmra.mrb[0].mxu0 %v1405
        %v3389 = vpop.f32.mrb[0].mxu0
        %v3390 = vadd.f32 0.0, %v3389
        %v3391 = vpop.f32.mrb[0].mxu0
        %3392 = vmatprep.mubr.f32.mxu0 0.0
        %3393 = vmatmul.mubr.f32.gmra.mrb[0].mxu0 %v1406
        %v3394 = vpop.f32.mrb[0].mxu0
        %v3395 = vadd.f32 0.0, %v3394
        %v3396 = vpop.f32.mrb[0].mxu0
        %3397 = vmatprep.mubr.f32.mxu0 0.0
        %3398 = vmatmul.mubr.f32.gmra.mrb[0].mxu0 %v1407
        %v3399 = vpop.f32.mrb[0].mxu0
        %v3400 = vadd.f32 0.0, %v3399
        %v3401 = vpop.f32.mrb[0].mxu0
        %3402 = vmatprep.mubr.f32.mxu0 0.0
        %3403 = vmatmul.mubr.f32.gmra.mrb[0].mxu0 %v1408
        %v3404 = vpop.f32.mrb[0].mxu0
        %v3405 = vadd.f32 0.0, %v3404
        %v3406 = vpop.f32.mrb[0].mxu0
        %3407 = vmatprep.mubr.f32.mxu0 0.0
        %3408 = vmatmul.mubr.f32.gmra.mrb[0].mxu0 %v1409
        %v3409 = vpop.f32.mrb[0].mxu0
        %v3410 = vadd.f32 0.0, %v3409
        %v3411 = vpop.f32.mrb[0].mxu0
        %3412 = vmatprep.mubr.f32.mxu0 0.0
        %3413 = vmatmul.mubr.f32.gmra.mrb[0].mxu0 %v1410
        %v3414 = vpop.f32.mrb[0].mxu0
        %v3415 = vadd.f32 0.0, %v3414
        %v3416 = vpop.f32.mrb[0].mxu0
        %3417 = vmatprep.mubr.f32.mxu0 0.0
        %3418 = vmatmul.mubr.f32.gmra.mrb[0].mxu0 %v1411
        %v3419 = vpop.f32.mrb[0].mxu0
        %v3420 = vadd.f32 0.0, %v3419
        %v3421 = vpop.f32.mrb[0].mxu0
        %3422 = vmatprep.mubr.f32.mxu0 0.0
        %3423 = vmatmul.mubr.f32.gmra.mrb[0].mxu0 %v1412
        %v3424 = vpop.f32.mrb[0].mxu0
        %v3425 = vadd.f32 0.0, %v3424
        %v3426 = vpop.f32.mrb[0].mxu0
        %3427 = vmatprep.mubr.f32.mxu0 0.0
        %3428 = vmatmul.mubr.f32.gmra.mrb[0].mxu0 %v1413
        %v3429 = vpop.f32.mrb[0].mxu0
        %v3430 = vadd.f32 0.0, %v3429
        %v3431 = vpop.f32.mrb[0].mxu0
        %3432 = vmatprep.mubr.f32.mxu0 0.0
        %3433 = vmatmul.mubr.f32.gmra.mrb[0].mxu0 %v1414
        %v3434 = vpop.f32.mrb[0].mxu0
        %v3435 = vadd.f32 0.0, %v3434
        %v3436 = vpop.f32.mrb[0].mxu0
        %3437 = vmatprep.mubr.f32.mxu0 0.0
        %3438 = vmatmul.mubr.f32.gmra.mrb[0].mxu0 %v1415
        %v3439 = vpop.f32.mrb[0].mxu0
        %v3440 = vadd.f32 0.0, %v3439
        %v3441 = vpop.f32.mrb[0].mxu0
        %3442 = vmatprep.mubr.f32.mxu0 0.0
        %3443 = vmatmul.mubr.f32.gmra.mrb[0].mxu0 %v1416
        %v3444 = vpop.f32.mrb[0].mxu0
        %v3445 = vadd.f32 0.0, %v3444
        %v3446 = vpop.f32.mrb[0].mxu0
        %3447 = vmatprep.mubr.f32.mxu0 0.0
        %3448 = vmatmul.mubr.f32.gmra.mrb[0].mxu0 %v1417
        %v3449 = vpop.f32.mrb[0].mxu0
        %v3450 = vadd.f32 0.0, %v3449
        %v3451 = vpop.f32.mrb[0].mxu0
        %3452 = vmatprep.mubr.f32.mxu0 0.0
        %3453 = vmatmul.mubr.f32.gmra.mrb[0].mxu0 %v1418
        %v3454 = vpop.f32.mrb[0].mxu0
        %v3455 = vadd.f32 0.0, %v3454
        %v3456 = vpop.f32.mrb[0].mxu0
        %3457 = vmatprep.mubr.f32.mxu0 0.0
        %3458 = vmatmul.mubr.f32.gmra.mrb[0].mxu0 %v1419
        %v3459 = vpop.f32.mrb[0].mxu0
        %v3460 = vadd.f32 0.0, %v3459
        %v3461 = vpop.f32.mrb[0].mxu0
        %3462 = vmatprep.mubr.f32.mxu0 0.0
        %3463 = vmatmul.mubr.f32.gmra.mrb[0].mxu0 %v1420
        %v3464 = vpop.f32.mrb[0].mxu0
        %v3465 = vadd.f32 0.0, %v3464
        %v3466 = vpop.f32.mrb[0].mxu0
        %3467 = vmatprep.mubr.f32.mxu0 0.0
        %3468 = vmatmul.mubr.f32.gmra.mrb[0].mxu0 %v1421
        %v3469 = vpop.f32.mrb[0].mxu0
        %v3470 = vadd.f32 0.0, %v3469
        %v3471 = vpop.f32.mrb[0].mxu0
        %3472 = vmatprep.mubr.f32.mxu0 0.0
        %3473 = vmatmul.mubr.f32.gmra.mrb[0].mxu0 %v1422
        %v3474 = vpop.f32.mrb[0].mxu0
        %v3475 = vadd.f32 0.0, %v3474
        %v3476 = vpop.f32.mrb[0].mxu0
        %3477 = vmatprep.mubr.f32.mxu0 0.0
        %3478 = vmatmul.mubr.f32.gmra.mrb[0].mxu0 %v1423
        %v3479 = vpop.f32.mrb[0].mxu0
        %v3480 = vadd.f32 0.0, %v3479
        %v3481 = vpop.f32.mrb[0].mxu0
        %3482 = vmatprep.mubr.f32.mxu0 0.0
        %3483 = vmatmul.mubr.f32.gmra.mrb[0].mxu0 %v1424
        %v3484 = vpop.f32.mrb[0].mxu0
        %v3485 = vadd.f32 0.0, %v3484
        %v3486 = vpop.f32.mrb[0].mxu0
        %3487 = vmatprep.mubr.f32.mxu0 0.0
        %3488 = vmatmul.mubr.f32.gmra.mrb[0].mxu0 %v1425
        %v3489 = vpop.f32.mrb[0].mxu0
        %v3490 = vadd.f32 0.0, %v3489
        %v3491 = vpop.f32.mrb[0].mxu0
        %3492 = vmatprep.mubr.f32.mxu0 0.0
        %3493 = vmatmul.mubr.f32.gmra.mrb[0].mxu0 %v1426
        %v3494 = vpop.f32.mrb[0].mxu0
        %v3495 = vadd.f32 0.0, %v3494
        %v3496 = vpop.f32.mrb[0].mxu0
        %3497 = vmatprep.mubr.f32.mxu0 0.0
        %3498 = vmatmul.mubr.f32.gmra.mrb[0].mxu0 %v1427
        %v3499 = vpop.f32.mrb[0].mxu0
        %v3500 = vadd.f32 0.0, %v3499
        %v3501 = vpop.f32.mrb[0].mxu0
        %3502 = vmatprep.mubr.f32.mxu0 0.0
        %3503 = vmatmul.mubr.f32.gmra.mrb[0].mxu0 %v1428
        %v3504 = vpop.f32.mrb[0].mxu0
        %v3505 = vadd.f32 0.0, %v3504
        %v3506 = vpop.f32.mrb[0].mxu0
        %3507 = vmatprep.mubr.f32.mxu0 0.0
        %3508 = vmatmul.mubr.f32.gmra.mrb[0].mxu0 %v1429
        %v3509 = vpop.f32.mrb[0].mxu0
        %v3510 = vadd.f32 0.0, %v3509
        %v3511 = vpop.f32.mrb[0].mxu0
        %3512 = vmatprep.mubr.f32.mxu0 0.0
        %3513 = vmatmul.mubr.f32.gmra.mrb[0].mxu0 %v1430
        %v3514 = vpop.f32.mrb[0].mxu0
        %v3515 = vadd.f32 0.0, %v3514
        %v3516 = vpop.f32.mrb[0].mxu0
        %3517 = vmatprep.mubr.f32.mxu0 0.0
        %3518 = vmatmul.mubr.f32.gmra.mrb[0].mxu0 %v1431
        %v3519 = vpop.f32.mrb[0].mxu0
        %v3520 = vadd.f32 0.0, %v3519
        %v3521 = vpop.f32.mrb[0].mxu0
        %3522 = vmatprep.mubr.f32.mxu0 0.0
        %3523 = vmatmul.mubr.f32.gmra.mrb[0].mxu0 %v1432
        %v3524 = vpop.f32.mrb[0].mxu0
        %v3525 = vadd.f32 0.0, %v3524
        %v3526 = vpop.f32.mrb[0].mxu0
        %3527 = vmatprep.mubr.f32.mxu0 0.0
        %3528 = vmatmul.mubr.f32.gmra.mrb[0].mxu0 %v1433
        %v3529 = vpop.f32.mrb[0].mxu0
        %v3530 = vadd.f32 0.0, %v3529
        %v3531 = vpop.f32.mrb[0].mxu0
        %3532 = vmatprep.mubr.f32.mxu0 0.0
        %3533 = vmatmul.mubr.f32.gmra.mrb[0].mxu0 %v1434
        %v3534 = vpop.f32.mrb[0].mxu0
        %v3535 = vadd.f32 0.0, %v3534
        %v3536 = vpop.f32.mrb[0].mxu0
        %3537 = vmatprep.mubr.f32.mxu0 0.0
        %3538 = vmatmul.mubr.f32.gmra.mrb[0].mxu0 %v1435
        %v3539 = vpop.f32.mrb[0].mxu0
        %v3540 = vadd.f32 0.0, %v3539
        %v3541 = vpop.f32.mrb[0].mxu0
        %3542 = vmatprep.mubr.f32.mxu0 0.0
        %3543 = vmatmul.mubr.f32.gmra.mrb[0].mxu0 %v1436
        %v3544 = vpop.f32.mrb[0].mxu0
        %v3545 = vadd.f32 0.0, %v3544
        %v3546 = vpop.f32.mrb[0].mxu0
        %3547 = vmatprep.mubr.f32.mxu0 0.0
        %3548 = vmatmul.mubr.f32.gmra.mrb[0].mxu0 %v1437
        %v3549 = vpop.f32.mrb[0].mxu0
        %v3550 = vadd.f32 0.0, %v3549
        %v3551 = vpop.f32.mrb[0].mxu0
        %3552 = vmatprep.mubr.f32.mxu0 0.0
        %3553 = vmatmul.mubr.f32.gmra.mrb[0].mxu0 %v1438
        %v3554 = vpop.f32.mrb[0].mxu0
        %v3555 = vadd.f32 0.0, %v3554
        %v3556 = vpop.f32.mrb[0].mxu0
        %3557 = vmatprep.mubr.f32.mxu0 0.0
        %3558 = vmatmul.mubr.f32.gmra.mrb[0].mxu0 %v1439
        %v3559 = vpop.f32.mrb[0].mxu0
        %v3560 = vadd.f32 0.0, %v3559
        %v3561 = vpop.f32.mrb[0].mxu0
        %3562 = vmatprep.mubr.f32.mxu0 0.0
        %3563 = vmatmul.mubr.f32.gmra.mrb[0].mxu0 %v1440
        %v3564 = vpop.f32.mrb[0].mxu0
        %v3565 = vadd.f32 0.0, %v3564
        %v3566 = vpop.f32.mrb[0].mxu0
        %3567 = vmatprep.mubr.f32.mxu0 0.0
        %3568 = vmatmul.mubr.f32.gmra.mrb[0].mxu0 %v1441
        %v3569 = vpop.f32.mrb[0].mxu0
        %v3570 = vadd.f32 0.0, %v3569
        %v3571 = vpop.f32.mrb[0].mxu0
        %3572 = vmatprep.mubr.f32.mxu0 0.0
        %3573 = vmatmul.mubr.f32.gmra.mrb[0].mxu0 %v1442
        %v3574 = vpop.f32.mrb[0].mxu0
        %v3575 = vadd.f32 0.0, %v3574
        %v3576 = vpop.f32.mrb[0].mxu0
        %3577 = vmatprep.mubr.f32.mxu0 0.0
        %3578 = vmatmul.mubr.f32.gmra.mrb[0].mxu0 %v1443
        %v3579 = vpop.f32.mrb[0].mxu0
        %v3580 = vadd.f32 0.0, %v3579
        %v3581 = vpop.f32.mrb[0].mxu0
        %3582 = vmatprep.mubr.f32.mxu0 0.0
        %3583 = vmatmul.mubr.f32.gmra.mrb[0].mxu0 %v1444
        %v3584 = vpop.f32.mrb[0].mxu0
        %v3585 = vadd.f32 0.0, %v3584
        %v3586 = vpop.f32.mrb[0].mxu0
        %3587 = vmatprep.mubr.f32.mxu0 0.0
        %3588 = vmatmul.mubr.f32.gmra.mrb[0].mxu0 %v1445
        %v3589 = vpop.f32.mrb[0].mxu0
        %v3590 = vadd.f32 0.0, %v3589
        %v3591 = vpop.f32.mrb[0].mxu0
        %3592 = vmatprep.mubr.f32.mxu0 0.0
        %3593 = vmatmul.mubr.f32.gmra.mrb[0].mxu0 %v1446
        %v3594 = vpop.f32.mrb[0].mxu0
        %v3595 = vadd.f32 0.0, %v3594
        %v3596 = vpop.f32.mrb[0].mxu0
        %3597 = vmatprep.mubr.f32.mxu0 0.0
        %3598 = vmatmul.mubr.f32.gmra.mrb[0].mxu0 %v1447
        %v3599 = vpop.f32.mrb[0].mxu0
        %v3600 = vadd.f32 0.0, %v3599
        %v3601 = vpop.f32.mrb[0].mxu0
        %3602 = vmatprep.mubr.f32.mxu0 0.0
        %3603 = vmatmul.mubr.f32.gmra.mrb[0].mxu0 %v1448
        %v3604 = vpop.f32.mrb[0].mxu0
        %v3605 = vadd.f32 0.0, %v3604
        %v3606 = vpop.f32.mrb[0].mxu0
        %3607 = vmatprep.mubr.f32.mxu0 0.0
        %3608 = vmatmul.mubr.f32.gmra.mrb[0].mxu0 %v1449
        %v3609 = vpop.f32.mrb[0].mxu0
        %v3610 = vadd.f32 0.0, %v3609
        %v3611 = vpop.f32.mrb[0].mxu0
        %3612 = vdwg.mxu0
        %v3613 = vmul.f32 %v1533, %v1853
        %v3614 = vmul.f32 %v1538, %v1858
        %v3615 = vmul.f32 %v1543, %v1863
        %v3616 = vmul.f32 %v1548, %v1868
        %v3617 = vmul.f32 %v1553, %v1873
        %v3618 = vmul.f32 %v1558, %v1878
        %v3619 = vmul.f32 %v1563, %v1883
        %v3620 = vmul.f32 %v1568, %v1888
        %v3621 = vmul.f32 %v1573, %v1893
        %v3622 = vmul.f32 %v1578, %v1898
        %v3623 = vmul.f32 %v1583, %v1903
        %v3624 = vmul.f32 %v1588, %v1908
        %v3625 = vmul.f32 %v1593, %v1913
        %v3626 = vmul.f32 %v1598, %v1918
        %v3627 = vmul.f32 %v1603, %v1923
        %v3628 = vmul.f32 %v1608, %v1928
        %v3629 = vmul.f32 %v1613, %v1933
        %v3630 = vmul.f32 %v1618, %v1938
        %v3631 = vmul.f32 %v1623, %v1943
        %v3632 = vmul.f32 %v1628, %v1948
        %v3633 = vmul.f32 %v1633, %v1953
        %v3634 = vmul.f32 %v1638, %v1958
        %v3635 = vmul.f32 %v1643, %v1963
        %v3636 = vmul.f32 %v1648, %v1968
        %v3637 = vmul.f32 %v1653, %v1973
        %v3638 = vmul.f32 %v1658, %v1978
        %v3639 = vmul.f32 %v1663, %v1983
        %v3640 = vmul.f32 %v1668, %v1988
        %v3641 = vmul.f32 %v1673, %v1993
        %v3642 = vmul.f32 %v1678, %v1998
        %v3643 = vmul.f32 %v1683, %v2003
        %v3644 = vmul.f32 %v1688, %v2008
        %v3645 = vmul.f32 %v1693, %v2013
        %v3646 = vmul.f32 %v1698, %v2018
        %v3647 = vmul.f32 %v1703, %v2023
        %v3648 = vmul.f32 %v1708, %v2028
        %v3649 = vmul.f32 %v1713, %v2033
        %v3650 = vmul.f32 %v1718, %v2038
        %v3651 = vmul.f32 %v1723, %v2043
        %v3652 = vmul.f32 %v1728, %v2048
        %v3653 = vmul.f32 %v1733, %v2053
        %v3654 = vmul.f32 %v1738, %v2058
        %v3655 = vmul.f32 %v1743, %v2063
        %v3656 = vmul.f32 %v1748, %v2068
        %v3657 = vmul.f32 %v1753, %v2073
        %v3658 = vmul.f32 %v1758, %v2078
        %v3659 = vmul.f32 %v1763, %v2083
        %v3660 = vmul.f32 %v1768, %v2088
        %v3661 = vmul.f32 %v1773, %v2093
        %v3662 = vmul.f32 %v1778, %v2098
        %v3663 = vmul.f32 %v1783, %v2103
        %v3664 = vmul.f32 %v1788, %v2108
        %v3665 = vmul.f32 %v1793, %v2113
        %v3666 = vmul.f32 %v1798, %v2118
        %v3667 = vmul.f32 %v1803, %v2123
        %v3668 = vmul.f32 %v1808, %v2128
        %v3669 = vmul.f32 %v1813, %v2133
        %v3670 = vmul.f32 %v1818, %v2138
        %v3671 = vmul.f32 %v1823, %v2143
        %v3672 = vmul.f32 %v1828, %v2148
        %v3673 = vmul.f32 %v1833, %v2153
        %v3674 = vmul.f32 %v1838, %v2158
        %v3675 = vmul.f32 %v1843, %v2163
        %v3676 = vmul.f32 %v1848, %v2168
        %v3677 = vmul.f32 %v1533, %v2574
        %v3678 = vmul.f32 %v1538, %v2579
        %v3679 = vmul.f32 %v1543, %v2584
        %v3680 = vmul.f32 %v1548, %v2589
        %v3681 = vmul.f32 %v1553, %v2594
        %v3682 = vmul.f32 %v1558, %v2599
        %v3683 = vmul.f32 %v1563, %v2604
        %v3684 = vmul.f32 %v1568, %v2609
        %v3685 = vmul.f32 %v1573, %v2614
        %v3686 = vmul.f32 %v1578, %v2619
        %v3687 = vmul.f32 %v1583, %v2624
        %v3688 = vmul.f32 %v1588, %v2629
        %v3689 = vmul.f32 %v1593, %v2634
        %v3690 = vmul.f32 %v1598, %v2639
        %v3691 = vmul.f32 %v1603, %v2644
        %v3692 = vmul.f32 %v1608, %v2649
        %v3693 = vmul.f32 %v1613, %v2654
        %v3694 = vmul.f32 %v1618, %v2659
        %v3695 = vmul.f32 %v1623, %v2664
        %v3696 = vmul.f32 %v1628, %v2669
        %v3697 = vmul.f32 %v1633, %v2674
        %v3698 = vmul.f32 %v1638, %v2679
        %v3699 = vmul.f32 %v1643, %v2684
        %v3700 = vmul.f32 %v1648, %v2689
        %v3701 = vmul.f32 %v1653, %v2694
        %v3702 = vmul.f32 %v1658, %v2699
        %v3703 = vmul.f32 %v1663, %v2704
        %v3704 = vmul.f32 %v1668, %v2709
        %v3705 = vmul.f32 %v1673, %v2714
        %v3706 = vmul.f32 %v1678, %v2719
        %v3707 = vmul.f32 %v1683, %v2724
        %v3708 = vmul.f32 %v1688, %v2729
        %v3709 = vmul.f32 %v1693, %v2734
        %v3710 = vmul.f32 %v1698, %v2739
        %v3711 = vmul.f32 %v1703, %v2744
        %v3712 = vmul.f32 %v1708, %v2749
        %v3713 = vmul.f32 %v1713, %v2754
        %v3714 = vmul.f32 %v1718, %v2759
        %v3715 = vmul.f32 %v1723, %v2764
        %v3716 = vmul.f32 %v1728, %v2769
        %v3717 = vmul.f32 %v1733, %v2774
        %v3718 = vmul.f32 %v1738, %v2779
        %v3719 = vmul.f32 %v1743, %v2784
        %v3720 = vmul.f32 %v1748, %v2789
        %v3721 = vmul.f32 %v1753, %v2794
        %v3722 = vmul.f32 %v1758, %v2799
        %v3723 = vmul.f32 %v1763, %v2804
        %v3724 = vmul.f32 %v1768, %v2809
        %v3725 = vmul.f32 %v1773, %v2814
        %v3726 = vmul.f32 %v1778, %v2819
        %v3727 = vmul.f32 %v1783, %v2824
        %v3728 = vmul.f32 %v1788, %v2829
        %v3729 = vmul.f32 %v1793, %v2834
        %v3730 = vmul.f32 %v1798, %v2839
        %v3731 = vmul.f32 %v1803, %v2844
        %v3732 = vmul.f32 %v1808, %v2849
        %v3733 = vmul.f32 %v1813, %v2854
        %v3734 = vmul.f32 %v1818, %v2859
        %v3735 = vmul.f32 %v1823, %v2864
        %v3736 = vmul.f32 %v1828, %v2869
        %v3737 = vmul.f32 %v1833, %v2874
        %v3738 = vmul.f32 %v1838, %v2879
        %v3739 = vmul.f32 %v1843, %v2884
        %v3740 = vmul.f32 %v1848, %v2889
        %v3741 = vmul.f32 %v2254, %v1853
        %v3742 = vmul.f32 %v2259, %v1858
        %v3743 = vmul.f32 %v2264, %v1863
        %v3744 = vmul.f32 %v2269, %v1868
        %v3745 = vmul.f32 %v2274, %v1873
        %v3746 = vmul.f32 %v2279, %v1878
        %v3747 = vmul.f32 %v2284, %v1883
        %v3748 = vmul.f32 %v2289, %v1888
        %v3749 = vmul.f32 %v2294, %v1893
        %v3750 = vmul.f32 %v2299, %v1898
        %v3751 = vmul.f32 %v2304, %v1903
        %v3752 = vmul.f32 %v2309, %v1908
        %v3753 = vmul.f32 %v2314, %v1913
        %v3754 = vmul.f32 %v2319, %v1918
        %v3755 = vmul.f32 %v2324, %v1923
        %v3756 = vmul.f32 %v2329, %v1928
        %v3757 = vmul.f32 %v2334, %v1933
        %v3758 = vmul.f32 %v2339, %v1938
        %v3759 = vmul.f32 %v2344, %v1943
        %v3760 = vmul.f32 %v2349, %v1948
        %v3761 = vmul.f32 %v2354, %v1953
        %v3762 = vmul.f32 %v2359, %v1958
        %v3763 = vmul.f32 %v2364, %v1963
        %v3764 = vmul.f32 %v2369, %v1968
        %v3765 = vmul.f32 %v2374, %v1973
        %v3766 = vmul.f32 %v2379, %v1978
        %v3767 = vmul.f32 %v2384, %v1983
        %v3768 = vmul.f32 %v2389, %v1988
        %v3769 = vmul.f32 %v2394, %v1993
        %v3770 = vmul.f32 %v2399, %v1998
        %v3771 = vmul.f32 %v2404, %v2003
        %v3772 = vmul.f32 %v2409, %v2008
        %v3773 = vmul.f32 %v2414, %v2013
        %v3774 = vmul.f32 %v2419, %v2018
        %v3775 = vmul.f32 %v2424, %v2023
        %v3776 = vmul.f32 %v2429, %v2028
        %v3777 = vmul.f32 %v2434, %v2033
        %v3778 = vmul.f32 %v2439, %v2038
        %v3779 = vmul.f32 %v2444, %v2043
        %v3780 = vmul.f32 %v2449, %v2048
        %v3781 = vmul.f32 %v2454, %v2053
        %v3782 = vmul.f32 %v2459, %v2058
        %v3783 = vmul.f32 %v2464, %v2063
        %v3784 = vmul.f32 %v2469, %v2068
        %v3785 = vmul.f32 %v2474, %v2073
        %v3786 = vmul.f32 %v2479, %v2078
        %v3787 = vmul.f32 %v2484, %v2083
        %v3788 = vmul.f32 %v2489, %v2088
        %v3789 = vmul.f32 %v2494, %v2093
        %v3790 = vmul.f32 %v2499, %v2098
        %v3791 = vmul.f32 %v2504, %v2103
        %v3792 = vmul.f32 %v2509, %v2108
        %v3793 = vmul.f32 %v2514, %v2113
        %v3794 = vmul.f32 %v2519, %v2118
        %v3795 = vmul.f32 %v2524, %v2123
        %v3796 = vmul.f32 %v2529, %v2128
        %v3797 = vmul.f32 %v2534, %v2133
        %v3798 = vmul.f32 %v2539, %v2138
        %v3799 = vmul.f32 %v2544, %v2143
        %v3800 = vmul.f32 %v2549, %v2148
        %v3801 = vmul.f32 %v2554, %v2153
        %v3802 = vmul.f32 %v2559, %v2158
        %v3803 = vmul.f32 %v2564, %v2163
        %v3804 = vmul.f32 %v2569, %v2168
        %v3805 = vadd.f32 %v3677, %v3741
        %v3806 = vadd.f32 %v3678, %v3742
        %v3807 = vadd.f32 %v3679, %v3743
        %v3808 = vadd.f32 %v3680, %v3744
        %v3809 = vadd.f32 %v3681, %v3745
        %v3810 = vadd.f32 %v3682, %v3746
        %v3811 = vadd.f32 %v3683, %v3747
        %v3812 = vadd.f32 %v3684, %v3748
        %v3813 = vadd.f32 %v3685, %v3749
        %v3814 = vadd.f32 %v3686, %v3750
        %v3815 = vadd.f32 %v3687, %v3751
        %v3816 = vadd.f32 %v3688, %v3752
        %v3817 = vadd.f32 %v3689, %v3753
        %v3818 = vadd.f32 %v3690, %v3754
        %v3819 = vadd.f32 %v3691, %v3755
        %v3820 = vadd.f32 %v3692, %v3756
        %v3821 = vadd.f32 %v3693, %v3757
        %v3822 = vadd.f32 %v3694, %v3758
        %v3823 = vadd.f32 %v3695, %v3759
        %v3824 = vadd.f32 %v3696, %v3760
        %v3825 = vadd.f32 %v3697, %v3761
        %v3826 = vadd.f32 %v3698, %v3762
        %v3827 = vadd.f32 %v3699, %v3763
        %v3828 = vadd.f32 %v3700, %v3764
        %v3829 = vadd.f32 %v3701, %v3765
        %v3830 = vadd.f32 %v3702, %v3766
        %v3831 = vadd.f32 %v3703, %v3767
        %v3832 = vadd.f32 %v3704, %v3768
        %v3833 = vadd.f32 %v3705, %v3769
        %v3834 = vadd.f32 %v3706, %v3770
        %v3835 = vadd.f32 %v3707, %v3771
        %v3836 = vadd.f32 %v3708, %v3772
        %v3837 = vadd.f32 %v3709, %v3773
        %v3838 = vadd.f32 %v3710, %v3774
        %v3839 = vadd.f32 %v3711, %v3775
        %v3840 = vadd.f32 %v3712, %v3776
        %v3841 = vadd.f32 %v3713, %v3777
        %v3842 = vadd.f32 %v3714, %v3778
        %v3843 = vadd.f32 %v3715, %v3779
        %v3844 = vadd.f32 %v3716, %v3780
        %v3845 = vadd.f32 %v3717, %v3781
        %v3846 = vadd.f32 %v3718, %v3782
        %v3847 = vadd.f32 %v3719, %v3783
        %v3848 = vadd.f32 %v3720, %v3784
        %v3849 = vadd.f32 %v3721, %v3785
        %v3850 = vadd.f32 %v3722, %v3786
        %v3851 = vadd.f32 %v3723, %v3787
        %v3852 = vadd.f32 %v3724, %v3788
        %v3853 = vadd.f32 %v3725, %v3789
        %v3854 = vadd.f32 %v3726, %v3790
        %v3855 = vadd.f32 %v3727, %v3791
        %v3856 = vadd.f32 %v3728, %v3792
        %v3857 = vadd.f32 %v3729, %v3793
        %v3858 = vadd.f32 %v3730, %v3794
        %v3859 = vadd.f32 %v3731, %v3795
        %v3860 = vadd.f32 %v3732, %v3796
        %v3861 = vadd.f32 %v3733, %v3797
        %v3862 = vadd.f32 %v3734, %v3798
        %v3863 = vadd.f32 %v3735, %v3799
        %v3864 = vadd.f32 %v3736, %v3800
        %v3865 = vadd.f32 %v3737, %v3801
        %v3866 = vadd.f32 %v3738, %v3802
        %v3867 = vadd.f32 %v3739, %v3803
        %v3868 = vadd.f32 %v3740, %v3804
        %v3869 = vld [vmem:[%s5] sm:$0xff]
        %v3870 = vld [vmem:[%s5 + $0x8] sm:$0xff]
        %v3871 = vld [vmem:[%s5 + $0x10] sm:$0xff]
        %v3872 = vld [vmem:[%s5 + $0x18] sm:$0xff]
        %v3873 = vld [vmem:[%s5 + $0x20] sm:$0xff]
        %v3874 = vld [vmem:[%s5 + $0x28] sm:$0xff]
        %v3875 = vld [vmem:[%s5 + $0x30] sm:$0xff]
        %v3876 = vld [vmem:[%s5 + $0x38] sm:$0xff]
        %v3877 = vld [vmem:[%s5 + $0x40] sm:$0xff]
        %v3878 = vld [vmem:[%s5 + $0x48] sm:$0xff]
        %v3879 = vld [vmem:[%s5 + $0x50] sm:$0xff]
        %v3880 = vld [vmem:[%s5 + $0x58] sm:$0xff]
        %v3881 = vld [vmem:[%s5 + $0x60] sm:$0xff]
        %v3882 = vld [vmem:[%s5 + $0x68] sm:$0xff]
        %v3883 = vld [vmem:[%s5 + $0x70] sm:$0xff]
        %v3884 = vld [vmem:[%s5 + $0x78] sm:$0xff]
        %v3885 = vld [vmem:[%s6] sm:$0x1]
        %v3887 = vlaneseq
        %v3888 = vshrl.u32 %v3887, 7
        %v3889 = vsub.s32 0, %v3888
        %v3890 = vrot.slane %v3885, %v3889
        %3892 = vmatprep.subr.mxu0 0.0
        %3893 = vmatpush1.msra.mxu0 %v3869
        %3894 = vmatprep.subr.mxu0 0.0
        %3895 = vmatpush1.msra.mxu0 %v3870
        %3896 = vmatprep.subr.mxu0 0.0
        %3897 = vmatpush1.msra.mxu0 %v3871
        %3898 = vmatprep.subr.mxu0 0.0
        %3899 = vmatpush1.msra.mxu0 %v3872
        %3900 = vmatprep.subr.mxu0 0.0
        %3901 = vmatpush1.msra.mxu0 %v3873
        %3902 = vmatprep.subr.mxu0 0.0
        %3903 = vmatpush1.msra.mxu0 %v3874
        %3904 = vmatprep.subr.mxu0 0.0
        %3905 = vmatpush1.msra.mxu0 %v3875
        %3906 = vmatprep.subr.mxu0 0.0
        %3907 = vmatpush1.msra.mxu0 %v3876
        %3908 = vmatprep.subr.mxu0 0.0
        %3909 = vmatpush1.msra.mxu0 %v3877
        %3910 = vmatprep.subr.mxu0 0.0
        %3911 = vmatpush1.msra.mxu0 %v3878
        %3912 = vmatprep.subr.mxu0 0.0
        %3913 = vmatpush1.msra.mxu0 %v3879
        %3914 = vmatprep.subr.mxu0 0.0
        %3915 = vmatpush1.msra.mxu0 %v3880
        %3916 = vmatprep.subr.mxu0 0.0
        %3917 = vmatpush1.msra.mxu0 %v3881
        %3918 = vmatprep.subr.mxu0 0.0
        %3919 = vmatpush1.msra.mxu0 %v3882
        %3920 = vmatprep.subr.mxu0 0.0
        %3921 = vmatpush1.msra.mxu0 %v3883
        %3922 = vmatprep.subr.mxu0 0.0
        %3923 = vmatpush1.msra.mxu0 %v3884
        %3924 = vmatprep.subr.mxu0 0.0
        %3925 = vmatpush1.msra.mxu0 0.0
        %3926 = vmatprep.subr.mxu0 0.0
        %3927 = vmatpush1.msra.mxu0 0.0
        %3928 = vmatprep.subr.mxu0 0.0
        %3929 = vmatpush1.msra.mxu0 0.0
        %3930 = vmatprep.subr.mxu0 0.0
        %3931 = vmatpush1.msra.mxu0 0.0
        %3932 = vmatprep.subr.mxu0 0.0
        %3933 = vmatpush1.msra.mxu0 0.0
        %3934 = vmatprep.subr.mxu0 0.0
        %3935 = vmatpush1.msra.mxu0 0.0
        %3936 = vmatprep.subr.mxu0 0.0
        %3937 = vmatpush1.msra.mxu0 0.0
        %3938 = vmatprep.subr.mxu0 0.0
        %3939 = vmatpush1.msra.mxu0 0.0
        %3940 = vmatprep.subr.mxu0 0.0
        %3941 = vmatpush1.msra.mxu0 0.0
        %3942 = vmatprep.subr.mxu0 0.0
        %3943 = vmatpush1.msra.mxu0 0.0
        %3944 = vmatprep.subr.mxu0 0.0
        %3945 = vmatpush1.msra.mxu0 0.0
        %3946 = vmatprep.subr.mxu0 0.0
        %3947 = vmatpush1.msra.mxu0 0.0
        %3948 = vmatprep.subr.mxu0 0.0
        %3949 = vmatpush1.msra.mxu0 0.0
        %3950 = vmatprep.subr.mxu0 0.0
        %3951 = vmatpush1.msra.mxu0 0.0
        %3952 = vmatprep.subr.mxu0 0.0
        %3953 = vmatpush1.msra.mxu0 0.0
        %3954 = vmatprep.subr.mxu0 0.0
        %3955 = vmatpush1.msra.mxu0 0.0
        %3956 = vmatprep.mubr.f32.mxu0 0.0
        %3957 = vmatmul.mubr.f32.gmra.mrb[0].mxu0 %v3613
        %v3958 = vpop.f32.mrb[0].mxu0
        %v3959 = vadd.f32 %v3890, %v3958
        %v3960 = vpop.f32.mrb[0].mxu0
        %3961 = vmatprep.mubr.f32.mxu0 0.0
        %3962 = vmatmul.mubr.f32.gmra.mrb[0].mxu0 %v3614
        %v3963 = vpop.f32.mrb[0].mxu0
        %v3964 = vadd.f32 %v3890, %v3963
        %v3965 = vpop.f32.mrb[0].mxu0
        %3966 = vmatprep.mubr.f32.mxu0 0.0
        %3967 = vmatmul.mubr.f32.gmra.mrb[0].mxu0 %v3615
        %v3968 = vpop.f32.mrb[0].mxu0
        %v3969 = vadd.f32 %v3890, %v3968
        %v3970 = vpop.f32.mrb[0].mxu0
        %3971 = vmatprep.mubr.f32.mxu0 0.0
        %3972 = vmatmul.mubr.f32.gmra.mrb[0].mxu0 %v3616
        %v3973 = vpop.f32.mrb[0].mxu0
        %v3974 = vadd.f32 %v3890, %v3973
        %v3975 = vpop.f32.mrb[0].mxu0
        %3976 = vmatprep.mubr.f32.mxu0 0.0
        %3977 = vmatmul.mubr.f32.gmra.mrb[0].mxu0 %v3617
        %v3978 = vpop.f32.mrb[0].mxu0
        %v3979 = vadd.f32 %v3890, %v3978
        %v3980 = vpop.f32.mrb[0].mxu0
        %3981 = vmatprep.mubr.f32.mxu0 0.0
        %3982 = vmatmul.mubr.f32.gmra.mrb[0].mxu0 %v3618
        %v3983 = vpop.f32.mrb[0].mxu0
        %v3984 = vadd.f32 %v3890, %v3983
        %v3985 = vpop.f32.mrb[0].mxu0
        %3986 = vmatprep.mubr.f32.mxu0 0.0
        %3987 = vmatmul.mubr.f32.gmra.mrb[0].mxu0 %v3619
        %v3988 = vpop.f32.mrb[0].mxu0
        %v3989 = vadd.f32 %v3890, %v3988
        %v3990 = vpop.f32.mrb[0].mxu0
        %3991 = vmatprep.mubr.f32.mxu0 0.0
        %3992 = vmatmul.mubr.f32.gmra.mrb[0].mxu0 %v3620
        %v3993 = vpop.f32.mrb[0].mxu0
        %v3994 = vadd.f32 %v3890, %v3993
        %v3995 = vpop.f32.mrb[0].mxu0
        %3996 = vmatprep.mubr.f32.mxu0 0.0
        %3997 = vmatmul.mubr.f32.gmra.mrb[0].mxu0 %v3621
        %v3998 = vpop.f32.mrb[0].mxu0
        %v3999 = vadd.f32 %v3890, %v3998
        %v4000 = vpop.f32.mrb[0].mxu0
        %4001 = vmatprep.mubr.f32.mxu0 0.0
        %4002 = vmatmul.mubr.f32.gmra.mrb[0].mxu0 %v3622
        %v4003 = vpop.f32.mrb[0].mxu0
        %v4004 = vadd.f32 %v3890, %v4003
        %v4005 = vpop.f32.mrb[0].mxu0
        %4006 = vmatprep.mubr.f32.mxu0 0.0
        %4007 = vmatmul.mubr.f32.gmra.mrb[0].mxu0 %v3623
        %v4008 = vpop.f32.mrb[0].mxu0
        %v4009 = vadd.f32 %v3890, %v4008
        %v4010 = vpop.f32.mrb[0].mxu0
        %4011 = vmatprep.mubr.f32.mxu0 0.0
        %4012 = vmatmul.mubr.f32.gmra.mrb[0].mxu0 %v3624
        %v4013 = vpop.f32.mrb[0].mxu0
        %v4014 = vadd.f32 %v3890, %v4013
        %v4015 = vpop.f32.mrb[0].mxu0
        %4016 = vmatprep.mubr.f32.mxu0 0.0
        %4017 = vmatmul.mubr.f32.gmra.mrb[0].mxu0 %v3625
        %v4018 = vpop.f32.mrb[0].mxu0
        %v4019 = vadd.f32 %v3890, %v4018
        %v4020 = vpop.f32.mrb[0].mxu0
        %4021 = vmatprep.mubr.f32.mxu0 0.0
        %4022 = vmatmul.mubr.f32.gmra.mrb[0].mxu0 %v3626
        %v4023 = vpop.f32.mrb[0].mxu0
        %v4024 = vadd.f32 %v3890, %v4023
        %v4025 = vpop.f32.mrb[0].mxu0
        %4026 = vmatprep.mubr.f32.mxu0 0.0
        %4027 = vmatmul.mubr.f32.gmra.mrb[0].mxu0 %v3627
        %v4028 = vpop.f32.mrb[0].mxu0
        %v4029 = vadd.f32 %v3890, %v4028
        %v4030 = vpop.f32.mrb[0].mxu0
        %4031 = vmatprep.mubr.f32.mxu0 0.0
        %4032 = vmatmul.mubr.f32.gmra.mrb[0].mxu0 %v3628
        %v4033 = vpop.f32.mrb[0].mxu0
        %v4034 = vadd.f32 %v3890, %v4033
        %v4035 = vpop.f32.mrb[0].mxu0
        %4036 = vmatprep.mubr.f32.mxu0 0.0
        %4037 = vmatmul.mubr.f32.gmra.mrb[0].mxu0 %v3629
        %v4038 = vpop.f32.mrb[0].mxu0
        %v4039 = vadd.f32 %v3890, %v4038
        %v4040 = vpop.f32.mrb[0].mxu0
        %4041 = vmatprep.mubr.f32.mxu0 0.0
        %4042 = vmatmul.mubr.f32.gmra.mrb[0].mxu0 %v3630
        %v4043 = vpop.f32.mrb[0].mxu0
        %v4044 = vadd.f32 %v3890, %v4043
        %v4045 = vpop.f32.mrb[0].mxu0
        %4046 = vmatprep.mubr.f32.mxu0 0.0
        %4047 = vmatmul.mubr.f32.gmra.mrb[0].mxu0 %v3631
        %v4048 = vpop.f32.mrb[0].mxu0
        %v4049 = vadd.f32 %v3890, %v4048
        %v4050 = vpop.f32.mrb[0].mxu0
        %4051 = vmatprep.mubr.f32.mxu0 0.0
        %4052 = vmatmul.mubr.f32.gmra.mrb[0].mxu0 %v3632
        %v4053 = vpop.f32.mrb[0].mxu0
        %v4054 = vadd.f32 %v3890, %v4053
        %v4055 = vpop.f32.mrb[0].mxu0
        %4056 = vmatprep.mubr.f32.mxu0 0.0
        %4057 = vmatmul.mubr.f32.gmra.mrb[0].mxu0 %v3633
        %v4058 = vpop.f32.mrb[0].mxu0
        %v4059 = vadd.f32 %v3890, %v4058
        %v4060 = vpop.f32.mrb[0].mxu0
        %4061 = vmatprep.mubr.f32.mxu0 0.0
        %4062 = vmatmul.mubr.f32.gmra.mrb[0].mxu0 %v3634
        %v4063 = vpop.f32.mrb[0].mxu0
        %v4064 = vadd.f32 %v3890, %v4063
        %v4065 = vpop.f32.mrb[0].mxu0
        %4066 = vmatprep.mubr.f32.mxu0 0.0
        %4067 = vmatmul.mubr.f32.gmra.mrb[0].mxu0 %v3635
        %v4068 = vpop.f32.mrb[0].mxu0
        %v4069 = vadd.f32 %v3890, %v4068
        %v4070 = vpop.f32.mrb[0].mxu0
        %4071 = vmatprep.mubr.f32.mxu0 0.0
        %4072 = vmatmul.mubr.f32.gmra.mrb[0].mxu0 %v3636
        %v4073 = vpop.f32.mrb[0].mxu0
        %v4074 = vadd.f32 %v3890, %v4073
        %v4075 = vpop.f32.mrb[0].mxu0
        %4076 = vmatprep.mubr.f32.mxu0 0.0
        %4077 = vmatmul.mubr.f32.gmra.mrb[0].mxu0 %v3637
        %v4078 = vpop.f32.mrb[0].mxu0
        %v4079 = vadd.f32 %v3890, %v4078
        %v4080 = vpop.f32.mrb[0].mxu0
        %4081 = vmatprep.mubr.f32.mxu0 0.0
        %4082 = vmatmul.mubr.f32.gmra.mrb[0].mxu0 %v3638
        %v4083 = vpop.f32.mrb[0].mxu0
        %v4084 = vadd.f32 %v3890, %v4083
        %v4085 = vpop.f32.mrb[0].mxu0
        %4086 = vmatprep.mubr.f32.mxu0 0.0
        %4087 = vmatmul.mubr.f32.gmra.mrb[0].mxu0 %v3639
        %v4088 = vpop.f32.mrb[0].mxu0
        %v4089 = vadd.f32 %v3890, %v4088
        %v4090 = vpop.f32.mrb[0].mxu0
        %4091 = vmatprep.mubr.f32.mxu0 0.0
        %4092 = vmatmul.mubr.f32.gmra.mrb[0].mxu0 %v3640
        %v4093 = vpop.f32.mrb[0].mxu0
        %v4094 = vadd.f32 %v3890, %v4093
        %v4095 = vpop.f32.mrb[0].mxu0
        %4096 = vmatprep.mubr.f32.mxu0 0.0
        %4097 = vmatmul.mubr.f32.gmra.mrb[0].mxu0 %v3641
        %v4098 = vpop.f32.mrb[0].mxu0
        %v4099 = vadd.f32 %v3890, %v4098
        %v4100 = vpop.f32.mrb[0].mxu0
        %4101 = vmatprep.mubr.f32.mxu0 0.0
        %4102 = vmatmul.mubr.f32.gmra.mrb[0].mxu0 %v3642
        %v4103 = vpop.f32.mrb[0].mxu0
        %v4104 = vadd.f32 %v3890, %v4103
        %v4105 = vpop.f32.mrb[0].mxu0
        %4106 = vmatprep.mubr.f32.mxu0 0.0
        %4107 = vmatmul.mubr.f32.gmra.mrb[0].mxu0 %v3643
        %v4108 = vpop.f32.mrb[0].mxu0
        %v4109 = vadd.f32 %v3890, %v4108
        %v4110 = vpop.f32.mrb[0].mxu0
        %4111 = vmatprep.mubr.f32.mxu0 0.0
        %4112 = vmatmul.mubr.f32.gmra.mrb[0].mxu0 %v3644
        %v4113 = vpop.f32.mrb[0].mxu0
        %v4114 = vadd.f32 %v3890, %v4113
        %v4115 = vpop.f32.mrb[0].mxu0
        %4116 = vmatprep.mubr.f32.mxu0 0.0
        %4117 = vmatmul.mubr.f32.gmra.mrb[0].mxu0 %v3645
        %v4118 = vpop.f32.mrb[0].mxu0
        %v4119 = vadd.f32 %v3890, %v4118
        %v4120 = vpop.f32.mrb[0].mxu0
        %4121 = vmatprep.mubr.f32.mxu0 0.0
        %4122 = vmatmul.mubr.f32.gmra.mrb[0].mxu0 %v3646
        %v4123 = vpop.f32.mrb[0].mxu0
        %v4124 = vadd.f32 %v3890, %v4123
        %v4125 = vpop.f32.mrb[0].mxu0
        %4126 = vmatprep.mubr.f32.mxu0 0.0
        %4127 = vmatmul.mubr.f32.gmra.mrb[0].mxu0 %v3647
        %v4128 = vpop.f32.mrb[0].mxu0
        %v4129 = vadd.f32 %v3890, %v4128
        %v4130 = vpop.f32.mrb[0].mxu0
        %4131 = vmatprep.mubr.f32.mxu0 0.0
        %4132 = vmatmul.mubr.f32.gmra.mrb[0].mxu0 %v3648
        %v4133 = vpop.f32.mrb[0].mxu0
        %v4134 = vadd.f32 %v3890, %v4133
        %v4135 = vpop.f32.mrb[0].mxu0
        %4136 = vmatprep.mubr.f32.mxu0 0.0
        %4137 = vmatmul.mubr.f32.gmra.mrb[0].mxu0 %v3649
        %v4138 = vpop.f32.mrb[0].mxu0
        %v4139 = vadd.f32 %v3890, %v4138
        %v4140 = vpop.f32.mrb[0].mxu0
        %4141 = vmatprep.mubr.f32.mxu0 0.0
        %4142 = vmatmul.mubr.f32.gmra.mrb[0].mxu0 %v3650
        %v4143 = vpop.f32.mrb[0].mxu0
        %v4144 = vadd.f32 %v3890, %v4143
        %v4145 = vpop.f32.mrb[0].mxu0
        %4146 = vmatprep.mubr.f32.mxu0 0.0
        %4147 = vmatmul.mubr.f32.gmra.mrb[0].mxu0 %v3651
        %v4148 = vpop.f32.mrb[0].mxu0
        %v4149 = vadd.f32 %v3890, %v4148
        %v4150 = vpop.f32.mrb[0].mxu0
        %4151 = vmatprep.mubr.f32.mxu0 0.0
        %4152 = vmatmul.mubr.f32.gmra.mrb[0].mxu0 %v3652
        %v4153 = vpop.f32.mrb[0].mxu0
        %v4154 = vadd.f32 %v3890, %v4153
        %v4155 = vpop.f32.mrb[0].mxu0
        %4156 = vmatprep.mubr.f32.mxu0 0.0
        %4157 = vmatmul.mubr.f32.gmra.mrb[0].mxu0 %v3653
        %v4158 = vpop.f32.mrb[0].mxu0
        %v4159 = vadd.f32 %v3890, %v4158
        %v4160 = vpop.f32.mrb[0].mxu0
        %4161 = vmatprep.mubr.f32.mxu0 0.0
        %4162 = vmatmul.mubr.f32.gmra.mrb[0].mxu0 %v3654
        %v4163 = vpop.f32.mrb[0].mxu0
        %v4164 = vadd.f32 %v3890, %v4163
        %v4165 = vpop.f32.mrb[0].mxu0
        %4166 = vmatprep.mubr.f32.mxu0 0.0
        %4167 = vmatmul.mubr.f32.gmra.mrb[0].mxu0 %v3655
        %v4168 = vpop.f32.mrb[0].mxu0
        %v4169 = vadd.f32 %v3890, %v4168
        %v4170 = vpop.f32.mrb[0].mxu0
        %4171 = vmatprep.mubr.f32.mxu0 0.0
        %4172 = vmatmul.mubr.f32.gmra.mrb[0].mxu0 %v3656
        %v4173 = vpop.f32.mrb[0].mxu0
        %v4174 = vadd.f32 %v3890, %v4173
        %v4175 = vpop.f32.mrb[0].mxu0
        %4176 = vmatprep.mubr.f32.mxu0 0.0
        %4177 = vmatmul.mubr.f32.gmra.mrb[0].mxu0 %v3657
        %v4178 = vpop.f32.mrb[0].mxu0
        %v4179 = vadd.f32 %v3890, %v4178
        %v4180 = vpop.f32.mrb[0].mxu0
        %4181 = vmatprep.mubr.f32.mxu0 0.0
        %4182 = vmatmul.mubr.f32.gmra.mrb[0].mxu0 %v3658
        %v4183 = vpop.f32.mrb[0].mxu0
        %v4184 = vadd.f32 %v3890, %v4183
        %v4185 = vpop.f32.mrb[0].mxu0
        %4186 = vmatprep.mubr.f32.mxu0 0.0
        %4187 = vmatmul.mubr.f32.gmra.mrb[0].mxu0 %v3659
        %v4188 = vpop.f32.mrb[0].mxu0
        %v4189 = vadd.f32 %v3890, %v4188
        %v4190 = vpop.f32.mrb[0].mxu0
        %4191 = vmatprep.mubr.f32.mxu0 0.0
        %4192 = vmatmul.mubr.f32.gmra.mrb[0].mxu0 %v3660
        %v4193 = vpop.f32.mrb[0].mxu0
        %v4194 = vadd.f32 %v3890, %v4193
        %v4195 = vpop.f32.mrb[0].mxu0
        %4196 = vmatprep.mubr.f32.mxu0 0.0
        %4197 = vmatmul.mubr.f32.gmra.mrb[0].mxu0 %v3661
        %v4198 = vpop.f32.mrb[0].mxu0
        %v4199 = vadd.f32 %v3890, %v4198
        %v4200 = vpop.f32.mrb[0].mxu0
        %4201 = vmatprep.mubr.f32.mxu0 0.0
        %4202 = vmatmul.mubr.f32.gmra.mrb[0].mxu0 %v3662
        %v4203 = vpop.f32.mrb[0].mxu0
        %v4204 = vadd.f32 %v3890, %v4203
        %v4205 = vpop.f32.mrb[0].mxu0
        %4206 = vmatprep.mubr.f32.mxu0 0.0
        %4207 = vmatmul.mubr.f32.gmra.mrb[0].mxu0 %v3663
        %v4208 = vpop.f32.mrb[0].mxu0
        %v4209 = vadd.f32 %v3890, %v4208
        %v4210 = vpop.f32.mrb[0].mxu0
        %4211 = vmatprep.mubr.f32.mxu0 0.0
        %4212 = vmatmul.mubr.f32.gmra.mrb[0].mxu0 %v3664
        %v4213 = vpop.f32.mrb[0].mxu0
        %v4214 = vadd.f32 %v3890, %v4213
        %v4215 = vpop.f32.mrb[0].mxu0
        %4216 = vmatprep.mubr.f32.mxu0 0.0
        %4217 = vmatmul.mubr.f32.gmra.mrb[0].mxu0 %v3665
        %v4218 = vpop.f32.mrb[0].mxu0
        %v4219 = vadd.f32 %v3890, %v4218
        %v4220 = vpop.f32.mrb[0].mxu0
        %4221 = vmatprep.mubr.f32.mxu0 0.0
        %4222 = vmatmul.mubr.f32.gmra.mrb[0].mxu0 %v3666
        %v4223 = vpop.f32.mrb[0].mxu0
        %v4224 = vadd.f32 %v3890, %v4223
        %v4225 = vpop.f32.mrb[0].mxu0
        %4226 = vmatprep.mubr.f32.mxu0 0.0
        %4227 = vmatmul.mubr.f32.gmra.mrb[0].mxu0 %v3667
        %v4228 = vpop.f32.mrb[0].mxu0
        %v4229 = vadd.f32 %v3890, %v4228
        %v4230 = vpop.f32.mrb[0].mxu0
        %4231 = vmatprep.mubr.f32.mxu0 0.0
        %4232 = vmatmul.mubr.f32.gmra.mrb[0].mxu0 %v3668
        %v4233 = vpop.f32.mrb[0].mxu0
        %v4234 = vadd.f32 %v3890, %v4233
        %v4235 = vpop.f32.mrb[0].mxu0
        %4236 = vmatprep.mubr.f32.mxu0 0.0
        %4237 = vmatmul.mubr.f32.gmra.mrb[0].mxu0 %v3669
        %v4238 = vpop.f32.mrb[0].mxu0
        %v4239 = vadd.f32 %v3890, %v4238
        %v4240 = vpop.f32.mrb[0].mxu0
        %4241 = vmatprep.mubr.f32.mxu0 0.0
        %4242 = vmatmul.mubr.f32.gmra.mrb[0].mxu0 %v3670
        %v4243 = vpop.f32.mrb[0].mxu0
        %v4244 = vadd.f32 %v3890, %v4243
        %v4245 = vpop.f32.mrb[0].mxu0
        %4246 = vmatprep.mubr.f32.mxu0 0.0
        %4247 = vmatmul.mubr.f32.gmra.mrb[0].mxu0 %v3671
        %v4248 = vpop.f32.mrb[0].mxu0
        %v4249 = vadd.f32 %v3890, %v4248
        %v4250 = vpop.f32.mrb[0].mxu0
        %4251 = vmatprep.mubr.f32.mxu0 0.0
        %4252 = vmatmul.mubr.f32.gmra.mrb[0].mxu0 %v3672
        %v4253 = vpop.f32.mrb[0].mxu0
        %v4254 = vadd.f32 %v3890, %v4253
        %v4255 = vpop.f32.mrb[0].mxu0
        %4256 = vmatprep.mubr.f32.mxu0 0.0
        %4257 = vmatmul.mubr.f32.gmra.mrb[0].mxu0 %v3673
        %v4258 = vpop.f32.mrb[0].mxu0
        %v4259 = vadd.f32 %v3890, %v4258
        %v4260 = vpop.f32.mrb[0].mxu0
        %4261 = vmatprep.mubr.f32.mxu0 0.0
        %4262 = vmatmul.mubr.f32.gmra.mrb[0].mxu0 %v3674
        %v4263 = vpop.f32.mrb[0].mxu0
        %v4264 = vadd.f32 %v3890, %v4263
        %v4265 = vpop.f32.mrb[0].mxu0
        %4266 = vmatprep.mubr.f32.mxu0 0.0
        %4267 = vmatmul.mubr.f32.gmra.mrb[0].mxu0 %v3675
        %v4268 = vpop.f32.mrb[0].mxu0
        %v4269 = vadd.f32 %v3890, %v4268
        %v4270 = vpop.f32.mrb[0].mxu0
        %4271 = vmatprep.mubr.f32.mxu0 0.0
        %4272 = vmatmul.mubr.f32.gmra.mrb[0].mxu0 %v3676
        %v4273 = vpop.f32.mrb[0].mxu0
        %v4274 = vadd.f32 %v3890, %v4273
        %v4275 = vpop.f32.mrb[0].mxu0
        %4276 = vdwg.mxu0
        %v4277 = vmax.f32 %v3959, 0.0
        %v4278 = vmax.f32 %v3964, 0.0
        %v4279 = vmax.f32 %v3969, 0.0
        %v4280 = vmax.f32 %v3974, 0.0
        %v4281 = vmax.f32 %v3979, 0.0
        %v4282 = vmax.f32 %v3984, 0.0
        %v4283 = vmax.f32 %v3989, 0.0
        %v4284 = vmax.f32 %v3994, 0.0
        %v4285 = vmax.f32 %v3999, 0.0
        %v4286 = vmax.f32 %v4004, 0.0
        %v4287 = vmax.f32 %v4009, 0.0
        %v4288 = vmax.f32 %v4014, 0.0
        %v4289 = vmax.f32 %v4019, 0.0
        %v4290 = vmax.f32 %v4024, 0.0
        %v4291 = vmax.f32 %v4029, 0.0
        %v4292 = vmax.f32 %v4034, 0.0
        %v4293 = vmax.f32 %v4039, 0.0
        %v4294 = vmax.f32 %v4044, 0.0
        %v4295 = vmax.f32 %v4049, 0.0
        %v4296 = vmax.f32 %v4054, 0.0
        %v4297 = vmax.f32 %v4059, 0.0
        %v4298 = vmax.f32 %v4064, 0.0
        %v4299 = vmax.f32 %v4069, 0.0
        %v4300 = vmax.f32 %v4074, 0.0
        %v4301 = vmax.f32 %v4079, 0.0
        %v4302 = vmax.f32 %v4084, 0.0
        %v4303 = vmax.f32 %v4089, 0.0
        %v4304 = vmax.f32 %v4094, 0.0
        %v4305 = vmax.f32 %v4099, 0.0
        %v4306 = vmax.f32 %v4104, 0.0
        %v4307 = vmax.f32 %v4109, 0.0
        %v4308 = vmax.f32 %v4114, 0.0
        %v4309 = vmax.f32 %v4119, 0.0
        %v4310 = vmax.f32 %v4124, 0.0
        %v4311 = vmax.f32 %v4129, 0.0
        %v4312 = vmax.f32 %v4134, 0.0
        %v4313 = vmax.f32 %v4139, 0.0
        %v4314 = vmax.f32 %v4144, 0.0
        %v4315 = vmax.f32 %v4149, 0.0
        %v4316 = vmax.f32 %v4154, 0.0
        %v4317 = vmax.f32 %v4159, 0.0
        %v4318 = vmax.f32 %v4164, 0.0
        %v4319 = vmax.f32 %v4169, 0.0
        %v4320 = vmax.f32 %v4174, 0.0
        %v4321 = vmax.f32 %v4179, 0.0
        %v4322 = vmax.f32 %v4184, 0.0
        %v4323 = vmax.f32 %v4189, 0.0
        %v4324 = vmax.f32 %v4194, 0.0
        %v4325 = vmax.f32 %v4199, 0.0
        %v4326 = vmax.f32 %v4204, 0.0
        %v4327 = vmax.f32 %v4209, 0.0
        %v4328 = vmax.f32 %v4214, 0.0
        %v4329 = vmax.f32 %v4219, 0.0
        %v4330 = vmax.f32 %v4224, 0.0
        %v4331 = vmax.f32 %v4229, 0.0
        %v4332 = vmax.f32 %v4234, 0.0
        %v4333 = vmax.f32 %v4239, 0.0
        %v4334 = vmax.f32 %v4244, 0.0
        %v4335 = vmax.f32 %v4249, 0.0
        %v4336 = vmax.f32 %v4254, 0.0
        %v4337 = vmax.f32 %v4259, 0.0
        %v4338 = vmax.f32 %v4264, 0.0
        %v4339 = vmax.f32 %v4269, 0.0
        %v4340 = vmax.f32 %v4274, 0.0
        %v4341 = vld [vmem:[%s7] sm:$0xff]
        %v4342 = vld [vmem:[%s7 + $0x8] sm:$0xff]
        %v4343 = vld [vmem:[%s7 + $0x10] sm:$0xff]
        %v4344 = vld [vmem:[%s7 + $0x18] sm:$0xff]
        %v4345 = vld [vmem:[%s8] sm:$0x1]
        %v4347 = vlaneseq
        %v4348 = vshrl.u32 %v4347, 7
        %v4349 = vsub.s32 0, %v4348
        %v4350 = vrot.slane %v4345, %v4349
        %vm4352 = vcmask 261120
        %v4354 = vsel %vm4352, %v4277, 0
        %v4357 = vsel %vm4352, %v4278, 0
        %v4360 = vsel %vm4352, %v4279, 0
        %v4363 = vsel %vm4352, %v4280, 0
        %v4366 = vsel %vm4352, %v4281, 0
        %v4369 = vsel %vm4352, %v4282, 0
        %v4372 = vsel %vm4352, %v4283, 0
        %v4375 = vsel %vm4352, %v4284, 0
        %v4378 = vsel %vm4352, %v4285, 0
        %v4381 = vsel %vm4352, %v4286, 0
        %v4384 = vsel %vm4352, %v4287, 0
        %v4387 = vsel %vm4352, %v4288, 0
        %v4390 = vsel %vm4352, %v4289, 0
        %v4393 = vsel %vm4352, %v4290, 0
        %v4396 = vsel %vm4352, %v4291, 0
        %v4399 = vsel %vm4352, %v4292, 0
        %v4402 = vsel %vm4352, %v4293, 0
        %v4405 = vsel %vm4352, %v4294, 0
        %v4408 = vsel %vm4352, %v4295, 0
        %v4411 = vsel %vm4352, %v4296, 0
        %v4414 = vsel %vm4352, %v4297, 0
        %v4417 = vsel %vm4352, %v4298, 0
        %v4420 = vsel %vm4352, %v4299, 0
        %v4423 = vsel %vm4352, %v4300, 0
        %v4426 = vsel %vm4352, %v4301, 0
        %v4429 = vsel %vm4352, %v4302, 0
        %v4432 = vsel %vm4352, %v4303, 0
        %v4435 = vsel %vm4352, %v4304, 0
        %v4438 = vsel %vm4352, %v4305, 0
        %v4441 = vsel %vm4352, %v4306, 0
        %v4444 = vsel %vm4352, %v4307, 0
        %v4447 = vsel %vm4352, %v4308, 0
        %v4450 = vsel %vm4352, %v4309, 0
        %v4453 = vsel %vm4352, %v4310, 0
        %v4456 = vsel %vm4352, %v4311, 0
        %v4459 = vsel %vm4352, %v4312, 0
        %v4462 = vsel %vm4352, %v4313, 0
        %v4465 = vsel %vm4352, %v4314, 0
        %v4468 = vsel %vm4352, %v4315, 0
        %v4471 = vsel %vm4352, %v4316, 0
        %v4474 = vsel %vm4352, %v4317, 0
        %v4477 = vsel %vm4352, %v4318, 0
        %v4480 = vsel %vm4352, %v4319, 0
        %v4483 = vsel %vm4352, %v4320, 0
        %v4486 = vsel %vm4352, %v4321, 0
        %v4489 = vsel %vm4352, %v4322, 0
        %v4492 = vsel %vm4352, %v4323, 0
        %v4495 = vsel %vm4352, %v4324, 0
        %v4498 = vsel %vm4352, %v4325, 0
        %v4501 = vsel %vm4352, %v4326, 0
        %v4504 = vsel %vm4352, %v4327, 0
        %v4507 = vsel %vm4352, %v4328, 0
        %v4510 = vsel %vm4352, %v4329, 0
        %v4513 = vsel %vm4352, %v4330, 0
        %v4516 = vsel %vm4352, %v4331, 0
        %v4519 = vsel %vm4352, %v4332, 0
        %v4522 = vsel %vm4352, %v4333, 0
        %v4525 = vsel %vm4352, %v4334, 0
        %v4528 = vsel %vm4352, %v4335, 0
        %v4531 = vsel %vm4352, %v4336, 0
        %v4534 = vsel %vm4352, %v4337, 0
        %v4537 = vsel %vm4352, %v4338, 0
        %v4540 = vsel %vm4352, %v4339, 0
        %v4543 = vsel %vm4352, %v4340, 0
        %4545 = vmatprep.subr.mxu0 0.0
        %4546 = vmatpush1.msra.mxu0 %v4341
        %4547 = vmatprep.subr.mxu0 0.0
        %4548 = vmatpush1.msra.mxu0 %v4342
        %4549 = vmatprep.subr.mxu0 0.0
        %4550 = vmatpush1.msra.mxu0 %v4343
        %4551 = vmatprep.subr.mxu0 0.0
        %4552 = vmatpush1.msra.mxu0 %v4344
        %4553 = vmatprep.subr.mxu0 0.0
        %4554 = vmatpush1.msra.mxu0 0.0
        %4555 = vmatprep.subr.mxu0 0.0
        %4556 = vmatpush1.msra.mxu0 0.0
        %4557 = vmatprep.subr.mxu0 0.0
        %4558 = vmatpush1.msra.mxu0 0.0
        %4559 = vmatprep.subr.mxu0 0.0
        %4560 = vmatpush1.msra.mxu0 0.0
        %4561 = vmatprep.subr.mxu0 0.0
        %4562 = vmatpush1.msra.mxu0 0.0
        %4563 = vmatprep.subr.mxu0 0.0
        %4564 = vmatpush1.msra.mxu0 0.0
        %4565 = vmatprep.subr.mxu0 0.0
        %4566 = vmatpush1.msra.mxu0 0.0
        %4567 = vmatprep.subr.mxu0 0.0
        %4568 = vmatpush1.msra.mxu0 0.0
        %4569 = vmatprep.subr.mxu0 0.0
        %4570 = vmatpush1.msra.mxu0 0.0
        %4571 = vmatprep.subr.mxu0 0.0
        %4572 = vmatpush1.msra.mxu0 0.0
        %4573 = vmatprep.subr.mxu0 0.0
        %4574 = vmatpush1.msra.mxu0 0.0
        %4575 = vmatprep.subr.mxu0 0.0
        %4576 = vmatpush1.msra.mxu0 0.0
        %4577 = vmatprep.subr.mxu0 0.0
        %4578 = vmatpush1.msra.mxu0 0.0
        %4579 = vmatprep.subr.mxu0 0.0
        %4580 = vmatpush1.msra.mxu0 0.0
        %4581 = vmatprep.subr.mxu0 0.0
        %4582 = vmatpush1.msra.mxu0 0.0
        %4583 = vmatprep.subr.mxu0 0.0
        %4584 = vmatpush1.msra.mxu0 0.0
        %4585 = vmatprep.subr.mxu0 0.0
        %4586 = vmatpush1.msra.mxu0 0.0
        %4587 = vmatprep.subr.mxu0 0.0
        %4588 = vmatpush1.msra.mxu0 0.0
        %4589 = vmatprep.subr.mxu0 0.0
        %4590 = vmatpush1.msra.mxu0 0.0
        %4591 = vmatprep.subr.mxu0 0.0
        %4592 = vmatpush1.msra.mxu0 0.0
        %4593 = vmatprep.subr.mxu0 0.0
        %4594 = vmatpush1.msra.mxu0 0.0
        %4595 = vmatprep.subr.mxu0 0.0
        %4596 = vmatpush1.msra.mxu0 0.0
        %4597 = vmatprep.subr.mxu0 0.0
        %4598 = vmatpush1.msra.mxu0 0.0
        %4599 = vmatprep.subr.mxu0 0.0
        %4600 = vmatpush1.msra.mxu0 0.0
        %4601 = vmatprep.subr.mxu0 0.0
        %4602 = vmatpush1.msra.mxu0 0.0
        %4603 = vmatprep.subr.mxu0 0.0
        %4604 = vmatpush1.msra.mxu0 0.0
        %4605 = vmatprep.subr.mxu0 0.0
        %4606 = vmatpush1.msra.mxu0 0.0
        %4607 = vmatprep.subr.mxu0 0.0
        %4608 = vmatpush1.msra.mxu0 0.0
        %4609 = vmatprep.mubr.f32.mxu0 0.0
        %4610 = vmatmul.mubr.f32.gmra.mrb[0].mxu0 %v4354
        %v4611 = vpop.f32.mrb[0].mxu0
        %v4612 = vadd.f32 %v4350, %v4611
        %v4613 = vpop.f32.mrb[0].mxu0
        %4614 = vmatprep.mubr.f32.mxu0 0.0
        %4615 = vmatmul.mubr.f32.gmra.mrb[0].mxu0 %v4357
        %v4616 = vpop.f32.mrb[0].mxu0
        %v4617 = vadd.f32 %v4350, %v4616
        %v4618 = vpop.f32.mrb[0].mxu0
        %4619 = vmatprep.mubr.f32.mxu0 0.0
        %4620 = vmatmul.mubr.f32.gmra.mrb[0].mxu0 %v4360
        %v4621 = vpop.f32.mrb[0].mxu0
        %v4622 = vadd.f32 %v4350, %v4621
        %v4623 = vpop.f32.mrb[0].mxu0
        %4624 = vmatprep.mubr.f32.mxu0 0.0
        %4625 = vmatmul.mubr.f32.gmra.mrb[0].mxu0 %v4363
        %v4626 = vpop.f32.mrb[0].mxu0
        %v4627 = vadd.f32 %v4350, %v4626
        %v4628 = vpop.f32.mrb[0].mxu0
        %4629 = vmatprep.mubr.f32.mxu0 0.0
        %4630 = vmatmul.mubr.f32.gmra.mrb[0].mxu0 %v4366
        %v4631 = vpop.f32.mrb[0].mxu0
        %v4632 = vadd.f32 %v4350, %v4631
        %v4633 = vpop.f32.mrb[0].mxu0
        %4634 = vmatprep.mubr.f32.mxu0 0.0
        %4635 = vmatmul.mubr.f32.gmra.mrb[0].mxu0 %v4369
        %v4636 = vpop.f32.mrb[0].mxu0
        %v4637 = vadd.f32 %v4350, %v4636
        %v4638 = vpop.f32.mrb[0].mxu0
        %4639 = vmatprep.mubr.f32.mxu0 0.0
        %4640 = vmatmul.mubr.f32.gmra.mrb[0].mxu0 %v4372
        %v4641 = vpop.f32.mrb[0].mxu0
        %v4642 = vadd.f32 %v4350, %v4641
        %v4643 = vpop.f32.mrb[0].mxu0
        %4644 = vmatprep.mubr.f32.mxu0 0.0
        %4645 = vmatmul.mubr.f32.gmra.mrb[0].mxu0 %v4375
        %v4646 = vpop.f32.mrb[0].mxu0
        %v4647 = vadd.f32 %v4350, %v4646
        %v4648 = vpop.f32.mrb[0].mxu0
        %4649 = vmatprep.mubr.f32.mxu0 0.0
        %4650 = vmatmul.mubr.f32.gmra.mrb[0].mxu0 %v4378
        %v4651 = vpop.f32.mrb[0].mxu0
        %v4652 = vadd.f32 %v4350, %v4651
        %v4653 = vpop.f32.mrb[0].mxu0
        %4654 = vmatprep.mubr.f32.mxu0 0.0
        %4655 = vmatmul.mubr.f32.gmra.mrb[0].mxu0 %v4381
        %v4656 = vpop.f32.mrb[0].mxu0
        %v4657 = vadd.f32 %v4350, %v4656
        %v4658 = vpop.f32.mrb[0].mxu0
        %4659 = vmatprep.mubr.f32.mxu0 0.0
        %4660 = vmatmul.mubr.f32.gmra.mrb[0].mxu0 %v4384
        %v4661 = vpop.f32.mrb[0].mxu0
        %v4662 = vadd.f32 %v4350, %v4661
        %v4663 = vpop.f32.mrb[0].mxu0
        %4664 = vmatprep.mubr.f32.mxu0 0.0
        %4665 = vmatmul.mubr.f32.gmra.mrb[0].mxu0 %v4387
        %v4666 = vpop.f32.mrb[0].mxu0
        %v4667 = vadd.f32 %v4350, %v4666
        %v4668 = vpop.f32.mrb[0].mxu0
        %4669 = vmatprep.mubr.f32.mxu0 0.0
        %4670 = vmatmul.mubr.f32.gmra.mrb[0].mxu0 %v4390
        %v4671 = vpop.f32.mrb[0].mxu0
        %v4672 = vadd.f32 %v4350, %v4671
        %v4673 = vpop.f32.mrb[0].mxu0
        %4674 = vmatprep.mubr.f32.mxu0 0.0
        %4675 = vmatmul.mubr.f32.gmra.mrb[0].mxu0 %v4393
        %v4676 = vpop.f32.mrb[0].mxu0
        %v4677 = vadd.f32 %v4350, %v4676
        %v4678 = vpop.f32.mrb[0].mxu0
        %4679 = vmatprep.mubr.f32.mxu0 0.0
        %4680 = vmatmul.mubr.f32.gmra.mrb[0].mxu0 %v4396
        %v4681 = vpop.f32.mrb[0].mxu0
        %v4682 = vadd.f32 %v4350, %v4681
        %v4683 = vpop.f32.mrb[0].mxu0
        %4684 = vmatprep.mubr.f32.mxu0 0.0
        %4685 = vmatmul.mubr.f32.gmra.mrb[0].mxu0 %v4399
        %v4686 = vpop.f32.mrb[0].mxu0
        %v4687 = vadd.f32 %v4350, %v4686
        %v4688 = vpop.f32.mrb[0].mxu0
        %4689 = vmatprep.mubr.f32.mxu0 0.0
        %4690 = vmatmul.mubr.f32.gmra.mrb[0].mxu0 %v4402
        %v4691 = vpop.f32.mrb[0].mxu0
        %v4692 = vadd.f32 %v4350, %v4691
        %v4693 = vpop.f32.mrb[0].mxu0
        %4694 = vmatprep.mubr.f32.mxu0 0.0
        %4695 = vmatmul.mubr.f32.gmra.mrb[0].mxu0 %v4405
        %v4696 = vpop.f32.mrb[0].mxu0
        %v4697 = vadd.f32 %v4350, %v4696
        %v4698 = vpop.f32.mrb[0].mxu0
        %4699 = vmatprep.mubr.f32.mxu0 0.0
        %4700 = vmatmul.mubr.f32.gmra.mrb[0].mxu0 %v4408
        %v4701 = vpop.f32.mrb[0].mxu0
        %v4702 = vadd.f32 %v4350, %v4701
        %v4703 = vpop.f32.mrb[0].mxu0
        %4704 = vmatprep.mubr.f32.mxu0 0.0
        %4705 = vmatmul.mubr.f32.gmra.mrb[0].mxu0 %v4411
        %v4706 = vpop.f32.mrb[0].mxu0
        %v4707 = vadd.f32 %v4350, %v4706
        %v4708 = vpop.f32.mrb[0].mxu0
        %4709 = vmatprep.mubr.f32.mxu0 0.0
        %4710 = vmatmul.mubr.f32.gmra.mrb[0].mxu0 %v4414
        %v4711 = vpop.f32.mrb[0].mxu0
        %v4712 = vadd.f32 %v4350, %v4711
        %v4713 = vpop.f32.mrb[0].mxu0
        %4714 = vmatprep.mubr.f32.mxu0 0.0
        %4715 = vmatmul.mubr.f32.gmra.mrb[0].mxu0 %v4417
        %v4716 = vpop.f32.mrb[0].mxu0
        %v4717 = vadd.f32 %v4350, %v4716
        %v4718 = vpop.f32.mrb[0].mxu0
        %4719 = vmatprep.mubr.f32.mxu0 0.0
        %4720 = vmatmul.mubr.f32.gmra.mrb[0].mxu0 %v4420
        %v4721 = vpop.f32.mrb[0].mxu0
        %v4722 = vadd.f32 %v4350, %v4721
        %v4723 = vpop.f32.mrb[0].mxu0
        %4724 = vmatprep.mubr.f32.mxu0 0.0
        %4725 = vmatmul.mubr.f32.gmra.mrb[0].mxu0 %v4423
        %v4726 = vpop.f32.mrb[0].mxu0
        %v4727 = vadd.f32 %v4350, %v4726
        %v4728 = vpop.f32.mrb[0].mxu0
        %4729 = vmatprep.mubr.f32.mxu0 0.0
        %4730 = vmatmul.mubr.f32.gmra.mrb[0].mxu0 %v4426
        %v4731 = vpop.f32.mrb[0].mxu0
        %v4732 = vadd.f32 %v4350, %v4731
        %v4733 = vpop.f32.mrb[0].mxu0
        %4734 = vmatprep.mubr.f32.mxu0 0.0
        %4735 = vmatmul.mubr.f32.gmra.mrb[0].mxu0 %v4429
        %v4736 = vpop.f32.mrb[0].mxu0
        %v4737 = vadd.f32 %v4350, %v4736
        %v4738 = vpop.f32.mrb[0].mxu0
        %4739 = vmatprep.mubr.f32.mxu0 0.0
        %4740 = vmatmul.mubr.f32.gmra.mrb[0].mxu0 %v4432
        %v4741 = vpop.f32.mrb[0].mxu0
        %v4742 = vadd.f32 %v4350, %v4741
        %v4743 = vpop.f32.mrb[0].mxu0
        %4744 = vmatprep.mubr.f32.mxu0 0.0
        %4745 = vmatmul.mubr.f32.gmra.mrb[0].mxu0 %v4435
        %v4746 = vpop.f32.mrb[0].mxu0
        %v4747 = vadd.f32 %v4350, %v4746
        %v4748 = vpop.f32.mrb[0].mxu0
        %4749 = vmatprep.mubr.f32.mxu0 0.0
        %4750 = vmatmul.mubr.f32.gmra.mrb[0].mxu0 %v4438
        %v4751 = vpop.f32.mrb[0].mxu0
        %v4752 = vadd.f32 %v4350, %v4751
        %v4753 = vpop.f32.mrb[0].mxu0
        %4754 = vmatprep.mubr.f32.mxu0 0.0
        %4755 = vmatmul.mubr.f32.gmra.mrb[0].mxu0 %v4441
        %v4756 = vpop.f32.mrb[0].mxu0
        %v4757 = vadd.f32 %v4350, %v4756
        %v4758 = vpop.f32.mrb[0].mxu0
        %4759 = vmatprep.mubr.f32.mxu0 0.0
        %4760 = vmatmul.mubr.f32.gmra.mrb[0].mxu0 %v4444
        %v4761 = vpop.f32.mrb[0].mxu0
        %v4762 = vadd.f32 %v4350, %v4761
        %v4763 = vpop.f32.mrb[0].mxu0
        %4764 = vmatprep.mubr.f32.mxu0 0.0
        %4765 = vmatmul.mubr.f32.gmra.mrb[0].mxu0 %v4447
        %v4766 = vpop.f32.mrb[0].mxu0
        %v4767 = vadd.f32 %v4350, %v4766
        %v4768 = vpop.f32.mrb[0].mxu0
        %4769 = vmatprep.mubr.f32.mxu0 0.0
        %4770 = vmatmul.mubr.f32.gmra.mrb[0].mxu0 %v4450
        %v4771 = vpop.f32.mrb[0].mxu0
        %v4772 = vadd.f32 %v4350, %v4771
        %v4773 = vpop.f32.mrb[0].mxu0
        %4774 = vmatprep.mubr.f32.mxu0 0.0
        %4775 = vmatmul.mubr.f32.gmra.mrb[0].mxu0 %v4453
        %v4776 = vpop.f32.mrb[0].mxu0
        %v4777 = vadd.f32 %v4350, %v4776
        %v4778 = vpop.f32.mrb[0].mxu0
        %4779 = vmatprep.mubr.f32.mxu0 0.0
        %4780 = vmatmul.mubr.f32.gmra.mrb[0].mxu0 %v4456
        %v4781 = vpop.f32.mrb[0].mxu0
        %v4782 = vadd.f32 %v4350, %v4781
        %v4783 = vpop.f32.mrb[0].mxu0
        %4784 = vmatprep.mubr.f32.mxu0 0.0
        %4785 = vmatmul.mubr.f32.gmra.mrb[0].mxu0 %v4459
        %v4786 = vpop.f32.mrb[0].mxu0
        %v4787 = vadd.f32 %v4350, %v4786
        %v4788 = vpop.f32.mrb[0].mxu0
        %4789 = vmatprep.mubr.f32.mxu0 0.0
        %4790 = vmatmul.mubr.f32.gmra.mrb[0].mxu0 %v4462
        %v4791 = vpop.f32.mrb[0].mxu0
        %v4792 = vadd.f32 %v4350, %v4791
        %v4793 = vpop.f32.mrb[0].mxu0
        %4794 = vmatprep.mubr.f32.mxu0 0.0
        %4795 = vmatmul.mubr.f32.gmra.mrb[0].mxu0 %v4465
        %v4796 = vpop.f32.mrb[0].mxu0
        %v4797 = vadd.f32 %v4350, %v4796
        %v4798 = vpop.f32.mrb[0].mxu0
        %4799 = vmatprep.mubr.f32.mxu0 0.0
        %4800 = vmatmul.mubr.f32.gmra.mrb[0].mxu0 %v4468
        %v4801 = vpop.f32.mrb[0].mxu0
        %v4802 = vadd.f32 %v4350, %v4801
        %v4803 = vpop.f32.mrb[0].mxu0
        %4804 = vmatprep.mubr.f32.mxu0 0.0
        %4805 = vmatmul.mubr.f32.gmra.mrb[0].mxu0 %v4471
        %v4806 = vpop.f32.mrb[0].mxu0
        %v4807 = vadd.f32 %v4350, %v4806
        %v4808 = vpop.f32.mrb[0].mxu0
        %4809 = vmatprep.mubr.f32.mxu0 0.0
        %4810 = vmatmul.mubr.f32.gmra.mrb[0].mxu0 %v4474
        %v4811 = vpop.f32.mrb[0].mxu0
        %v4812 = vadd.f32 %v4350, %v4811
        %v4813 = vpop.f32.mrb[0].mxu0
        %4814 = vmatprep.mubr.f32.mxu0 0.0
        %4815 = vmatmul.mubr.f32.gmra.mrb[0].mxu0 %v4477
        %v4816 = vpop.f32.mrb[0].mxu0
        %v4817 = vadd.f32 %v4350, %v4816
        %v4818 = vpop.f32.mrb[0].mxu0
        %4819 = vmatprep.mubr.f32.mxu0 0.0
        %4820 = vmatmul.mubr.f32.gmra.mrb[0].mxu0 %v4480
        %v4821 = vpop.f32.mrb[0].mxu0
        %v4822 = vadd.f32 %v4350, %v4821
        %v4823 = vpop.f32.mrb[0].mxu0
        %4824 = vmatprep.mubr.f32.mxu0 0.0
        %4825 = vmatmul.mubr.f32.gmra.mrb[0].mxu0 %v4483
        %v4826 = vpop.f32.mrb[0].mxu0
        %v4827 = vadd.f32 %v4350, %v4826
        %v4828 = vpop.f32.mrb[0].mxu0
        %4829 = vmatprep.mubr.f32.mxu0 0.0
        %4830 = vmatmul.mubr.f32.gmra.mrb[0].mxu0 %v4486
        %v4831 = vpop.f32.mrb[0].mxu0
        %v4832 = vadd.f32 %v4350, %v4831
        %v4833 = vpop.f32.mrb[0].mxu0
        %4834 = vmatprep.mubr.f32.mxu0 0.0
        %4835 = vmatmul.mubr.f32.gmra.mrb[0].mxu0 %v4489
        %v4836 = vpop.f32.mrb[0].mxu0
        %v4837 = vadd.f32 %v4350, %v4836
        %v4838 = vpop.f32.mrb[0].mxu0
        %4839 = vmatprep.mubr.f32.mxu0 0.0
        %4840 = vmatmul.mubr.f32.gmra.mrb[0].mxu0 %v4492
        %v4841 = vpop.f32.mrb[0].mxu0
        %v4842 = vadd.f32 %v4350, %v4841
        %v4843 = vpop.f32.mrb[0].mxu0
        %4844 = vmatprep.mubr.f32.mxu0 0.0
        %4845 = vmatmul.mubr.f32.gmra.mrb[0].mxu0 %v4495
        %v4846 = vpop.f32.mrb[0].mxu0
        %v4847 = vadd.f32 %v4350, %v4846
        %v4848 = vpop.f32.mrb[0].mxu0
        %4849 = vmatprep.mubr.f32.mxu0 0.0
        %4850 = vmatmul.mubr.f32.gmra.mrb[0].mxu0 %v4498
        %v4851 = vpop.f32.mrb[0].mxu0
        %v4852 = vadd.f32 %v4350, %v4851
        %v4853 = vpop.f32.mrb[0].mxu0
        %4854 = vmatprep.mubr.f32.mxu0 0.0
        %4855 = vmatmul.mubr.f32.gmra.mrb[0].mxu0 %v4501
        %v4856 = vpop.f32.mrb[0].mxu0
        %v4857 = vadd.f32 %v4350, %v4856
        %v4858 = vpop.f32.mrb[0].mxu0
        %4859 = vmatprep.mubr.f32.mxu0 0.0
        %4860 = vmatmul.mubr.f32.gmra.mrb[0].mxu0 %v4504
        %v4861 = vpop.f32.mrb[0].mxu0
        %v4862 = vadd.f32 %v4350, %v4861
        %v4863 = vpop.f32.mrb[0].mxu0
        %4864 = vmatprep.mubr.f32.mxu0 0.0
        %4865 = vmatmul.mubr.f32.gmra.mrb[0].mxu0 %v4507
        %v4866 = vpop.f32.mrb[0].mxu0
        %v4867 = vadd.f32 %v4350, %v4866
        %v4868 = vpop.f32.mrb[0].mxu0
        %4869 = vmatprep.mubr.f32.mxu0 0.0
        %4870 = vmatmul.mubr.f32.gmra.mrb[0].mxu0 %v4510
        %v4871 = vpop.f32.mrb[0].mxu0
        %v4872 = vadd.f32 %v4350, %v4871
        %v4873 = vpop.f32.mrb[0].mxu0
        %4874 = vmatprep.mubr.f32.mxu0 0.0
        %4875 = vmatmul.mubr.f32.gmra.mrb[0].mxu0 %v4513
        %v4876 = vpop.f32.mrb[0].mxu0
        %v4877 = vadd.f32 %v4350, %v4876
        %v4878 = vpop.f32.mrb[0].mxu0
        %4879 = vmatprep.mubr.f32.mxu0 0.0
        %4880 = vmatmul.mubr.f32.gmra.mrb[0].mxu0 %v4516
        %v4881 = vpop.f32.mrb[0].mxu0
        %v4882 = vadd.f32 %v4350, %v4881
        %v4883 = vpop.f32.mrb[0].mxu0
        %4884 = vmatprep.mubr.f32.mxu0 0.0
        %4885 = vmatmul.mubr.f32.gmra.mrb[0].mxu0 %v4519
        %v4886 = vpop.f32.mrb[0].mxu0
        %v4887 = vadd.f32 %v4350, %v4886
        %v4888 = vpop.f32.mrb[0].mxu0
        %4889 = vmatprep.mubr.f32.mxu0 0.0
        %4890 = vmatmul.mubr.f32.gmra.mrb[0].mxu0 %v4522
        %v4891 = vpop.f32.mrb[0].mxu0
        %v4892 = vadd.f32 %v4350, %v4891
        %v4893 = vpop.f32.mrb[0].mxu0
        %4894 = vmatprep.mubr.f32.mxu0 0.0
        %4895 = vmatmul.mubr.f32.gmra.mrb[0].mxu0 %v4525
        %v4896 = vpop.f32.mrb[0].mxu0
        %v4897 = vadd.f32 %v4350, %v4896
        %v4898 = vpop.f32.mrb[0].mxu0
        %4899 = vmatprep.mubr.f32.mxu0 0.0
        %4900 = vmatmul.mubr.f32.gmra.mrb[0].mxu0 %v4528
        %v4901 = vpop.f32.mrb[0].mxu0
        %v4902 = vadd.f32 %v4350, %v4901
        %v4903 = vpop.f32.mrb[0].mxu0
        %4904 = vmatprep.mubr.f32.mxu0 0.0
        %4905 = vmatmul.mubr.f32.gmra.mrb[0].mxu0 %v4531
        %v4906 = vpop.f32.mrb[0].mxu0
        %v4907 = vadd.f32 %v4350, %v4906
        %v4908 = vpop.f32.mrb[0].mxu0
        %4909 = vmatprep.mubr.f32.mxu0 0.0
        %4910 = vmatmul.mubr.f32.gmra.mrb[0].mxu0 %v4534
        %v4911 = vpop.f32.mrb[0].mxu0
        %v4912 = vadd.f32 %v4350, %v4911
        %v4913 = vpop.f32.mrb[0].mxu0
        %4914 = vmatprep.mubr.f32.mxu0 0.0
        %4915 = vmatmul.mubr.f32.gmra.mrb[0].mxu0 %v4537
        %v4916 = vpop.f32.mrb[0].mxu0
        %v4917 = vadd.f32 %v4350, %v4916
        %v4918 = vpop.f32.mrb[0].mxu0
        %4919 = vmatprep.mubr.f32.mxu0 0.0
        %4920 = vmatmul.mubr.f32.gmra.mrb[0].mxu0 %v4540
        %v4921 = vpop.f32.mrb[0].mxu0
        %v4922 = vadd.f32 %v4350, %v4921
        %v4923 = vpop.f32.mrb[0].mxu0
        %4924 = vmatprep.mubr.f32.mxu0 0.0
        %4925 = vmatmul.mubr.f32.gmra.mrb[0].mxu0 %v4543
        %v4926 = vpop.f32.mrb[0].mxu0
        %v4927 = vadd.f32 %v4350, %v4926
        %v4928 = vpop.f32.mrb[0].mxu0
        %4929 = vdwg.mxu0
        %v4930 = vmax.f32 %v4612, 0.0
        %v4931 = vmax.f32 %v4617, 0.0
        %v4932 = vmax.f32 %v4622, 0.0
        %v4933 = vmax.f32 %v4627, 0.0
        %v4934 = vmax.f32 %v4632, 0.0
        %v4935 = vmax.f32 %v4637, 0.0
        %v4936 = vmax.f32 %v4642, 0.0
        %v4937 = vmax.f32 %v4647, 0.0
        %v4938 = vmax.f32 %v4652, 0.0
        %v4939 = vmax.f32 %v4657, 0.0
        %v4940 = vmax.f32 %v4662, 0.0
        %v4941 = vmax.f32 %v4667, 0.0
        %v4942 = vmax.f32 %v4672, 0.0
        %v4943 = vmax.f32 %v4677, 0.0
        %v4944 = vmax.f32 %v4682, 0.0
        %v4945 = vmax.f32 %v4687, 0.0
        %v4946 = vmax.f32 %v4692, 0.0
        %v4947 = vmax.f32 %v4697, 0.0
        %v4948 = vmax.f32 %v4702, 0.0
        %v4949 = vmax.f32 %v4707, 0.0
        %v4950 = vmax.f32 %v4712, 0.0
        %v4951 = vmax.f32 %v4717, 0.0
        %v4952 = vmax.f32 %v4722, 0.0
        %v4953 = vmax.f32 %v4727, 0.0
        %v4954 = vmax.f32 %v4732, 0.0
        %v4955 = vmax.f32 %v4737, 0.0
        %v4956 = vmax.f32 %v4742, 0.0
        %v4957 = vmax.f32 %v4747, 0.0
        %v4958 = vmax.f32 %v4752, 0.0
        %v4959 = vmax.f32 %v4757, 0.0
        %v4960 = vmax.f32 %v4762, 0.0
        %v4961 = vmax.f32 %v4767, 0.0
        %v4962 = vmax.f32 %v4772, 0.0
        %v4963 = vmax.f32 %v4777, 0.0
        %v4964 = vmax.f32 %v4782, 0.0
        %v4965 = vmax.f32 %v4787, 0.0
        %v4966 = vmax.f32 %v4792, 0.0
        %v4967 = vmax.f32 %v4797, 0.0
        %v4968 = vmax.f32 %v4802, 0.0
        %v4969 = vmax.f32 %v4807, 0.0
        %v4970 = vmax.f32 %v4812, 0.0
        %v4971 = vmax.f32 %v4817, 0.0
        %v4972 = vmax.f32 %v4822, 0.0
        %v4973 = vmax.f32 %v4827, 0.0
        %v4974 = vmax.f32 %v4832, 0.0
        %v4975 = vmax.f32 %v4837, 0.0
        %v4976 = vmax.f32 %v4842, 0.0
        %v4977 = vmax.f32 %v4847, 0.0
        %v4978 = vmax.f32 %v4852, 0.0
        %v4979 = vmax.f32 %v4857, 0.0
        %v4980 = vmax.f32 %v4862, 0.0
        %v4981 = vmax.f32 %v4867, 0.0
        %v4982 = vmax.f32 %v4872, 0.0
        %v4983 = vmax.f32 %v4877, 0.0
        %v4984 = vmax.f32 %v4882, 0.0
        %v4985 = vmax.f32 %v4887, 0.0
        %v4986 = vmax.f32 %v4892, 0.0
        %v4987 = vmax.f32 %v4897, 0.0
        %v4988 = vmax.f32 %v4902, 0.0
        %v4989 = vmax.f32 %v4907, 0.0
        %v4990 = vmax.f32 %v4912, 0.0
        %v4991 = vmax.f32 %v4917, 0.0
        %v4992 = vmax.f32 %v4922, 0.0
        %v4993 = vmax.f32 %v4927, 0.0
        %v4994 = vld [vmem:[%s10] sm:$0xff]
        %v4995 = vld [vmem:[%s10 + $0x8] sm:$0xff]
        %v4996 = vld [vmem:[%s10 + $0x10] sm:$0xff]
        %v4997 = vld [vmem:[%s10 + $0x18] sm:$0xff]
        %v4998 = vld [vmem:[%s10 + $0x20] sm:$0xff]
        %v4999 = vld [vmem:[%s10 + $0x28] sm:$0xff]
        %v5000 = vld [vmem:[%s10 + $0x30] sm:$0xff]
        %v5001 = vld [vmem:[%s10 + $0x38] sm:$0xff]
        %v5002 = vld [vmem:[%s10 + $0x40] sm:$0xff]
        %v5003 = vld [vmem:[%s10 + $0x48] sm:$0xff]
        %v5004 = vld [vmem:[%s10 + $0x50] sm:$0xff]
        %v5005 = vld [vmem:[%s10 + $0x58] sm:$0xff]
        %v5006 = vld [vmem:[%s10 + $0x60] sm:$0xff]
        %v5007 = vld [vmem:[%s10 + $0x68] sm:$0xff]
        %v5008 = vld [vmem:[%s10 + $0x70] sm:$0xff]
        %v5009 = vld [vmem:[%s10 + $0x78] sm:$0xff]
        %v5010 = vld [vmem:[%s11] sm:$0x1]
        %v5012 = vlaneseq
        %v5013 = vshrl.u32 %v5012, 7
        %v5014 = vsub.s32 0, %v5013
        %v5015 = vrot.slane %v5010, %v5014
        %5017 = vmatprep.subr.mxu0 0.0
        %5018 = vmatpush1.msra.mxu0 %v4994
        %5019 = vmatprep.subr.mxu0 0.0
        %5020 = vmatpush1.msra.mxu0 %v4995
        %5021 = vmatprep.subr.mxu0 0.0
        %5022 = vmatpush1.msra.mxu0 %v4996
        %5023 = vmatprep.subr.mxu0 0.0
        %5024 = vmatpush1.msra.mxu0 %v4997
        %5025 = vmatprep.subr.mxu0 0.0
        %5026 = vmatpush1.msra.mxu0 %v4998
        %5027 = vmatprep.subr.mxu0 0.0
        %5028 = vmatpush1.msra.mxu0 %v4999
        %5029 = vmatprep.subr.mxu0 0.0
        %5030 = vmatpush1.msra.mxu0 %v5000
        %5031 = vmatprep.subr.mxu0 0.0
        %5032 = vmatpush1.msra.mxu0 %v5001
        %5033 = vmatprep.subr.mxu0 0.0
        %5034 = vmatpush1.msra.mxu0 %v5002
        %5035 = vmatprep.subr.mxu0 0.0
        %5036 = vmatpush1.msra.mxu0 %v5003
        %5037 = vmatprep.subr.mxu0 0.0
        %5038 = vmatpush1.msra.mxu0 %v5004
        %5039 = vmatprep.subr.mxu0 0.0
        %5040 = vmatpush1.msra.mxu0 %v5005
        %5041 = vmatprep.subr.mxu0 0.0
        %5042 = vmatpush1.msra.mxu0 %v5006
        %5043 = vmatprep.subr.mxu0 0.0
        %5044 = vmatpush1.msra.mxu0 %v5007
        %5045 = vmatprep.subr.mxu0 0.0
        %5046 = vmatpush1.msra.mxu0 %v5008
        %5047 = vmatprep.subr.mxu0 0.0
        %5048 = vmatpush1.msra.mxu0 %v5009
        %5049 = vmatprep.subr.mxu0 0.0
        %5050 = vmatpush1.msra.mxu0 0.0
        %5051 = vmatprep.subr.mxu0 0.0
        %5052 = vmatpush1.msra.mxu0 0.0
        %5053 = vmatprep.subr.mxu0 0.0
        %5054 = vmatpush1.msra.mxu0 0.0
        %5055 = vmatprep.subr.mxu0 0.0
        %5056 = vmatpush1.msra.mxu0 0.0
        %5057 = vmatprep.subr.mxu0 0.0
        %5058 = vmatpush1.msra.mxu0 0.0
        %5059 = vmatprep.subr.mxu0 0.0
        %5060 = vmatpush1.msra.mxu0 0.0
        %5061 = vmatprep.subr.mxu0 0.0
        %5062 = vmatpush1.msra.mxu0 0.0
        %5063 = vmatprep.subr.mxu0 0.0
        %5064 = vmatpush1.msra.mxu0 0.0
        %5065 = vmatprep.subr.mxu0 0.0
        %5066 = vmatpush1.msra.mxu0 0.0
        %5067 = vmatprep.subr.mxu0 0.0
        %5068 = vmatpush1.msra.mxu0 0.0
        %5069 = vmatprep.subr.mxu0 0.0
        %5070 = vmatpush1.msra.mxu0 0.0
        %5071 = vmatprep.subr.mxu0 0.0
        %5072 = vmatpush1.msra.mxu0 0.0
        %5073 = vmatprep.subr.mxu0 0.0
        %5074 = vmatpush1.msra.mxu0 0.0
        %5075 = vmatprep.subr.mxu0 0.0
        %5076 = vmatpush1.msra.mxu0 0.0
        %5077 = vmatprep.subr.mxu0 0.0
        %5078 = vmatpush1.msra.mxu0 0.0
        %5079 = vmatprep.subr.mxu0 0.0
        %5080 = vmatpush1.msra.mxu0 0.0
        %5081 = vmatprep.mubr.f32.mxu0 0.0
        %5082 = vmatmul.mubr.f32.gmra.mrb[0].mxu0 %v3805
        %v5083 = vpop.f32.mrb[0].mxu0
        %v5084 = vadd.f32 %v5015, %v5083
        %v5085 = vpop.f32.mrb[0].mxu0
        %5086 = vmatprep.mubr.f32.mxu0 0.0
        %5087 = vmatmul.mubr.f32.gmra.mrb[0].mxu0 %v3806
        %v5088 = vpop.f32.mrb[0].mxu0
        %v5089 = vadd.f32 %v5015, %v5088
        %v5090 = vpop.f32.mrb[0].mxu0
        %5091 = vmatprep.mubr.f32.mxu0 0.0
        %5092 = vmatmul.mubr.f32.gmra.mrb[0].mxu0 %v3807
        %v5093 = vpop.f32.mrb[0].mxu0
        %v5094 = vadd.f32 %v5015, %v5093
        %v5095 = vpop.f32.mrb[0].mxu0
        %5096 = vmatprep.mubr.f32.mxu0 0.0
        %5097 = vmatmul.mubr.f32.gmra.mrb[0].mxu0 %v3808
        %v5098 = vpop.f32.mrb[0].mxu0
        %v5099 = vadd.f32 %v5015, %v5098
        %v5100 = vpop.f32.mrb[0].mxu0
        %5101 = vmatprep.mubr.f32.mxu0 0.0
        %5102 = vmatmul.mubr.f32.gmra.mrb[0].mxu0 %v3809
        %v5103 = vpop.f32.mrb[0].mxu0
        %v5104 = vadd.f32 %v5015, %v5103
        %v5105 = vpop.f32.mrb[0].mxu0
        %5106 = vmatprep.mubr.f32.mxu0 0.0
        %5107 = vmatmul.mubr.f32.gmra.mrb[0].mxu0 %v3810
        %v5108 = vpop.f32.mrb[0].mxu0
        %v5109 = vadd.f32 %v5015, %v5108
        %v5110 = vpop.f32.mrb[0].mxu0
        %5111 = vmatprep.mubr.f32.mxu0 0.0
        %5112 = vmatmul.mubr.f32.gmra.mrb[0].mxu0 %v3811
        %v5113 = vpop.f32.mrb[0].mxu0
        %v5114 = vadd.f32 %v5015, %v5113
        %v5115 = vpop.f32.mrb[0].mxu0
        %5116 = vmatprep.mubr.f32.mxu0 0.0
        %5117 = vmatmul.mubr.f32.gmra.mrb[0].mxu0 %v3812
        %v5118 = vpop.f32.mrb[0].mxu0
        %v5119 = vadd.f32 %v5015, %v5118
        %v5120 = vpop.f32.mrb[0].mxu0
        %5121 = vmatprep.mubr.f32.mxu0 0.0
        %5122 = vmatmul.mubr.f32.gmra.mrb[0].mxu0 %v3813
        %v5123 = vpop.f32.mrb[0].mxu0
        %v5124 = vadd.f32 %v5015, %v5123
        %v5125 = vpop.f32.mrb[0].mxu0
        %5126 = vmatprep.mubr.f32.mxu0 0.0
        %5127 = vmatmul.mubr.f32.gmra.mrb[0].mxu0 %v3814
        %v5128 = vpop.f32.mrb[0].mxu0
        %v5129 = vadd.f32 %v5015, %v5128
        %v5130 = vpop.f32.mrb[0].mxu0
        %5131 = vmatprep.mubr.f32.mxu0 0.0
        %5132 = vmatmul.mubr.f32.gmra.mrb[0].mxu0 %v3815
        %v5133 = vpop.f32.mrb[0].mxu0
        %v5134 = vadd.f32 %v5015, %v5133
        %v5135 = vpop.f32.mrb[0].mxu0
        %5136 = vmatprep.mubr.f32.mxu0 0.0
        %5137 = vmatmul.mubr.f32.gmra.mrb[0].mxu0 %v3816
        %v5138 = vpop.f32.mrb[0].mxu0
        %v5139 = vadd.f32 %v5015, %v5138
        %v5140 = vpop.f32.mrb[0].mxu0
        %5141 = vmatprep.mubr.f32.mxu0 0.0
        %5142 = vmatmul.mubr.f32.gmra.mrb[0].mxu0 %v3817
        %v5143 = vpop.f32.mrb[0].mxu0
        %v5144 = vadd.f32 %v5015, %v5143
        %v5145 = vpop.f32.mrb[0].mxu0
        %5146 = vmatprep.mubr.f32.mxu0 0.0
        %5147 = vmatmul.mubr.f32.gmra.mrb[0].mxu0 %v3818
        %v5148 = vpop.f32.mrb[0].mxu0
        %v5149 = vadd.f32 %v5015, %v5148
        %v5150 = vpop.f32.mrb[0].mxu0
        %5151 = vmatprep.mubr.f32.mxu0 0.0
        %5152 = vmatmul.mubr.f32.gmra.mrb[0].mxu0 %v3819
        %v5153 = vpop.f32.mrb[0].mxu0
        %v5154 = vadd.f32 %v5015, %v5153
        %v5155 = vpop.f32.mrb[0].mxu0
        %5156 = vmatprep.mubr.f32.mxu0 0.0
        %5157 = vmatmul.mubr.f32.gmra.mrb[0].mxu0 %v3820
        %v5158 = vpop.f32.mrb[0].mxu0
        %v5159 = vadd.f32 %v5015, %v5158
        %v5160 = vpop.f32.mrb[0].mxu0
        %5161 = vmatprep.mubr.f32.mxu0 0.0
        %5162 = vmatmul.mubr.f32.gmra.mrb[0].mxu0 %v3821
        %v5163 = vpop.f32.mrb[0].mxu0
        %v5164 = vadd.f32 %v5015, %v5163
        %v5165 = vpop.f32.mrb[0].mxu0
        %5166 = vmatprep.mubr.f32.mxu0 0.0
        %5167 = vmatmul.mubr.f32.gmra.mrb[0].mxu0 %v3822
        %v5168 = vpop.f32.mrb[0].mxu0
        %v5169 = vadd.f32 %v5015, %v5168
        %v5170 = vpop.f32.mrb[0].mxu0
        %5171 = vmatprep.mubr.f32.mxu0 0.0
        %5172 = vmatmul.mubr.f32.gmra.mrb[0].mxu0 %v3823
        %v5173 = vpop.f32.mrb[0].mxu0
        %v5174 = vadd.f32 %v5015, %v5173
        %v5175 = vpop.f32.mrb[0].mxu0
        %5176 = vmatprep.mubr.f32.mxu0 0.0
        %5177 = vmatmul.mubr.f32.gmra.mrb[0].mxu0 %v3824
        %v5178 = vpop.f32.mrb[0].mxu0
        %v5179 = vadd.f32 %v5015, %v5178
        %v5180 = vpop.f32.mrb[0].mxu0
        %5181 = vmatprep.mubr.f32.mxu0 0.0
        %5182 = vmatmul.mubr.f32.gmra.mrb[0].mxu0 %v3825
        %v5183 = vpop.f32.mrb[0].mxu0
        %v5184 = vadd.f32 %v5015, %v5183
        %v5185 = vpop.f32.mrb[0].mxu0
        %5186 = vmatprep.mubr.f32.mxu0 0.0
        %5187 = vmatmul.mubr.f32.gmra.mrb[0].mxu0 %v3826
        %v5188 = vpop.f32.mrb[0].mxu0
        %v5189 = vadd.f32 %v5015, %v5188
        %v5190 = vpop.f32.mrb[0].mxu0
        %5191 = vmatprep.mubr.f32.mxu0 0.0
        %5192 = vmatmul.mubr.f32.gmra.mrb[0].mxu0 %v3827
        %v5193 = vpop.f32.mrb[0].mxu0
        %v5194 = vadd.f32 %v5015, %v5193
        %v5195 = vpop.f32.mrb[0].mxu0
        %5196 = vmatprep.mubr.f32.mxu0 0.0
        %5197 = vmatmul.mubr.f32.gmra.mrb[0].mxu0 %v3828
        %v5198 = vpop.f32.mrb[0].mxu0
        %v5199 = vadd.f32 %v5015, %v5198
        %v5200 = vpop.f32.mrb[0].mxu0
        %5201 = vmatprep.mubr.f32.mxu0 0.0
        %5202 = vmatmul.mubr.f32.gmra.mrb[0].mxu0 %v3829
        %v5203 = vpop.f32.mrb[0].mxu0
        %v5204 = vadd.f32 %v5015, %v5203
        %v5205 = vpop.f32.mrb[0].mxu0
        %5206 = vmatprep.mubr.f32.mxu0 0.0
        %5207 = vmatmul.mubr.f32.gmra.mrb[0].mxu0 %v3830
        %v5208 = vpop.f32.mrb[0].mxu0
        %v5209 = vadd.f32 %v5015, %v5208
        %v5210 = vpop.f32.mrb[0].mxu0
        %5211 = vmatprep.mubr.f32.mxu0 0.0
        %5212 = vmatmul.mubr.f32.gmra.mrb[0].mxu0 %v3831
        %v5213 = vpop.f32.mrb[0].mxu0
        %v5214 = vadd.f32 %v5015, %v5213
        %v5215 = vpop.f32.mrb[0].mxu0
        %5216 = vmatprep.mubr.f32.mxu0 0.0
        %5217 = vmatmul.mubr.f32.gmra.mrb[0].mxu0 %v3832
        %v5218 = vpop.f32.mrb[0].mxu0
        %v5219 = vadd.f32 %v5015, %v5218
        %v5220 = vpop.f32.mrb[0].mxu0
        %5221 = vmatprep.mubr.f32.mxu0 0.0
        %5222 = vmatmul.mubr.f32.gmra.mrb[0].mxu0 %v3833
        %v5223 = vpop.f32.mrb[0].mxu0
        %v5224 = vadd.f32 %v5015, %v5223
        %v5225 = vpop.f32.mrb[0].mxu0
        %5226 = vmatprep.mubr.f32.mxu0 0.0
        %5227 = vmatmul.mubr.f32.gmra.mrb[0].mxu0 %v3834
        %v5228 = vpop.f32.mrb[0].mxu0
        %v5229 = vadd.f32 %v5015, %v5228
        %v5230 = vpop.f32.mrb[0].mxu0
        %5231 = vmatprep.mubr.f32.mxu0 0.0
        %5232 = vmatmul.mubr.f32.gmra.mrb[0].mxu0 %v3835
        %v5233 = vpop.f32.mrb[0].mxu0
        %v5234 = vadd.f32 %v5015, %v5233
        %v5235 = vpop.f32.mrb[0].mxu0
        %5236 = vmatprep.mubr.f32.mxu0 0.0
        %5237 = vmatmul.mubr.f32.gmra.mrb[0].mxu0 %v3836
        %v5238 = vpop.f32.mrb[0].mxu0
        %v5239 = vadd.f32 %v5015, %v5238
        %v5240 = vpop.f32.mrb[0].mxu0
        %5241 = vmatprep.mubr.f32.mxu0 0.0
        %5242 = vmatmul.mubr.f32.gmra.mrb[0].mxu0 %v3837
        %v5243 = vpop.f32.mrb[0].mxu0
        %v5244 = vadd.f32 %v5015, %v5243
        %v5245 = vpop.f32.mrb[0].mxu0
        %5246 = vmatprep.mubr.f32.mxu0 0.0
        %5247 = vmatmul.mubr.f32.gmra.mrb[0].mxu0 %v3838
        %v5248 = vpop.f32.mrb[0].mxu0
        %v5249 = vadd.f32 %v5015, %v5248
        %v5250 = vpop.f32.mrb[0].mxu0
        %5251 = vmatprep.mubr.f32.mxu0 0.0
        %5252 = vmatmul.mubr.f32.gmra.mrb[0].mxu0 %v3839
        %v5253 = vpop.f32.mrb[0].mxu0
        %v5254 = vadd.f32 %v5015, %v5253
        %v5255 = vpop.f32.mrb[0].mxu0
        %5256 = vmatprep.mubr.f32.mxu0 0.0
        %5257 = vmatmul.mubr.f32.gmra.mrb[0].mxu0 %v3840
        %v5258 = vpop.f32.mrb[0].mxu0
        %v5259 = vadd.f32 %v5015, %v5258
        %v5260 = vpop.f32.mrb[0].mxu0
        %5261 = vmatprep.mubr.f32.mxu0 0.0
        %5262 = vmatmul.mubr.f32.gmra.mrb[0].mxu0 %v3841
        %v5263 = vpop.f32.mrb[0].mxu0
        %v5264 = vadd.f32 %v5015, %v5263
        %v5265 = vpop.f32.mrb[0].mxu0
        %5266 = vmatprep.mubr.f32.mxu0 0.0
        %5267 = vmatmul.mubr.f32.gmra.mrb[0].mxu0 %v3842
        %v5268 = vpop.f32.mrb[0].mxu0
        %v5269 = vadd.f32 %v5015, %v5268
        %v5270 = vpop.f32.mrb[0].mxu0
        %5271 = vmatprep.mubr.f32.mxu0 0.0
        %5272 = vmatmul.mubr.f32.gmra.mrb[0].mxu0 %v3843
        %v5273 = vpop.f32.mrb[0].mxu0
        %v5274 = vadd.f32 %v5015, %v5273
        %v5275 = vpop.f32.mrb[0].mxu0
        %5276 = vmatprep.mubr.f32.mxu0 0.0
        %5277 = vmatmul.mubr.f32.gmra.mrb[0].mxu0 %v3844
        %v5278 = vpop.f32.mrb[0].mxu0
        %v5279 = vadd.f32 %v5015, %v5278
        %v5280 = vpop.f32.mrb[0].mxu0
        %5281 = vmatprep.mubr.f32.mxu0 0.0
        %5282 = vmatmul.mubr.f32.gmra.mrb[0].mxu0 %v3845
        %v5283 = vpop.f32.mrb[0].mxu0
        %v5284 = vadd.f32 %v5015, %v5283
        %v5285 = vpop.f32.mrb[0].mxu0
        %5286 = vmatprep.mubr.f32.mxu0 0.0
        %5287 = vmatmul.mubr.f32.gmra.mrb[0].mxu0 %v3846
        %v5288 = vpop.f32.mrb[0].mxu0
        %v5289 = vadd.f32 %v5015, %v5288
        %v5290 = vpop.f32.mrb[0].mxu0
        %5291 = vmatprep.mubr.f32.mxu0 0.0
        %5292 = vmatmul.mubr.f32.gmra.mrb[0].mxu0 %v3847
        %v5293 = vpop.f32.mrb[0].mxu0
        %v5294 = vadd.f32 %v5015, %v5293
        %v5295 = vpop.f32.mrb[0].mxu0
        %5296 = vmatprep.mubr.f32.mxu0 0.0
        %5297 = vmatmul.mubr.f32.gmra.mrb[0].mxu0 %v3848
        %v5298 = vpop.f32.mrb[0].mxu0
        %v5299 = vadd.f32 %v5015, %v5298
        %v5300 = vpop.f32.mrb[0].mxu0
        %5301 = vmatprep.mubr.f32.mxu0 0.0
        %5302 = vmatmul.mubr.f32.gmra.mrb[0].mxu0 %v3849
        %v5303 = vpop.f32.mrb[0].mxu0
        %v5304 = vadd.f32 %v5015, %v5303
        %v5305 = vpop.f32.mrb[0].mxu0
        %5306 = vmatprep.mubr.f32.mxu0 0.0
        %5307 = vmatmul.mubr.f32.gmra.mrb[0].mxu0 %v3850
        %v5308 = vpop.f32.mrb[0].mxu0
        %v5309 = vadd.f32 %v5015, %v5308
        %v5310 = vpop.f32.mrb[0].mxu0
        %5311 = vmatprep.mubr.f32.mxu0 0.0
        %5312 = vmatmul.mubr.f32.gmra.mrb[0].mxu0 %v3851
        %v5313 = vpop.f32.mrb[0].mxu0
        %v5314 = vadd.f32 %v5015, %v5313
        %v5315 = vpop.f32.mrb[0].mxu0
        %5316 = vmatprep.mubr.f32.mxu0 0.0
        %5317 = vmatmul.mubr.f32.gmra.mrb[0].mxu0 %v3852
        %v5318 = vpop.f32.mrb[0].mxu0
        %v5319 = vadd.f32 %v5015, %v5318
        %v5320 = vpop.f32.mrb[0].mxu0
        %5321 = vmatprep.mubr.f32.mxu0 0.0
        %5322 = vmatmul.mubr.f32.gmra.mrb[0].mxu0 %v3853
        %v5323 = vpop.f32.mrb[0].mxu0
        %v5324 = vadd.f32 %v5015, %v5323
        %v5325 = vpop.f32.mrb[0].mxu0
        %5326 = vmatprep.mubr.f32.mxu0 0.0
        %5327 = vmatmul.mubr.f32.gmra.mrb[0].mxu0 %v3854
        %v5328 = vpop.f32.mrb[0].mxu0
        %v5329 = vadd.f32 %v5015, %v5328
        %v5330 = vpop.f32.mrb[0].mxu0
        %5331 = vmatprep.mubr.f32.mxu0 0.0
        %5332 = vmatmul.mubr.f32.gmra.mrb[0].mxu0 %v3855
        %v5333 = vpop.f32.mrb[0].mxu0
        %v5334 = vadd.f32 %v5015, %v5333
        %v5335 = vpop.f32.mrb[0].mxu0
        %5336 = vmatprep.mubr.f32.mxu0 0.0
        %5337 = vmatmul.mubr.f32.gmra.mrb[0].mxu0 %v3856
        %v5338 = vpop.f32.mrb[0].mxu0
        %v5339 = vadd.f32 %v5015, %v5338
        %v5340 = vpop.f32.mrb[0].mxu0
        %5341 = vmatprep.mubr.f32.mxu0 0.0
        %5342 = vmatmul.mubr.f32.gmra.mrb[0].mxu0 %v3857
        %v5343 = vpop.f32.mrb[0].mxu0
        %v5344 = vadd.f32 %v5015, %v5343
        %v5345 = vpop.f32.mrb[0].mxu0
        %5346 = vmatprep.mubr.f32.mxu0 0.0
        %5347 = vmatmul.mubr.f32.gmra.mrb[0].mxu0 %v3858
        %v5348 = vpop.f32.mrb[0].mxu0
        %v5349 = vadd.f32 %v5015, %v5348
        %v5350 = vpop.f32.mrb[0].mxu0
        %5351 = vmatprep.mubr.f32.mxu0 0.0
        %5352 = vmatmul.mubr.f32.gmra.mrb[0].mxu0 %v3859
        %v5353 = vpop.f32.mrb[0].mxu0
        %v5354 = vadd.f32 %v5015, %v5353
        %v5355 = vpop.f32.mrb[0].mxu0
        %5356 = vmatprep.mubr.f32.mxu0 0.0
        %5357 = vmatmul.mubr.f32.gmra.mrb[0].mxu0 %v3860
        %v5358 = vpop.f32.mrb[0].mxu0
        %v5359 = vadd.f32 %v5015, %v5358
        %v5360 = vpop.f32.mrb[0].mxu0
        %5361 = vmatprep.mubr.f32.mxu0 0.0
        %5362 = vmatmul.mubr.f32.gmra.mrb[0].mxu0 %v3861
        %v5363 = vpop.f32.mrb[0].mxu0
        %v5364 = vadd.f32 %v5015, %v5363
        %v5365 = vpop.f32.mrb[0].mxu0
        %5366 = vmatprep.mubr.f32.mxu0 0.0
        %5367 = vmatmul.mubr.f32.gmra.mrb[0].mxu0 %v3862
        %v5368 = vpop.f32.mrb[0].mxu0
        %v5369 = vadd.f32 %v5015, %v5368
        %v5370 = vpop.f32.mrb[0].mxu0
        %5371 = vmatprep.mubr.f32.mxu0 0.0
        %5372 = vmatmul.mubr.f32.gmra.mrb[0].mxu0 %v3863
        %v5373 = vpop.f32.mrb[0].mxu0
        %v5374 = vadd.f32 %v5015, %v5373
        %v5375 = vpop.f32.mrb[0].mxu0
        %5376 = vmatprep.mubr.f32.mxu0 0.0
        %5377 = vmatmul.mubr.f32.gmra.mrb[0].mxu0 %v3864
        %v5378 = vpop.f32.mrb[0].mxu0
        %v5379 = vadd.f32 %v5015, %v5378
        %v5380 = vpop.f32.mrb[0].mxu0
        %5381 = vmatprep.mubr.f32.mxu0 0.0
        %5382 = vmatmul.mubr.f32.gmra.mrb[0].mxu0 %v3865
        %v5383 = vpop.f32.mrb[0].mxu0
        %v5384 = vadd.f32 %v5015, %v5383
        %v5385 = vpop.f32.mrb[0].mxu0
        %5386 = vmatprep.mubr.f32.mxu0 0.0
        %5387 = vmatmul.mubr.f32.gmra.mrb[0].mxu0 %v3866
        %v5388 = vpop.f32.mrb[0].mxu0
        %v5389 = vadd.f32 %v5015, %v5388
        %v5390 = vpop.f32.mrb[0].mxu0
        %5391 = vmatprep.mubr.f32.mxu0 0.0
        %5392 = vmatmul.mubr.f32.gmra.mrb[0].mxu0 %v3867
        %v5393 = vpop.f32.mrb[0].mxu0
        %v5394 = vadd.f32 %v5015, %v5393
        %v5395 = vpop.f32.mrb[0].mxu0
        %5396 = vmatprep.mubr.f32.mxu0 0.0
        %5397 = vmatmul.mubr.f32.gmra.mrb[0].mxu0 %v3868
        %v5398 = vpop.f32.mrb[0].mxu0
        %v5399 = vadd.f32 %v5015, %v5398
        %v5400 = vpop.f32.mrb[0].mxu0
        %5401 = vdwg.mxu0
        %v5402 = vmax.f32 %v5084, 0.0
        %v5403 = vmax.f32 %v5089, 0.0
        %v5404 = vmax.f32 %v5094, 0.0
        %v5405 = vmax.f32 %v5099, 0.0
        %v5406 = vmax.f32 %v5104, 0.0
        %v5407 = vmax.f32 %v5109, 0.0
        %v5408 = vmax.f32 %v5114, 0.0
        %v5409 = vmax.f32 %v5119, 0.0
        %v5410 = vmax.f32 %v5124, 0.0
        %v5411 = vmax.f32 %v5129, 0.0
        %v5412 = vmax.f32 %v5134, 0.0
        %v5413 = vmax.f32 %v5139, 0.0
        %v5414 = vmax.f32 %v5144, 0.0
        %v5415 = vmax.f32 %v5149, 0.0
        %v5416 = vmax.f32 %v5154, 0.0
        %v5417 = vmax.f32 %v5159, 0.0
        %v5418 = vmax.f32 %v5164, 0.0
        %v5419 = vmax.f32 %v5169, 0.0
        %v5420 = vmax.f32 %v5174, 0.0
        %v5421 = vmax.f32 %v5179, 0.0
        %v5422 = vmax.f32 %v5184, 0.0
        %v5423 = vmax.f32 %v5189, 0.0
        %v5424 = vmax.f32 %v5194, 0.0
        %v5425 = vmax.f32 %v5199, 0.0
        %v5426 = vmax.f32 %v5204, 0.0
        %v5427 = vmax.f32 %v5209, 0.0
        %v5428 = vmax.f32 %v5214, 0.0
        %v5429 = vmax.f32 %v5219, 0.0
        %v5430 = vmax.f32 %v5224, 0.0
        %v5431 = vmax.f32 %v5229, 0.0
        %v5432 = vmax.f32 %v5234, 0.0
        %v5433 = vmax.f32 %v5239, 0.0
        %v5434 = vmax.f32 %v5244, 0.0
        %v5435 = vmax.f32 %v5249, 0.0
        %v5436 = vmax.f32 %v5254, 0.0
        %v5437 = vmax.f32 %v5259, 0.0
        %v5438 = vmax.f32 %v5264, 0.0
        %v5439 = vmax.f32 %v5269, 0.0
        %v5440 = vmax.f32 %v5274, 0.0
        %v5441 = vmax.f32 %v5279, 0.0
        %v5442 = vmax.f32 %v5284, 0.0
        %v5443 = vmax.f32 %v5289, 0.0
        %v5444 = vmax.f32 %v5294, 0.0
        %v5445 = vmax.f32 %v5299, 0.0
        %v5446 = vmax.f32 %v5304, 0.0
        %v5447 = vmax.f32 %v5309, 0.0
        %v5448 = vmax.f32 %v5314, 0.0
        %v5449 = vmax.f32 %v5319, 0.0
        %v5450 = vmax.f32 %v5324, 0.0
        %v5451 = vmax.f32 %v5329, 0.0
        %v5452 = vmax.f32 %v5334, 0.0
        %v5453 = vmax.f32 %v5339, 0.0
        %v5454 = vmax.f32 %v5344, 0.0
        %v5455 = vmax.f32 %v5349, 0.0
        %v5456 = vmax.f32 %v5354, 0.0
        %v5457 = vmax.f32 %v5359, 0.0
        %v5458 = vmax.f32 %v5364, 0.0
        %v5459 = vmax.f32 %v5369, 0.0
        %v5460 = vmax.f32 %v5374, 0.0
        %v5461 = vmax.f32 %v5379, 0.0
        %v5462 = vmax.f32 %v5384, 0.0
        %v5463 = vmax.f32 %v5389, 0.0
        %v5464 = vmax.f32 %v5394, 0.0
        %v5465 = vmax.f32 %v5399, 0.0
        %v5466 = vld [vmem:[%s12] sm:$0xff]
        %v5467 = vld [vmem:[%s12 + $0x8] sm:$0xff]
        %v5468 = vld [vmem:[%s12 + $0x10] sm:$0xff]
        %v5469 = vld [vmem:[%s12 + $0x18] sm:$0xff]
        %v5470 = vld [vmem:[%s13] sm:$0x1]
        %v5472 = vlaneseq
        %v5473 = vshrl.u32 %v5472, 7
        %v5474 = vsub.s32 0, %v5473
        %v5475 = vrot.slane %v5470, %v5474
        %v5478 = vsel %vm4352, %v5402, 0
        %v5481 = vsel %vm4352, %v5403, 0
        %v5484 = vsel %vm4352, %v5404, 0
        %v5487 = vsel %vm4352, %v5405, 0
        %v5490 = vsel %vm4352, %v5406, 0
        %v5493 = vsel %vm4352, %v5407, 0
        %v5496 = vsel %vm4352, %v5408, 0
        %v5499 = vsel %vm4352, %v5409, 0
        %v5502 = vsel %vm4352, %v5410, 0
        %v5505 = vsel %vm4352, %v5411, 0
        %v5508 = vsel %vm4352, %v5412, 0
        %v5511 = vsel %vm4352, %v5413, 0
        %v5514 = vsel %vm4352, %v5414, 0
        %v5517 = vsel %vm4352, %v5415, 0
        %v5520 = vsel %vm4352, %v5416, 0
        %v5523 = vsel %vm4352, %v5417, 0
        %v5526 = vsel %vm4352, %v5418, 0
        %v5529 = vsel %vm4352, %v5419, 0
        %v5532 = vsel %vm4352, %v5420, 0
        %v5535 = vsel %vm4352, %v5421, 0
        %v5538 = vsel %vm4352, %v5422, 0
        %v5541 = vsel %vm4352, %v5423, 0
        %v5544 = vsel %vm4352, %v5424, 0
        %v5547 = vsel %vm4352, %v5425, 0
        %v5550 = vsel %vm4352, %v5426, 0
        %v5553 = vsel %vm4352, %v5427, 0
        %v5556 = vsel %vm4352, %v5428, 0
        %v5559 = vsel %vm4352, %v5429, 0
        %v5562 = vsel %vm4352, %v5430, 0
        %v5565 = vsel %vm4352, %v5431, 0
        %v5568 = vsel %vm4352, %v5432, 0
        %v5571 = vsel %vm4352, %v5433, 0
        %v5574 = vsel %vm4352, %v5434, 0
        %v5577 = vsel %vm4352, %v5435, 0
        %v5580 = vsel %vm4352, %v5436, 0
        %v5583 = vsel %vm4352, %v5437, 0
        %v5586 = vsel %vm4352, %v5438, 0
        %v5589 = vsel %vm4352, %v5439, 0
        %v5592 = vsel %vm4352, %v5440, 0
        %v5595 = vsel %vm4352, %v5441, 0
        %v5598 = vsel %vm4352, %v5442, 0
        %v5601 = vsel %vm4352, %v5443, 0
        %v5604 = vsel %vm4352, %v5444, 0
        %v5607 = vsel %vm4352, %v5445, 0
        %v5610 = vsel %vm4352, %v5446, 0
        %v5613 = vsel %vm4352, %v5447, 0
        %v5616 = vsel %vm4352, %v5448, 0
        %v5619 = vsel %vm4352, %v5449, 0
        %v5622 = vsel %vm4352, %v5450, 0
        %v5625 = vsel %vm4352, %v5451, 0
        %v5628 = vsel %vm4352, %v5452, 0
        %v5631 = vsel %vm4352, %v5453, 0
        %v5634 = vsel %vm4352, %v5454, 0
        %v5637 = vsel %vm4352, %v5455, 0
        %v5640 = vsel %vm4352, %v5456, 0
        %v5643 = vsel %vm4352, %v5457, 0
        %v5646 = vsel %vm4352, %v5458, 0
        %v5649 = vsel %vm4352, %v5459, 0
        %v5652 = vsel %vm4352, %v5460, 0
        %v5655 = vsel %vm4352, %v5461, 0
        %v5658 = vsel %vm4352, %v5462, 0
        %v5661 = vsel %vm4352, %v5463, 0
        %v5664 = vsel %vm4352, %v5464, 0
        %v5667 = vsel %vm4352, %v5465, 0
        %5669 = vmatprep.subr.mxu0 0.0
        %5670 = vmatpush1.msra.mxu0 %v5466
        %5671 = vmatprep.subr.mxu0 0.0
        %5672 = vmatpush1.msra.mxu0 %v5467
        %5673 = vmatprep.subr.mxu0 0.0
        %5674 = vmatpush1.msra.mxu0 %v5468
        %5675 = vmatprep.subr.mxu0 0.0
        %5676 = vmatpush1.msra.mxu0 %v5469
        %5677 = vmatprep.subr.mxu0 0.0
        %5678 = vmatpush1.msra.mxu0 0.0
        %5679 = vmatprep.subr.mxu0 0.0
        %5680 = vmatpush1.msra.mxu0 0.0
        %5681 = vmatprep.subr.mxu0 0.0
        %5682 = vmatpush1.msra.mxu0 0.0
        %5683 = vmatprep.subr.mxu0 0.0
        %5684 = vmatpush1.msra.mxu0 0.0
        %5685 = vmatprep.subr.mxu0 0.0
        %5686 = vmatpush1.msra.mxu0 0.0
        %5687 = vmatprep.subr.mxu0 0.0
        %5688 = vmatpush1.msra.mxu0 0.0
        %5689 = vmatprep.subr.mxu0 0.0
        %5690 = vmatpush1.msra.mxu0 0.0
        %5691 = vmatprep.subr.mxu0 0.0
        %5692 = vmatpush1.msra.mxu0 0.0
        %5693 = vmatprep.subr.mxu0 0.0
        %5694 = vmatpush1.msra.mxu0 0.0
        %5695 = vmatprep.subr.mxu0 0.0
        %5696 = vmatpush1.msra.mxu0 0.0
        %5697 = vmatprep.subr.mxu0 0.0
        %5698 = vmatpush1.msra.mxu0 0.0
        %5699 = vmatprep.subr.mxu0 0.0
        %5700 = vmatpush1.msra.mxu0 0.0
        %5701 = vmatprep.subr.mxu0 0.0
        %5702 = vmatpush1.msra.mxu0 0.0
        %5703 = vmatprep.subr.mxu0 0.0
        %5704 = vmatpush1.msra.mxu0 0.0
        %5705 = vmatprep.subr.mxu0 0.0
        %5706 = vmatpush1.msra.mxu0 0.0
        %5707 = vmatprep.subr.mxu0 0.0
        %5708 = vmatpush1.msra.mxu0 0.0
        %5709 = vmatprep.subr.mxu0 0.0
        %5710 = vmatpush1.msra.mxu0 0.0
        %5711 = vmatprep.subr.mxu0 0.0
        %5712 = vmatpush1.msra.mxu0 0.0
        %5713 = vmatprep.subr.mxu0 0.0
        %5714 = vmatpush1.msra.mxu0 0.0
        %5715 = vmatprep.subr.mxu0 0.0
        %5716 = vmatpush1.msra.mxu0 0.0
        %5717 = vmatprep.subr.mxu0 0.0
        %5718 = vmatpush1.msra.mxu0 0.0
        %5719 = vmatprep.subr.mxu0 0.0
        %5720 = vmatpush1.msra.mxu0 0.0
        %5721 = vmatprep.subr.mxu0 0.0
        %5722 = vmatpush1.msra.mxu0 0.0
        %5723 = vmatprep.subr.mxu0 0.0
        %5724 = vmatpush1.msra.mxu0 0.0
        %5725 = vmatprep.subr.mxu0 0.0
        %5726 = vmatpush1.msra.mxu0 0.0
        %5727 = vmatprep.subr.mxu0 0.0
        %5728 = vmatpush1.msra.mxu0 0.0
        %5729 = vmatprep.subr.mxu0 0.0
        %5730 = vmatpush1.msra.mxu0 0.0
        %5731 = vmatprep.subr.mxu0 0.0
        %5732 = vmatpush1.msra.mxu0 0.0
        %5733 = vmatprep.mubr.f32.mxu0 0.0
        %5734 = vmatmul.mubr.f32.gmra.mrb[0].mxu0 %v5478
        %v5735 = vpop.f32.mrb[0].mxu0
        %v5736 = vadd.f32 %v5475, %v5735
        %v5737 = vpop.f32.mrb[0].mxu0
        %5738 = vmatprep.mubr.f32.mxu0 0.0
        %5739 = vmatmul.mubr.f32.gmra.mrb[0].mxu0 %v5481
        %v5740 = vpop.f32.mrb[0].mxu0
        %v5741 = vadd.f32 %v5475, %v5740
        %v5742 = vpop.f32.mrb[0].mxu0
        %5743 = vmatprep.mubr.f32.mxu0 0.0
        %5744 = vmatmul.mubr.f32.gmra.mrb[0].mxu0 %v5484
        %v5745 = vpop.f32.mrb[0].mxu0
        %v5746 = vadd.f32 %v5475, %v5745
        %v5747 = vpop.f32.mrb[0].mxu0
        %5748 = vmatprep.mubr.f32.mxu0 0.0
        %5749 = vmatmul.mubr.f32.gmra.mrb[0].mxu0 %v5487
        %v5750 = vpop.f32.mrb[0].mxu0
        %v5751 = vadd.f32 %v5475, %v5750
        %v5752 = vpop.f32.mrb[0].mxu0
        %5753 = vmatprep.mubr.f32.mxu0 0.0
        %5754 = vmatmul.mubr.f32.gmra.mrb[0].mxu0 %v5490
        %v5755 = vpop.f32.mrb[0].mxu0
        %v5756 = vadd.f32 %v5475, %v5755
        %v5757 = vpop.f32.mrb[0].mxu0
        %5758 = vmatprep.mubr.f32.mxu0 0.0
        %5759 = vmatmul.mubr.f32.gmra.mrb[0].mxu0 %v5493
        %v5760 = vpop.f32.mrb[0].mxu0
        %v5761 = vadd.f32 %v5475, %v5760
        %v5762 = vpop.f32.mrb[0].mxu0
        %5763 = vmatprep.mubr.f32.mxu0 0.0
        %5764 = vmatmul.mubr.f32.gmra.mrb[0].mxu0 %v5496
        %v5765 = vpop.f32.mrb[0].mxu0
        %v5766 = vadd.f32 %v5475, %v5765
        %v5767 = vpop.f32.mrb[0].mxu0
        %5768 = vmatprep.mubr.f32.mxu0 0.0
        %5769 = vmatmul.mubr.f32.gmra.mrb[0].mxu0 %v5499
        %v5770 = vpop.f32.mrb[0].mxu0
        %v5771 = vadd.f32 %v5475, %v5770
        %v5772 = vpop.f32.mrb[0].mxu0
        %5773 = vmatprep.mubr.f32.mxu0 0.0
        %5774 = vmatmul.mubr.f32.gmra.mrb[0].mxu0 %v5502
        %v5775 = vpop.f32.mrb[0].mxu0
        %v5776 = vadd.f32 %v5475, %v5775
        %v5777 = vpop.f32.mrb[0].mxu0
        %5778 = vmatprep.mubr.f32.mxu0 0.0
        %5779 = vmatmul.mubr.f32.gmra.mrb[0].mxu0 %v5505
        %v5780 = vpop.f32.mrb[0].mxu0
        %v5781 = vadd.f32 %v5475, %v5780
        %v5782 = vpop.f32.mrb[0].mxu0
        %5783 = vmatprep.mubr.f32.mxu0 0.0
        %5784 = vmatmul.mubr.f32.gmra.mrb[0].mxu0 %v5508
        %v5785 = vpop.f32.mrb[0].mxu0
        %v5786 = vadd.f32 %v5475, %v5785
        %v5787 = vpop.f32.mrb[0].mxu0
        %5788 = vmatprep.mubr.f32.mxu0 0.0
        %5789 = vmatmul.mubr.f32.gmra.mrb[0].mxu0 %v5511
        %v5790 = vpop.f32.mrb[0].mxu0
        %v5791 = vadd.f32 %v5475, %v5790
        %v5792 = vpop.f32.mrb[0].mxu0
        %5793 = vmatprep.mubr.f32.mxu0 0.0
        %5794 = vmatmul.mubr.f32.gmra.mrb[0].mxu0 %v5514
        %v5795 = vpop.f32.mrb[0].mxu0
        %v5796 = vadd.f32 %v5475, %v5795
        %v5797 = vpop.f32.mrb[0].mxu0
        %5798 = vmatprep.mubr.f32.mxu0 0.0
        %5799 = vmatmul.mubr.f32.gmra.mrb[0].mxu0 %v5517
        %v5800 = vpop.f32.mrb[0].mxu0
        %v5801 = vadd.f32 %v5475, %v5800
        %v5802 = vpop.f32.mrb[0].mxu0
        %5803 = vmatprep.mubr.f32.mxu0 0.0
        %5804 = vmatmul.mubr.f32.gmra.mrb[0].mxu0 %v5520
        %v5805 = vpop.f32.mrb[0].mxu0
        %v5806 = vadd.f32 %v5475, %v5805
        %v5807 = vpop.f32.mrb[0].mxu0
        %5808 = vmatprep.mubr.f32.mxu0 0.0
        %5809 = vmatmul.mubr.f32.gmra.mrb[0].mxu0 %v5523
        %v5810 = vpop.f32.mrb[0].mxu0
        %v5811 = vadd.f32 %v5475, %v5810
        %v5812 = vpop.f32.mrb[0].mxu0
        %5813 = vmatprep.mubr.f32.mxu0 0.0
        %5814 = vmatmul.mubr.f32.gmra.mrb[0].mxu0 %v5526
        %v5815 = vpop.f32.mrb[0].mxu0
        %v5816 = vadd.f32 %v5475, %v5815
        %v5817 = vpop.f32.mrb[0].mxu0
        %5818 = vmatprep.mubr.f32.mxu0 0.0
        %5819 = vmatmul.mubr.f32.gmra.mrb[0].mxu0 %v5529
        %v5820 = vpop.f32.mrb[0].mxu0
        %v5821 = vadd.f32 %v5475, %v5820
        %v5822 = vpop.f32.mrb[0].mxu0
        %5823 = vmatprep.mubr.f32.mxu0 0.0
        %5824 = vmatmul.mubr.f32.gmra.mrb[0].mxu0 %v5532
        %v5825 = vpop.f32.mrb[0].mxu0
        %v5826 = vadd.f32 %v5475, %v5825
        %v5827 = vpop.f32.mrb[0].mxu0
        %5828 = vmatprep.mubr.f32.mxu0 0.0
        %5829 = vmatmul.mubr.f32.gmra.mrb[0].mxu0 %v5535
        %v5830 = vpop.f32.mrb[0].mxu0
        %v5831 = vadd.f32 %v5475, %v5830
        %v5832 = vpop.f32.mrb[0].mxu0
        %5833 = vmatprep.mubr.f32.mxu0 0.0
        %5834 = vmatmul.mubr.f32.gmra.mrb[0].mxu0 %v5538
        %v5835 = vpop.f32.mrb[0].mxu0
        %v5836 = vadd.f32 %v5475, %v5835
        %v5837 = vpop.f32.mrb[0].mxu0
        %5838 = vmatprep.mubr.f32.mxu0 0.0
        %5839 = vmatmul.mubr.f32.gmra.mrb[0].mxu0 %v5541
        %v5840 = vpop.f32.mrb[0].mxu0
        %v5841 = vadd.f32 %v5475, %v5840
        %v5842 = vpop.f32.mrb[0].mxu0
        %5843 = vmatprep.mubr.f32.mxu0 0.0
        %5844 = vmatmul.mubr.f32.gmra.mrb[0].mxu0 %v5544
        %v5845 = vpop.f32.mrb[0].mxu0
        %v5846 = vadd.f32 %v5475, %v5845
        %v5847 = vpop.f32.mrb[0].mxu0
        %5848 = vmatprep.mubr.f32.mxu0 0.0
        %5849 = vmatmul.mubr.f32.gmra.mrb[0].mxu0 %v5547
        %v5850 = vpop.f32.mrb[0].mxu0
        %v5851 = vadd.f32 %v5475, %v5850
        %v5852 = vpop.f32.mrb[0].mxu0
        %5853 = vmatprep.mubr.f32.mxu0 0.0
        %5854 = vmatmul.mubr.f32.gmra.mrb[0].mxu0 %v5550
        %v5855 = vpop.f32.mrb[0].mxu0
        %v5856 = vadd.f32 %v5475, %v5855
        %v5857 = vpop.f32.mrb[0].mxu0
        %5858 = vmatprep.mubr.f32.mxu0 0.0
        %5859 = vmatmul.mubr.f32.gmra.mrb[0].mxu0 %v5553
        %v5860 = vpop.f32.mrb[0].mxu0
        %v5861 = vadd.f32 %v5475, %v5860
        %v5862 = vpop.f32.mrb[0].mxu0
        %5863 = vmatprep.mubr.f32.mxu0 0.0
        %5864 = vmatmul.mubr.f32.gmra.mrb[0].mxu0 %v5556
        %v5865 = vpop.f32.mrb[0].mxu0
        %v5866 = vadd.f32 %v5475, %v5865
        %v5867 = vpop.f32.mrb[0].mxu0
        %5868 = vmatprep.mubr.f32.mxu0 0.0
        %5869 = vmatmul.mubr.f32.gmra.mrb[0].mxu0 %v5559
        %v5870 = vpop.f32.mrb[0].mxu0
        %v5871 = vadd.f32 %v5475, %v5870
        %v5872 = vpop.f32.mrb[0].mxu0
        %5873 = vmatprep.mubr.f32.mxu0 0.0
        %5874 = vmatmul.mubr.f32.gmra.mrb[0].mxu0 %v5562
        %v5875 = vpop.f32.mrb[0].mxu0
        %v5876 = vadd.f32 %v5475, %v5875
        %v5877 = vpop.f32.mrb[0].mxu0
        %5878 = vmatprep.mubr.f32.mxu0 0.0
        %5879 = vmatmul.mubr.f32.gmra.mrb[0].mxu0 %v5565
        %v5880 = vpop.f32.mrb[0].mxu0
        %v5881 = vadd.f32 %v5475, %v5880
        %v5882 = vpop.f32.mrb[0].mxu0
        %5883 = vmatprep.mubr.f32.mxu0 0.0
        %5884 = vmatmul.mubr.f32.gmra.mrb[0].mxu0 %v5568
        %v5885 = vpop.f32.mrb[0].mxu0
        %v5886 = vadd.f32 %v5475, %v5885
        %v5887 = vpop.f32.mrb[0].mxu0
        %5888 = vmatprep.mubr.f32.mxu0 0.0
        %5889 = vmatmul.mubr.f32.gmra.mrb[0].mxu0 %v5571
        %v5890 = vpop.f32.mrb[0].mxu0
        %v5891 = vadd.f32 %v5475, %v5890
        %v5892 = vpop.f32.mrb[0].mxu0
        %5893 = vmatprep.mubr.f32.mxu0 0.0
        %5894 = vmatmul.mubr.f32.gmra.mrb[0].mxu0 %v5574
        %v5895 = vpop.f32.mrb[0].mxu0
        %v5896 = vadd.f32 %v5475, %v5895
        %v5897 = vpop.f32.mrb[0].mxu0
        %5898 = vmatprep.mubr.f32.mxu0 0.0
        %5899 = vmatmul.mubr.f32.gmra.mrb[0].mxu0 %v5577
        %v5900 = vpop.f32.mrb[0].mxu0
        %v5901 = vadd.f32 %v5475, %v5900
        %v5902 = vpop.f32.mrb[0].mxu0
        %5903 = vmatprep.mubr.f32.mxu0 0.0
        %5904 = vmatmul.mubr.f32.gmra.mrb[0].mxu0 %v5580
        %v5905 = vpop.f32.mrb[0].mxu0
        %v5906 = vadd.f32 %v5475, %v5905
        %v5907 = vpop.f32.mrb[0].mxu0
        %5908 = vmatprep.mubr.f32.mxu0 0.0
        %5909 = vmatmul.mubr.f32.gmra.mrb[0].mxu0 %v5583
        %v5910 = vpop.f32.mrb[0].mxu0
        %v5911 = vadd.f32 %v5475, %v5910
        %v5912 = vpop.f32.mrb[0].mxu0
        %5913 = vmatprep.mubr.f32.mxu0 0.0
        %5914 = vmatmul.mubr.f32.gmra.mrb[0].mxu0 %v5586
        %v5915 = vpop.f32.mrb[0].mxu0
        %v5916 = vadd.f32 %v5475, %v5915
        %v5917 = vpop.f32.mrb[0].mxu0
        %5918 = vmatprep.mubr.f32.mxu0 0.0
        %5919 = vmatmul.mubr.f32.gmra.mrb[0].mxu0 %v5589
        %v5920 = vpop.f32.mrb[0].mxu0
        %v5921 = vadd.f32 %v5475, %v5920
        %v5922 = vpop.f32.mrb[0].mxu0
        %5923 = vmatprep.mubr.f32.mxu0 0.0
        %5924 = vmatmul.mubr.f32.gmra.mrb[0].mxu0 %v5592
        %v5925 = vpop.f32.mrb[0].mxu0
        %v5926 = vadd.f32 %v5475, %v5925
        %v5927 = vpop.f32.mrb[0].mxu0
        %5928 = vmatprep.mubr.f32.mxu0 0.0
        %5929 = vmatmul.mubr.f32.gmra.mrb[0].mxu0 %v5595
        %v5930 = vpop.f32.mrb[0].mxu0
        %v5931 = vadd.f32 %v5475, %v5930
        %v5932 = vpop.f32.mrb[0].mxu0
        %5933 = vmatprep.mubr.f32.mxu0 0.0
        %5934 = vmatmul.mubr.f32.gmra.mrb[0].mxu0 %v5598
        %v5935 = vpop.f32.mrb[0].mxu0
        %v5936 = vadd.f32 %v5475, %v5935
        %v5937 = vpop.f32.mrb[0].mxu0
        %5938 = vmatprep.mubr.f32.mxu0 0.0
        %5939 = vmatmul.mubr.f32.gmra.mrb[0].mxu0 %v5601
        %v5940 = vpop.f32.mrb[0].mxu0
        %v5941 = vadd.f32 %v5475, %v5940
        %v5942 = vpop.f32.mrb[0].mxu0
        %5943 = vmatprep.mubr.f32.mxu0 0.0
        %5944 = vmatmul.mubr.f32.gmra.mrb[0].mxu0 %v5604
        %v5945 = vpop.f32.mrb[0].mxu0
        %v5946 = vadd.f32 %v5475, %v5945
        %v5947 = vpop.f32.mrb[0].mxu0
        %5948 = vmatprep.mubr.f32.mxu0 0.0
        %5949 = vmatmul.mubr.f32.gmra.mrb[0].mxu0 %v5607
        %v5950 = vpop.f32.mrb[0].mxu0
        %v5951 = vadd.f32 %v5475, %v5950
        %v5952 = vpop.f32.mrb[0].mxu0
        %5953 = vmatprep.mubr.f32.mxu0 0.0
        %5954 = vmatmul.mubr.f32.gmra.mrb[0].mxu0 %v5610
        %v5955 = vpop.f32.mrb[0].mxu0
        %v5956 = vadd.f32 %v5475, %v5955
        %v5957 = vpop.f32.mrb[0].mxu0
        %5958 = vmatprep.mubr.f32.mxu0 0.0
        %5959 = vmatmul.mubr.f32.gmra.mrb[0].mxu0 %v5613
        %v5960 = vpop.f32.mrb[0].mxu0
        %v5961 = vadd.f32 %v5475, %v5960
        %v5962 = vpop.f32.mrb[0].mxu0
        %5963 = vmatprep.mubr.f32.mxu0 0.0
        %5964 = vmatmul.mubr.f32.gmra.mrb[0].mxu0 %v5616
        %v5965 = vpop.f32.mrb[0].mxu0
        %v5966 = vadd.f32 %v5475, %v5965
        %v5967 = vpop.f32.mrb[0].mxu0
        %5968 = vmatprep.mubr.f32.mxu0 0.0
        %5969 = vmatmul.mubr.f32.gmra.mrb[0].mxu0 %v5619
        %v5970 = vpop.f32.mrb[0].mxu0
        %v5971 = vadd.f32 %v5475, %v5970
        %v5972 = vpop.f32.mrb[0].mxu0
        %5973 = vmatprep.mubr.f32.mxu0 0.0
        %5974 = vmatmul.mubr.f32.gmra.mrb[0].mxu0 %v5622
        %v5975 = vpop.f32.mrb[0].mxu0
        %v5976 = vadd.f32 %v5475, %v5975
        %v5977 = vpop.f32.mrb[0].mxu0
        %5978 = vmatprep.mubr.f32.mxu0 0.0
        %5979 = vmatmul.mubr.f32.gmra.mrb[0].mxu0 %v5625
        %v5980 = vpop.f32.mrb[0].mxu0
        %v5981 = vadd.f32 %v5475, %v5980
        %v5982 = vpop.f32.mrb[0].mxu0
        %5983 = vmatprep.mubr.f32.mxu0 0.0
        %5984 = vmatmul.mubr.f32.gmra.mrb[0].mxu0 %v5628
        %v5985 = vpop.f32.mrb[0].mxu0
        %v5986 = vadd.f32 %v5475, %v5985
        %v5987 = vpop.f32.mrb[0].mxu0
        %5988 = vmatprep.mubr.f32.mxu0 0.0
        %5989 = vmatmul.mubr.f32.gmra.mrb[0].mxu0 %v5631
        %v5990 = vpop.f32.mrb[0].mxu0
        %v5991 = vadd.f32 %v5475, %v5990
        %v5992 = vpop.f32.mrb[0].mxu0
        %5993 = vmatprep.mubr.f32.mxu0 0.0
        %5994 = vmatmul.mubr.f32.gmra.mrb[0].mxu0 %v5634
        %v5995 = vpop.f32.mrb[0].mxu0
        %v5996 = vadd.f32 %v5475, %v5995
        %v5997 = vpop.f32.mrb[0].mxu0
        %5998 = vmatprep.mubr.f32.mxu0 0.0
        %5999 = vmatmul.mubr.f32.gmra.mrb[0].mxu0 %v5637
        %v6000 = vpop.f32.mrb[0].mxu0
        %v6001 = vadd.f32 %v5475, %v6000
        %v6002 = vpop.f32.mrb[0].mxu0
        %6003 = vmatprep.mubr.f32.mxu0 0.0
        %6004 = vmatmul.mubr.f32.gmra.mrb[0].mxu0 %v5640
        %v6005 = vpop.f32.mrb[0].mxu0
        %v6006 = vadd.f32 %v5475, %v6005
        %v6007 = vpop.f32.mrb[0].mxu0
        %6008 = vmatprep.mubr.f32.mxu0 0.0
        %6009 = vmatmul.mubr.f32.gmra.mrb[0].mxu0 %v5643
        %v6010 = vpop.f32.mrb[0].mxu0
        %v6011 = vadd.f32 %v5475, %v6010
        %v6012 = vpop.f32.mrb[0].mxu0
        %6013 = vmatprep.mubr.f32.mxu0 0.0
        %6014 = vmatmul.mubr.f32.gmra.mrb[0].mxu0 %v5646
        %v6015 = vpop.f32.mrb[0].mxu0
        %v6016 = vadd.f32 %v5475, %v6015
        %v6017 = vpop.f32.mrb[0].mxu0
        %6018 = vmatprep.mubr.f32.mxu0 0.0
        %6019 = vmatmul.mubr.f32.gmra.mrb[0].mxu0 %v5649
        %v6020 = vpop.f32.mrb[0].mxu0
        %v6021 = vadd.f32 %v5475, %v6020
        %v6022 = vpop.f32.mrb[0].mxu0
        %6023 = vmatprep.mubr.f32.mxu0 0.0
        %6024 = vmatmul.mubr.f32.gmra.mrb[0].mxu0 %v5652
        %v6025 = vpop.f32.mrb[0].mxu0
        %v6026 = vadd.f32 %v5475, %v6025
        %v6027 = vpop.f32.mrb[0].mxu0
        %6028 = vmatprep.mubr.f32.mxu0 0.0
        %6029 = vmatmul.mubr.f32.gmra.mrb[0].mxu0 %v5655
        %v6030 = vpop.f32.mrb[0].mxu0
        %v6031 = vadd.f32 %v5475, %v6030
        %v6032 = vpop.f32.mrb[0].mxu0
        %6033 = vmatprep.mubr.f32.mxu0 0.0
        %6034 = vmatmul.mubr.f32.gmra.mrb[0].mxu0 %v5658
        %v6035 = vpop.f32.mrb[0].mxu0
        %v6036 = vadd.f32 %v5475, %v6035
        %v6037 = vpop.f32.mrb[0].mxu0
        %6038 = vmatprep.mubr.f32.mxu0 0.0
        %6039 = vmatmul.mubr.f32.gmra.mrb[0].mxu0 %v5661
        %v6040 = vpop.f32.mrb[0].mxu0
        %v6041 = vadd.f32 %v5475, %v6040
        %v6042 = vpop.f32.mrb[0].mxu0
        %6043 = vmatprep.mubr.f32.mxu0 0.0
        %6044 = vmatmul.mubr.f32.gmra.mrb[0].mxu0 %v5664
        %v6045 = vpop.f32.mrb[0].mxu0
        %v6046 = vadd.f32 %v5475, %v6045
        %v6047 = vpop.f32.mrb[0].mxu0
        %6048 = vmatprep.mubr.f32.mxu0 0.0
        %6049 = vmatmul.mubr.f32.gmra.mrb[0].mxu0 %v5667
        %v6050 = vpop.f32.mrb[0].mxu0
        %v6051 = vadd.f32 %v5475, %v6050
        %v6052 = vpop.f32.mrb[0].mxu0
        %6053 = vdwg.mxu0
        %v6054 = vmax.f32 %v5736, 0.0
        %v6055 = vmax.f32 %v5741, 0.0
        %v6056 = vmax.f32 %v5746, 0.0
        %v6057 = vmax.f32 %v5751, 0.0
        %v6058 = vmax.f32 %v5756, 0.0
        %v6059 = vmax.f32 %v5761, 0.0
        %v6060 = vmax.f32 %v5766, 0.0
        %v6061 = vmax.f32 %v5771, 0.0
        %v6062 = vmax.f32 %v5776, 0.0
        %v6063 = vmax.f32 %v5781, 0.0
        %v6064 = vmax.f32 %v5786, 0.0
        %v6065 = vmax.f32 %v5791, 0.0
        %v6066 = vmax.f32 %v5796, 0.0
        %v6067 = vmax.f32 %v5801, 0.0
        %v6068 = vmax.f32 %v5806, 0.0
        %v6069 = vmax.f32 %v5811, 0.0
        %v6070 = vmax.f32 %v5816, 0.0
        %v6071 = vmax.f32 %v5821, 0.0
        %v6072 = vmax.f32 %v5826, 0.0
        %v6073 = vmax.f32 %v5831, 0.0
        %v6074 = vmax.f32 %v5836, 0.0
        %v6075 = vmax.f32 %v5841, 0.0
        %v6076 = vmax.f32 %v5846, 0.0
        %v6077 = vmax.f32 %v5851, 0.0
        %v6078 = vmax.f32 %v5856, 0.0
        %v6079 = vmax.f32 %v5861, 0.0
        %v6080 = vmax.f32 %v5866, 0.0
        %v6081 = vmax.f32 %v5871, 0.0
        %v6082 = vmax.f32 %v5876, 0.0
        %v6083 = vmax.f32 %v5881, 0.0
        %v6084 = vmax.f32 %v5886, 0.0
        %v6085 = vmax.f32 %v5891, 0.0
        %v6086 = vmax.f32 %v5896, 0.0
        %v6087 = vmax.f32 %v5901, 0.0
        %v6088 = vmax.f32 %v5906, 0.0
        %v6089 = vmax.f32 %v5911, 0.0
        %v6090 = vmax.f32 %v5916, 0.0
        %v6091 = vmax.f32 %v5921, 0.0
        %v6092 = vmax.f32 %v5926, 0.0
        %v6093 = vmax.f32 %v5931, 0.0
        %v6094 = vmax.f32 %v5936, 0.0
        %v6095 = vmax.f32 %v5941, 0.0
        %v6096 = vmax.f32 %v5946, 0.0
        %v6097 = vmax.f32 %v5951, 0.0
        %v6098 = vmax.f32 %v5956, 0.0
        %v6099 = vmax.f32 %v5961, 0.0
        %v6100 = vmax.f32 %v5966, 0.0
        %v6101 = vmax.f32 %v5971, 0.0
        %v6102 = vmax.f32 %v5976, 0.0
        %v6103 = vmax.f32 %v5981, 0.0
        %v6104 = vmax.f32 %v5986, 0.0
        %v6105 = vmax.f32 %v5991, 0.0
        %v6106 = vmax.f32 %v5996, 0.0
        %v6107 = vmax.f32 %v6001, 0.0
        %v6108 = vmax.f32 %v6006, 0.0
        %v6109 = vmax.f32 %v6011, 0.0
        %v6110 = vmax.f32 %v6016, 0.0
        %v6111 = vmax.f32 %v6021, 0.0
        %v6112 = vmax.f32 %v6026, 0.0
        %v6113 = vmax.f32 %v6031, 0.0
        %v6114 = vmax.f32 %v6036, 0.0
        %v6115 = vmax.f32 %v6041, 0.0
        %v6116 = vmax.f32 %v6046, 0.0
        %v6117 = vmax.f32 %v6051, 0.0
        %v6118 = vmul.f32 %v2975, %v3295
        %v6119 = vmul.f32 %v2980, %v3300
        %v6120 = vmul.f32 %v2985, %v3305
        %v6121 = vmul.f32 %v2990, %v3310
        %v6122 = vmul.f32 %v2995, %v3315
        %v6123 = vmul.f32 %v3000, %v3320
        %v6124 = vmul.f32 %v3005, %v3325
        %v6125 = vmul.f32 %v3010, %v3330
        %v6126 = vmul.f32 %v3015, %v3335
        %v6127 = vmul.f32 %v3020, %v3340
        %v6128 = vmul.f32 %v3025, %v3345
        %v6129 = vmul.f32 %v3030, %v3350
        %v6130 = vmul.f32 %v3035, %v3355
        %v6131 = vmul.f32 %v3040, %v3360
        %v6132 = vmul.f32 %v3045, %v3365
        %v6133 = vmul.f32 %v3050, %v3370
        %v6134 = vmul.f32 %v3055, %v3375
        %v6135 = vmul.f32 %v3060, %v3380
        %v6136 = vmul.f32 %v3065, %v3385
        %v6137 = vmul.f32 %v3070, %v3390
        %v6138 = vmul.f32 %v3075, %v3395
        %v6139 = vmul.f32 %v3080, %v3400
        %v6140 = vmul.f32 %v3085, %v3405
        %v6141 = vmul.f32 %v3090, %v3410
        %v6142 = vmul.f32 %v3095, %v3415
        %v6143 = vmul.f32 %v3100, %v3420
        %v6144 = vmul.f32 %v3105, %v3425
        %v6145 = vmul.f32 %v3110, %v3430
        %v6146 = vmul.f32 %v3115, %v3435
        %v6147 = vmul.f32 %v3120, %v3440
        %v6148 = vmul.f32 %v3125, %v3445
        %v6149 = vmul.f32 %v3130, %v3450
        %v6150 = vmul.f32 %v3135, %v3455
        %v6151 = vmul.f32 %v3140, %v3460
        %v6152 = vmul.f32 %v3145, %v3465
        %v6153 = vmul.f32 %v3150, %v3470
        %v6154 = vmul.f32 %v3155, %v3475
        %v6155 = vmul.f32 %v3160, %v3480
        %v6156 = vmul.f32 %v3165, %v3485
        %v6157 = vmul.f32 %v3170, %v3490
        %v6158 = vmul.f32 %v3175, %v3495
        %v6159 = vmul.f32 %v3180, %v3500
        %v6160 = vmul.f32 %v3185, %v3505
        %v6161 = vmul.f32 %v3190, %v3510
        %v6162 = vmul.f32 %v3195, %v3515
        %v6163 = vmul.f32 %v3200, %v3520
        %v6164 = vmul.f32 %v3205, %v3525
        %v6165 = vmul.f32 %v3210, %v3530
        %v6166 = vmul.f32 %v3215, %v3535
        %v6167 = vmul.f32 %v3220, %v3540
        %v6168 = vmul.f32 %v3225, %v3545
        %v6169 = vmul.f32 %v3230, %v3550
        %v6170 = vmul.f32 %v3235, %v3555
        %v6171 = vmul.f32 %v3240, %v3560
        %v6172 = vmul.f32 %v3245, %v3565
        %v6173 = vmul.f32 %v3250, %v3570
        %v6174 = vmul.f32 %v3255, %v3575
        %v6175 = vmul.f32 %v3260, %v3580
        %v6176 = vmul.f32 %v3265, %v3585
        %v6177 = vmul.f32 %v3270, %v3590
        %v6178 = vmul.f32 %v3275, %v3595
        %v6179 = vmul.f32 %v3280, %v3600
        %v6180 = vmul.f32 %v3285, %v3605
        %v6181 = vmul.f32 %v3290, %v3610
        %v6182 = vld [vmem:[%s15] sm:$0xff]
        %v6183 = vld [vmem:[%s15 + $0x8] sm:$0xff]
        %v6184 = vld [vmem:[%s15 + $0x10] sm:$0xff]
        %v6185 = vld [vmem:[%s15 + $0x18] sm:$0xff]
        %v6186 = vld [vmem:[%s16] sm:$0x1]
        %v6188 = vlaneseq
        %v6189 = vshrl.u32 %v6188, 7
        %v6190 = vsub.s32 0, %v6189
        %v6191 = vrot.slane %v6186, %v6190
        %v6194 = vsel %vm4352, %v6118, 0
        %v6197 = vsel %vm4352, %v6119, 0
        %v6200 = vsel %vm4352, %v6120, 0
        %v6203 = vsel %vm4352, %v6121, 0
        %v6206 = vsel %vm4352, %v6122, 0
        %v6209 = vsel %vm4352, %v6123, 0
        %v6212 = vsel %vm4352, %v6124, 0
        %v6215 = vsel %vm4352, %v6125, 0
        %v6218 = vsel %vm4352, %v6126, 0
        %v6221 = vsel %vm4352, %v6127, 0
        %v6224 = vsel %vm4352, %v6128, 0
        %v6227 = vsel %vm4352, %v6129, 0
        %v6230 = vsel %vm4352, %v6130, 0
        %v6233 = vsel %vm4352, %v6131, 0
        %v6236 = vsel %vm4352, %v6132, 0
        %v6239 = vsel %vm4352, %v6133, 0
        %v6242 = vsel %vm4352, %v6134, 0
        %v6245 = vsel %vm4352, %v6135, 0
        %v6248 = vsel %vm4352, %v6136, 0
        %v6251 = vsel %vm4352, %v6137, 0
        %v6254 = vsel %vm4352, %v6138, 0
        %v6257 = vsel %vm4352, %v6139, 0
        %v6260 = vsel %vm4352, %v6140, 0
        %v6263 = vsel %vm4352, %v6141, 0
        %v6266 = vsel %vm4352, %v6142, 0
        %v6269 = vsel %vm4352, %v6143, 0
        %v6272 = vsel %vm4352, %v6144, 0
        %v6275 = vsel %vm4352, %v6145, 0
        %v6278 = vsel %vm4352, %v6146, 0
        %v6281 = vsel %vm4352, %v6147, 0
        %v6284 = vsel %vm4352, %v6148, 0
        %v6287 = vsel %vm4352, %v6149, 0
        %v6290 = vsel %vm4352, %v6150, 0
        %v6293 = vsel %vm4352, %v6151, 0
        %v6296 = vsel %vm4352, %v6152, 0
        %v6299 = vsel %vm4352, %v6153, 0
        %v6302 = vsel %vm4352, %v6154, 0
        %v6305 = vsel %vm4352, %v6155, 0
        %v6308 = vsel %vm4352, %v6156, 0
        %v6311 = vsel %vm4352, %v6157, 0
        %v6314 = vsel %vm4352, %v6158, 0
        %v6317 = vsel %vm4352, %v6159, 0
        %v6320 = vsel %vm4352, %v6160, 0
        %v6323 = vsel %vm4352, %v6161, 0
        %v6326 = vsel %vm4352, %v6162, 0
        %v6329 = vsel %vm4352, %v6163, 0
        %v6332 = vsel %vm4352, %v6164, 0
        %v6335 = vsel %vm4352, %v6165, 0
        %v6338 = vsel %vm4352, %v6166, 0
        %v6341 = vsel %vm4352, %v6167, 0
        %v6344 = vsel %vm4352, %v6168, 0
        %v6347 = vsel %vm4352, %v6169, 0
        %v6350 = vsel %vm4352, %v6170, 0
        %v6353 = vsel %vm4352, %v6171, 0
        %v6356 = vsel %vm4352, %v6172, 0
        %v6359 = vsel %vm4352, %v6173, 0
        %v6362 = vsel %vm4352, %v6174, 0
        %v6365 = vsel %vm4352, %v6175, 0
        %v6368 = vsel %vm4352, %v6176, 0
        %v6371 = vsel %vm4352, %v6177, 0
        %v6374 = vsel %vm4352, %v6178, 0
        %v6377 = vsel %vm4352, %v6179, 0
        %v6380 = vsel %vm4352, %v6180, 0
        %v6383 = vsel %vm4352, %v6181, 0
        %6385 = vmatprep.subr.mxu0 0.0
        %6386 = vmatpush1.msra.mxu0 %v6182
        %6387 = vmatprep.subr.mxu0 0.0
        %6388 = vmatpush1.msra.mxu0 %v6183
        %6389 = vmatprep.subr.mxu0 0.0
        %6390 = vmatpush1.msra.mxu0 %v6184
        %6391 = vmatprep.subr.mxu0 0.0
        %6392 = vmatpush1.msra.mxu0 %v6185
        %6393 = vmatprep.subr.mxu0 0.0
        %6394 = vmatpush1.msra.mxu0 0.0
        %6395 = vmatprep.subr.mxu0 0.0
        %6396 = vmatpush1.msra.mxu0 0.0
        %6397 = vmatprep.subr.mxu0 0.0
        %6398 = vmatpush1.msra.mxu0 0.0
        %6399 = vmatprep.subr.mxu0 0.0
        %6400 = vmatpush1.msra.mxu0 0.0
        %6401 = vmatprep.subr.mxu0 0.0
        %6402 = vmatpush1.msra.mxu0 0.0
        %6403 = vmatprep.subr.mxu0 0.0
        %6404 = vmatpush1.msra.mxu0 0.0
        %6405 = vmatprep.subr.mxu0 0.0
        %6406 = vmatpush1.msra.mxu0 0.0
        %6407 = vmatprep.subr.mxu0 0.0
        %6408 = vmatpush1.msra.mxu0 0.0
        %6409 = vmatprep.subr.mxu0 0.0
        %6410 = vmatpush1.msra.mxu0 0.0
        %6411 = vmatprep.subr.mxu0 0.0
        %6412 = vmatpush1.msra.mxu0 0.0
        %6413 = vmatprep.subr.mxu0 0.0
        %6414 = vmatpush1.msra.mxu0 0.0
        %6415 = vmatprep.subr.mxu0 0.0
        %6416 = vmatpush1.msra.mxu0 0.0
        %6417 = vmatprep.subr.mxu0 0.0
        %6418 = vmatpush1.msra.mxu0 0.0
        %6419 = vmatprep.subr.mxu0 0.0
        %6420 = vmatpush1.msra.mxu0 0.0
        %6421 = vmatprep.subr.mxu0 0.0
        %6422 = vmatpush1.msra.mxu0 0.0
        %6423 = vmatprep.subr.mxu0 0.0
        %6424 = vmatpush1.msra.mxu0 0.0
        %6425 = vmatprep.subr.mxu0 0.0
        %6426 = vmatpush1.msra.mxu0 0.0
        %6427 = vmatprep.subr.mxu0 0.0
        %6428 = vmatpush1.msra.mxu0 0.0
        %6429 = vmatprep.subr.mxu0 0.0
        %6430 = vmatpush1.msra.mxu0 0.0
        %6431 = vmatprep.subr.mxu0 0.0
        %6432 = vmatpush1.msra.mxu0 0.0
        %6433 = vmatprep.subr.mxu0 0.0
        %6434 = vmatpush1.msra.mxu0 0.0
        %6435 = vmatprep.subr.mxu0 0.0
        %6436 = vmatpush1.msra.mxu0 0.0
        %6437 = vmatprep.subr.mxu0 0.0
        %6438 = vmatpush1.msra.mxu0 0.0
        %6439 = vmatprep.subr.mxu0 0.0
        %6440 = vmatpush1.msra.mxu0 0.0
        %6441 = vmatprep.subr.mxu0 0.0
        %6442 = vmatpush1.msra.mxu0 0.0
        %6443 = vmatprep.subr.mxu0 0.0
        %6444 = vmatpush1.msra.mxu0 0.0
        %6445 = vmatprep.subr.mxu0 0.0
        %6446 = vmatpush1.msra.mxu0 0.0
        %6447 = vmatprep.subr.mxu0 0.0
        %6448 = vmatpush1.msra.mxu0 0.0
        %6449 = vmatprep.mubr.f32.mxu0 0.0
        %6450 = vmatmul.mubr.f32.gmra.mrb[0].mxu0 %v6194
        %v6451 = vpop.f32.mrb[0].mxu0
        %v6452 = vadd.f32 %v6191, %v6451
        %v6453 = vpop.f32.mrb[0].mxu0
        %6454 = vmatprep.mubr.f32.mxu0 0.0
        %6455 = vmatmul.mubr.f32.gmra.mrb[0].mxu0 %v6197
        %v6456 = vpop.f32.mrb[0].mxu0
        %v6457 = vadd.f32 %v6191, %v6456
        %v6458 = vpop.f32.mrb[0].mxu0
        %6459 = vmatprep.mubr.f32.mxu0 0.0
        %6460 = vmatmul.mubr.f32.gmra.mrb[0].mxu0 %v6200
        %v6461 = vpop.f32.mrb[0].mxu0
        %v6462 = vadd.f32 %v6191, %v6461
        %v6463 = vpop.f32.mrb[0].mxu0
        %6464 = vmatprep.mubr.f32.mxu0 0.0
        %6465 = vmatmul.mubr.f32.gmra.mrb[0].mxu0 %v6203
        %v6466 = vpop.f32.mrb[0].mxu0
        %v6467 = vadd.f32 %v6191, %v6466
        %v6468 = vpop.f32.mrb[0].mxu0
        %6469 = vmatprep.mubr.f32.mxu0 0.0
        %6470 = vmatmul.mubr.f32.gmra.mrb[0].mxu0 %v6206
        %v6471 = vpop.f32.mrb[0].mxu0
        %v6472 = vadd.f32 %v6191, %v6471
        %v6473 = vpop.f32.mrb[0].mxu0
        %6474 = vmatprep.mubr.f32.mxu0 0.0
        %6475 = vmatmul.mubr.f32.gmra.mrb[0].mxu0 %v6209
        %v6476 = vpop.f32.mrb[0].mxu0
        %v6477 = vadd.f32 %v6191, %v6476
        %v6478 = vpop.f32.mrb[0].mxu0
        %6479 = vmatprep.mubr.f32.mxu0 0.0
        %6480 = vmatmul.mubr.f32.gmra.mrb[0].mxu0 %v6212
        %v6481 = vpop.f32.mrb[0].mxu0
        %v6482 = vadd.f32 %v6191, %v6481
        %v6483 = vpop.f32.mrb[0].mxu0
        %6484 = vmatprep.mubr.f32.mxu0 0.0
        %6485 = vmatmul.mubr.f32.gmra.mrb[0].mxu0 %v6215
        %v6486 = vpop.f32.mrb[0].mxu0
        %v6487 = vadd.f32 %v6191, %v6486
        %v6488 = vpop.f32.mrb[0].mxu0
        %6489 = vmatprep.mubr.f32.mxu0 0.0
        %6490 = vmatmul.mubr.f32.gmra.mrb[0].mxu0 %v6218
        %v6491 = vpop.f32.mrb[0].mxu0
        %v6492 = vadd.f32 %v6191, %v6491
        %v6493 = vpop.f32.mrb[0].mxu0
        %6494 = vmatprep.mubr.f32.mxu0 0.0
        %6495 = vmatmul.mubr.f32.gmra.mrb[0].mxu0 %v6221
        %v6496 = vpop.f32.mrb[0].mxu0
        %v6497 = vadd.f32 %v6191, %v6496
        %v6498 = vpop.f32.mrb[0].mxu0
        %6499 = vmatprep.mubr.f32.mxu0 0.0
        %6500 = vmatmul.mubr.f32.gmra.mrb[0].mxu0 %v6224
        %v6501 = vpop.f32.mrb[0].mxu0
        %v6502 = vadd.f32 %v6191, %v6501
        %v6503 = vpop.f32.mrb[0].mxu0
        %6504 = vmatprep.mubr.f32.mxu0 0.0
        %6505 = vmatmul.mubr.f32.gmra.mrb[0].mxu0 %v6227
        %v6506 = vpop.f32.mrb[0].mxu0
        %v6507 = vadd.f32 %v6191, %v6506
        %v6508 = vpop.f32.mrb[0].mxu0
        %6509 = vmatprep.mubr.f32.mxu0 0.0
        %6510 = vmatmul.mubr.f32.gmra.mrb[0].mxu0 %v6230
        %v6511 = vpop.f32.mrb[0].mxu0
        %v6512 = vadd.f32 %v6191, %v6511
        %v6513 = vpop.f32.mrb[0].mxu0
        %6514 = vmatprep.mubr.f32.mxu0 0.0
        %6515 = vmatmul.mubr.f32.gmra.mrb[0].mxu0 %v6233
        %v6516 = vpop.f32.mrb[0].mxu0
        %v6517 = vadd.f32 %v6191, %v6516
        %v6518 = vpop.f32.mrb[0].mxu0
        %6519 = vmatprep.mubr.f32.mxu0 0.0
        %6520 = vmatmul.mubr.f32.gmra.mrb[0].mxu0 %v6236
        %v6521 = vpop.f32.mrb[0].mxu0
        %v6522 = vadd.f32 %v6191, %v6521
        %v6523 = vpop.f32.mrb[0].mxu0
        %6524 = vmatprep.mubr.f32.mxu0 0.0
        %6525 = vmatmul.mubr.f32.gmra.mrb[0].mxu0 %v6239
        %v6526 = vpop.f32.mrb[0].mxu0
        %v6527 = vadd.f32 %v6191, %v6526
        %v6528 = vpop.f32.mrb[0].mxu0
        %6529 = vmatprep.mubr.f32.mxu0 0.0
        %6530 = vmatmul.mubr.f32.gmra.mrb[0].mxu0 %v6242
        %v6531 = vpop.f32.mrb[0].mxu0
        %v6532 = vadd.f32 %v6191, %v6531
        %v6533 = vpop.f32.mrb[0].mxu0
        %6534 = vmatprep.mubr.f32.mxu0 0.0
        %6535 = vmatmul.mubr.f32.gmra.mrb[0].mxu0 %v6245
        %v6536 = vpop.f32.mrb[0].mxu0
        %v6537 = vadd.f32 %v6191, %v6536
        %v6538 = vpop.f32.mrb[0].mxu0
        %6539 = vmatprep.mubr.f32.mxu0 0.0
        %6540 = vmatmul.mubr.f32.gmra.mrb[0].mxu0 %v6248
        %v6541 = vpop.f32.mrb[0].mxu0
        %v6542 = vadd.f32 %v6191, %v6541
        %v6543 = vpop.f32.mrb[0].mxu0
        %6544 = vmatprep.mubr.f32.mxu0 0.0
        %6545 = vmatmul.mubr.f32.gmra.mrb[0].mxu0 %v6251
        %v6546 = vpop.f32.mrb[0].mxu0
        %v6547 = vadd.f32 %v6191, %v6546
        %v6548 = vpop.f32.mrb[0].mxu0
        %6549 = vmatprep.mubr.f32.mxu0 0.0
        %6550 = vmatmul.mubr.f32.gmra.mrb[0].mxu0 %v6254
        %v6551 = vpop.f32.mrb[0].mxu0
        %v6552 = vadd.f32 %v6191, %v6551
        %v6553 = vpop.f32.mrb[0].mxu0
        %6554 = vmatprep.mubr.f32.mxu0 0.0
        %6555 = vmatmul.mubr.f32.gmra.mrb[0].mxu0 %v6257
        %v6556 = vpop.f32.mrb[0].mxu0
        %v6557 = vadd.f32 %v6191, %v6556
        %v6558 = vpop.f32.mrb[0].mxu0
        %6559 = vmatprep.mubr.f32.mxu0 0.0
        %6560 = vmatmul.mubr.f32.gmra.mrb[0].mxu0 %v6260
        %v6561 = vpop.f32.mrb[0].mxu0
        %v6562 = vadd.f32 %v6191, %v6561
        %v6563 = vpop.f32.mrb[0].mxu0
        %6564 = vmatprep.mubr.f32.mxu0 0.0
        %6565 = vmatmul.mubr.f32.gmra.mrb[0].mxu0 %v6263
        %v6566 = vpop.f32.mrb[0].mxu0
        %v6567 = vadd.f32 %v6191, %v6566
        %v6568 = vpop.f32.mrb[0].mxu0
        %6569 = vmatprep.mubr.f32.mxu0 0.0
        %6570 = vmatmul.mubr.f32.gmra.mrb[0].mxu0 %v6266
        %v6571 = vpop.f32.mrb[0].mxu0
        %v6572 = vadd.f32 %v6191, %v6571
        %v6573 = vpop.f32.mrb[0].mxu0
        %6574 = vmatprep.mubr.f32.mxu0 0.0
        %6575 = vmatmul.mubr.f32.gmra.mrb[0].mxu0 %v6269
        %v6576 = vpop.f32.mrb[0].mxu0
        %v6577 = vadd.f32 %v6191, %v6576
        %v6578 = vpop.f32.mrb[0].mxu0
        %6579 = vmatprep.mubr.f32.mxu0 0.0
        %6580 = vmatmul.mubr.f32.gmra.mrb[0].mxu0 %v6272
        %v6581 = vpop.f32.mrb[0].mxu0
        %v6582 = vadd.f32 %v6191, %v6581
        %v6583 = vpop.f32.mrb[0].mxu0
        %6584 = vmatprep.mubr.f32.mxu0 0.0
        %6585 = vmatmul.mubr.f32.gmra.mrb[0].mxu0 %v6275
        %v6586 = vpop.f32.mrb[0].mxu0
        %v6587 = vadd.f32 %v6191, %v6586
        %v6588 = vpop.f32.mrb[0].mxu0
        %6589 = vmatprep.mubr.f32.mxu0 0.0
        %6590 = vmatmul.mubr.f32.gmra.mrb[0].mxu0 %v6278
        %v6591 = vpop.f32.mrb[0].mxu0
        %v6592 = vadd.f32 %v6191, %v6591
        %v6593 = vpop.f32.mrb[0].mxu0
        %6594 = vmatprep.mubr.f32.mxu0 0.0
        %6595 = vmatmul.mubr.f32.gmra.mrb[0].mxu0 %v6281
        %v6596 = vpop.f32.mrb[0].mxu0
        %v6597 = vadd.f32 %v6191, %v6596
        %v6598 = vpop.f32.mrb[0].mxu0
        %6599 = vmatprep.mubr.f32.mxu0 0.0
        %6600 = vmatmul.mubr.f32.gmra.mrb[0].mxu0 %v6284
        %v6601 = vpop.f32.mrb[0].mxu0
        %v6602 = vadd.f32 %v6191, %v6601
        %v6603 = vpop.f32.mrb[0].mxu0
        %6604 = vmatprep.mubr.f32.mxu0 0.0
        %6605 = vmatmul.mubr.f32.gmra.mrb[0].mxu0 %v6287
        %v6606 = vpop.f32.mrb[0].mxu0
        %v6607 = vadd.f32 %v6191, %v6606
        %v6608 = vpop.f32.mrb[0].mxu0
        %6609 = vmatprep.mubr.f32.mxu0 0.0
        %6610 = vmatmul.mubr.f32.gmra.mrb[0].mxu0 %v6290
        %v6611 = vpop.f32.mrb[0].mxu0
        %v6612 = vadd.f32 %v6191, %v6611
        %v6613 = vpop.f32.mrb[0].mxu0
        %6614 = vmatprep.mubr.f32.mxu0 0.0
        %6615 = vmatmul.mubr.f32.gmra.mrb[0].mxu0 %v6293
        %v6616 = vpop.f32.mrb[0].mxu0
        %v6617 = vadd.f32 %v6191, %v6616
        %v6618 = vpop.f32.mrb[0].mxu0
        %6619 = vmatprep.mubr.f32.mxu0 0.0
        %6620 = vmatmul.mubr.f32.gmra.mrb[0].mxu0 %v6296
        %v6621 = vpop.f32.mrb[0].mxu0
        %v6622 = vadd.f32 %v6191, %v6621
        %v6623 = vpop.f32.mrb[0].mxu0
        %6624 = vmatprep.mubr.f32.mxu0 0.0
        %6625 = vmatmul.mubr.f32.gmra.mrb[0].mxu0 %v6299
        %v6626 = vpop.f32.mrb[0].mxu0
        %v6627 = vadd.f32 %v6191, %v6626
        %v6628 = vpop.f32.mrb[0].mxu0
        %6629 = vmatprep.mubr.f32.mxu0 0.0
        %6630 = vmatmul.mubr.f32.gmra.mrb[0].mxu0 %v6302
        %v6631 = vpop.f32.mrb[0].mxu0
        %v6632 = vadd.f32 %v6191, %v6631
        %v6633 = vpop.f32.mrb[0].mxu0
        %6634 = vmatprep.mubr.f32.mxu0 0.0
        %6635 = vmatmul.mubr.f32.gmra.mrb[0].mxu0 %v6305
        %v6636 = vpop.f32.mrb[0].mxu0
        %v6637 = vadd.f32 %v6191, %v6636
        %v6638 = vpop.f32.mrb[0].mxu0
        %6639 = vmatprep.mubr.f32.mxu0 0.0
        %6640 = vmatmul.mubr.f32.gmra.mrb[0].mxu0 %v6308
        %v6641 = vpop.f32.mrb[0].mxu0
        %v6642 = vadd.f32 %v6191, %v6641
        %v6643 = vpop.f32.mrb[0].mxu0
        %6644 = vmatprep.mubr.f32.mxu0 0.0
        %6645 = vmatmul.mubr.f32.gmra.mrb[0].mxu0 %v6311
        %v6646 = vpop.f32.mrb[0].mxu0
        %v6647 = vadd.f32 %v6191, %v6646
        %v6648 = vpop.f32.mrb[0].mxu0
        %6649 = vmatprep.mubr.f32.mxu0 0.0
        %6650 = vmatmul.mubr.f32.gmra.mrb[0].mxu0 %v6314
        %v6651 = vpop.f32.mrb[0].mxu0
        %v6652 = vadd.f32 %v6191, %v6651
        %v6653 = vpop.f32.mrb[0].mxu0
        %6654 = vmatprep.mubr.f32.mxu0 0.0
        %6655 = vmatmul.mubr.f32.gmra.mrb[0].mxu0 %v6317
        %v6656 = vpop.f32.mrb[0].mxu0
        %v6657 = vadd.f32 %v6191, %v6656
        %v6658 = vpop.f32.mrb[0].mxu0
        %6659 = vmatprep.mubr.f32.mxu0 0.0
        %6660 = vmatmul.mubr.f32.gmra.mrb[0].mxu0 %v6320
        %v6661 = vpop.f32.mrb[0].mxu0
        %v6662 = vadd.f32 %v6191, %v6661
        %v6663 = vpop.f32.mrb[0].mxu0
        %6664 = vmatprep.mubr.f32.mxu0 0.0
        %6665 = vmatmul.mubr.f32.gmra.mrb[0].mxu0 %v6323
        %v6666 = vpop.f32.mrb[0].mxu0
        %v6667 = vadd.f32 %v6191, %v6666
        %v6668 = vpop.f32.mrb[0].mxu0
        %6669 = vmatprep.mubr.f32.mxu0 0.0
        %6670 = vmatmul.mubr.f32.gmra.mrb[0].mxu0 %v6326
        %v6671 = vpop.f32.mrb[0].mxu0
        %v6672 = vadd.f32 %v6191, %v6671
        %v6673 = vpop.f32.mrb[0].mxu0
        %6674 = vmatprep.mubr.f32.mxu0 0.0
        %6675 = vmatmul.mubr.f32.gmra.mrb[0].mxu0 %v6329
        %v6676 = vpop.f32.mrb[0].mxu0
        %v6677 = vadd.f32 %v6191, %v6676
        %v6678 = vpop.f32.mrb[0].mxu0
        %6679 = vmatprep.mubr.f32.mxu0 0.0
        %6680 = vmatmul.mubr.f32.gmra.mrb[0].mxu0 %v6332
        %v6681 = vpop.f32.mrb[0].mxu0
        %v6682 = vadd.f32 %v6191, %v6681
        %v6683 = vpop.f32.mrb[0].mxu0
        %6684 = vmatprep.mubr.f32.mxu0 0.0
        %6685 = vmatmul.mubr.f32.gmra.mrb[0].mxu0 %v6335
        %v6686 = vpop.f32.mrb[0].mxu0
        %v6687 = vadd.f32 %v6191, %v6686
        %v6688 = vpop.f32.mrb[0].mxu0
        %6689 = vmatprep.mubr.f32.mxu0 0.0
        %6690 = vmatmul.mubr.f32.gmra.mrb[0].mxu0 %v6338
        %v6691 = vpop.f32.mrb[0].mxu0
        %v6692 = vadd.f32 %v6191, %v6691
        %v6693 = vpop.f32.mrb[0].mxu0
        %6694 = vmatprep.mubr.f32.mxu0 0.0
        %6695 = vmatmul.mubr.f32.gmra.mrb[0].mxu0 %v6341
        %v6696 = vpop.f32.mrb[0].mxu0
        %v6697 = vadd.f32 %v6191, %v6696
        %v6698 = vpop.f32.mrb[0].mxu0
        %6699 = vmatprep.mubr.f32.mxu0 0.0
        %6700 = vmatmul.mubr.f32.gmra.mrb[0].mxu0 %v6344
        %v6701 = vpop.f32.mrb[0].mxu0
        %v6702 = vadd.f32 %v6191, %v6701
        %v6703 = vpop.f32.mrb[0].mxu0
        %6704 = vmatprep.mubr.f32.mxu0 0.0
        %6705 = vmatmul.mubr.f32.gmra.mrb[0].mxu0 %v6347
        %v6706 = vpop.f32.mrb[0].mxu0
        %v6707 = vadd.f32 %v6191, %v6706
        %v6708 = vpop.f32.mrb[0].mxu0
        %6709 = vmatprep.mubr.f32.mxu0 0.0
        %6710 = vmatmul.mubr.f32.gmra.mrb[0].mxu0 %v6350
        %v6711 = vpop.f32.mrb[0].mxu0
        %v6712 = vadd.f32 %v6191, %v6711
        %v6713 = vpop.f32.mrb[0].mxu0
        %6714 = vmatprep.mubr.f32.mxu0 0.0
        %6715 = vmatmul.mubr.f32.gmra.mrb[0].mxu0 %v6353
        %v6716 = vpop.f32.mrb[0].mxu0
        %v6717 = vadd.f32 %v6191, %v6716
        %v6718 = vpop.f32.mrb[0].mxu0
        %6719 = vmatprep.mubr.f32.mxu0 0.0
        %6720 = vmatmul.mubr.f32.gmra.mrb[0].mxu0 %v6356
        %v6721 = vpop.f32.mrb[0].mxu0
        %v6722 = vadd.f32 %v6191, %v6721
        %v6723 = vpop.f32.mrb[0].mxu0
        %6724 = vmatprep.mubr.f32.mxu0 0.0
        %6725 = vmatmul.mubr.f32.gmra.mrb[0].mxu0 %v6359
        %v6726 = vpop.f32.mrb[0].mxu0
        %v6727 = vadd.f32 %v6191, %v6726
        %v6728 = vpop.f32.mrb[0].mxu0
        %6729 = vmatprep.mubr.f32.mxu0 0.0
        %6730 = vmatmul.mubr.f32.gmra.mrb[0].mxu0 %v6362
        %v6731 = vpop.f32.mrb[0].mxu0
        %v6732 = vadd.f32 %v6191, %v6731
        %v6733 = vpop.f32.mrb[0].mxu0
        %6734 = vmatprep.mubr.f32.mxu0 0.0
        %6735 = vmatmul.mubr.f32.gmra.mrb[0].mxu0 %v6365
        %v6736 = vpop.f32.mrb[0].mxu0
        %v6737 = vadd.f32 %v6191, %v6736
        %v6738 = vpop.f32.mrb[0].mxu0
        %6739 = vmatprep.mubr.f32.mxu0 0.0
        %6740 = vmatmul.mubr.f32.gmra.mrb[0].mxu0 %v6368
        %v6741 = vpop.f32.mrb[0].mxu0
        %v6742 = vadd.f32 %v6191, %v6741
        %v6743 = vpop.f32.mrb[0].mxu0
        %6744 = vmatprep.mubr.f32.mxu0 0.0
        %6745 = vmatmul.mubr.f32.gmra.mrb[0].mxu0 %v6371
        %v6746 = vpop.f32.mrb[0].mxu0
        %v6747 = vadd.f32 %v6191, %v6746
        %v6748 = vpop.f32.mrb[0].mxu0
        %6749 = vmatprep.mubr.f32.mxu0 0.0
        %6750 = vmatmul.mubr.f32.gmra.mrb[0].mxu0 %v6374
        %v6751 = vpop.f32.mrb[0].mxu0
        %v6752 = vadd.f32 %v6191, %v6751
        %v6753 = vpop.f32.mrb[0].mxu0
        %6754 = vmatprep.mubr.f32.mxu0 0.0
        %6755 = vmatmul.mubr.f32.gmra.mrb[0].mxu0 %v6377
        %v6756 = vpop.f32.mrb[0].mxu0
        %v6757 = vadd.f32 %v6191, %v6756
        %v6758 = vpop.f32.mrb[0].mxu0
        %6759 = vmatprep.mubr.f32.mxu0 0.0
        %6760 = vmatmul.mubr.f32.gmra.mrb[0].mxu0 %v6380
        %v6761 = vpop.f32.mrb[0].mxu0
        %v6762 = vadd.f32 %v6191, %v6761
        %v6763 = vpop.f32.mrb[0].mxu0
        %6764 = vmatprep.mubr.f32.mxu0 0.0
        %6765 = vmatmul.mubr.f32.gmra.mrb[0].mxu0 %v6383
        %v6766 = vpop.f32.mrb[0].mxu0
        %v6767 = vadd.f32 %v6191, %v6766
        %v6768 = vpop.f32.mrb[0].mxu0
        %6769 = vdwg.mxu0
        %v6770 = vmax.f32 %v6452, 0.0
        %v6771 = vmax.f32 %v6457, 0.0
        %v6772 = vmax.f32 %v6462, 0.0
        %v6773 = vmax.f32 %v6467, 0.0
        %v6774 = vmax.f32 %v6472, 0.0
        %v6775 = vmax.f32 %v6477, 0.0
        %v6776 = vmax.f32 %v6482, 0.0
        %v6777 = vmax.f32 %v6487, 0.0
        %v6778 = vmax.f32 %v6492, 0.0
        %v6779 = vmax.f32 %v6497, 0.0
        %v6780 = vmax.f32 %v6502, 0.0
        %v6781 = vmax.f32 %v6507, 0.0
        %v6782 = vmax.f32 %v6512, 0.0
        %v6783 = vmax.f32 %v6517, 0.0
        %v6784 = vmax.f32 %v6522, 0.0
        %v6785 = vmax.f32 %v6527, 0.0
        %v6786 = vmax.f32 %v6532, 0.0
        %v6787 = vmax.f32 %v6537, 0.0
        %v6788 = vmax.f32 %v6542, 0.0
        %v6789 = vmax.f32 %v6547, 0.0
        %v6790 = vmax.f32 %v6552, 0.0
        %v6791 = vmax.f32 %v6557, 0.0
        %v6792 = vmax.f32 %v6562, 0.0
        %v6793 = vmax.f32 %v6567, 0.0
        %v6794 = vmax.f32 %v6572, 0.0
        %v6795 = vmax.f32 %v6577, 0.0
        %v6796 = vmax.f32 %v6582, 0.0
        %v6797 = vmax.f32 %v6587, 0.0
        %v6798 = vmax.f32 %v6592, 0.0
        %v6799 = vmax.f32 %v6597, 0.0
        %v6800 = vmax.f32 %v6602, 0.0
        %v6801 = vmax.f32 %v6607, 0.0
        %v6802 = vmax.f32 %v6612, 0.0
        %v6803 = vmax.f32 %v6617, 0.0
        %v6804 = vmax.f32 %v6622, 0.0
        %v6805 = vmax.f32 %v6627, 0.0
        %v6806 = vmax.f32 %v6632, 0.0
        %v6807 = vmax.f32 %v6637, 0.0
        %v6808 = vmax.f32 %v6642, 0.0
        %v6809 = vmax.f32 %v6647, 0.0
        %v6810 = vmax.f32 %v6652, 0.0
        %v6811 = vmax.f32 %v6657, 0.0
        %v6812 = vmax.f32 %v6662, 0.0
        %v6813 = vmax.f32 %v6667, 0.0
        %v6814 = vmax.f32 %v6672, 0.0
        %v6815 = vmax.f32 %v6677, 0.0
        %v6816 = vmax.f32 %v6682, 0.0
        %v6817 = vmax.f32 %v6687, 0.0
        %v6818 = vmax.f32 %v6692, 0.0
        %v6819 = vmax.f32 %v6697, 0.0
        %v6820 = vmax.f32 %v6702, 0.0
        %v6821 = vmax.f32 %v6707, 0.0
        %v6822 = vmax.f32 %v6712, 0.0
        %v6823 = vmax.f32 %v6717, 0.0
        %v6824 = vmax.f32 %v6722, 0.0
        %v6825 = vmax.f32 %v6727, 0.0
        %v6826 = vmax.f32 %v6732, 0.0
        %v6827 = vmax.f32 %v6737, 0.0
        %v6828 = vmax.f32 %v6742, 0.0
        %v6829 = vmax.f32 %v6747, 0.0
        %v6830 = vmax.f32 %v6752, 0.0
        %v6831 = vmax.f32 %v6757, 0.0
        %v6832 = vmax.f32 %v6762, 0.0
        %v6833 = vmax.f32 %v6767, 0.0
        %v6834 = vld [vmem:[%s9] sm:$0xff]
        %v6835 = vld [vmem:[%s9 + $0x8] sm:$0xff]
        %v6836 = vld [vmem:[%s9 + $0x10] sm:$0xff]
        %v6837 = vld [vmem:[%s9 + $0x18] sm:$0xff]
        %v6838 = vld [vmem:[%s14] sm:$0xff]
        %v6839 = vld [vmem:[%s14 + $0x8] sm:$0xff]
        %v6840 = vld [vmem:[%s14 + $0x10] sm:$0xff]
        %v6841 = vld [vmem:[%s14 + $0x18] sm:$0xff]
        %v6843 = vsel %vm4352, %v6054, 0
        %v6846 = vsel %vm4352, %v6055, 0
        %v6849 = vsel %vm4352, %v6056, 0
        %v6852 = vsel %vm4352, %v6057, 0
        %v6855 = vsel %vm4352, %v6058, 0
        %v6858 = vsel %vm4352, %v6059, 0
        %v6861 = vsel %vm4352, %v6060, 0
        %v6864 = vsel %vm4352, %v6061, 0
        %v6867 = vsel %vm4352, %v6062, 0
        %v6870 = vsel %vm4352, %v6063, 0
        %v6873 = vsel %vm4352, %v6064, 0
        %v6876 = vsel %vm4352, %v6065, 0
        %v6879 = vsel %vm4352, %v6066, 0
        %v6882 = vsel %vm4352, %v6067, 0
        %v6885 = vsel %vm4352, %v6068, 0
        %v6888 = vsel %vm4352, %v6069, 0
        %v6891 = vsel %vm4352, %v6070, 0
        %v6894 = vsel %vm4352, %v6071, 0
        %v6897 = vsel %vm4352, %v6072, 0
        %v6900 = vsel %vm4352, %v6073, 0
        %v6903 = vsel %vm4352, %v6074, 0
        %v6906 = vsel %vm4352, %v6075, 0
        %v6909 = vsel %vm4352, %v6076, 0
        %v6912 = vsel %vm4352, %v6077, 0
        %v6915 = vsel %vm4352, %v6078, 0
        %v6918 = vsel %vm4352, %v6079, 0
        %v6921 = vsel %vm4352, %v6080, 0
        %v6924 = vsel %vm4352, %v6081, 0
        %v6927 = vsel %vm4352, %v6082, 0
        %v6930 = vsel %vm4352, %v6083, 0
        %v6933 = vsel %vm4352, %v6084, 0
        %v6936 = vsel %vm4352, %v6085, 0
        %v6939 = vsel %vm4352, %v6086, 0
        %v6942 = vsel %vm4352, %v6087, 0
        %v6945 = vsel %vm4352, %v6088, 0
        %v6948 = vsel %vm4352, %v6089, 0
        %v6951 = vsel %vm4352, %v6090, 0
        %v6954 = vsel %vm4352, %v6091, 0
        %v6957 = vsel %vm4352, %v6092, 0
        %v6960 = vsel %vm4352, %v6093, 0
        %v6963 = vsel %vm4352, %v6094, 0
        %v6966 = vsel %vm4352, %v6095, 0
        %v6969 = vsel %vm4352, %v6096, 0
        %v6972 = vsel %vm4352, %v6097, 0
        %v6975 = vsel %vm4352, %v6098, 0
        %v6978 = vsel %vm4352, %v6099, 0
        %v6981 = vsel %vm4352, %v6100, 0
        %v6984 = vsel %vm4352, %v6101, 0
        %v6987 = vsel %vm4352, %v6102, 0
        %v6990 = vsel %vm4352, %v6103, 0
        %v6993 = vsel %vm4352, %v6104, 0
        %v6996 = vsel %vm4352, %v6105, 0
        %v6999 = vsel %vm4352, %v6106, 0
        %v7002 = vsel %vm4352, %v6107, 0
        %v7005 = vsel %vm4352, %v6108, 0
        %v7008 = vsel %vm4352, %v6109, 0
        %v7011 = vsel %vm4352, %v6110, 0
        %v7014 = vsel %vm4352, %v6111, 0
        %v7017 = vsel %vm4352, %v6112, 0
        %v7020 = vsel %vm4352, %v6113, 0
        %v7023 = vsel %vm4352, %v6114, 0
        %v7026 = vsel %vm4352, %v6115, 0
        %v7029 = vsel %vm4352, %v6116, 0
        %v7032 = vsel %vm4352, %v6117, 0
        %7034 = vmatprep.subr.mxu0 0.0
        %7035 = vmatpush1.msra.mxu0 %v6838
        %7036 = vmatprep.subr.mxu0 0.0
        %7037 = vmatpush1.msra.mxu0 %v6839
        %7038 = vmatprep.subr.mxu0 0.0
        %7039 = vmatpush1.msra.mxu0 %v6840
        %7040 = vmatprep.subr.mxu0 0.0
        %7041 = vmatpush1.msra.mxu0 %v6841
        %7042 = vmatprep.subr.mxu0 0.0
        %7043 = vmatpush1.msra.mxu0 0.0
        %7044 = vmatprep.subr.mxu0 0.0
        %7045 = vmatpush1.msra.mxu0 0.0
        %7046 = vmatprep.subr.mxu0 0.0
        %7047 = vmatpush1.msra.mxu0 0.0
        %7048 = vmatprep.subr.mxu0 0.0
        %7049 = vmatpush1.msra.mxu0 0.0
        %7050 = vmatprep.subr.mxu0 0.0
        %7051 = vmatpush1.msra.mxu0 0.0
        %7052 = vmatprep.subr.mxu0 0.0
        %7053 = vmatpush1.msra.mxu0 0.0
        %7054 = vmatprep.subr.mxu0 0.0
        %7055 = vmatpush1.msra.mxu0 0.0
        %7056 = vmatprep.subr.mxu0 0.0
        %7057 = vmatpush1.msra.mxu0 0.0
        %7058 = vmatprep.subr.mxu0 0.0
        %7059 = vmatpush1.msra.mxu0 0.0
        %7060 = vmatprep.subr.mxu0 0.0
        %7061 = vmatpush1.msra.mxu0 0.0
        %7062 = vmatprep.subr.mxu0 0.0
        %7063 = vmatpush1.msra.mxu0 0.0
        %7064 = vmatprep.subr.mxu0 0.0
        %7065 = vmatpush1.msra.mxu0 0.0
        %7066 = vmatprep.subr.mxu0 0.0
        %7067 = vmatpush1.msra.mxu0 0.0
        %7068 = vmatprep.subr.mxu0 0.0
        %7069 = vmatpush1.msra.mxu0 0.0
        %7070 = vmatprep.subr.mxu0 0.0
        %7071 = vmatpush1.msra.mxu0 0.0
        %7072 = vmatprep.subr.mxu0 0.0
        %7073 = vmatpush1.msra.mxu0 0.0
        %7074 = vmatprep.subr.mxu0 0.0
        %7075 = vmatpush1.msra.mxu0 0.0
        %7076 = vmatprep.subr.mxu0 0.0
        %7077 = vmatpush1.msra.mxu0 0.0
        %7078 = vmatprep.subr.mxu0 0.0
        %7079 = vmatpush1.msra.mxu0 0.0
        %7080 = vmatprep.subr.mxu0 0.0
        %7081 = vmatpush1.msra.mxu0 0.0
        %7082 = vmatprep.subr.mxu0 0.0
        %7083 = vmatpush1.msra.mxu0 0.0
        %7084 = vmatprep.subr.mxu0 0.0
        %7085 = vmatpush1.msra.mxu0 0.0
        %7086 = vmatprep.subr.mxu0 0.0
        %7087 = vmatpush1.msra.mxu0 0.0
        %7088 = vmatprep.subr.mxu0 0.0
        %7089 = vmatpush1.msra.mxu0 0.0
        %7090 = vmatprep.subr.mxu0 0.0
        %7091 = vmatpush1.msra.mxu0 0.0
        %7092 = vmatprep.subr.mxu0 0.0
        %7093 = vmatpush1.msra.mxu0 0.0
        %7094 = vmatprep.subr.mxu0 0.0
        %7095 = vmatpush1.msra.mxu0 0.0
        %7096 = vmatprep.subr.mxu0 0.0
        %7097 = vmatpush1.msra.mxu0 0.0
        %7098 = vmatprep.mubr.f32.mxu0 0.0
        %7099 = vmatmul.mubr.f32.gmra.mrb[0].mxu0 %v6843
        %v7100 = vpop.f32.mrb[0].mxu0
        %v7101 = vadd.f32 0.0, %v7100
        %v7102 = vpop.f32.mrb[0].mxu0
        %7103 = vmatprep.mubr.f32.mxu0 0.0
        %7104 = vmatmul.mubr.f32.gmra.mrb[0].mxu0 %v6846
        %v7105 = vpop.f32.mrb[0].mxu0
        %v7106 = vadd.f32 0.0, %v7105
        %v7107 = vpop.f32.mrb[0].mxu0
        %7108 = vmatprep.mubr.f32.mxu0 0.0
        %7109 = vmatmul.mubr.f32.gmra.mrb[0].mxu0 %v6849
        %v7110 = vpop.f32.mrb[0].mxu0
        %v7111 = vadd.f32 0.0, %v7110
        %v7112 = vpop.f32.mrb[0].mxu0
        %7113 = vmatprep.mubr.f32.mxu0 0.0
        %7114 = vmatmul.mubr.f32.gmra.mrb[0].mxu0 %v6852
        %v7115 = vpop.f32.mrb[0].mxu0
        %v7116 = vadd.f32 0.0, %v7115
        %v7117 = vpop.f32.mrb[0].mxu0
        %7118 = vmatprep.mubr.f32.mxu0 0.0
        %7119 = vmatmul.mubr.f32.gmra.mrb[0].mxu0 %v6855
        %v7120 = vpop.f32.mrb[0].mxu0
        %v7121 = vadd.f32 0.0, %v7120
        %v7122 = vpop.f32.mrb[0].mxu0
        %7123 = vmatprep.mubr.f32.mxu0 0.0
        %7124 = vmatmul.mubr.f32.gmra.mrb[0].mxu0 %v6858
        %v7125 = vpop.f32.mrb[0].mxu0
        %v7126 = vadd.f32 0.0, %v7125
        %v7127 = vpop.f32.mrb[0].mxu0
        %7128 = vmatprep.mubr.f32.mxu0 0.0
        %7129 = vmatmul.mubr.f32.gmra.mrb[0].mxu0 %v6861
        %v7130 = vpop.f32.mrb[0].mxu0
        %v7131 = vadd.f32 0.0, %v7130
        %v7132 = vpop.f32.mrb[0].mxu0
        %7133 = vmatprep.mubr.f32.mxu0 0.0
        %7134 = vmatmul.mubr.f32.gmra.mrb[0].mxu0 %v6864
        %v7135 = vpop.f32.mrb[0].mxu0
        %v7136 = vadd.f32 0.0, %v7135
        %v7137 = vpop.f32.mrb[0].mxu0
        %7138 = vmatprep.mubr.f32.mxu0 0.0
        %7139 = vmatmul.mubr.f32.gmra.mrb[0].mxu0 %v6867
        %v7140 = vpop.f32.mrb[0].mxu0
        %v7141 = vadd.f32 0.0, %v7140
        %v7142 = vpop.f32.mrb[0].mxu0
        %7143 = vmatprep.mubr.f32.mxu0 0.0
        %7144 = vmatmul.mubr.f32.gmra.mrb[0].mxu0 %v6870
        %v7145 = vpop.f32.mrb[0].mxu0
        %v7146 = vadd.f32 0.0, %v7145
        %v7147 = vpop.f32.mrb[0].mxu0
        %7148 = vmatprep.mubr.f32.mxu0 0.0
        %7149 = vmatmul.mubr.f32.gmra.mrb[0].mxu0 %v6873
        %v7150 = vpop.f32.mrb[0].mxu0
        %v7151 = vadd.f32 0.0, %v7150
        %v7152 = vpop.f32.mrb[0].mxu0
        %7153 = vmatprep.mubr.f32.mxu0 0.0
        %7154 = vmatmul.mubr.f32.gmra.mrb[0].mxu0 %v6876
        %v7155 = vpop.f32.mrb[0].mxu0
        %v7156 = vadd.f32 0.0, %v7155
        %v7157 = vpop.f32.mrb[0].mxu0
        %7158 = vmatprep.mubr.f32.mxu0 0.0
        %7159 = vmatmul.mubr.f32.gmra.mrb[0].mxu0 %v6879
        %v7160 = vpop.f32.mrb[0].mxu0
        %v7161 = vadd.f32 0.0, %v7160
        %v7162 = vpop.f32.mrb[0].mxu0
        %7163 = vmatprep.mubr.f32.mxu0 0.0
        %7164 = vmatmul.mubr.f32.gmra.mrb[0].mxu0 %v6882
        %v7165 = vpop.f32.mrb[0].mxu0
        %v7166 = vadd.f32 0.0, %v7165
        %v7167 = vpop.f32.mrb[0].mxu0
        %7168 = vmatprep.mubr.f32.mxu0 0.0
        %7169 = vmatmul.mubr.f32.gmra.mrb[0].mxu0 %v6885
        %v7170 = vpop.f32.mrb[0].mxu0
        %v7171 = vadd.f32 0.0, %v7170
        %v7172 = vpop.f32.mrb[0].mxu0
        %7173 = vmatprep.mubr.f32.mxu0 0.0
        %7174 = vmatmul.mubr.f32.gmra.mrb[0].mxu0 %v6888
        %v7175 = vpop.f32.mrb[0].mxu0
        %v7176 = vadd.f32 0.0, %v7175
        %v7177 = vpop.f32.mrb[0].mxu0
        %7178 = vmatprep.mubr.f32.mxu0 0.0
        %7179 = vmatmul.mubr.f32.gmra.mrb[0].mxu0 %v6891
        %v7180 = vpop.f32.mrb[0].mxu0
        %v7181 = vadd.f32 0.0, %v7180
        %v7182 = vpop.f32.mrb[0].mxu0
        %7183 = vmatprep.mubr.f32.mxu0 0.0
        %7184 = vmatmul.mubr.f32.gmra.mrb[0].mxu0 %v6894
        %v7185 = vpop.f32.mrb[0].mxu0
        %v7186 = vadd.f32 0.0, %v7185
        %v7187 = vpop.f32.mrb[0].mxu0
        %7188 = vmatprep.mubr.f32.mxu0 0.0
        %7189 = vmatmul.mubr.f32.gmra.mrb[0].mxu0 %v6897
        %v7190 = vpop.f32.mrb[0].mxu0
        %v7191 = vadd.f32 0.0, %v7190
        %v7192 = vpop.f32.mrb[0].mxu0
        %7193 = vmatprep.mubr.f32.mxu0 0.0
        %7194 = vmatmul.mubr.f32.gmra.mrb[0].mxu0 %v6900
        %v7195 = vpop.f32.mrb[0].mxu0
        %v7196 = vadd.f32 0.0, %v7195
        %v7197 = vpop.f32.mrb[0].mxu0
        %7198 = vmatprep.mubr.f32.mxu0 0.0
        %7199 = vmatmul.mubr.f32.gmra.mrb[0].mxu0 %v6903
        %v7200 = vpop.f32.mrb[0].mxu0
        %v7201 = vadd.f32 0.0, %v7200
        %v7202 = vpop.f32.mrb[0].mxu0
        %7203 = vmatprep.mubr.f32.mxu0 0.0
        %7204 = vmatmul.mubr.f32.gmra.mrb[0].mxu0 %v6906
        %v7205 = vpop.f32.mrb[0].mxu0
        %v7206 = vadd.f32 0.0, %v7205
        %v7207 = vpop.f32.mrb[0].mxu0
        %7208 = vmatprep.mubr.f32.mxu0 0.0
        %7209 = vmatmul.mubr.f32.gmra.mrb[0].mxu0 %v6909
        %v7210 = vpop.f32.mrb[0].mxu0
        %v7211 = vadd.f32 0.0, %v7210
        %v7212 = vpop.f32.mrb[0].mxu0
        %7213 = vmatprep.mubr.f32.mxu0 0.0
        %7214 = vmatmul.mubr.f32.gmra.mrb[0].mxu0 %v6912
        %v7215 = vpop.f32.mrb[0].mxu0
        %v7216 = vadd.f32 0.0, %v7215
        %v7217 = vpop.f32.mrb[0].mxu0
        %7218 = vmatprep.mubr.f32.mxu0 0.0
        %7219 = vmatmul.mubr.f32.gmra.mrb[0].mxu0 %v6915
        %v7220 = vpop.f32.mrb[0].mxu0
        %v7221 = vadd.f32 0.0, %v7220
        %v7222 = vpop.f32.mrb[0].mxu0
        %7223 = vmatprep.mubr.f32.mxu0 0.0
        %7224 = vmatmul.mubr.f32.gmra.mrb[0].mxu0 %v6918
        %v7225 = vpop.f32.mrb[0].mxu0
        %v7226 = vadd.f32 0.0, %v7225
        %v7227 = vpop.f32.mrb[0].mxu0
        %7228 = vmatprep.mubr.f32.mxu0 0.0
        %7229 = vmatmul.mubr.f32.gmra.mrb[0].mxu0 %v6921
        %v7230 = vpop.f32.mrb[0].mxu0
        %v7231 = vadd.f32 0.0, %v7230
        %v7232 = vpop.f32.mrb[0].mxu0
        %7233 = vmatprep.mubr.f32.mxu0 0.0
        %7234 = vmatmul.mubr.f32.gmra.mrb[0].mxu0 %v6924
        %v7235 = vpop.f32.mrb[0].mxu0
        %v7236 = vadd.f32 0.0, %v7235
        %v7237 = vpop.f32.mrb[0].mxu0
        %7238 = vmatprep.mubr.f32.mxu0 0.0
        %7239 = vmatmul.mubr.f32.gmra.mrb[0].mxu0 %v6927
        %v7240 = vpop.f32.mrb[0].mxu0
        %v7241 = vadd.f32 0.0, %v7240
        %v7242 = vpop.f32.mrb[0].mxu0
        %7243 = vmatprep.mubr.f32.mxu0 0.0
        %7244 = vmatmul.mubr.f32.gmra.mrb[0].mxu0 %v6930
        %v7245 = vpop.f32.mrb[0].mxu0
        %v7246 = vadd.f32 0.0, %v7245
        %v7247 = vpop.f32.mrb[0].mxu0
        %7248 = vmatprep.mubr.f32.mxu0 0.0
        %7249 = vmatmul.mubr.f32.gmra.mrb[0].mxu0 %v6933
        %v7250 = vpop.f32.mrb[0].mxu0
        %v7251 = vadd.f32 0.0, %v7250
        %v7252 = vpop.f32.mrb[0].mxu0
        %7253 = vmatprep.mubr.f32.mxu0 0.0
        %7254 = vmatmul.mubr.f32.gmra.mrb[0].mxu0 %v6936
        %v7255 = vpop.f32.mrb[0].mxu0
        %v7256 = vadd.f32 0.0, %v7255
        %v7257 = vpop.f32.mrb[0].mxu0
        %7258 = vmatprep.mubr.f32.mxu0 0.0
        %7259 = vmatmul.mubr.f32.gmra.mrb[0].mxu0 %v6939
        %v7260 = vpop.f32.mrb[0].mxu0
        %v7261 = vadd.f32 0.0, %v7260
        %v7262 = vpop.f32.mrb[0].mxu0
        %7263 = vmatprep.mubr.f32.mxu0 0.0
        %7264 = vmatmul.mubr.f32.gmra.mrb[0].mxu0 %v6942
        %v7265 = vpop.f32.mrb[0].mxu0
        %v7266 = vadd.f32 0.0, %v7265
        %v7267 = vpop.f32.mrb[0].mxu0
        %7268 = vmatprep.mubr.f32.mxu0 0.0
        %7269 = vmatmul.mubr.f32.gmra.mrb[0].mxu0 %v6945
        %v7270 = vpop.f32.mrb[0].mxu0
        %v7271 = vadd.f32 0.0, %v7270
        %v7272 = vpop.f32.mrb[0].mxu0
        %7273 = vmatprep.mubr.f32.mxu0 0.0
        %7274 = vmatmul.mubr.f32.gmra.mrb[0].mxu0 %v6948
        %v7275 = vpop.f32.mrb[0].mxu0
        %v7276 = vadd.f32 0.0, %v7275
        %v7277 = vpop.f32.mrb[0].mxu0
        %7278 = vmatprep.mubr.f32.mxu0 0.0
        %7279 = vmatmul.mubr.f32.gmra.mrb[0].mxu0 %v6951
        %v7280 = vpop.f32.mrb[0].mxu0
        %v7281 = vadd.f32 0.0, %v7280
        %v7282 = vpop.f32.mrb[0].mxu0
        %7283 = vmatprep.mubr.f32.mxu0 0.0
        %7284 = vmatmul.mubr.f32.gmra.mrb[0].mxu0 %v6954
        %v7285 = vpop.f32.mrb[0].mxu0
        %v7286 = vadd.f32 0.0, %v7285
        %v7287 = vpop.f32.mrb[0].mxu0
        %7288 = vmatprep.mubr.f32.mxu0 0.0
        %7289 = vmatmul.mubr.f32.gmra.mrb[0].mxu0 %v6957
        %v7290 = vpop.f32.mrb[0].mxu0
        %v7291 = vadd.f32 0.0, %v7290
        %v7292 = vpop.f32.mrb[0].mxu0
        %7293 = vmatprep.mubr.f32.mxu0 0.0
        %7294 = vmatmul.mubr.f32.gmra.mrb[0].mxu0 %v6960
        %v7295 = vpop.f32.mrb[0].mxu0
        %v7296 = vadd.f32 0.0, %v7295
        %v7297 = vpop.f32.mrb[0].mxu0
        %7298 = vmatprep.mubr.f32.mxu0 0.0
        %7299 = vmatmul.mubr.f32.gmra.mrb[0].mxu0 %v6963
        %v7300 = vpop.f32.mrb[0].mxu0
        %v7301 = vadd.f32 0.0, %v7300
        %v7302 = vpop.f32.mrb[0].mxu0
        %7303 = vmatprep.mubr.f32.mxu0 0.0
        %7304 = vmatmul.mubr.f32.gmra.mrb[0].mxu0 %v6966
        %v7305 = vpop.f32.mrb[0].mxu0
        %v7306 = vadd.f32 0.0, %v7305
        %v7307 = vpop.f32.mrb[0].mxu0
        %7308 = vmatprep.mubr.f32.mxu0 0.0
        %7309 = vmatmul.mubr.f32.gmra.mrb[0].mxu0 %v6969
        %v7310 = vpop.f32.mrb[0].mxu0
        %v7311 = vadd.f32 0.0, %v7310
        %v7312 = vpop.f32.mrb[0].mxu0
        %7313 = vmatprep.mubr.f32.mxu0 0.0
        %7314 = vmatmul.mubr.f32.gmra.mrb[0].mxu0 %v6972
        %v7315 = vpop.f32.mrb[0].mxu0
        %v7316 = vadd.f32 0.0, %v7315
        %v7317 = vpop.f32.mrb[0].mxu0
        %7318 = vmatprep.mubr.f32.mxu0 0.0
        %7319 = vmatmul.mubr.f32.gmra.mrb[0].mxu0 %v6975
        %v7320 = vpop.f32.mrb[0].mxu0
        %v7321 = vadd.f32 0.0, %v7320
        %v7322 = vpop.f32.mrb[0].mxu0
        %7323 = vmatprep.mubr.f32.mxu0 0.0
        %7324 = vmatmul.mubr.f32.gmra.mrb[0].mxu0 %v6978
        %v7325 = vpop.f32.mrb[0].mxu0
        %v7326 = vadd.f32 0.0, %v7325
        %v7327 = vpop.f32.mrb[0].mxu0
        %7328 = vmatprep.mubr.f32.mxu0 0.0
        %7329 = vmatmul.mubr.f32.gmra.mrb[0].mxu0 %v6981
        %v7330 = vpop.f32.mrb[0].mxu0
        %v7331 = vadd.f32 0.0, %v7330
        %v7332 = vpop.f32.mrb[0].mxu0
        %7333 = vmatprep.mubr.f32.mxu0 0.0
        %7334 = vmatmul.mubr.f32.gmra.mrb[0].mxu0 %v6984
        %v7335 = vpop.f32.mrb[0].mxu0
        %v7336 = vadd.f32 0.0, %v7335
        %v7337 = vpop.f32.mrb[0].mxu0
        %7338 = vmatprep.mubr.f32.mxu0 0.0
        %7339 = vmatmul.mubr.f32.gmra.mrb[0].mxu0 %v6987
        %v7340 = vpop.f32.mrb[0].mxu0
        %v7341 = vadd.f32 0.0, %v7340
        %v7342 = vpop.f32.mrb[0].mxu0
        %7343 = vmatprep.mubr.f32.mxu0 0.0
        %7344 = vmatmul.mubr.f32.gmra.mrb[0].mxu0 %v6990
        %v7345 = vpop.f32.mrb[0].mxu0
        %v7346 = vadd.f32 0.0, %v7345
        %v7347 = vpop.f32.mrb[0].mxu0
        %7348 = vmatprep.mubr.f32.mxu0 0.0
        %7349 = vmatmul.mubr.f32.gmra.mrb[0].mxu0 %v6993
        %v7350 = vpop.f32.mrb[0].mxu0
        %v7351 = vadd.f32 0.0, %v7350
        %v7352 = vpop.f32.mrb[0].mxu0
        %7353 = vmatprep.mubr.f32.mxu0 0.0
        %7354 = vmatmul.mubr.f32.gmra.mrb[0].mxu0 %v6996
        %v7355 = vpop.f32.mrb[0].mxu0
        %v7356 = vadd.f32 0.0, %v7355
        %v7357 = vpop.f32.mrb[0].mxu0
        %7358 = vmatprep.mubr.f32.mxu0 0.0
        %7359 = vmatmul.mubr.f32.gmra.mrb[0].mxu0 %v6999
        %v7360 = vpop.f32.mrb[0].mxu0
        %v7361 = vadd.f32 0.0, %v7360
        %v7362 = vpop.f32.mrb[0].mxu0
        %7363 = vmatprep.mubr.f32.mxu0 0.0
        %7364 = vmatmul.mubr.f32.gmra.mrb[0].mxu0 %v7002
        %v7365 = vpop.f32.mrb[0].mxu0
        %v7366 = vadd.f32 0.0, %v7365
        %v7367 = vpop.f32.mrb[0].mxu0
        %7368 = vmatprep.mubr.f32.mxu0 0.0
        %7369 = vmatmul.mubr.f32.gmra.mrb[0].mxu0 %v7005
        %v7370 = vpop.f32.mrb[0].mxu0
        %v7371 = vadd.f32 0.0, %v7370
        %v7372 = vpop.f32.mrb[0].mxu0
        %7373 = vmatprep.mubr.f32.mxu0 0.0
        %7374 = vmatmul.mubr.f32.gmra.mrb[0].mxu0 %v7008
        %v7375 = vpop.f32.mrb[0].mxu0
        %v7376 = vadd.f32 0.0, %v7375
        %v7377 = vpop.f32.mrb[0].mxu0
        %7378 = vmatprep.mubr.f32.mxu0 0.0
        %7379 = vmatmul.mubr.f32.gmra.mrb[0].mxu0 %v7011
        %v7380 = vpop.f32.mrb[0].mxu0
        %v7381 = vadd.f32 0.0, %v7380
        %v7382 = vpop.f32.mrb[0].mxu0
        %7383 = vmatprep.mubr.f32.mxu0 0.0
        %7384 = vmatmul.mubr.f32.gmra.mrb[0].mxu0 %v7014
        %v7385 = vpop.f32.mrb[0].mxu0
        %v7386 = vadd.f32 0.0, %v7385
        %v7387 = vpop.f32.mrb[0].mxu0
        %7388 = vmatprep.mubr.f32.mxu0 0.0
        %7389 = vmatmul.mubr.f32.gmra.mrb[0].mxu0 %v7017
        %v7390 = vpop.f32.mrb[0].mxu0
        %v7391 = vadd.f32 0.0, %v7390
        %v7392 = vpop.f32.mrb[0].mxu0
        %7393 = vmatprep.mubr.f32.mxu0 0.0
        %7394 = vmatmul.mubr.f32.gmra.mrb[0].mxu0 %v7020
        %v7395 = vpop.f32.mrb[0].mxu0
        %v7396 = vadd.f32 0.0, %v7395
        %v7397 = vpop.f32.mrb[0].mxu0
        %7398 = vmatprep.mubr.f32.mxu0 0.0
        %7399 = vmatmul.mubr.f32.gmra.mrb[0].mxu0 %v7023
        %v7400 = vpop.f32.mrb[0].mxu0
        %v7401 = vadd.f32 0.0, %v7400
        %v7402 = vpop.f32.mrb[0].mxu0
        %7403 = vmatprep.mubr.f32.mxu0 0.0
        %7404 = vmatmul.mubr.f32.gmra.mrb[0].mxu0 %v7026
        %v7405 = vpop.f32.mrb[0].mxu0
        %v7406 = vadd.f32 0.0, %v7405
        %v7407 = vpop.f32.mrb[0].mxu0
        %7408 = vmatprep.mubr.f32.mxu0 0.0
        %7409 = vmatmul.mubr.f32.gmra.mrb[0].mxu0 %v7029
        %v7410 = vpop.f32.mrb[0].mxu0
        %v7411 = vadd.f32 0.0, %v7410
        %v7412 = vpop.f32.mrb[0].mxu0
        %7413 = vmatprep.mubr.f32.mxu0 0.0
        %7414 = vmatmul.mubr.f32.gmra.mrb[0].mxu0 %v7032
        %v7415 = vpop.f32.mrb[0].mxu0
        %v7416 = vadd.f32 0.0, %v7415
        %v7417 = vpop.f32.mrb[0].mxu0
        %7418 = vdwg.mxu0
        %v7420 = vsel %vm4352, %v4930, 0
        %v7423 = vsel %vm4352, %v4931, 0
        %v7426 = vsel %vm4352, %v4932, 0
        %v7429 = vsel %vm4352, %v4933, 0
        %v7432 = vsel %vm4352, %v4934, 0
        %v7435 = vsel %vm4352, %v4935, 0
        %v7438 = vsel %vm4352, %v4936, 0
        %v7441 = vsel %vm4352, %v4937, 0
        %v7444 = vsel %vm4352, %v4938, 0
        %v7447 = vsel %vm4352, %v4939, 0
        %v7450 = vsel %vm4352, %v4940, 0
        %v7453 = vsel %vm4352, %v4941, 0
        %v7456 = vsel %vm4352, %v4942, 0
        %v7459 = vsel %vm4352, %v4943, 0
        %v7462 = vsel %vm4352, %v4944, 0
        %v7465 = vsel %vm4352, %v4945, 0
        %v7468 = vsel %vm4352, %v4946, 0
        %v7471 = vsel %vm4352, %v4947, 0
        %v7474 = vsel %vm4352, %v4948, 0
        %v7477 = vsel %vm4352, %v4949, 0
        %v7480 = vsel %vm4352, %v4950, 0
        %v7483 = vsel %vm4352, %v4951, 0
        %v7486 = vsel %vm4352, %v4952, 0
        %v7489 = vsel %vm4352, %v4953, 0
        %v7492 = vsel %vm4352, %v4954, 0
        %v7495 = vsel %vm4352, %v4955, 0
        %v7498 = vsel %vm4352, %v4956, 0
        %v7501 = vsel %vm4352, %v4957, 0
        %v7504 = vsel %vm4352, %v4958, 0
        %v7507 = vsel %vm4352, %v4959, 0
        %v7510 = vsel %vm4352, %v4960, 0
        %v7513 = vsel %vm4352, %v4961, 0
        %v7516 = vsel %vm4352, %v4962, 0
        %v7519 = vsel %vm4352, %v4963, 0
        %v7522 = vsel %vm4352, %v4964, 0
        %v7525 = vsel %vm4352, %v4965, 0
        %v7528 = vsel %vm4352, %v4966, 0
        %v7531 = vsel %vm4352, %v4967, 0
        %v7534 = vsel %vm4352, %v4968, 0
        %v7537 = vsel %vm4352, %v4969, 0
        %v7540 = vsel %vm4352, %v4970, 0
        %v7543 = vsel %vm4352, %v4971, 0
        %v7546 = vsel %vm4352, %v4972, 0
        %v7549 = vsel %vm4352, %v4973, 0
        %v7552 = vsel %vm4352, %v4974, 0
        %v7555 = vsel %vm4352, %v4975, 0
        %v7558 = vsel %vm4352, %v4976, 0
        %v7561 = vsel %vm4352, %v4977, 0
        %v7564 = vsel %vm4352, %v4978, 0
        %v7567 = vsel %vm4352, %v4979, 0
        %v7570 = vsel %vm4352, %v4980, 0
        %v7573 = vsel %vm4352, %v4981, 0
        %v7576 = vsel %vm4352, %v4982, 0
        %v7579 = vsel %vm4352, %v4983, 0
        %v7582 = vsel %vm4352, %v4984, 0
        %v7585 = vsel %vm4352, %v4985, 0
        %v7588 = vsel %vm4352, %v4986, 0
        %v7591 = vsel %vm4352, %v4987, 0
        %v7594 = vsel %vm4352, %v4988, 0
        %v7597 = vsel %vm4352, %v4989, 0
        %v7600 = vsel %vm4352, %v4990, 0
        %v7603 = vsel %vm4352, %v4991, 0
        %v7606 = vsel %vm4352, %v4992, 0
        %v7609 = vsel %vm4352, %v4993, 0
        %7611 = vmatprep.subr.mxu0 0.0
        %7612 = vmatpush1.msra.mxu0 %v6834
        %7613 = vmatprep.subr.mxu0 0.0
        %7614 = vmatpush1.msra.mxu0 %v6835
        %7615 = vmatprep.subr.mxu0 0.0
        %7616 = vmatpush1.msra.mxu0 %v6836
        %7617 = vmatprep.subr.mxu0 0.0
        %7618 = vmatpush1.msra.mxu0 %v6837
        %7619 = vmatprep.subr.mxu0 0.0
        %7620 = vmatpush1.msra.mxu0 0.0
        %7621 = vmatprep.subr.mxu0 0.0
        %7622 = vmatpush1.msra.mxu0 0.0
        %7623 = vmatprep.subr.mxu0 0.0
        %7624 = vmatpush1.msra.mxu0 0.0
        %7625 = vmatprep.subr.mxu0 0.0
        %7626 = vmatpush1.msra.mxu0 0.0
        %7627 = vmatprep.subr.mxu0 0.0
        %7628 = vmatpush1.msra.mxu0 0.0
        %7629 = vmatprep.subr.mxu0 0.0
        %7630 = vmatpush1.msra.mxu0 0.0
        %7631 = vmatprep.subr.mxu0 0.0
        %7632 = vmatpush1.msra.mxu0 0.0
        %7633 = vmatprep.subr.mxu0 0.0
        %7634 = vmatpush1.msra.mxu0 0.0
        %7635 = vmatprep.subr.mxu0 0.0
        %7636 = vmatpush1.msra.mxu0 0.0
        %7637 = vmatprep.subr.mxu0 0.0
        %7638 = vmatpush1.msra.mxu0 0.0
        %7639 = vmatprep.subr.mxu0 0.0
        %7640 = vmatpush1.msra.mxu0 0.0
        %7641 = vmatprep.subr.mxu0 0.0
        %7642 = vmatpush1.msra.mxu0 0.0
        %7643 = vmatprep.subr.mxu0 0.0
        %7644 = vmatpush1.msra.mxu0 0.0
        %7645 = vmatprep.subr.mxu0 0.0
        %7646 = vmatpush1.msra.mxu0 0.0
        %7647 = vmatprep.subr.mxu0 0.0
        %7648 = vmatpush1.msra.mxu0 0.0
        %7649 = vmatprep.subr.mxu0 0.0
        %7650 = vmatpush1.msra.mxu0 0.0
        %7651 = vmatprep.subr.mxu0 0.0
        %7652 = vmatpush1.msra.mxu0 0.0
        %7653 = vmatprep.subr.mxu0 0.0
        %7654 = vmatpush1.msra.mxu0 0.0
        %7655 = vmatprep.subr.mxu0 0.0
        %7656 = vmatpush1.msra.mxu0 0.0
        %7657 = vmatprep.subr.mxu0 0.0
        %7658 = vmatpush1.msra.mxu0 0.0
        %7659 = vmatprep.subr.mxu0 0.0
        %7660 = vmatpush1.msra.mxu0 0.0
        %7661 = vmatprep.subr.mxu0 0.0
        %7662 = vmatpush1.msra.mxu0 0.0
        %7663 = vmatprep.subr.mxu0 0.0
        %7664 = vmatpush1.msra.mxu0 0.0
        %7665 = vmatprep.subr.mxu0 0.0
        %7666 = vmatpush1.msra.mxu0 0.0
        %7667 = vmatprep.subr.mxu0 0.0
        %7668 = vmatpush1.msra.mxu0 0.0
        %7669 = vmatprep.subr.mxu0 0.0
        %7670 = vmatpush1.msra.mxu0 0.0
        %7671 = vmatprep.subr.mxu0 0.0
        %7672 = vmatpush1.msra.mxu0 0.0
        %7673 = vmatprep.subr.mxu0 0.0
        %7674 = vmatpush1.msra.mxu0 0.0
        %7675 = vmatprep.mubr.f32.mxu0 0.0
        %7676 = vmatmul.mubr.f32.gmra.mrb[0].mxu0 %v7420
        %v7677 = vpop.f32.mrb[0].mxu0
        %v7678 = vadd.f32 %v7101, %v7677
        %v7679 = vpop.f32.mrb[0].mxu0
        %7680 = vmatprep.mubr.f32.mxu0 0.0
        %7681 = vmatmul.mubr.f32.gmra.mrb[0].mxu0 %v7423
        %v7682 = vpop.f32.mrb[0].mxu0
        %v7683 = vadd.f32 %v7106, %v7682
        %v7684 = vpop.f32.mrb[0].mxu0
        %7685 = vmatprep.mubr.f32.mxu0 0.0
        %7686 = vmatmul.mubr.f32.gmra.mrb[0].mxu0 %v7426
        %v7687 = vpop.f32.mrb[0].mxu0
        %v7688 = vadd.f32 %v7111, %v7687
        %v7689 = vpop.f32.mrb[0].mxu0
        %7690 = vmatprep.mubr.f32.mxu0 0.0
        %7691 = vmatmul.mubr.f32.gmra.mrb[0].mxu0 %v7429
        %v7692 = vpop.f32.mrb[0].mxu0
        %v7693 = vadd.f32 %v7116, %v7692
        %v7694 = vpop.f32.mrb[0].mxu0
        %7695 = vmatprep.mubr.f32.mxu0 0.0
        %7696 = vmatmul.mubr.f32.gmra.mrb[0].mxu0 %v7432
        %v7697 = vpop.f32.mrb[0].mxu0
        %v7698 = vadd.f32 %v7121, %v7697
        %v7699 = vpop.f32.mrb[0].mxu0
        %7700 = vmatprep.mubr.f32.mxu0 0.0
        %7701 = vmatmul.mubr.f32.gmra.mrb[0].mxu0 %v7435
        %v7702 = vpop.f32.mrb[0].mxu0
        %v7703 = vadd.f32 %v7126, %v7702
        %v7704 = vpop.f32.mrb[0].mxu0
        %7705 = vmatprep.mubr.f32.mxu0 0.0
        %7706 = vmatmul.mubr.f32.gmra.mrb[0].mxu0 %v7438
        %v7707 = vpop.f32.mrb[0].mxu0
        %v7708 = vadd.f32 %v7131, %v7707
        %v7709 = vpop.f32.mrb[0].mxu0
        %7710 = vmatprep.mubr.f32.mxu0 0.0
        %7711 = vmatmul.mubr.f32.gmra.mrb[0].mxu0 %v7441
        %v7712 = vpop.f32.mrb[0].mxu0
        %v7713 = vadd.f32 %v7136, %v7712
        %v7714 = vpop.f32.mrb[0].mxu0
        %7715 = vmatprep.mubr.f32.mxu0 0.0
        %7716 = vmatmul.mubr.f32.gmra.mrb[0].mxu0 %v7444
        %v7717 = vpop.f32.mrb[0].mxu0
        %v7718 = vadd.f32 %v7141, %v7717
        %v7719 = vpop.f32.mrb[0].mxu0
        %7720 = vmatprep.mubr.f32.mxu0 0.0
        %7721 = vmatmul.mubr.f32.gmra.mrb[0].mxu0 %v7447
        %v7722 = vpop.f32.mrb[0].mxu0
        %v7723 = vadd.f32 %v7146, %v7722
        %v7724 = vpop.f32.mrb[0].mxu0
        %7725 = vmatprep.mubr.f32.mxu0 0.0
        %7726 = vmatmul.mubr.f32.gmra.mrb[0].mxu0 %v7450
        %v7727 = vpop.f32.mrb[0].mxu0
        %v7728 = vadd.f32 %v7151, %v7727
        %v7729 = vpop.f32.mrb[0].mxu0
        %7730 = vmatprep.mubr.f32.mxu0 0.0
        %7731 = vmatmul.mubr.f32.gmra.mrb[0].mxu0 %v7453
        %v7732 = vpop.f32.mrb[0].mxu0
        %v7733 = vadd.f32 %v7156, %v7732
        %v7734 = vpop.f32.mrb[0].mxu0
        %7735 = vmatprep.mubr.f32.mxu0 0.0
        %7736 = vmatmul.mubr.f32.gmra.mrb[0].mxu0 %v7456
        %v7737 = vpop.f32.mrb[0].mxu0
        %v7738 = vadd.f32 %v7161, %v7737
        %v7739 = vpop.f32.mrb[0].mxu0
        %7740 = vmatprep.mubr.f32.mxu0 0.0
        %7741 = vmatmul.mubr.f32.gmra.mrb[0].mxu0 %v7459
        %v7742 = vpop.f32.mrb[0].mxu0
        %v7743 = vadd.f32 %v7166, %v7742
        %v7744 = vpop.f32.mrb[0].mxu0
        %7745 = vmatprep.mubr.f32.mxu0 0.0
        %7746 = vmatmul.mubr.f32.gmra.mrb[0].mxu0 %v7462
        %v7747 = vpop.f32.mrb[0].mxu0
        %v7748 = vadd.f32 %v7171, %v7747
        %v7749 = vpop.f32.mrb[0].mxu0
        %7750 = vmatprep.mubr.f32.mxu0 0.0
        %7751 = vmatmul.mubr.f32.gmra.mrb[0].mxu0 %v7465
        %v7752 = vpop.f32.mrb[0].mxu0
        %v7753 = vadd.f32 %v7176, %v7752
        %v7754 = vpop.f32.mrb[0].mxu0
        %7755 = vmatprep.mubr.f32.mxu0 0.0
        %7756 = vmatmul.mubr.f32.gmra.mrb[0].mxu0 %v7468
        %v7757 = vpop.f32.mrb[0].mxu0
        %v7758 = vadd.f32 %v7181, %v7757
        %v7759 = vpop.f32.mrb[0].mxu0
        %7760 = vmatprep.mubr.f32.mxu0 0.0
        %7761 = vmatmul.mubr.f32.gmra.mrb[0].mxu0 %v7471
        %v7762 = vpop.f32.mrb[0].mxu0
        %v7763 = vadd.f32 %v7186, %v7762
        %v7764 = vpop.f32.mrb[0].mxu0
        %7765 = vmatprep.mubr.f32.mxu0 0.0
        %7766 = vmatmul.mubr.f32.gmra.mrb[0].mxu0 %v7474
        %v7767 = vpop.f32.mrb[0].mxu0
        %v7768 = vadd.f32 %v7191, %v7767
        %v7769 = vpop.f32.mrb[0].mxu0
        %7770 = vmatprep.mubr.f32.mxu0 0.0
        %7771 = vmatmul.mubr.f32.gmra.mrb[0].mxu0 %v7477
        %v7772 = vpop.f32.mrb[0].mxu0
        %v7773 = vadd.f32 %v7196, %v7772
        %v7774 = vpop.f32.mrb[0].mxu0
        %7775 = vmatprep.mubr.f32.mxu0 0.0
        %7776 = vmatmul.mubr.f32.gmra.mrb[0].mxu0 %v7480
        %v7777 = vpop.f32.mrb[0].mxu0
        %v7778 = vadd.f32 %v7201, %v7777
        %v7779 = vpop.f32.mrb[0].mxu0
        %7780 = vmatprep.mubr.f32.mxu0 0.0
        %7781 = vmatmul.mubr.f32.gmra.mrb[0].mxu0 %v7483
        %v7782 = vpop.f32.mrb[0].mxu0
        %v7783 = vadd.f32 %v7206, %v7782
        %v7784 = vpop.f32.mrb[0].mxu0
        %7785 = vmatprep.mubr.f32.mxu0 0.0
        %7786 = vmatmul.mubr.f32.gmra.mrb[0].mxu0 %v7486
        %v7787 = vpop.f32.mrb[0].mxu0
        %v7788 = vadd.f32 %v7211, %v7787
        %v7789 = vpop.f32.mrb[0].mxu0
        %7790 = vmatprep.mubr.f32.mxu0 0.0
        %7791 = vmatmul.mubr.f32.gmra.mrb[0].mxu0 %v7489
        %v7792 = vpop.f32.mrb[0].mxu0
        %v7793 = vadd.f32 %v7216, %v7792
        %v7794 = vpop.f32.mrb[0].mxu0
        %7795 = vmatprep.mubr.f32.mxu0 0.0
        %7796 = vmatmul.mubr.f32.gmra.mrb[0].mxu0 %v7492
        %v7797 = vpop.f32.mrb[0].mxu0
        %v7798 = vadd.f32 %v7221, %v7797
        %v7799 = vpop.f32.mrb[0].mxu0
        %7800 = vmatprep.mubr.f32.mxu0 0.0
        %7801 = vmatmul.mubr.f32.gmra.mrb[0].mxu0 %v7495
        %v7802 = vpop.f32.mrb[0].mxu0
        %v7803 = vadd.f32 %v7226, %v7802
        %v7804 = vpop.f32.mrb[0].mxu0
        %7805 = vmatprep.mubr.f32.mxu0 0.0
        %7806 = vmatmul.mubr.f32.gmra.mrb[0].mxu0 %v7498
        %v7807 = vpop.f32.mrb[0].mxu0
        %v7808 = vadd.f32 %v7231, %v7807
        %v7809 = vpop.f32.mrb[0].mxu0
        %7810 = vmatprep.mubr.f32.mxu0 0.0
        %7811 = vmatmul.mubr.f32.gmra.mrb[0].mxu0 %v7501
        %v7812 = vpop.f32.mrb[0].mxu0
        %v7813 = vadd.f32 %v7236, %v7812
        %v7814 = vpop.f32.mrb[0].mxu0
        %7815 = vmatprep.mubr.f32.mxu0 0.0
        %7816 = vmatmul.mubr.f32.gmra.mrb[0].mxu0 %v7504
        %v7817 = vpop.f32.mrb[0].mxu0
        %v7818 = vadd.f32 %v7241, %v7817
        %v7819 = vpop.f32.mrb[0].mxu0
        %7820 = vmatprep.mubr.f32.mxu0 0.0
        %7821 = vmatmul.mubr.f32.gmra.mrb[0].mxu0 %v7507
        %v7822 = vpop.f32.mrb[0].mxu0
        %v7823 = vadd.f32 %v7246, %v7822
        %v7824 = vpop.f32.mrb[0].mxu0
        %7825 = vmatprep.mubr.f32.mxu0 0.0
        %7826 = vmatmul.mubr.f32.gmra.mrb[0].mxu0 %v7510
        %v7827 = vpop.f32.mrb[0].mxu0
        %v7828 = vadd.f32 %v7251, %v7827
        %v7829 = vpop.f32.mrb[0].mxu0
        %7830 = vmatprep.mubr.f32.mxu0 0.0
        %7831 = vmatmul.mubr.f32.gmra.mrb[0].mxu0 %v7513
        %v7832 = vpop.f32.mrb[0].mxu0
        %v7833 = vadd.f32 %v7256, %v7832
        %v7834 = vpop.f32.mrb[0].mxu0
        %7835 = vmatprep.mubr.f32.mxu0 0.0
        %7836 = vmatmul.mubr.f32.gmra.mrb[0].mxu0 %v7516
        %v7837 = vpop.f32.mrb[0].mxu0
        %v7838 = vadd.f32 %v7261, %v7837
        %v7839 = vpop.f32.mrb[0].mxu0
        %7840 = vmatprep.mubr.f32.mxu0 0.0
        %7841 = vmatmul.mubr.f32.gmra.mrb[0].mxu0 %v7519
        %v7842 = vpop.f32.mrb[0].mxu0
        %v7843 = vadd.f32 %v7266, %v7842
        %v7844 = vpop.f32.mrb[0].mxu0
        %7845 = vmatprep.mubr.f32.mxu0 0.0
        %7846 = vmatmul.mubr.f32.gmra.mrb[0].mxu0 %v7522
        %v7847 = vpop.f32.mrb[0].mxu0
        %v7848 = vadd.f32 %v7271, %v7847
        %v7849 = vpop.f32.mrb[0].mxu0
        %7850 = vmatprep.mubr.f32.mxu0 0.0
        %7851 = vmatmul.mubr.f32.gmra.mrb[0].mxu0 %v7525
        %v7852 = vpop.f32.mrb[0].mxu0
        %v7853 = vadd.f32 %v7276, %v7852
        %v7854 = vpop.f32.mrb[0].mxu0
        %7855 = vmatprep.mubr.f32.mxu0 0.0
        %7856 = vmatmul.mubr.f32.gmra.mrb[0].mxu0 %v7528
        %v7857 = vpop.f32.mrb[0].mxu0
        %v7858 = vadd.f32 %v7281, %v7857
        %v7859 = vpop.f32.mrb[0].mxu0
        %7860 = vmatprep.mubr.f32.mxu0 0.0
        %7861 = vmatmul.mubr.f32.gmra.mrb[0].mxu0 %v7531
        %v7862 = vpop.f32.mrb[0].mxu0
        %v7863 = vadd.f32 %v7286, %v7862
        %v7864 = vpop.f32.mrb[0].mxu0
        %7865 = vmatprep.mubr.f32.mxu0 0.0
        %7866 = vmatmul.mubr.f32.gmra.mrb[0].mxu0 %v7534
        %v7867 = vpop.f32.mrb[0].mxu0
        %v7868 = vadd.f32 %v7291, %v7867
        %v7869 = vpop.f32.mrb[0].mxu0
        %7870 = vmatprep.mubr.f32.mxu0 0.0
        %7871 = vmatmul.mubr.f32.gmra.mrb[0].mxu0 %v7537
        %v7872 = vpop.f32.mrb[0].mxu0
        %v7873 = vadd.f32 %v7296, %v7872
        %v7874 = vpop.f32.mrb[0].mxu0
        %7875 = vmatprep.mubr.f32.mxu0 0.0
        %7876 = vmatmul.mubr.f32.gmra.mrb[0].mxu0 %v7540
        %v7877 = vpop.f32.mrb[0].mxu0
        %v7878 = vadd.f32 %v7301, %v7877
        %v7879 = vpop.f32.mrb[0].mxu0
        %7880 = vmatprep.mubr.f32.mxu0 0.0
        %7881 = vmatmul.mubr.f32.gmra.mrb[0].mxu0 %v7543
        %v7882 = vpop.f32.mrb[0].mxu0
        %v7883 = vadd.f32 %v7306, %v7882
        %v7884 = vpop.f32.mrb[0].mxu0
        %7885 = vmatprep.mubr.f32.mxu0 0.0
        %7886 = vmatmul.mubr.f32.gmra.mrb[0].mxu0 %v7546
        %v7887 = vpop.f32.mrb[0].mxu0
        %v7888 = vadd.f32 %v7311, %v7887
        %v7889 = vpop.f32.mrb[0].mxu0
        %7890 = vmatprep.mubr.f32.mxu0 0.0
        %7891 = vmatmul.mubr.f32.gmra.mrb[0].mxu0 %v7549
        %v7892 = vpop.f32.mrb[0].mxu0
        %v7893 = vadd.f32 %v7316, %v7892
        %v7894 = vpop.f32.mrb[0].mxu0
        %7895 = vmatprep.mubr.f32.mxu0 0.0
        %7896 = vmatmul.mubr.f32.gmra.mrb[0].mxu0 %v7552
        %v7897 = vpop.f32.mrb[0].mxu0
        %v7898 = vadd.f32 %v7321, %v7897
        %v7899 = vpop.f32.mrb[0].mxu0
        %7900 = vmatprep.mubr.f32.mxu0 0.0
        %7901 = vmatmul.mubr.f32.gmra.mrb[0].mxu0 %v7555
        %v7902 = vpop.f32.mrb[0].mxu0
        %v7903 = vadd.f32 %v7326, %v7902
        %v7904 = vpop.f32.mrb[0].mxu0
        %7905 = vmatprep.mubr.f32.mxu0 0.0
        %7906 = vmatmul.mubr.f32.gmra.mrb[0].mxu0 %v7558
        %v7907 = vpop.f32.mrb[0].mxu0
        %v7908 = vadd.f32 %v7331, %v7907
        %v7909 = vpop.f32.mrb[0].mxu0
        %7910 = vmatprep.mubr.f32.mxu0 0.0
        %7911 = vmatmul.mubr.f32.gmra.mrb[0].mxu0 %v7561
        %v7912 = vpop.f32.mrb[0].mxu0
        %v7913 = vadd.f32 %v7336, %v7912
        %v7914 = vpop.f32.mrb[0].mxu0
        %7915 = vmatprep.mubr.f32.mxu0 0.0
        %7916 = vmatmul.mubr.f32.gmra.mrb[0].mxu0 %v7564
        %v7917 = vpop.f32.mrb[0].mxu0
        %v7918 = vadd.f32 %v7341, %v7917
        %v7919 = vpop.f32.mrb[0].mxu0
        %7920 = vmatprep.mubr.f32.mxu0 0.0
        %7921 = vmatmul.mubr.f32.gmra.mrb[0].mxu0 %v7567
        %v7922 = vpop.f32.mrb[0].mxu0
        %v7923 = vadd.f32 %v7346, %v7922
        %v7924 = vpop.f32.mrb[0].mxu0
        %7925 = vmatprep.mubr.f32.mxu0 0.0
        %7926 = vmatmul.mubr.f32.gmra.mrb[0].mxu0 %v7570
        %v7927 = vpop.f32.mrb[0].mxu0
        %v7928 = vadd.f32 %v7351, %v7927
        %v7929 = vpop.f32.mrb[0].mxu0
        %7930 = vmatprep.mubr.f32.mxu0 0.0
        %7931 = vmatmul.mubr.f32.gmra.mrb[0].mxu0 %v7573
        %v7932 = vpop.f32.mrb[0].mxu0
        %v7933 = vadd.f32 %v7356, %v7932
        %v7934 = vpop.f32.mrb[0].mxu0
        %7935 = vmatprep.mubr.f32.mxu0 0.0
        %7936 = vmatmul.mubr.f32.gmra.mrb[0].mxu0 %v7576
        %v7937 = vpop.f32.mrb[0].mxu0
        %v7938 = vadd.f32 %v7361, %v7937
        %v7939 = vpop.f32.mrb[0].mxu0
        %7940 = vmatprep.mubr.f32.mxu0 0.0
        %7941 = vmatmul.mubr.f32.gmra.mrb[0].mxu0 %v7579
        %v7942 = vpop.f32.mrb[0].mxu0
        %v7943 = vadd.f32 %v7366, %v7942
        %v7944 = vpop.f32.mrb[0].mxu0
        %7945 = vmatprep.mubr.f32.mxu0 0.0
        %7946 = vmatmul.mubr.f32.gmra.mrb[0].mxu0 %v7582
        %v7947 = vpop.f32.mrb[0].mxu0
        %v7948 = vadd.f32 %v7371, %v7947
        %v7949 = vpop.f32.mrb[0].mxu0
        %7950 = vmatprep.mubr.f32.mxu0 0.0
        %7951 = vmatmul.mubr.f32.gmra.mrb[0].mxu0 %v7585
        %v7952 = vpop.f32.mrb[0].mxu0
        %v7953 = vadd.f32 %v7376, %v7952
        %v7954 = vpop.f32.mrb[0].mxu0
        %7955 = vmatprep.mubr.f32.mxu0 0.0
        %7956 = vmatmul.mubr.f32.gmra.mrb[0].mxu0 %v7588
        %v7957 = vpop.f32.mrb[0].mxu0
        %v7958 = vadd.f32 %v7381, %v7957
        %v7959 = vpop.f32.mrb[0].mxu0
        %7960 = vmatprep.mubr.f32.mxu0 0.0
        %7961 = vmatmul.mubr.f32.gmra.mrb[0].mxu0 %v7591
        %v7962 = vpop.f32.mrb[0].mxu0
        %v7963 = vadd.f32 %v7386, %v7962
        %v7964 = vpop.f32.mrb[0].mxu0
        %7965 = vmatprep.mubr.f32.mxu0 0.0
        %7966 = vmatmul.mubr.f32.gmra.mrb[0].mxu0 %v7594
        %v7967 = vpop.f32.mrb[0].mxu0
        %v7968 = vadd.f32 %v7391, %v7967
        %v7969 = vpop.f32.mrb[0].mxu0
        %7970 = vmatprep.mubr.f32.mxu0 0.0
        %7971 = vmatmul.mubr.f32.gmra.mrb[0].mxu0 %v7597
        %v7972 = vpop.f32.mrb[0].mxu0
        %v7973 = vadd.f32 %v7396, %v7972
        %v7974 = vpop.f32.mrb[0].mxu0
        %7975 = vmatprep.mubr.f32.mxu0 0.0
        %7976 = vmatmul.mubr.f32.gmra.mrb[0].mxu0 %v7600
        %v7977 = vpop.f32.mrb[0].mxu0
        %v7978 = vadd.f32 %v7401, %v7977
        %v7979 = vpop.f32.mrb[0].mxu0
        %7980 = vmatprep.mubr.f32.mxu0 0.0
        %7981 = vmatmul.mubr.f32.gmra.mrb[0].mxu0 %v7603
        %v7982 = vpop.f32.mrb[0].mxu0
        %v7983 = vadd.f32 %v7406, %v7982
        %v7984 = vpop.f32.mrb[0].mxu0
        %7985 = vmatprep.mubr.f32.mxu0 0.0
        %7986 = vmatmul.mubr.f32.gmra.mrb[0].mxu0 %v7606
        %v7987 = vpop.f32.mrb[0].mxu0
        %v7988 = vadd.f32 %v7411, %v7987
        %v7989 = vpop.f32.mrb[0].mxu0
        %7990 = vmatprep.mubr.f32.mxu0 0.0
        %7991 = vmatmul.mubr.f32.gmra.mrb[0].mxu0 %v7609
        %v7992 = vpop.f32.mrb[0].mxu0
        %v7993 = vadd.f32 %v7416, %v7992
        %v7994 = vpop.f32.mrb[0].mxu0
        %7995 = vdwg.mxu0
        %v7996 = vld [vmem:[%s17] sm:$0xff]
        %v7997 = vld [vmem:[%s17 + $0x8] sm:$0xff]
        %v7998 = vld [vmem:[%s17 + $0x10] sm:$0xff]
        %v7999 = vld [vmem:[%s17 + $0x18] sm:$0xff]
        %v8001 = vsel %vm4352, %v6770, 0
        %v8004 = vsel %vm4352, %v6771, 0
        %v8007 = vsel %vm4352, %v6772, 0
        %v8010 = vsel %vm4352, %v6773, 0
        %v8013 = vsel %vm4352, %v6774, 0
        %v8016 = vsel %vm4352, %v6775, 0
        %v8019 = vsel %vm4352, %v6776, 0
        %v8022 = vsel %vm4352, %v6777, 0
        %v8025 = vsel %vm4352, %v6778, 0
        %v8028 = vsel %vm4352, %v6779, 0
        %v8031 = vsel %vm4352, %v6780, 0
        %v8034 = vsel %vm4352, %v6781, 0
        %v8037 = vsel %vm4352, %v6782, 0
        %v8040 = vsel %vm4352, %v6783, 0
        %v8043 = vsel %vm4352, %v6784, 0
        %v8046 = vsel %vm4352, %v6785, 0
        %v8049 = vsel %vm4352, %v6786, 0
        %v8052 = vsel %vm4352, %v6787, 0
        %v8055 = vsel %vm4352, %v6788, 0
        %v8058 = vsel %vm4352, %v6789, 0
        %v8061 = vsel %vm4352, %v6790, 0
        %v8064 = vsel %vm4352, %v6791, 0
        %v8067 = vsel %vm4352, %v6792, 0
        %v8070 = vsel %vm4352, %v6793, 0
        %v8073 = vsel %vm4352, %v6794, 0
        %v8076 = vsel %vm4352, %v6795, 0
        %v8079 = vsel %vm4352, %v6796, 0
        %v8082 = vsel %vm4352, %v6797, 0
        %v8085 = vsel %vm4352, %v6798, 0
        %v8088 = vsel %vm4352, %v6799, 0
        %v8091 = vsel %vm4352, %v6800, 0
        %v8094 = vsel %vm4352, %v6801, 0
        %v8097 = vsel %vm4352, %v6802, 0
        %v8100 = vsel %vm4352, %v6803, 0
        %v8103 = vsel %vm4352, %v6804, 0
        %v8106 = vsel %vm4352, %v6805, 0
        %v8109 = vsel %vm4352, %v6806, 0
        %v8112 = vsel %vm4352, %v6807, 0
        %v8115 = vsel %vm4352, %v6808, 0
        %v8118 = vsel %vm4352, %v6809, 0
        %v8121 = vsel %vm4352, %v6810, 0
        %v8124 = vsel %vm4352, %v6811, 0
        %v8127 = vsel %vm4352, %v6812, 0
        %v8130 = vsel %vm4352, %v6813, 0
        %v8133 = vsel %vm4352, %v6814, 0
        %v8136 = vsel %vm4352, %v6815, 0
        %v8139 = vsel %vm4352, %v6816, 0
        %v8142 = vsel %vm4352, %v6817, 0
        %v8145 = vsel %vm4352, %v6818, 0
        %v8148 = vsel %vm4352, %v6819, 0
        %v8151 = vsel %vm4352, %v6820, 0
        %v8154 = vsel %vm4352, %v6821, 0
        %v8157 = vsel %vm4352, %v6822, 0
        %v8160 = vsel %vm4352, %v6823, 0
        %v8163 = vsel %vm4352, %v6824, 0
        %v8166 = vsel %vm4352, %v6825, 0
        %v8169 = vsel %vm4352, %v6826, 0
        %v8172 = vsel %vm4352, %v6827, 0
        %v8175 = vsel %vm4352, %v6828, 0
        %v8178 = vsel %vm4352, %v6829, 0
        %v8181 = vsel %vm4352, %v6830, 0
        %v8184 = vsel %vm4352, %v6831, 0
        %v8187 = vsel %vm4352, %v6832, 0
        %v8190 = vsel %vm4352, %v6833, 0
        %8192 = vmatprep.subr.mxu0 0.0
        %8193 = vmatpush1.msra.mxu0 %v7996
        %8194 = vmatprep.subr.mxu0 0.0
        %8195 = vmatpush1.msra.mxu0 %v7997
        %8196 = vmatprep.subr.mxu0 0.0
        %8197 = vmatpush1.msra.mxu0 %v7998
        %8198 = vmatprep.subr.mxu0 0.0
        %8199 = vmatpush1.msra.mxu0 %v7999
        %8200 = vmatprep.subr.mxu0 0.0
        %8201 = vmatpush1.msra.mxu0 0.0
        %8202 = vmatprep.subr.mxu0 0.0
        %8203 = vmatpush1.msra.mxu0 0.0
        %8204 = vmatprep.subr.mxu0 0.0
        %8205 = vmatpush1.msra.mxu0 0.0
        %8206 = vmatprep.subr.mxu0 0.0
        %8207 = vmatpush1.msra.mxu0 0.0
        %8208 = vmatprep.subr.mxu0 0.0
        %8209 = vmatpush1.msra.mxu0 0.0
        %8210 = vmatprep.subr.mxu0 0.0
        %8211 = vmatpush1.msra.mxu0 0.0
        %8212 = vmatprep.subr.mxu0 0.0
        %8213 = vmatpush1.msra.mxu0 0.0
        %8214 = vmatprep.subr.mxu0 0.0
        %8215 = vmatpush1.msra.mxu0 0.0
        %8216 = vmatprep.subr.mxu0 0.0
        %8217 = vmatpush1.msra.mxu0 0.0
        %8218 = vmatprep.subr.mxu0 0.0
        %8219 = vmatpush1.msra.mxu0 0.0
        %8220 = vmatprep.subr.mxu0 0.0
        %8221 = vmatpush1.msra.mxu0 0.0
        %8222 = vmatprep.subr.mxu0 0.0
        %8223 = vmatpush1.msra.mxu0 0.0
        %8224 = vmatprep.subr.mxu0 0.0
        %8225 = vmatpush1.msra.mxu0 0.0
        %8226 = vmatprep.subr.mxu0 0.0
        %8227 = vmatpush1.msra.mxu0 0.0
        %8228 = vmatprep.subr.mxu0 0.0
        %8229 = vmatpush1.msra.mxu0 0.0
        %8230 = vmatprep.subr.mxu0 0.0
        %8231 = vmatpush1.msra.mxu0 0.0
        %8232 = vmatprep.subr.mxu0 0.0
        %8233 = vmatpush1.msra.mxu0 0.0
        %8234 = vmatprep.subr.mxu0 0.0
        %8235 = vmatpush1.msra.mxu0 0.0
        %8236 = vmatprep.subr.mxu0 0.0
        %8237 = vmatpush1.msra.mxu0 0.0
        %8238 = vmatprep.subr.mxu0 0.0
        %8239 = vmatpush1.msra.mxu0 0.0
        %8240 = vmatprep.subr.mxu0 0.0
        %8241 = vmatpush1.msra.mxu0 0.0
        %8242 = vmatprep.subr.mxu0 0.0
        %8243 = vmatpush1.msra.mxu0 0.0
        %8244 = vmatprep.subr.mxu0 0.0
        %8245 = vmatpush1.msra.mxu0 0.0
        %8246 = vmatprep.subr.mxu0 0.0
        %8247 = vmatpush1.msra.mxu0 0.0
        %8248 = vmatprep.subr.mxu0 0.0
        %8249 = vmatpush1.msra.mxu0 0.0
        %8250 = vmatprep.subr.mxu0 0.0
        %8251 = vmatpush1.msra.mxu0 0.0
        %8252 = vmatprep.subr.mxu0 0.0
        %8253 = vmatpush1.msra.mxu0 0.0
        %8254 = vmatprep.subr.mxu0 0.0
        %8255 = vmatpush1.msra.mxu0 0.0
        %8256 = vmatprep.mubr.f32.mxu0 0.0
        %8257 = vmatmul.mubr.f32.gmra.mrb[0].mxu0 %v8001
        %v8258 = vpop.f32.mrb[0].mxu0
        %v8259 = vadd.f32 0.0, %v8258
        %v8260 = vpop.f32.mrb[0].mxu0
        %8261 = vmatprep.mubr.f32.mxu0 0.0
        %8262 = vmatmul.mubr.f32.gmra.mrb[0].mxu0 %v8004
        %v8263 = vpop.f32.mrb[0].mxu0
        %v8264 = vadd.f32 0.0, %v8263
        %v8265 = vpop.f32.mrb[0].mxu0
        %8266 = vmatprep.mubr.f32.mxu0 0.0
        %8267 = vmatmul.mubr.f32.gmra.mrb[0].mxu0 %v8007
        %v8268 = vpop.f32.mrb[0].mxu0
        %v8269 = vadd.f32 0.0, %v8268
        %v8270 = vpop.f32.mrb[0].mxu0
        %8271 = vmatprep.mubr.f32.mxu0 0.0
        %8272 = vmatmul.mubr.f32.gmra.mrb[0].mxu0 %v8010
        %v8273 = vpop.f32.mrb[0].mxu0
        %v8274 = vadd.f32 0.0, %v8273
        %v8275 = vpop.f32.mrb[0].mxu0
        %8276 = vmatprep.mubr.f32.mxu0 0.0
        %8277 = vmatmul.mubr.f32.gmra.mrb[0].mxu0 %v8013
        %v8278 = vpop.f32.mrb[0].mxu0
        %v8279 = vadd.f32 0.0, %v8278
        %v8280 = vpop.f32.mrb[0].mxu0
        %8281 = vmatprep.mubr.f32.mxu0 0.0
        %8282 = vmatmul.mubr.f32.gmra.mrb[0].mxu0 %v8016
        %v8283 = vpop.f32.mrb[0].mxu0
        %v8284 = vadd.f32 0.0, %v8283
        %v8285 = vpop.f32.mrb[0].mxu0
        %8286 = vmatprep.mubr.f32.mxu0 0.0
        %8287 = vmatmul.mubr.f32.gmra.mrb[0].mxu0 %v8019
        %v8288 = vpop.f32.mrb[0].mxu0
        %v8289 = vadd.f32 0.0, %v8288
        %v8290 = vpop.f32.mrb[0].mxu0
        %8291 = vmatprep.mubr.f32.mxu0 0.0
        %8292 = vmatmul.mubr.f32.gmra.mrb[0].mxu0 %v8022
        %v8293 = vpop.f32.mrb[0].mxu0
        %v8294 = vadd.f32 0.0, %v8293
        %v8295 = vpop.f32.mrb[0].mxu0
        %8296 = vmatprep.mubr.f32.mxu0 0.0
        %8297 = vmatmul.mubr.f32.gmra.mrb[0].mxu0 %v8025
        %v8298 = vpop.f32.mrb[0].mxu0
        %v8299 = vadd.f32 0.0, %v8298
        %v8300 = vpop.f32.mrb[0].mxu0
        %8301 = vmatprep.mubr.f32.mxu0 0.0
        %8302 = vmatmul.mubr.f32.gmra.mrb[0].mxu0 %v8028
        %v8303 = vpop.f32.mrb[0].mxu0
        %v8304 = vadd.f32 0.0, %v8303
        %v8305 = vpop.f32.mrb[0].mxu0
        %8306 = vmatprep.mubr.f32.mxu0 0.0
        %8307 = vmatmul.mubr.f32.gmra.mrb[0].mxu0 %v8031
        %v8308 = vpop.f32.mrb[0].mxu0
        %v8309 = vadd.f32 0.0, %v8308
        %v8310 = vpop.f32.mrb[0].mxu0
        %8311 = vmatprep.mubr.f32.mxu0 0.0
        %8312 = vmatmul.mubr.f32.gmra.mrb[0].mxu0 %v8034
        %v8313 = vpop.f32.mrb[0].mxu0
        %v8314 = vadd.f32 0.0, %v8313
        %v8315 = vpop.f32.mrb[0].mxu0
        %8316 = vmatprep.mubr.f32.mxu0 0.0
        %8317 = vmatmul.mubr.f32.gmra.mrb[0].mxu0 %v8037
        %v8318 = vpop.f32.mrb[0].mxu0
        %v8319 = vadd.f32 0.0, %v8318
        %v8320 = vpop.f32.mrb[0].mxu0
        %8321 = vmatprep.mubr.f32.mxu0 0.0
        %8322 = vmatmul.mubr.f32.gmra.mrb[0].mxu0 %v8040
        %v8323 = vpop.f32.mrb[0].mxu0
        %v8324 = vadd.f32 0.0, %v8323
        %v8325 = vpop.f32.mrb[0].mxu0
        %8326 = vmatprep.mubr.f32.mxu0 0.0
        %8327 = vmatmul.mubr.f32.gmra.mrb[0].mxu0 %v8043
        %v8328 = vpop.f32.mrb[0].mxu0
        %v8329 = vadd.f32 0.0, %v8328
        %v8330 = vpop.f32.mrb[0].mxu0
        %8331 = vmatprep.mubr.f32.mxu0 0.0
        %8332 = vmatmul.mubr.f32.gmra.mrb[0].mxu0 %v8046
        %v8333 = vpop.f32.mrb[0].mxu0
        %v8334 = vadd.f32 0.0, %v8333
        %v8335 = vpop.f32.mrb[0].mxu0
        %8336 = vmatprep.mubr.f32.mxu0 0.0
        %8337 = vmatmul.mubr.f32.gmra.mrb[0].mxu0 %v8049
        %v8338 = vpop.f32.mrb[0].mxu0
        %v8339 = vadd.f32 0.0, %v8338
        %v8340 = vpop.f32.mrb[0].mxu0
        %8341 = vmatprep.mubr.f32.mxu0 0.0
        %8342 = vmatmul.mubr.f32.gmra.mrb[0].mxu0 %v8052
        %v8343 = vpop.f32.mrb[0].mxu0
        %v8344 = vadd.f32 0.0, %v8343
        %v8345 = vpop.f32.mrb[0].mxu0
        %8346 = vmatprep.mubr.f32.mxu0 0.0
        %8347 = vmatmul.mubr.f32.gmra.mrb[0].mxu0 %v8055
        %v8348 = vpop.f32.mrb[0].mxu0
        %v8349 = vadd.f32 0.0, %v8348
        %v8350 = vpop.f32.mrb[0].mxu0
        %8351 = vmatprep.mubr.f32.mxu0 0.0
        %8352 = vmatmul.mubr.f32.gmra.mrb[0].mxu0 %v8058
        %v8353 = vpop.f32.mrb[0].mxu0
        %v8354 = vadd.f32 0.0, %v8353
        %v8355 = vpop.f32.mrb[0].mxu0
        %8356 = vmatprep.mubr.f32.mxu0 0.0
        %8357 = vmatmul.mubr.f32.gmra.mrb[0].mxu0 %v8061
        %v8358 = vpop.f32.mrb[0].mxu0
        %v8359 = vadd.f32 0.0, %v8358
        %v8360 = vpop.f32.mrb[0].mxu0
        %8361 = vmatprep.mubr.f32.mxu0 0.0
        %8362 = vmatmul.mubr.f32.gmra.mrb[0].mxu0 %v8064
        %v8363 = vpop.f32.mrb[0].mxu0
        %v8364 = vadd.f32 0.0, %v8363
        %v8365 = vpop.f32.mrb[0].mxu0
        %8366 = vmatprep.mubr.f32.mxu0 0.0
        %8367 = vmatmul.mubr.f32.gmra.mrb[0].mxu0 %v8067
        %v8368 = vpop.f32.mrb[0].mxu0
        %v8369 = vadd.f32 0.0, %v8368
        %v8370 = vpop.f32.mrb[0].mxu0
        %8371 = vmatprep.mubr.f32.mxu0 0.0
        %8372 = vmatmul.mubr.f32.gmra.mrb[0].mxu0 %v8070
        %v8373 = vpop.f32.mrb[0].mxu0
        %v8374 = vadd.f32 0.0, %v8373
        %v8375 = vpop.f32.mrb[0].mxu0
        %8376 = vmatprep.mubr.f32.mxu0 0.0
        %8377 = vmatmul.mubr.f32.gmra.mrb[0].mxu0 %v8073
        %v8378 = vpop.f32.mrb[0].mxu0
        %v8379 = vadd.f32 0.0, %v8378
        %v8380 = vpop.f32.mrb[0].mxu0
        %8381 = vmatprep.mubr.f32.mxu0 0.0
        %8382 = vmatmul.mubr.f32.gmra.mrb[0].mxu0 %v8076
        %v8383 = vpop.f32.mrb[0].mxu0
        %v8384 = vadd.f32 0.0, %v8383
        %v8385 = vpop.f32.mrb[0].mxu0
        %8386 = vmatprep.mubr.f32.mxu0 0.0
        %8387 = vmatmul.mubr.f32.gmra.mrb[0].mxu0 %v8079
        %v8388 = vpop.f32.mrb[0].mxu0
        %v8389 = vadd.f32 0.0, %v8388
        %v8390 = vpop.f32.mrb[0].mxu0
        %8391 = vmatprep.mubr.f32.mxu0 0.0
        %8392 = vmatmul.mubr.f32.gmra.mrb[0].mxu0 %v8082
        %v8393 = vpop.f32.mrb[0].mxu0
        %v8394 = vadd.f32 0.0, %v8393
        %v8395 = vpop.f32.mrb[0].mxu0
        %8396 = vmatprep.mubr.f32.mxu0 0.0
        %8397 = vmatmul.mubr.f32.gmra.mrb[0].mxu0 %v8085
        %v8398 = vpop.f32.mrb[0].mxu0
        %v8399 = vadd.f32 0.0, %v8398
        %v8400 = vpop.f32.mrb[0].mxu0
        %8401 = vmatprep.mubr.f32.mxu0 0.0
        %8402 = vmatmul.mubr.f32.gmra.mrb[0].mxu0 %v8088
        %v8403 = vpop.f32.mrb[0].mxu0
        %v8404 = vadd.f32 0.0, %v8403
        %v8405 = vpop.f32.mrb[0].mxu0
        %8406 = vmatprep.mubr.f32.mxu0 0.0
        %8407 = vmatmul.mubr.f32.gmra.mrb[0].mxu0 %v8091
        %v8408 = vpop.f32.mrb[0].mxu0
        %v8409 = vadd.f32 0.0, %v8408
        %v8410 = vpop.f32.mrb[0].mxu0
        %8411 = vmatprep.mubr.f32.mxu0 0.0
        %8412 = vmatmul.mubr.f32.gmra.mrb[0].mxu0 %v8094
        %v8413 = vpop.f32.mrb[0].mxu0
        %v8414 = vadd.f32 0.0, %v8413
        %v8415 = vpop.f32.mrb[0].mxu0
        %8416 = vmatprep.mubr.f32.mxu0 0.0
        %8417 = vmatmul.mubr.f32.gmra.mrb[0].mxu0 %v8097
        %v8418 = vpop.f32.mrb[0].mxu0
        %v8419 = vadd.f32 0.0, %v8418
        %v8420 = vpop.f32.mrb[0].mxu0
        %8421 = vmatprep.mubr.f32.mxu0 0.0
        %8422 = vmatmul.mubr.f32.gmra.mrb[0].mxu0 %v8100
        %v8423 = vpop.f32.mrb[0].mxu0
        %v8424 = vadd.f32 0.0, %v8423
        %v8425 = vpop.f32.mrb[0].mxu0
        %8426 = vmatprep.mubr.f32.mxu0 0.0
        %8427 = vmatmul.mubr.f32.gmra.mrb[0].mxu0 %v8103
        %v8428 = vpop.f32.mrb[0].mxu0
        %v8429 = vadd.f32 0.0, %v8428
        %v8430 = vpop.f32.mrb[0].mxu0
        %8431 = vmatprep.mubr.f32.mxu0 0.0
        %8432 = vmatmul.mubr.f32.gmra.mrb[0].mxu0 %v8106
        %v8433 = vpop.f32.mrb[0].mxu0
        %v8434 = vadd.f32 0.0, %v8433
        %v8435 = vpop.f32.mrb[0].mxu0
        %8436 = vmatprep.mubr.f32.mxu0 0.0
        %8437 = vmatmul.mubr.f32.gmra.mrb[0].mxu0 %v8109
        %v8438 = vpop.f32.mrb[0].mxu0
        %v8439 = vadd.f32 0.0, %v8438
        %v8440 = vpop.f32.mrb[0].mxu0
        %8441 = vmatprep.mubr.f32.mxu0 0.0
        %8442 = vmatmul.mubr.f32.gmra.mrb[0].mxu0 %v8112
        %v8443 = vpop.f32.mrb[0].mxu0
        %v8444 = vadd.f32 0.0, %v8443
        %v8445 = vpop.f32.mrb[0].mxu0
        %8446 = vmatprep.mubr.f32.mxu0 0.0
        %8447 = vmatmul.mubr.f32.gmra.mrb[0].mxu0 %v8115
        %v8448 = vpop.f32.mrb[0].mxu0
        %v8449 = vadd.f32 0.0, %v8448
        %v8450 = vpop.f32.mrb[0].mxu0
        %8451 = vmatprep.mubr.f32.mxu0 0.0
        %8452 = vmatmul.mubr.f32.gmra.mrb[0].mxu0 %v8118
        %v8453 = vpop.f32.mrb[0].mxu0
        %v8454 = vadd.f32 0.0, %v8453
        %v8455 = vpop.f32.mrb[0].mxu0
        %8456 = vmatprep.mubr.f32.mxu0 0.0
        %8457 = vmatmul.mubr.f32.gmra.mrb[0].mxu0 %v8121
        %v8458 = vpop.f32.mrb[0].mxu0
        %v8459 = vadd.f32 0.0, %v8458
        %v8460 = vpop.f32.mrb[0].mxu0
        %8461 = vmatprep.mubr.f32.mxu0 0.0
        %8462 = vmatmul.mubr.f32.gmra.mrb[0].mxu0 %v8124
        %v8463 = vpop.f32.mrb[0].mxu0
        %v8464 = vadd.f32 0.0, %v8463
        %v8465 = vpop.f32.mrb[0].mxu0
        %8466 = vmatprep.mubr.f32.mxu0 0.0
        %8467 = vmatmul.mubr.f32.gmra.mrb[0].mxu0 %v8127
        %v8468 = vpop.f32.mrb[0].mxu0
        %v8469 = vadd.f32 0.0, %v8468
        %v8470 = vpop.f32.mrb[0].mxu0
        %8471 = vmatprep.mubr.f32.mxu0 0.0
        %8472 = vmatmul.mubr.f32.gmra.mrb[0].mxu0 %v8130
        %v8473 = vpop.f32.mrb[0].mxu0
        %v8474 = vadd.f32 0.0, %v8473
        %v8475 = vpop.f32.mrb[0].mxu0
        %8476 = vmatprep.mubr.f32.mxu0 0.0
        %8477 = vmatmul.mubr.f32.gmra.mrb[0].mxu0 %v8133
        %v8478 = vpop.f32.mrb[0].mxu0
        %v8479 = vadd.f32 0.0, %v8478
        %v8480 = vpop.f32.mrb[0].mxu0
        %8481 = vmatprep.mubr.f32.mxu0 0.0
        %8482 = vmatmul.mubr.f32.gmra.mrb[0].mxu0 %v8136
        %v8483 = vpop.f32.mrb[0].mxu0
        %v8484 = vadd.f32 0.0, %v8483
        %v8485 = vpop.f32.mrb[0].mxu0
        %8486 = vmatprep.mubr.f32.mxu0 0.0
        %8487 = vmatmul.mubr.f32.gmra.mrb[0].mxu0 %v8139
        %v8488 = vpop.f32.mrb[0].mxu0
        %v8489 = vadd.f32 0.0, %v8488
        %v8490 = vpop.f32.mrb[0].mxu0
        %8491 = vmatprep.mubr.f32.mxu0 0.0
        %8492 = vmatmul.mubr.f32.gmra.mrb[0].mxu0 %v8142
        %v8493 = vpop.f32.mrb[0].mxu0
        %v8494 = vadd.f32 0.0, %v8493
        %v8495 = vpop.f32.mrb[0].mxu0
        %8496 = vmatprep.mubr.f32.mxu0 0.0
        %8497 = vmatmul.mubr.f32.gmra.mrb[0].mxu0 %v8145
        %v8498 = vpop.f32.mrb[0].mxu0
        %v8499 = vadd.f32 0.0, %v8498
        %v8500 = vpop.f32.mrb[0].mxu0
        %8501 = vmatprep.mubr.f32.mxu0 0.0
        %8502 = vmatmul.mubr.f32.gmra.mrb[0].mxu0 %v8148
        %v8503 = vpop.f32.mrb[0].mxu0
        %v8504 = vadd.f32 0.0, %v8503
        %v8505 = vpop.f32.mrb[0].mxu0
        %8506 = vmatprep.mubr.f32.mxu0 0.0
        %8507 = vmatmul.mubr.f32.gmra.mrb[0].mxu0 %v8151
        %v8508 = vpop.f32.mrb[0].mxu0
        %v8509 = vadd.f32 0.0, %v8508
        %v8510 = vpop.f32.mrb[0].mxu0
        %8511 = vmatprep.mubr.f32.mxu0 0.0
        %8512 = vmatmul.mubr.f32.gmra.mrb[0].mxu0 %v8154
        %v8513 = vpop.f32.mrb[0].mxu0
        %v8514 = vadd.f32 0.0, %v8513
        %v8515 = vpop.f32.mrb[0].mxu0
        %8516 = vmatprep.mubr.f32.mxu0 0.0
        %8517 = vmatmul.mubr.f32.gmra.mrb[0].mxu0 %v8157
        %v8518 = vpop.f32.mrb[0].mxu0
        %v8519 = vadd.f32 0.0, %v8518
        %v8520 = vpop.f32.mrb[0].mxu0
        %8521 = vmatprep.mubr.f32.mxu0 0.0
        %8522 = vmatmul.mubr.f32.gmra.mrb[0].mxu0 %v8160
        %v8523 = vpop.f32.mrb[0].mxu0
        %v8524 = vadd.f32 0.0, %v8523
        %v8525 = vpop.f32.mrb[0].mxu0
        %8526 = vmatprep.mubr.f32.mxu0 0.0
        %8527 = vmatmul.mubr.f32.gmra.mrb[0].mxu0 %v8163
        %v8528 = vpop.f32.mrb[0].mxu0
        %v8529 = vadd.f32 0.0, %v8528
        %v8530 = vpop.f32.mrb[0].mxu0
        %8531 = vmatprep.mubr.f32.mxu0 0.0
        %8532 = vmatmul.mubr.f32.gmra.mrb[0].mxu0 %v8166
        %v8533 = vpop.f32.mrb[0].mxu0
        %v8534 = vadd.f32 0.0, %v8533
        %v8535 = vpop.f32.mrb[0].mxu0
        %8536 = vmatprep.mubr.f32.mxu0 0.0
        %8537 = vmatmul.mubr.f32.gmra.mrb[0].mxu0 %v8169
        %v8538 = vpop.f32.mrb[0].mxu0
        %v8539 = vadd.f32 0.0, %v8538
        %v8540 = vpop.f32.mrb[0].mxu0
        %8541 = vmatprep.mubr.f32.mxu0 0.0
        %8542 = vmatmul.mubr.f32.gmra.mrb[0].mxu0 %v8172
        %v8543 = vpop.f32.mrb[0].mxu0
        %v8544 = vadd.f32 0.0, %v8543
        %v8545 = vpop.f32.mrb[0].mxu0
        %8546 = vmatprep.mubr.f32.mxu0 0.0
        %8547 = vmatmul.mubr.f32.gmra.mrb[0].mxu0 %v8175
        %v8548 = vpop.f32.mrb[0].mxu0
        %v8549 = vadd.f32 0.0, %v8548
        %v8550 = vpop.f32.mrb[0].mxu0
        %8551 = vmatprep.mubr.f32.mxu0 0.0
        %8552 = vmatmul.mubr.f32.gmra.mrb[0].mxu0 %v8178
        %v8553 = vpop.f32.mrb[0].mxu0
        %v8554 = vadd.f32 0.0, %v8553
        %v8555 = vpop.f32.mrb[0].mxu0
        %8556 = vmatprep.mubr.f32.mxu0 0.0
        %8557 = vmatmul.mubr.f32.gmra.mrb[0].mxu0 %v8181
        %v8558 = vpop.f32.mrb[0].mxu0
        %v8559 = vadd.f32 0.0, %v8558
        %v8560 = vpop.f32.mrb[0].mxu0
        %8561 = vmatprep.mubr.f32.mxu0 0.0
        %8562 = vmatmul.mubr.f32.gmra.mrb[0].mxu0 %v8184
        %v8563 = vpop.f32.mrb[0].mxu0
        %v8564 = vadd.f32 0.0, %v8563
        %v8565 = vpop.f32.mrb[0].mxu0
        %8566 = vmatprep.mubr.f32.mxu0 0.0
        %8567 = vmatmul.mubr.f32.gmra.mrb[0].mxu0 %v8187
        %v8568 = vpop.f32.mrb[0].mxu0
        %v8569 = vadd.f32 0.0, %v8568
        %v8570 = vpop.f32.mrb[0].mxu0
        %8571 = vmatprep.mubr.f32.mxu0 0.0
        %8572 = vmatmul.mubr.f32.gmra.mrb[0].mxu0 %v8190
        %v8573 = vpop.f32.mrb[0].mxu0
        %v8574 = vadd.f32 0.0, %v8573
        %v8575 = vpop.f32.mrb[0].mxu0
        %8576 = vdwg.mxu0
        %v8577 = vadd.f32 %v7678, %v8259
        %v8578 = vadd.f32 %v7683, %v8264
        %v8579 = vadd.f32 %v7688, %v8269
        %v8580 = vadd.f32 %v7693, %v8274
        %v8581 = vadd.f32 %v7698, %v8279
        %v8582 = vadd.f32 %v7703, %v8284
        %v8583 = vadd.f32 %v7708, %v8289
        %v8584 = vadd.f32 %v7713, %v8294
        %v8585 = vadd.f32 %v7718, %v8299
        %v8586 = vadd.f32 %v7723, %v8304
        %v8587 = vadd.f32 %v7728, %v8309
        %v8588 = vadd.f32 %v7733, %v8314
        %v8589 = vadd.f32 %v7738, %v8319
        %v8590 = vadd.f32 %v7743, %v8324
        %v8591 = vadd.f32 %v7748, %v8329
        %v8592 = vadd.f32 %v7753, %v8334
        %v8593 = vadd.f32 %v7758, %v8339
        %v8594 = vadd.f32 %v7763, %v8344
        %v8595 = vadd.f32 %v7768, %v8349
        %v8596 = vadd.f32 %v7773, %v8354
        %v8597 = vadd.f32 %v7778, %v8359
        %v8598 = vadd.f32 %v7783, %v8364
        %v8599 = vadd.f32 %v7788, %v8369
        %v8600 = vadd.f32 %v7793, %v8374
        %v8601 = vadd.f32 %v7798, %v8379
        %v8602 = vadd.f32 %v7803, %v8384
        %v8603 = vadd.f32 %v7808, %v8389
        %v8604 = vadd.f32 %v7813, %v8394
        %v8605 = vadd.f32 %v7818, %v8399
        %v8606 = vadd.f32 %v7823, %v8404
        %v8607 = vadd.f32 %v7828, %v8409
        %v8608 = vadd.f32 %v7833, %v8414
        %v8609 = vadd.f32 %v7838, %v8419
        %v8610 = vadd.f32 %v7843, %v8424
        %v8611 = vadd.f32 %v7848, %v8429
        %v8612 = vadd.f32 %v7853, %v8434
        %v8613 = vadd.f32 %v7858, %v8439
        %v8614 = vadd.f32 %v7863, %v8444
        %v8615 = vadd.f32 %v7868, %v8449
        %v8616 = vadd.f32 %v7873, %v8454
        %v8617 = vadd.f32 %v7878, %v8459
        %v8618 = vadd.f32 %v7883, %v8464
        %v8619 = vadd.f32 %v7888, %v8469
        %v8620 = vadd.f32 %v7893, %v8474
        %v8621 = vadd.f32 %v7898, %v8479
        %v8622 = vadd.f32 %v7903, %v8484
        %v8623 = vadd.f32 %v7908, %v8489
        %v8624 = vadd.f32 %v7913, %v8494
        %v8625 = vadd.f32 %v7918, %v8499
        %v8626 = vadd.f32 %v7923, %v8504
        %v8627 = vadd.f32 %v7928, %v8509
        %v8628 = vadd.f32 %v7933, %v8514
        %v8629 = vadd.f32 %v7938, %v8519
        %v8630 = vadd.f32 %v7943, %v8524
        %v8631 = vadd.f32 %v7948, %v8529
        %v8632 = vadd.f32 %v7953, %v8534
        %v8633 = vadd.f32 %v7958, %v8539
        %v8634 = vadd.f32 %v7963, %v8544
        %v8635 = vadd.f32 %v7968, %v8549
        %v8636 = vadd.f32 %v7973, %v8554
        %v8637 = vadd.f32 %v7978, %v8559
        %v8638 = vadd.f32 %v7983, %v8564
        %v8639 = vadd.f32 %v7988, %v8569
        %v8640 = vadd.f32 %v7993, %v8574
        %v8641 = vld [vmem:[%s18] sm:$0x1]
        %v8643 = vlaneseq
        %v8644 = vshrl.u32 %v8643, 7
        %v8645 = vsub.s32 0, %v8644
        %v8646 = vrot.slane %v8641, %v8645
        %v8648 = vadd.f32 %v8577, %v8646
        %v8649 = vadd.f32 %v8578, %v8646
        %v8650 = vadd.f32 %v8579, %v8646
        %v8651 = vadd.f32 %v8580, %v8646
        %v8652 = vadd.f32 %v8581, %v8646
        %v8653 = vadd.f32 %v8582, %v8646
        %v8654 = vadd.f32 %v8583, %v8646
        %v8655 = vadd.f32 %v8584, %v8646
        %v8656 = vadd.f32 %v8585, %v8646
        %v8657 = vadd.f32 %v8586, %v8646
        %v8658 = vadd.f32 %v8587, %v8646
        %v8659 = vadd.f32 %v8588, %v8646
        %v8660 = vadd.f32 %v8589, %v8646
        %v8661 = vadd.f32 %v8590, %v8646
        %v8662 = vadd.f32 %v8591, %v8646
        %v8663 = vadd.f32 %v8592, %v8646
        %v8664 = vadd.f32 %v8593, %v8646
        %v8665 = vadd.f32 %v8594, %v8646
        %v8666 = vadd.f32 %v8595, %v8646
        %v8667 = vadd.f32 %v8596, %v8646
        %v8668 = vadd.f32 %v8597, %v8646
        %v8669 = vadd.f32 %v8598, %v8646
        %v8670 = vadd.f32 %v8599, %v8646
        %v8671 = vadd.f32 %v8600, %v8646
        %v8672 = vadd.f32 %v8601, %v8646
        %v8673 = vadd.f32 %v8602, %v8646
        %v8674 = vadd.f32 %v8603, %v8646
        %v8675 = vadd.f32 %v8604, %v8646
        %v8676 = vadd.f32 %v8605, %v8646
        %v8677 = vadd.f32 %v8606, %v8646
        %v8678 = vadd.f32 %v8607, %v8646
        %v8679 = vadd.f32 %v8608, %v8646
        %v8680 = vadd.f32 %v8609, %v8646
        %v8681 = vadd.f32 %v8610, %v8646
        %v8682 = vadd.f32 %v8611, %v8646
        %v8683 = vadd.f32 %v8612, %v8646
        %v8684 = vadd.f32 %v8613, %v8646
        %v8685 = vadd.f32 %v8614, %v8646
        %v8686 = vadd.f32 %v8615, %v8646
        %v8687 = vadd.f32 %v8616, %v8646
        %v8688 = vadd.f32 %v8617, %v8646
        %v8689 = vadd.f32 %v8618, %v8646
        %v8690 = vadd.f32 %v8619, %v8646
        %v8691 = vadd.f32 %v8620, %v8646
        %v8692 = vadd.f32 %v8621, %v8646
        %v8693 = vadd.f32 %v8622, %v8646
        %v8694 = vadd.f32 %v8623, %v8646
        %v8695 = vadd.f32 %v8624, %v8646
        %v8696 = vadd.f32 %v8625, %v8646
        %v8697 = vadd.f32 %v8626, %v8646
        %v8698 = vadd.f32 %v8627, %v8646
        %v8699 = vadd.f32 %v8628, %v8646
        %v8700 = vadd.f32 %v8629, %v8646
        %v8701 = vadd.f32 %v8630, %v8646
        %v8702 = vadd.f32 %v8631, %v8646
        %v8703 = vadd.f32 %v8632, %v8646
        %v8704 = vadd.f32 %v8633, %v8646
        %v8705 = vadd.f32 %v8634, %v8646
        %v8706 = vadd.f32 %v8635, %v8646
        %v8707 = vadd.f32 %v8636, %v8646
        %v8708 = vadd.f32 %v8637, %v8646
        %v8709 = vadd.f32 %v8638, %v8646
        %v8710 = vadd.f32 %v8639, %v8646
        %v8711 = vadd.f32 %v8640, %v8646
        %v8712 = vmax.f32 %v8648, 0.0
        %v8713 = vmax.f32 %v8649, 0.0
        %v8714 = vmax.f32 %v8650, 0.0
        %v8715 = vmax.f32 %v8651, 0.0
        %v8716 = vmax.f32 %v8652, 0.0
        %v8717 = vmax.f32 %v8653, 0.0
        %v8718 = vmax.f32 %v8654, 0.0
        %v8719 = vmax.f32 %v8655, 0.0
        %v8720 = vmax.f32 %v8656, 0.0
        %v8721 = vmax.f32 %v8657, 0.0
        %v8722 = vmax.f32 %v8658, 0.0
        %v8723 = vmax.f32 %v8659, 0.0
        %v8724 = vmax.f32 %v8660, 0.0
        %v8725 = vmax.f32 %v8661, 0.0
        %v8726 = vmax.f32 %v8662, 0.0
        %v8727 = vmax.f32 %v8663, 0.0
        %v8728 = vmax.f32 %v8664, 0.0
        %v8729 = vmax.f32 %v8665, 0.0
        %v8730 = vmax.f32 %v8666, 0.0
        %v8731 = vmax.f32 %v8667, 0.0
        %v8732 = vmax.f32 %v8668, 0.0
        %v8733 = vmax.f32 %v8669, 0.0
        %v8734 = vmax.f32 %v8670, 0.0
        %v8735 = vmax.f32 %v8671, 0.0
        %v8736 = vmax.f32 %v8672, 0.0
        %v8737 = vmax.f32 %v8673, 0.0
        %v8738 = vmax.f32 %v8674, 0.0
        %v8739 = vmax.f32 %v8675, 0.0
        %v8740 = vmax.f32 %v8676, 0.0
        %v8741 = vmax.f32 %v8677, 0.0
        %v8742 = vmax.f32 %v8678, 0.0
        %v8743 = vmax.f32 %v8679, 0.0
        %v8744 = vmax.f32 %v8680, 0.0
        %v8745 = vmax.f32 %v8681, 0.0
        %v8746 = vmax.f32 %v8682, 0.0
        %v8747 = vmax.f32 %v8683, 0.0
        %v8748 = vmax.f32 %v8684, 0.0
        %v8749 = vmax.f32 %v8685, 0.0
        %v8750 = vmax.f32 %v8686, 0.0
        %v8751 = vmax.f32 %v8687, 0.0
        %v8752 = vmax.f32 %v8688, 0.0
        %v8753 = vmax.f32 %v8689, 0.0
        %v8754 = vmax.f32 %v8690, 0.0
        %v8755 = vmax.f32 %v8691, 0.0
        %v8756 = vmax.f32 %v8692, 0.0
        %v8757 = vmax.f32 %v8693, 0.0
        %v8758 = vmax.f32 %v8694, 0.0
        %v8759 = vmax.f32 %v8695, 0.0
        %v8760 = vmax.f32 %v8696, 0.0
        %v8761 = vmax.f32 %v8697, 0.0
        %v8762 = vmax.f32 %v8698, 0.0
        %v8763 = vmax.f32 %v8699, 0.0
        %v8764 = vmax.f32 %v8700, 0.0
        %v8765 = vmax.f32 %v8701, 0.0
        %v8766 = vmax.f32 %v8702, 0.0
        %v8767 = vmax.f32 %v8703, 0.0
        %v8768 = vmax.f32 %v8704, 0.0
        %v8769 = vmax.f32 %v8705, 0.0
        %v8770 = vmax.f32 %v8706, 0.0
        %v8771 = vmax.f32 %v8707, 0.0
        %v8772 = vmax.f32 %v8708, 0.0
        %v8773 = vmax.f32 %v8709, 0.0
        %v8774 = vmax.f32 %v8710, 0.0
        %v8775 = vmax.f32 %v8711, 0.0
        %v8776 = vld [vmem:[%s19] sm:$0xff]
        %v8777 = vld [vmem:[%s19 + $0x8] sm:$0xff]
        %v8778 = vld [vmem:[%s19 + $0x10] sm:$0xff]
        %v8779 = vld [vmem:[%s19 + $0x18] sm:$0xff]
        %v8780 = vld [vmem:[%s20] sm:$0x1]
        %v8782 = vlaneseq
        %v8783 = vshrl.u32 %v8782, 7
        %v8784 = vsub.s32 0, %v8783
        %v8785 = vrot.slane %v8780, %v8784
        %v8788 = vsel %vm4352, %v8712, 0
        %v8791 = vsel %vm4352, %v8713, 0
        %v8794 = vsel %vm4352, %v8714, 0
        %v8797 = vsel %vm4352, %v8715, 0
        %v8800 = vsel %vm4352, %v8716, 0
        %v8803 = vsel %vm4352, %v8717, 0
        %v8806 = vsel %vm4352, %v8718, 0
        %v8809 = vsel %vm4352, %v8719, 0
        %v8812 = vsel %vm4352, %v8720, 0
        %v8815 = vsel %vm4352, %v8721, 0
        %v8818 = vsel %vm4352, %v8722, 0
        %v8821 = vsel %vm4352, %v8723, 0
        %v8824 = vsel %vm4352, %v8724, 0
        %v8827 = vsel %vm4352, %v8725, 0
        %v8830 = vsel %vm4352, %v8726, 0
        %v8833 = vsel %vm4352, %v8727, 0
        %v8836 = vsel %vm4352, %v8728, 0
        %v8839 = vsel %vm4352, %v8729, 0
        %v8842 = vsel %vm4352, %v8730, 0
        %v8845 = vsel %vm4352, %v8731, 0
        %v8848 = vsel %vm4352, %v8732, 0
        %v8851 = vsel %vm4352, %v8733, 0
        %v8854 = vsel %vm4352, %v8734, 0
        %v8857 = vsel %vm4352, %v8735, 0
        %v8860 = vsel %vm4352, %v8736, 0
        %v8863 = vsel %vm4352, %v8737, 0
        %v8866 = vsel %vm4352, %v8738, 0
        %v8869 = vsel %vm4352, %v8739, 0
        %v8872 = vsel %vm4352, %v8740, 0
        %v8875 = vsel %vm4352, %v8741, 0
        %v8878 = vsel %vm4352, %v8742, 0
        %v8881 = vsel %vm4352, %v8743, 0
        %v8884 = vsel %vm4352, %v8744, 0
        %v8887 = vsel %vm4352, %v8745, 0
        %v8890 = vsel %vm4352, %v8746, 0
        %v8893 = vsel %vm4352, %v8747, 0
        %v8896 = vsel %vm4352, %v8748, 0
        %v8899 = vsel %vm4352, %v8749, 0
        %v8902 = vsel %vm4352, %v8750, 0
        %v8905 = vsel %vm4352, %v8751, 0
        %v8908 = vsel %vm4352, %v8752, 0
        %v8911 = vsel %vm4352, %v8753, 0
        %v8914 = vsel %vm4352, %v8754, 0
        %v8917 = vsel %vm4352, %v8755, 0
        %v8920 = vsel %vm4352, %v8756, 0
        %v8923 = vsel %vm4352, %v8757, 0
        %v8926 = vsel %vm4352, %v8758, 0
        %v8929 = vsel %vm4352, %v8759, 0
        %v8932 = vsel %vm4352, %v8760, 0
        %v8935 = vsel %vm4352, %v8761, 0
        %v8938 = vsel %vm4352, %v8762, 0
        %v8941 = vsel %vm4352, %v8763, 0
        %v8944 = vsel %vm4352, %v8764, 0
        %v8947 = vsel %vm4352, %v8765, 0
        %v8950 = vsel %vm4352, %v8766, 0
        %v8953 = vsel %vm4352, %v8767, 0
        %v8956 = vsel %vm4352, %v8768, 0
        %v8959 = vsel %vm4352, %v8769, 0
        %v8962 = vsel %vm4352, %v8770, 0
        %v8965 = vsel %vm4352, %v8771, 0
        %v8968 = vsel %vm4352, %v8772, 0
        %v8971 = vsel %vm4352, %v8773, 0
        %v8974 = vsel %vm4352, %v8774, 0
        %v8977 = vsel %vm4352, %v8775, 0
        %8979 = vmatprep.subr.mxu0 0.0
        %8980 = vmatpush1.msra.mxu0 %v8776
        %8981 = vmatprep.subr.mxu0 0.0
        %8982 = vmatpush1.msra.mxu0 %v8777
        %8983 = vmatprep.subr.mxu0 0.0
        %8984 = vmatpush1.msra.mxu0 %v8778
        %8985 = vmatprep.subr.mxu0 0.0
        %8986 = vmatpush1.msra.mxu0 %v8779
        %8987 = vmatprep.subr.mxu0 0.0
        %8988 = vmatpush1.msra.mxu0 0.0
        %8989 = vmatprep.subr.mxu0 0.0
        %8990 = vmatpush1.msra.mxu0 0.0
        %8991 = vmatprep.subr.mxu0 0.0
        %8992 = vmatpush1.msra.mxu0 0.0
        %8993 = vmatprep.subr.mxu0 0.0
        %8994 = vmatpush1.msra.mxu0 0.0
        %8995 = vmatprep.subr.mxu0 0.0
        %8996 = vmatpush1.msra.mxu0 0.0
        %8997 = vmatprep.subr.mxu0 0.0
        %8998 = vmatpush1.msra.mxu0 0.0
        %8999 = vmatprep.subr.mxu0 0.0
        %9000 = vmatpush1.msra.mxu0 0.0
        %9001 = vmatprep.subr.mxu0 0.0
        %9002 = vmatpush1.msra.mxu0 0.0
        %9003 = vmatprep.subr.mxu0 0.0
        %9004 = vmatpush1.msra.mxu0 0.0
        %9005 = vmatprep.subr.mxu0 0.0
        %9006 = vmatpush1.msra.mxu0 0.0
        %9007 = vmatprep.subr.mxu0 0.0
        %9008 = vmatpush1.msra.mxu0 0.0
        %9009 = vmatprep.subr.mxu0 0.0
        %9010 = vmatpush1.msra.mxu0 0.0
        %9011 = vmatprep.subr.mxu0 0.0
        %9012 = vmatpush1.msra.mxu0 0.0
        %9013 = vmatprep.subr.mxu0 0.0
        %9014 = vmatpush1.msra.mxu0 0.0
        %9015 = vmatprep.subr.mxu0 0.0
        %9016 = vmatpush1.msra.mxu0 0.0
        %9017 = vmatprep.subr.mxu0 0.0
        %9018 = vmatpush1.msra.mxu0 0.0
        %9019 = vmatprep.subr.mxu0 0.0
        %9020 = vmatpush1.msra.mxu0 0.0
        %9021 = vmatprep.subr.mxu0 0.0
        %9022 = vmatpush1.msra.mxu0 0.0
        %9023 = vmatprep.subr.mxu0 0.0
        %9024 = vmatpush1.msra.mxu0 0.0
        %9025 = vmatprep.subr.mxu0 0.0
        %9026 = vmatpush1.msra.mxu0 0.0
        %9027 = vmatprep.subr.mxu0 0.0
        %9028 = vmatpush1.msra.mxu0 0.0
        %9029 = vmatprep.subr.mxu0 0.0
        %9030 = vmatpush1.msra.mxu0 0.0
        %9031 = vmatprep.subr.mxu0 0.0
        %9032 = vmatpush1.msra.mxu0 0.0
        %9033 = vmatprep.subr.mxu0 0.0
        %9034 = vmatpush1.msra.mxu0 0.0
        %9035 = vmatprep.subr.mxu0 0.0
        %9036 = vmatpush1.msra.mxu0 0.0
        %9037 = vmatprep.subr.mxu0 0.0
        %9038 = vmatpush1.msra.mxu0 0.0
        %9039 = vmatprep.subr.mxu0 0.0
        %9040 = vmatpush1.msra.mxu0 0.0
        %9041 = vmatprep.subr.mxu0 0.0
        %9042 = vmatpush1.msra.mxu0 0.0
        %9043 = vmatprep.mubr.f32.mxu0 0.0
        %9044 = vmatmul.mubr.f32.gmra.mrb[0].mxu0 %v8788
        %v9045 = vpop.f32.mrb[0].mxu0
        %v9046 = vadd.f32 %v8785, %v9045
        %v9047 = vpop.f32.mrb[0].mxu0
        %9048 = vmatprep.mubr.f32.mxu0 0.0
        %9049 = vmatmul.mubr.f32.gmra.mrb[0].mxu0 %v8791
        %v9050 = vpop.f32.mrb[0].mxu0
        %v9051 = vadd.f32 %v8785, %v9050
        %v9052 = vpop.f32.mrb[0].mxu0
        %9053 = vmatprep.mubr.f32.mxu0 0.0
        %9054 = vmatmul.mubr.f32.gmra.mrb[0].mxu0 %v8794
        %v9055 = vpop.f32.mrb[0].mxu0
        %v9056 = vadd.f32 %v8785, %v9055
        %v9057 = vpop.f32.mrb[0].mxu0
        %9058 = vmatprep.mubr.f32.mxu0 0.0
        %9059 = vmatmul.mubr.f32.gmra.mrb[0].mxu0 %v8797
        %v9060 = vpop.f32.mrb[0].mxu0
        %v9061 = vadd.f32 %v8785, %v9060
        %v9062 = vpop.f32.mrb[0].mxu0
        %9063 = vmatprep.mubr.f32.mxu0 0.0
        %9064 = vmatmul.mubr.f32.gmra.mrb[0].mxu0 %v8800
        %v9065 = vpop.f32.mrb[0].mxu0
        %v9066 = vadd.f32 %v8785, %v9065
        %v9067 = vpop.f32.mrb[0].mxu0
        %9068 = vmatprep.mubr.f32.mxu0 0.0
        %9069 = vmatmul.mubr.f32.gmra.mrb[0].mxu0 %v8803
        %v9070 = vpop.f32.mrb[0].mxu0
        %v9071 = vadd.f32 %v8785, %v9070
        %v9072 = vpop.f32.mrb[0].mxu0
        %9073 = vmatprep.mubr.f32.mxu0 0.0
        %9074 = vmatmul.mubr.f32.gmra.mrb[0].mxu0 %v8806
        %v9075 = vpop.f32.mrb[0].mxu0
        %v9076 = vadd.f32 %v8785, %v9075
        %v9077 = vpop.f32.mrb[0].mxu0
        %9078 = vmatprep.mubr.f32.mxu0 0.0
        %9079 = vmatmul.mubr.f32.gmra.mrb[0].mxu0 %v8809
        %v9080 = vpop.f32.mrb[0].mxu0
        %v9081 = vadd.f32 %v8785, %v9080
        %v9082 = vpop.f32.mrb[0].mxu0
        %9083 = vmatprep.mubr.f32.mxu0 0.0
        %9084 = vmatmul.mubr.f32.gmra.mrb[0].mxu0 %v8812
        %v9085 = vpop.f32.mrb[0].mxu0
        %v9086 = vadd.f32 %v8785, %v9085
        %v9087 = vpop.f32.mrb[0].mxu0
        %9088 = vmatprep.mubr.f32.mxu0 0.0
        %9089 = vmatmul.mubr.f32.gmra.mrb[0].mxu0 %v8815
        %v9090 = vpop.f32.mrb[0].mxu0
        %v9091 = vadd.f32 %v8785, %v9090
        %v9092 = vpop.f32.mrb[0].mxu0
        %9093 = vmatprep.mubr.f32.mxu0 0.0
        %9094 = vmatmul.mubr.f32.gmra.mrb[0].mxu0 %v8818
        %v9095 = vpop.f32.mrb[0].mxu0
        %v9096 = vadd.f32 %v8785, %v9095
        %v9097 = vpop.f32.mrb[0].mxu0
        %9098 = vmatprep.mubr.f32.mxu0 0.0
        %9099 = vmatmul.mubr.f32.gmra.mrb[0].mxu0 %v8821
        %v9100 = vpop.f32.mrb[0].mxu0
        %v9101 = vadd.f32 %v8785, %v9100
        %v9102 = vpop.f32.mrb[0].mxu0
        %9103 = vmatprep.mubr.f32.mxu0 0.0
        %9104 = vmatmul.mubr.f32.gmra.mrb[0].mxu0 %v8824
        %v9105 = vpop.f32.mrb[0].mxu0
        %v9106 = vadd.f32 %v8785, %v9105
        %v9107 = vpop.f32.mrb[0].mxu0
        %9108 = vmatprep.mubr.f32.mxu0 0.0
        %9109 = vmatmul.mubr.f32.gmra.mrb[0].mxu0 %v8827
        %v9110 = vpop.f32.mrb[0].mxu0
        %v9111 = vadd.f32 %v8785, %v9110
        %v9112 = vpop.f32.mrb[0].mxu0
        %9113 = vmatprep.mubr.f32.mxu0 0.0
        %9114 = vmatmul.mubr.f32.gmra.mrb[0].mxu0 %v8830
        %v9115 = vpop.f32.mrb[0].mxu0
        %v9116 = vadd.f32 %v8785, %v9115
        %v9117 = vpop.f32.mrb[0].mxu0
        %9118 = vmatprep.mubr.f32.mxu0 0.0
        %9119 = vmatmul.mubr.f32.gmra.mrb[0].mxu0 %v8833
        %v9120 = vpop.f32.mrb[0].mxu0
        %v9121 = vadd.f32 %v8785, %v9120
        %v9122 = vpop.f32.mrb[0].mxu0
        %9123 = vmatprep.mubr.f32.mxu0 0.0
        %9124 = vmatmul.mubr.f32.gmra.mrb[0].mxu0 %v8836
        %v9125 = vpop.f32.mrb[0].mxu0
        %v9126 = vadd.f32 %v8785, %v9125
        %v9127 = vpop.f32.mrb[0].mxu0
        %9128 = vmatprep.mubr.f32.mxu0 0.0
        %9129 = vmatmul.mubr.f32.gmra.mrb[0].mxu0 %v8839
        %v9130 = vpop.f32.mrb[0].mxu0
        %v9131 = vadd.f32 %v8785, %v9130
        %v9132 = vpop.f32.mrb[0].mxu0
        %9133 = vmatprep.mubr.f32.mxu0 0.0
        %9134 = vmatmul.mubr.f32.gmra.mrb[0].mxu0 %v8842
        %v9135 = vpop.f32.mrb[0].mxu0
        %v9136 = vadd.f32 %v8785, %v9135
        %v9137 = vpop.f32.mrb[0].mxu0
        %9138 = vmatprep.mubr.f32.mxu0 0.0
        %9139 = vmatmul.mubr.f32.gmra.mrb[0].mxu0 %v8845
        %v9140 = vpop.f32.mrb[0].mxu0
        %v9141 = vadd.f32 %v8785, %v9140
        %v9142 = vpop.f32.mrb[0].mxu0
        %9143 = vmatprep.mubr.f32.mxu0 0.0
        %9144 = vmatmul.mubr.f32.gmra.mrb[0].mxu0 %v8848
        %v9145 = vpop.f32.mrb[0].mxu0
        %v9146 = vadd.f32 %v8785, %v9145
        %v9147 = vpop.f32.mrb[0].mxu0
        %9148 = vmatprep.mubr.f32.mxu0 0.0
        %9149 = vmatmul.mubr.f32.gmra.mrb[0].mxu0 %v8851
        %v9150 = vpop.f32.mrb[0].mxu0
        %v9151 = vadd.f32 %v8785, %v9150
        %v9152 = vpop.f32.mrb[0].mxu0
        %9153 = vmatprep.mubr.f32.mxu0 0.0
        %9154 = vmatmul.mubr.f32.gmra.mrb[0].mxu0 %v8854
        %v9155 = vpop.f32.mrb[0].mxu0
        %v9156 = vadd.f32 %v8785, %v9155
        %v9157 = vpop.f32.mrb[0].mxu0
        %9158 = vmatprep.mubr.f32.mxu0 0.0
        %9159 = vmatmul.mubr.f32.gmra.mrb[0].mxu0 %v8857
        %v9160 = vpop.f32.mrb[0].mxu0
        %v9161 = vadd.f32 %v8785, %v9160
        %v9162 = vpop.f32.mrb[0].mxu0
        %9163 = vmatprep.mubr.f32.mxu0 0.0
        %9164 = vmatmul.mubr.f32.gmra.mrb[0].mxu0 %v8860
        %v9165 = vpop.f32.mrb[0].mxu0
        %v9166 = vadd.f32 %v8785, %v9165
        %v9167 = vpop.f32.mrb[0].mxu0
        %9168 = vmatprep.mubr.f32.mxu0 0.0
        %9169 = vmatmul.mubr.f32.gmra.mrb[0].mxu0 %v8863
        %v9170 = vpop.f32.mrb[0].mxu0
        %v9171 = vadd.f32 %v8785, %v9170
        %v9172 = vpop.f32.mrb[0].mxu0
        %9173 = vmatprep.mubr.f32.mxu0 0.0
        %9174 = vmatmul.mubr.f32.gmra.mrb[0].mxu0 %v8866
        %v9175 = vpop.f32.mrb[0].mxu0
        %v9176 = vadd.f32 %v8785, %v9175
        %v9177 = vpop.f32.mrb[0].mxu0
        %9178 = vmatprep.mubr.f32.mxu0 0.0
        %9179 = vmatmul.mubr.f32.gmra.mrb[0].mxu0 %v8869
        %v9180 = vpop.f32.mrb[0].mxu0
        %v9181 = vadd.f32 %v8785, %v9180
        %v9182 = vpop.f32.mrb[0].mxu0
        %9183 = vmatprep.mubr.f32.mxu0 0.0
        %9184 = vmatmul.mubr.f32.gmra.mrb[0].mxu0 %v8872
        %v9185 = vpop.f32.mrb[0].mxu0
        %v9186 = vadd.f32 %v8785, %v9185
        %v9187 = vpop.f32.mrb[0].mxu0
        %9188 = vmatprep.mubr.f32.mxu0 0.0
        %9189 = vmatmul.mubr.f32.gmra.mrb[0].mxu0 %v8875
        %v9190 = vpop.f32.mrb[0].mxu0
        %v9191 = vadd.f32 %v8785, %v9190
        %v9192 = vpop.f32.mrb[0].mxu0
        %9193 = vmatprep.mubr.f32.mxu0 0.0
        %9194 = vmatmul.mubr.f32.gmra.mrb[0].mxu0 %v8878
        %v9195 = vpop.f32.mrb[0].mxu0
        %v9196 = vadd.f32 %v8785, %v9195
        %v9197 = vpop.f32.mrb[0].mxu0
        %9198 = vmatprep.mubr.f32.mxu0 0.0
        %9199 = vmatmul.mubr.f32.gmra.mrb[0].mxu0 %v8881
        %v9200 = vpop.f32.mrb[0].mxu0
        %v9201 = vadd.f32 %v8785, %v9200
        %v9202 = vpop.f32.mrb[0].mxu0
        %9203 = vmatprep.mubr.f32.mxu0 0.0
        %9204 = vmatmul.mubr.f32.gmra.mrb[0].mxu0 %v8884
        %v9205 = vpop.f32.mrb[0].mxu0
        %v9206 = vadd.f32 %v8785, %v9205
        %v9207 = vpop.f32.mrb[0].mxu0
        %9208 = vmatprep.mubr.f32.mxu0 0.0
        %9209 = vmatmul.mubr.f32.gmra.mrb[0].mxu0 %v8887
        %v9210 = vpop.f32.mrb[0].mxu0
        %v9211 = vadd.f32 %v8785, %v9210
        %v9212 = vpop.f32.mrb[0].mxu0
        %9213 = vmatprep.mubr.f32.mxu0 0.0
        %9214 = vmatmul.mubr.f32.gmra.mrb[0].mxu0 %v8890
        %v9215 = vpop.f32.mrb[0].mxu0
        %v9216 = vadd.f32 %v8785, %v9215
        %v9217 = vpop.f32.mrb[0].mxu0
        %9218 = vmatprep.mubr.f32.mxu0 0.0
        %9219 = vmatmul.mubr.f32.gmra.mrb[0].mxu0 %v8893
        %v9220 = vpop.f32.mrb[0].mxu0
        %v9221 = vadd.f32 %v8785, %v9220
        %v9222 = vpop.f32.mrb[0].mxu0
        %9223 = vmatprep.mubr.f32.mxu0 0.0
        %9224 = vmatmul.mubr.f32.gmra.mrb[0].mxu0 %v8896
        %v9225 = vpop.f32.mrb[0].mxu0
        %v9226 = vadd.f32 %v8785, %v9225
        %v9227 = vpop.f32.mrb[0].mxu0
        %9228 = vmatprep.mubr.f32.mxu0 0.0
        %9229 = vmatmul.mubr.f32.gmra.mrb[0].mxu0 %v8899
        %v9230 = vpop.f32.mrb[0].mxu0
        %v9231 = vadd.f32 %v8785, %v9230
        %v9232 = vpop.f32.mrb[0].mxu0
        %9233 = vmatprep.mubr.f32.mxu0 0.0
        %9234 = vmatmul.mubr.f32.gmra.mrb[0].mxu0 %v8902
        %v9235 = vpop.f32.mrb[0].mxu0
        %v9236 = vadd.f32 %v8785, %v9235
        %v9237 = vpop.f32.mrb[0].mxu0
        %9238 = vmatprep.mubr.f32.mxu0 0.0
        %9239 = vmatmul.mubr.f32.gmra.mrb[0].mxu0 %v8905
        %v9240 = vpop.f32.mrb[0].mxu0
        %v9241 = vadd.f32 %v8785, %v9240
        %v9242 = vpop.f32.mrb[0].mxu0
        %9243 = vmatprep.mubr.f32.mxu0 0.0
        %9244 = vmatmul.mubr.f32.gmra.mrb[0].mxu0 %v8908
        %v9245 = vpop.f32.mrb[0].mxu0
        %v9246 = vadd.f32 %v8785, %v9245
        %v9247 = vpop.f32.mrb[0].mxu0
        %9248 = vmatprep.mubr.f32.mxu0 0.0
        %9249 = vmatmul.mubr.f32.gmra.mrb[0].mxu0 %v8911
        %v9250 = vpop.f32.mrb[0].mxu0
        %v9251 = vadd.f32 %v8785, %v9250
        %v9252 = vpop.f32.mrb[0].mxu0
        %9253 = vmatprep.mubr.f32.mxu0 0.0
        %9254 = vmatmul.mubr.f32.gmra.mrb[0].mxu0 %v8914
        %v9255 = vpop.f32.mrb[0].mxu0
        %v9256 = vadd.f32 %v8785, %v9255
        %v9257 = vpop.f32.mrb[0].mxu0
        %9258 = vmatprep.mubr.f32.mxu0 0.0
        %9259 = vmatmul.mubr.f32.gmra.mrb[0].mxu0 %v8917
        %v9260 = vpop.f32.mrb[0].mxu0
        %v9261 = vadd.f32 %v8785, %v9260
        %v9262 = vpop.f32.mrb[0].mxu0
        %9263 = vmatprep.mubr.f32.mxu0 0.0
        %9264 = vmatmul.mubr.f32.gmra.mrb[0].mxu0 %v8920
        %v9265 = vpop.f32.mrb[0].mxu0
        %v9266 = vadd.f32 %v8785, %v9265
        %v9267 = vpop.f32.mrb[0].mxu0
        %9268 = vmatprep.mubr.f32.mxu0 0.0
        %9269 = vmatmul.mubr.f32.gmra.mrb[0].mxu0 %v8923
        %v9270 = vpop.f32.mrb[0].mxu0
        %v9271 = vadd.f32 %v8785, %v9270
        %v9272 = vpop.f32.mrb[0].mxu0
        %9273 = vmatprep.mubr.f32.mxu0 0.0
        %9274 = vmatmul.mubr.f32.gmra.mrb[0].mxu0 %v8926
        %v9275 = vpop.f32.mrb[0].mxu0
        %v9276 = vadd.f32 %v8785, %v9275
        %v9277 = vpop.f32.mrb[0].mxu0
        %9278 = vmatprep.mubr.f32.mxu0 0.0
        %9279 = vmatmul.mubr.f32.gmra.mrb[0].mxu0 %v8929
        %v9280 = vpop.f32.mrb[0].mxu0
        %v9281 = vadd.f32 %v8785, %v9280
        %v9282 = vpop.f32.mrb[0].mxu0
        %9283 = vmatprep.mubr.f32.mxu0 0.0
        %9284 = vmatmul.mubr.f32.gmra.mrb[0].mxu0 %v8932
        %v9285 = vpop.f32.mrb[0].mxu0
        %v9286 = vadd.f32 %v8785, %v9285
        %v9287 = vpop.f32.mrb[0].mxu0
        %9288 = vmatprep.mubr.f32.mxu0 0.0
        %9289 = vmatmul.mubr.f32.gmra.mrb[0].mxu0 %v8935
        %v9290 = vpop.f32.mrb[0].mxu0
        %v9291 = vadd.f32 %v8785, %v9290
        %v9292 = vpop.f32.mrb[0].mxu0
        %9293 = vmatprep.mubr.f32.mxu0 0.0
        %9294 = vmatmul.mubr.f32.gmra.mrb[0].mxu0 %v8938
        %v9295 = vpop.f32.mrb[0].mxu0
        %v9296 = vadd.f32 %v8785, %v9295
        %v9297 = vpop.f32.mrb[0].mxu0
        %9298 = vmatprep.mubr.f32.mxu0 0.0
        %9299 = vmatmul.mubr.f32.gmra.mrb[0].mxu0 %v8941
        %v9300 = vpop.f32.mrb[0].mxu0
        %v9301 = vadd.f32 %v8785, %v9300
        %v9302 = vpop.f32.mrb[0].mxu0
        %9303 = vmatprep.mubr.f32.mxu0 0.0
        %9304 = vmatmul.mubr.f32.gmra.mrb[0].mxu0 %v8944
        %v9305 = vpop.f32.mrb[0].mxu0
        %v9306 = vadd.f32 %v8785, %v9305
        %v9307 = vpop.f32.mrb[0].mxu0
        %9308 = vmatprep.mubr.f32.mxu0 0.0
        %9309 = vmatmul.mubr.f32.gmra.mrb[0].mxu0 %v8947
        %v9310 = vpop.f32.mrb[0].mxu0
        %v9311 = vadd.f32 %v8785, %v9310
        %v9312 = vpop.f32.mrb[0].mxu0
        %9313 = vmatprep.mubr.f32.mxu0 0.0
        %9314 = vmatmul.mubr.f32.gmra.mrb[0].mxu0 %v8950
        %v9315 = vpop.f32.mrb[0].mxu0
        %v9316 = vadd.f32 %v8785, %v9315
        %v9317 = vpop.f32.mrb[0].mxu0
        %9318 = vmatprep.mubr.f32.mxu0 0.0
        %9319 = vmatmul.mubr.f32.gmra.mrb[0].mxu0 %v8953
        %v9320 = vpop.f32.mrb[0].mxu0
        %v9321 = vadd.f32 %v8785, %v9320
        %v9322 = vpop.f32.mrb[0].mxu0
        %9323 = vmatprep.mubr.f32.mxu0 0.0
        %9324 = vmatmul.mubr.f32.gmra.mrb[0].mxu0 %v8956
        %v9325 = vpop.f32.mrb[0].mxu0
        %v9326 = vadd.f32 %v8785, %v9325
        %v9327 = vpop.f32.mrb[0].mxu0
        %9328 = vmatprep.mubr.f32.mxu0 0.0
        %9329 = vmatmul.mubr.f32.gmra.mrb[0].mxu0 %v8959
        %v9330 = vpop.f32.mrb[0].mxu0
        %v9331 = vadd.f32 %v8785, %v9330
        %v9332 = vpop.f32.mrb[0].mxu0
        %9333 = vmatprep.mubr.f32.mxu0 0.0
        %9334 = vmatmul.mubr.f32.gmra.mrb[0].mxu0 %v8962
        %v9335 = vpop.f32.mrb[0].mxu0
        %v9336 = vadd.f32 %v8785, %v9335
        %v9337 = vpop.f32.mrb[0].mxu0
        %9338 = vmatprep.mubr.f32.mxu0 0.0
        %9339 = vmatmul.mubr.f32.gmra.mrb[0].mxu0 %v8965
        %v9340 = vpop.f32.mrb[0].mxu0
        %v9341 = vadd.f32 %v8785, %v9340
        %v9342 = vpop.f32.mrb[0].mxu0
        %9343 = vmatprep.mubr.f32.mxu0 0.0
        %9344 = vmatmul.mubr.f32.gmra.mrb[0].mxu0 %v8968
        %v9345 = vpop.f32.mrb[0].mxu0
        %v9346 = vadd.f32 %v8785, %v9345
        %v9347 = vpop.f32.mrb[0].mxu0
        %9348 = vmatprep.mubr.f32.mxu0 0.0
        %9349 = vmatmul.mubr.f32.gmra.mrb[0].mxu0 %v8971
        %v9350 = vpop.f32.mrb[0].mxu0
        %v9351 = vadd.f32 %v8785, %v9350
        %v9352 = vpop.f32.mrb[0].mxu0
        %9353 = vmatprep.mubr.f32.mxu0 0.0
        %9354 = vmatmul.mubr.f32.gmra.mrb[0].mxu0 %v8974
        %v9355 = vpop.f32.mrb[0].mxu0
        %v9356 = vadd.f32 %v8785, %v9355
        %v9357 = vpop.f32.mrb[0].mxu0
        %9358 = vmatprep.mubr.f32.mxu0 0.0
        %9359 = vmatmul.mubr.f32.gmra.mrb[0].mxu0 %v8977
        %v9360 = vpop.f32.mrb[0].mxu0
        %v9361 = vadd.f32 %v8785, %v9360
        %v9362 = vpop.f32.mrb[0].mxu0
        %9363 = vdwg.mxu0
        %9364 = vst [vmem:[%s666] sm:$0xff] %v9046
        %9365 = vst [vmem:[%s666 + $0x8] sm:$0xff] %v9051
        %9366 = vst [vmem:[%s666 + $0x10] sm:$0xff] %v9056
        %9367 = vst [vmem:[%s666 + $0x18] sm:$0xff] %v9061
        %9368 = vst [vmem:[%s666 + $0x20] sm:$0xff] %v9066
        %9369 = vst [vmem:[%s666 + $0x28] sm:$0xff] %v9071
        %9370 = vst [vmem:[%s666 + $0x30] sm:$0xff] %v9076
        %9371 = vst [vmem:[%s666 + $0x38] sm:$0xff] %v9081
        %9372 = vst [vmem:[%s666 + $0x40] sm:$0xff] %v9086
        %9373 = vst [vmem:[%s666 + $0x48] sm:$0xff] %v9091
        %9374 = vst [vmem:[%s666 + $0x50] sm:$0xff] %v9096
        %9375 = vst [vmem:[%s666 + $0x58] sm:$0xff] %v9101
        %9376 = vst [vmem:[%s666 + $0x60] sm:$0xff] %v9106
        %9377 = vst [vmem:[%s666 + $0x68] sm:$0xff] %v9111
        %9378 = vst [vmem:[%s666 + $0x70] sm:$0xff] %v9116
        %9379 = vst [vmem:[%s666 + $0x78] sm:$0xff] %v9121
        %9380 = vst [vmem:[%s666 + $0x80] sm:$0xff] %v9126
        %9381 = vst [vmem:[%s666 + $0x88] sm:$0xff] %v9131
        %9382 = vst [vmem:[%s666 + $0x90] sm:$0xff] %v9136
        %9383 = vst [vmem:[%s666 + $0x98] sm:$0xff] %v9141
        %9384 = vst [vmem:[%s666 + $0xa0] sm:$0xff] %v9146
        %9385 = vst [vmem:[%s666 + $0xa8] sm:$0xff] %v9151
        %9386 = vst [vmem:[%s666 + $0xb0] sm:$0xff] %v9156
        %9387 = vst [vmem:[%s666 + $0xb8] sm:$0xff] %v9161
        %9388 = vst [vmem:[%s666 + $0xc0] sm:$0xff] %v9166
        %9389 = vst [vmem:[%s666 + $0xc8] sm:$0xff] %v9171
        %9390 = vst [vmem:[%s666 + $0xd0] sm:$0xff] %v9176
        %9391 = vst [vmem:[%s666 + $0xd8] sm:$0xff] %v9181
        %9392 = vst [vmem:[%s666 + $0xe0] sm:$0xff] %v9186
        %9393 = vst [vmem:[%s666 + $0xe8] sm:$0xff] %v9191
        %9394 = vst [vmem:[%s666 + $0xf0] sm:$0xff] %v9196
        %9395 = vst [vmem:[%s666 + $0xf8] sm:$0xff] %v9201
        %9396 = vst [vmem:[%s666 + $0x100] sm:$0xff] %v9206
        %9397 = vst [vmem:[%s666 + $0x108] sm:$0xff] %v9211
        %9398 = vst [vmem:[%s666 + $0x110] sm:$0xff] %v9216
        %9399 = vst [vmem:[%s666 + $0x118] sm:$0xff] %v9221
        %9400 = vst [vmem:[%s666 + $0x120] sm:$0xff] %v9226
        %9401 = vst [vmem:[%s666 + $0x128] sm:$0xff] %v9231
        %9402 = vst [vmem:[%s666 + $0x130] sm:$0xff] %v9236
        %9403 = vst [vmem:[%s666 + $0x138] sm:$0xff] %v9241
        %9404 = vst [vmem:[%s666 + $0x140] sm:$0xff] %v9246
        %9405 = vst [vmem:[%s666 + $0x148] sm:$0xff] %v9251
        %9406 = vst [vmem:[%s666 + $0x150] sm:$0xff] %v9256
        %9407 = vst [vmem:[%s666 + $0x158] sm:$0xff] %v9261
        %9408 = vst [vmem:[%s666 + $0x160] sm:$0xff] %v9266
        %9409 = vst [vmem:[%s666 + $0x168] sm:$0xff] %v9271
        %9410 = vst [vmem:[%s666 + $0x170] sm:$0xff] %v9276
        %9411 = vst [vmem:[%s666 + $0x178] sm:$0xff] %v9281
        %9412 = vst [vmem:[%s666 + $0x180] sm:$0xff] %v9286
        %9413 = vst [vmem:[%s666 + $0x188] sm:$0xff] %v9291
        %9414 = vst [vmem:[%s666 + $0x190] sm:$0xff] %v9296
        %9415 = vst [vmem:[%s666 + $0x198] sm:$0xff] %v9301
        %9416 = vst [vmem:[%s666 + $0x1a0] sm:$0xff] %v9306
        %9417 = vst [vmem:[%s666 + $0x1a8] sm:$0xff] %v9311
        %9418 = vst [vmem:[%s666 + $0x1b0] sm:$0xff] %v9316
        %9419 = vst [vmem:[%s666 + $0x1b8] sm:$0xff] %v9321
        %9420 = vst [vmem:[%s666 + $0x1c0] sm:$0xff] %v9326
        %9421 = vst [vmem:[%s666 + $0x1c8] sm:$0xff] %v9331
        %9422 = vst [vmem:[%s666 + $0x1d0] sm:$0xff] %v9336
        %9423 = vst [vmem:[%s666 + $0x1d8] sm:$0xff] %v9341
        %9424 = vst [vmem:[%s666 + $0x1e0] sm:$0xff] %v9346
        %9425 = vst [vmem:[%s666 + $0x1e8] sm:$0xff] %v9351
        %9426 = vst [vmem:[%s666 + $0x1f0] sm:$0xff] %v9356
        %9427 = vst [vmem:[%s666 + $0x1f8] sm:$0xff] %v9361
        %s9428 = sand.u32 %s494, 1
        %s9429 = scalar_lea.sflag [#allocation3], %s9428
        %s9430 = sand.u32 %s494, 1
        %s9431 = smul.addr %s9430, 512
        %s9432 = scalar_lea.vmem [#allocation2], %s9431
        // Predicated region
        $region105: #{tpu_custom_call.1} parent=103 // pred_check
          %p9433 = pneg %p504
        $region106: #{tpu_custom_call.1} parent=103 // pred_check_branch
          %9435 = sbr.rel (%p9433) target = $region108
        $region107: #{tpu_custom_call.1} parent=103 // pred_region
          %s9436 = smul.u32 64, %s35
          %s9438 = ssub.s32 8192, 8192
          %9439 = vsyncadd %s9429, %s9438
          %s9440 = smul.addr %s9436, 128
          %s9441 = scalar_lea.hbm %s21, %s9440
          %s9442 = sshll.u32 %s9432, 4
          %s9443 = int_to_ptr.vmem [resolvable:$true] %s9442
          %9448 = dma.vmem_to_hbm [thread:$0]  %s9443, 8192, %s9441, %s9429, 128, 128, 8
        $region108: #{tpu_custom_call.1} parent=103 // pred_fallthru
          _
      $region104: #{tpu_custom_call.1} parent=5 // pred_fallthru
        _
      %p9449 = scmp.le.s32.totalorder 2, %s30
      // Predicated region
      $region109: #{tpu_custom_call.1} parent=5 // pred_check
        %p9450 = pneg %p9449
      $region110: #{tpu_custom_call.1} parent=5 // pred_check_branch
        %9452 = sbr.rel (%p9450) target = $region112
      $region111: #{tpu_custom_call.1} parent=5 // pred_region
        %s9453 = ssub.s32 %s30, 2
        // Predicated region
        $region113: #{tpu_custom_call.1} parent=111 // pred_check
          %p9454 = pneg %p510
        $region114: #{tpu_custom_call.1} parent=111 // pred_check_branch
          %9456 = sbr.rel (%p9454) target = $region116
        $region115: #{tpu_custom_call.1} parent=111 // pred_region
          %s9457 = sand.u32 %s495, 1
          %s9458 = scalar_lea.sflag [#allocation3], %s9457
          %s9459 = sand.u32 %s495, 1
          %s9460 = smul.addr %s9459, 512
          %s9461 = scalar_lea.vmem [#allocation2], %s9460
          %9462 = dma.done %s9458, 8192
        $region116: #{tpu_custom_call.1} parent=111 // pred_fallthru
          _
      $region112: #{tpu_custom_call.1} parent=5 // pred_fallthru
        _
    $region6: #{tpu_custom_call.1} parent=1 // loop_footer
      %s34 = sadd.s32 1, %s30
    $region7: #{tpu_custom_call.1} parent=1 // loop_footer_branch
      %29 = sbr.rel target = $region3
    $region8: #{tpu_custom_call.1} parent=1 // loop_exit
      _
    %9463 = vsyncpa [#allocation3], 1
    %s9464 = scalar_lea.sflag [#allocation3], 1
    %9465 = vsyncpa %s9464, 1

</llo_original>
